<compile_context>
chip_gen: v7x
topology: tpu7x:2x2x1
jax: 0.10.0
libtpu: 0.0.40
codegen_flags: <defaults>
</compile_context>

<pallas_src>
import functools

import jax
import jax.numpy as jnp
from jax.experimental import pallas as pl
from jax.experimental.pallas import tpu as pltpu

NEG_INF = -1e30


# ----------------------------------------------------------------------------
# Fused encoder kernel: conv1 -> relu -> conv2 -> relu -> conv3 -> pool -> MLP
# ----------------------------------------------------------------------------
def _encoder_kernel(x_ref, adj_ref, pool_ref,
                    wl1, bl1, wr1, br1, att1, bias1,
                    wl2, bl2, wr2, br2, att2, bias2,
                    wl3, bl3, wr3, br3, att3, bias3,
                    w1_ref, b1_ref, w2_ref, b2_ref,
                    out_ref, *, heads, out_ch):
    # TODO(synk): at scale, pass adj as int8/bool to cut O(N^2) HBM traffic;
    # at these toy sizes it is ~1 KB so f32 is kept for lowering simplicity.
    adj_mask = adj_ref[...] > 0.0            # (N_dst, N_src), self-loops incl.

    def gatv2_layer(x, wl, bl, wr, br, att, bias, apply_relu):
        # --- hoisted linear transforms: one wide matmul per side ------------
        xb = x.astype(jnp.bfloat16)
        xl_all = jnp.dot(xb, wl[...].astype(jnp.bfloat16),
                         preferred_element_type=jnp.float32) + bl[...]  # (N, H*C)
        xr_all = jnp.dot(xb, wr[...].astype(jnp.bfloat16),
                         preferred_element_type=jnp.float32) + br[...]  # (N, H*C)

        alphas, xls = [], []
        for h in range(heads):               # static unroll over heads
            lo = h * out_ch
            xl = xl_all[:, lo:lo + out_ch]   # source transform  (N, C)
            xr = xr_all[:, lo:lo + out_ch]   # target transform  (N, C)
            # GATv2 logits: e_ij = a_h . LeakyReLU(xr_i + xl_j)
            # TODO(synk): for large N this (N_dst, N_src, C) intermediate must
            # be replaced by a src-tiled online-softmax loop; at N=16 it is
            # only a few KB and lives entirely in vregs/VMEM.
            t = xr[:, None, :] + xl[None, :, :]              # (N_dst, N_src, C)
            t = jnp.where(t > 0, t, 0.2 * t)                 # LeakyReLU(0.2)
            e = jnp.sum(t * att[h][None, None, :], axis=-1)  # (N_dst, N_src)
            e = jnp.where(adj_mask, e, NEG_INF)
            m = jnp.max(e, axis=-1, keepdims=True)
            p = jnp.exp(e - m)
            denom = jnp.sum(p, axis=-1, keepdims=True)       # >= 1 (self-loop)
            alphas.append(p * pl.reciprocal(denom, approx=True))
            xls.append(xl)

        # --- single aggregation matmul over all heads ------------------------
        alpha_cat = jnp.concatenate(alphas, axis=1)          # (N, H*N)
        xl_cat = jnp.concatenate(xls, axis=0)                # (H*N, C)
        acc = jnp.dot(alpha_cat.astype(jnp.bfloat16),
                      xl_cat.astype(jnp.bfloat16),
                      preferred_element_type=jnp.float32)    # (N, C)
        out = acc * (1.0 / heads) + bias[...]                # head mean + bias
        if apply_relu:
            out = jnp.maximum(out, 0.0)
        return out

    h1 = gatv2_layer(x_ref[...], wl1, bl1, wr1, br1, att1, bias1, True)
    h2 = gatv2_layer(h1,        wl2, bl2, wr2, br2, att2, bias2, True)
    h3 = gatv2_layer(h2,        wl3, bl3, wr3, br3, att3, bias3, False)

    # global_mean_pool + 2-layer MLP head (still fused; no HBM round-trip)
    pooled = jnp.dot(pool_ref[...].astype(jnp.bfloat16), h3.astype(jnp.bfloat16),
                     preferred_element_type=jnp.float32)                 # (G, C)
    hid = jnp.dot(pooled.astype(jnp.bfloat16), w1_ref[...].astype(jnp.bfloat16),
                  preferred_element_type=jnp.float32) + b1_ref[...]
    hid = jnp.maximum(hid, 0.0)
    out_ref[...] = (jnp.dot(hid.astype(jnp.bfloat16),
                            w2_ref[...].astype(jnp.bfloat16),
                            preferred_element_type=jnp.float32) + b2_ref[...])


def graph_encoder_forward(x, adj, pool_mat, params, *, heads, out_ch):
    g = pool_mat.shape[0]
    nout = params["w2"].shape[1]
    c1, c2, c3 = params["conv1"], params["conv2"], params["conv3"]
    args = (x, adj, pool_mat,
            c1["wl"], c1["bl"], c1["wr"], c1["br"], c1["att"], c1["bias"],
            c2["wl"], c2["bl"], c2["wr"], c2["br"], c2["att"], c2["bias"],
            c3["wl"], c3["bl"], c3["wr"], c3["br"], c3["att"], c3["bias"],
            params["w1"], params["b1"], params["w2"], params["b2"])
    kern = functools.partial(_encoder_kernel, heads=heads, out_ch=out_ch)
    # Everything fits in VMEM at these sizes (~200 KB of params + activations),
    # so no grid / BlockSpec tiling: whole arrays are resident in VMEM.
    return pl.pallas_call(
        kern,
        out_shape=jax.ShapeDtypeStruct((g, nout), jnp.float32),
        compiler_params=pltpu.CompilerParams(vmem_limit_bytes=32 * 1024 * 1024),
    )(*args)


# ----------------------------------------------------------------------------
# Parameter construction (deterministic, synthetic)
# ----------------------------------------------------------------------------
def make_gat_params(key, in_ch, out_ch, heads):
    ks = jax.random.split(key, 3)
    scale_in = 1.0 / jnp.sqrt(jnp.float32(in_ch))
    return {
        "wl":   jax.random.normal(ks[0], (in_ch, heads * out_ch), jnp.float32) * scale_in,
        "bl":   jnp.zeros((1, heads * out_ch), jnp.float32),
        "wr":   jax.random.normal(ks[1], (in_ch, heads * out_ch), jnp.float32) * scale_in,
        "br":   jnp.zeros((1, heads * out_ch), jnp.float32),
        "att":  jax.random.normal(ks[2], (heads, out_ch), jnp.float32)
                * (1.0 / jnp.sqrt(jnp.float32(out_ch))),
        "bias": jnp.zeros((1, out_ch), jnp.float32),
    }


def make_linear(key, in_f, out_f):
    w = jax.random.normal(key, (in_f, out_f), jnp.float32) / jnp.sqrt(jnp.float32(in_f))
    b = jnp.zeros((1, out_f), jnp.float32)
    return w, b


if __name__ == "__main__":
    # sizes implied by the module (small, synthetic)
    NUM_NODE_FEATURES = 8
    GRAPH_HIDDEN = 32
    NHID = 32
    NOUT = 16
    HEADS = 5
    N_NODES = 16          # 2 graphs x 8 nodes
    N_GRAPHS = 2

    key = jax.random.PRNGKey(0)
    k_x, k_c1, k_c2, k_c3, k_l1, k_l2 = jax.random.split(key, 6)

    # node features
    x = jax.random.normal(k_x, (N_NODES, NUM_NODE_FEATURES), jnp.float32)

    # graph assignment: nodes 0..7 -> graph 0, 8..15 -> graph 1
    batch = jnp.concatenate([jnp.zeros(8, jnp.int32), jnp.ones(8, jnp.int32)])

    # edge_index (PyG convention: row0 = source, row1 = target): a bidirected
    # ring inside each graph.
    srcs, dsts = [], []
    for g in range(N_GRAPHS):
        off = g * 8
        for n in range(8):
            a, b = off + n, off + (n + 1) % 8
            srcs += [a, b]
            dsts += [b, a]
    edge_index = jnp.stack([jnp.array(srcs, jnp.int32),
                            jnp.array(dsts, jnp.int32)])      # (2, E)

    # dense adjacency mask adj[dst, src] = 1, plus self-loops
    adj = jnp.zeros((N_NODES, N_NODES), jnp.float32)
    adj = adj.at[edge_index[1], edge_index[0]].set(1.0)
    adj = jnp.maximum(adj, jnp.eye(N_NODES, dtype=jnp.float32))

    # mean-pool matrix: pool_mat[g, n] = 1/count_g if batch[n] == g else 0
    onehot = (batch[None, :] == jnp.arange(N_GRAPHS)[:, None]).astype(jnp.float32)
    pool_mat = onehot / jnp.sum(onehot, axis=1, keepdims=True)

    w1, b1 = make_linear(k_l1, GRAPH_HIDDEN, NHID)
    w2, b2 = make_linear(k_l2, NHID, NOUT)
    params = {
        "conv1": make_gat_params(k_c1, NUM_NODE_FEATURES, GRAPH_HIDDEN, HEADS),
        "conv2": make_gat_params(k_c2, GRAPH_HIDDEN, GRAPH_HIDDEN, HEADS),
        "conv3": make_gat_params(k_c3, GRAPH_HIDDEN, GRAPH_HIDDEN, HEADS),
        "w1": w1, "b1": b1, "w2": w2, "b2": b2,
    }

    out = graph_encoder_forward(x, adj, pool_mat, params,
                                heads=HEADS, out_ch=GRAPH_HIDDEN)
    out = jax.block_until_ready(out)
    assert out.shape == (N_GRAPHS, NOUT)
    assert jnp.all(jnp.isfinite(out))
    print("KERNEL_OK")
</pallas_src>

<mosaic_0001>
module attributes {stable_mosaic.version = 11 : i64} {
  func.func @_encoder_kernel(%arg0: memref<16x8xf32, #tpu.memory_space<vmem>>, %arg1: memref<16x16xf32, #tpu.memory_space<vmem>>, %arg2: memref<2x16xf32, #tpu.memory_space<vmem>>, %arg3: memref<8x160xf32, #tpu.memory_space<vmem>>, %arg4: memref<1x160xf32, #tpu.memory_space<vmem>>, %arg5: memref<8x160xf32, #tpu.memory_space<vmem>>, %arg6: memref<1x160xf32, #tpu.memory_space<vmem>>, %arg7: memref<5x32xf32, #tpu.memory_space<vmem>>, %arg8: memref<1x32xf32, #tpu.memory_space<vmem>>, %arg9: memref<32x160xf32, #tpu.memory_space<vmem>>, %arg10: memref<1x160xf32, #tpu.memory_space<vmem>>, %arg11: memref<32x160xf32, #tpu.memory_space<vmem>>, %arg12: memref<1x160xf32, #tpu.memory_space<vmem>>, %arg13: memref<5x32xf32, #tpu.memory_space<vmem>>, %arg14: memref<1x32xf32, #tpu.memory_space<vmem>>, %arg15: memref<32x160xf32, #tpu.memory_space<vmem>>, %arg16: memref<1x160xf32, #tpu.memory_space<vmem>>, %arg17: memref<32x160xf32, #tpu.memory_space<vmem>>, %arg18: memref<1x160xf32, #tpu.memory_space<vmem>>, %arg19: memref<5x32xf32, #tpu.memory_space<vmem>>, %arg20: memref<1x32xf32, #tpu.memory_space<vmem>>, %arg21: memref<32x32xf32, #tpu.memory_space<vmem>>, %arg22: memref<1x32xf32, #tpu.memory_space<vmem>>, %arg23: memref<32x16xf32, #tpu.memory_space<vmem>>, %arg24: memref<1x16xf32, #tpu.memory_space<vmem>>, %arg25: memref<2x16xf32, #tpu.memory_space<vmem>>) attributes {dimension_semantics = [], scalar_prefetch = 0 : i64, scratch_operands = 0 : i64, tpu.core_type = #tpu.core_type<tc>} {
    %c0 = arith.constant 0 : index
    %c0_0 = arith.constant 0 : index
    %0 = vector.load %arg1[%c0, %c0_0] : memref<16x16xf32, #tpu.memory_space<vmem>>, vector<16x16xf32>
    %cst = arith.constant 0.000000e+00 : f32
    %1 = vector.broadcast %cst : f32 to vector<16x16xf32>
    %2 = arith.cmpf ogt, %0, %1 : vector<16x16xf32>
    %c0_1 = arith.constant 0 : index
    %c0_2 = arith.constant 0 : index
    %3 = vector.load %arg0[%c0_1, %c0_2] : memref<16x8xf32, #tpu.memory_space<vmem>>, vector<16x8xf32>
    %4 = arith.truncf %3 : vector<16x8xf32> to vector<16x8xbf16>
    %c0_3 = arith.constant 0 : index
    %c0_4 = arith.constant 0 : index
    %5 = vector.load %arg3[%c0_3, %c0_4] : memref<8x160xf32, #tpu.memory_space<vmem>>, vector<8x160xf32>
    %6 = arith.truncf %5 : vector<8x160xf32> to vector<8x160xbf16>
    %cst_5 = arith.constant dense<0.000000e+00> : vector<16x160xf32>
    %7 = tpu.matmul %4, %6, %cst_5 {dimension_numbers = #tpu.dot_dimension_numbers<[1], [0], [0], [1], [0, 0, 1, 1], [], []>} : vector<16x8xbf16>, vector<8x160xbf16>, vector<16x160xf32> -> vector<16x160xf32>
    %c0_6 = arith.constant 0 : index
    %c0_7 = arith.constant 0 : index
    %8 = vector.load %arg4[%c0_6, %c0_7] : memref<1x160xf32, #tpu.memory_space<vmem>>, vector<1x160xf32>
    %9 = vector.broadcast %8 : vector<1x160xf32> to vector<16x160xf32>
    %10 = arith.addf %7, %9 : vector<16x160xf32>
    %c0_8 = arith.constant 0 : index
    %c0_9 = arith.constant 0 : index
    %11 = vector.load %arg5[%c0_8, %c0_9] : memref<8x160xf32, #tpu.memory_space<vmem>>, vector<8x160xf32>
    %12 = arith.truncf %11 : vector<8x160xf32> to vector<8x160xbf16>
    %cst_10 = arith.constant dense<0.000000e+00> : vector<16x160xf32>
    %13 = tpu.matmul %4, %12, %cst_10 {dimension_numbers = #tpu.dot_dimension_numbers<[1], [0], [0], [1], [0, 0, 1, 1], [], []>} : vector<16x8xbf16>, vector<8x160xbf16>, vector<16x160xf32> -> vector<16x160xf32>
    %c0_11 = arith.constant 0 : index
    %c0_12 = arith.constant 0 : index
    %14 = vector.load %arg6[%c0_11, %c0_12] : memref<1x160xf32, #tpu.memory_space<vmem>>, vector<1x160xf32>
    %15 = vector.broadcast %14 : vector<1x160xf32> to vector<16x160xf32>
    %16 = arith.addf %13, %15 : vector<16x160xf32>
    %17 = vector.extract_strided_slice %10 {offsets = [0, 0], sizes = [16, 32], strides = [1, 1]} : vector<16x160xf32> to vector<16x32xf32>
    %18 = vector.extract_strided_slice %16 {offsets = [0, 0], sizes = [16, 32], strides = [1, 1]} : vector<16x160xf32> to vector<16x32xf32>
    %19 = vector.shape_cast %18 : vector<16x32xf32> to vector<16x1x32xf32>
    %20 = vector.shape_cast %17 : vector<16x32xf32> to vector<1x16x32xf32>
    %21 = vector.broadcast %19 : vector<16x1x32xf32> to vector<16x16x32xf32>
    %22 = vector.broadcast %20 : vector<1x16x32xf32> to vector<16x16x32xf32>
    %23 = arith.addf %21, %22 : vector<16x16x32xf32>
    %cst_13 = arith.constant 0.000000e+00 : f32
    %24 = vector.broadcast %cst_13 : f32 to vector<16x16x32xf32>
    %25 = arith.cmpf ogt, %23, %24 : vector<16x16x32xf32>
    %cst_14 = arith.constant 2.000000e-01 : f32
    %26 = vector.broadcast %cst_14 : f32 to vector<16x16x32xf32>
    %27 = arith.mulf %26, %23 : vector<16x16x32xf32>
    %28 = arith.select %25, %23, %27 : vector<16x16x32xi1>, vector<16x16x32xf32>
    %c0_15 = arith.constant 0 : index
    %c0_16 = arith.constant 0 : index
    %29 = vector.load %arg7[%c0_15, %c0_16] : memref<5x32xf32, #tpu.memory_space<vmem>>, vector<1x32xf32>
    %30 = vector.shape_cast %29 : vector<1x32xf32> to vector<32xf32>
    %31 = vector.shape_cast %30 : vector<32xf32> to vector<1x1x32xf32>
    %32 = vector.broadcast %31 : vector<1x1x32xf32> to vector<16x16x32xf32>
    %33 = arith.mulf %28, %32 : vector<16x16x32xf32>
    %cst_17 = arith.constant dense<0.000000e+00> : vector<16x16xf32>
    %34 = vector.multi_reduction <add>, %33, %cst_17 [2] : vector<16x16x32xf32> to vector<16x16xf32>
    %cst_18 = arith.constant -1.000000e+30 : f32
    %35 = vector.broadcast %cst_18 : f32 to vector<16x16xf32>
    %36 = arith.select %2, %34, %35 : vector<16x16xi1>, vector<16x16xf32>
    %cst_19 = arith.constant dense<0xFF800000> : vector<16xf32>
    %37 = vector.multi_reduction <maximumf>, %36, %cst_19 [1] : vector<16x16xf32> to vector<16xf32>
    %38 = vector.shape_cast %37 : vector<16xf32> to vector<16x1xf32>
    %39 = vector.broadcast %38 : vector<16x1xf32> to vector<16x16xf32>
    %40 = arith.subf %36, %39 : vector<16x16xf32>
    %41 = math.exp %40 : vector<16x16xf32>
    %cst_20 = arith.constant dense<0.000000e+00> : vector<16xf32>
    %42 = vector.multi_reduction <add>, %41, %cst_20 [1] : vector<16x16xf32> to vector<16xf32>
    %43 = vector.shape_cast %42 : vector<16xf32> to vector<16x1xf32>
    %44 = tpu.reciprocal %43 {approx = true} : vector<16x1xf32> -> vector<16x1xf32>
    %45 = vector.broadcast %44 : vector<16x1xf32> to vector<16x16xf32>
    %46 = arith.mulf %41, %45 : vector<16x16xf32>
    %47 = vector.extract_strided_slice %10 {offsets = [0, 32], sizes = [16, 32], strides = [1, 1]} : vector<16x160xf32> to vector<16x32xf32>
    %48 = vector.extract_strided_slice %16 {offsets = [0, 32], sizes = [16, 32], strides = [1, 1]} : vector<16x160xf32> to vector<16x32xf32>
    %49 = vector.shape_cast %48 : vector<16x32xf32> to vector<16x1x32xf32>
    %50 = vector.shape_cast %47 : vector<16x32xf32> to vector<1x16x32xf32>
    %51 = vector.broadcast %49 : vector<16x1x32xf32> to vector<16x16x32xf32>
    %52 = vector.broadcast %50 : vector<1x16x32xf32> to vector<16x16x32xf32>
    %53 = arith.addf %51, %52 : vector<16x16x32xf32>
    %cst_21 = arith.constant 0.000000e+00 : f32
    %54 = vector.broadcast %cst_21 : f32 to vector<16x16x32xf32>
    %55 = arith.cmpf ogt, %53, %54 : vector<16x16x32xf32>
    %cst_22 = arith.constant 2.000000e-01 : f32
    %56 = vector.broadcast %cst_22 : f32 to vector<16x16x32xf32>
    %57 = arith.mulf %56, %53 : vector<16x16x32xf32>
    %58 = arith.select %55, %53, %57 : vector<16x16x32xi1>, vector<16x16x32xf32>
    %c1 = arith.constant 1 : index
    %c0_23 = arith.constant 0 : index
    %59 = vector.load %arg7[%c1, %c0_23] : memref<5x32xf32, #tpu.memory_space<vmem>>, vector<1x32xf32>
    %60 = vector.shape_cast %59 : vector<1x32xf32> to vector<32xf32>
    %61 = vector.shape_cast %60 : vector<32xf32> to vector<1x1x32xf32>
    %62 = vector.broadcast %61 : vector<1x1x32xf32> to vector<16x16x32xf32>
    %63 = arith.mulf %58, %62 : vector<16x16x32xf32>
    %cst_24 = arith.constant dense<0.000000e+00> : vector<16x16xf32>
    %64 = vector.multi_reduction <add>, %63, %cst_24 [2] : vector<16x16x32xf32> to vector<16x16xf32>
    %cst_25 = arith.constant -1.000000e+30 : f32
    %65 = vector.broadcast %cst_25 : f32 to vector<16x16xf32>
    %66 = arith.select %2, %64, %65 : vector<16x16xi1>, vector<16x16xf32>
    %cst_26 = arith.constant dense<0xFF800000> : vector<16xf32>
    %67 = vector.multi_reduction <maximumf>, %66, %cst_26 [1] : vector<16x16xf32> to vector<16xf32>
    %68 = vector.shape_cast %67 : vector<16xf32> to vector<16x1xf32>
    %69 = vector.broadcast %68 : vector<16x1xf32> to vector<16x16xf32>
    %70 = arith.subf %66, %69 : vector<16x16xf32>
    %71 = math.exp %70 : vector<16x16xf32>
    %cst_27 = arith.constant dense<0.000000e+00> : vector<16xf32>
    %72 = vector.multi_reduction <add>, %71, %cst_27 [1] : vector<16x16xf32> to vector<16xf32>
    %73 = vector.shape_cast %72 : vector<16xf32> to vector<16x1xf32>
    %74 = tpu.reciprocal %73 {approx = true} : vector<16x1xf32> -> vector<16x1xf32>
    %75 = vector.broadcast %74 : vector<16x1xf32> to vector<16x16xf32>
    %76 = arith.mulf %71, %75 : vector<16x16xf32>
    %77 = vector.extract_strided_slice %10 {offsets = [0, 64], sizes = [16, 32], strides = [1, 1]} : vector<16x160xf32> to vector<16x32xf32>
    %78 = vector.extract_strided_slice %16 {offsets = [0, 64], sizes = [16, 32], strides = [1, 1]} : vector<16x160xf32> to vector<16x32xf32>
    %79 = vector.shape_cast %78 : vector<16x32xf32> to vector<16x1x32xf32>
    %80 = vector.shape_cast %77 : vector<16x32xf32> to vector<1x16x32xf32>
    %81 = vector.broadcast %79 : vector<16x1x32xf32> to vector<16x16x32xf32>
    %82 = vector.broadcast %80 : vector<1x16x32xf32> to vector<16x16x32xf32>
    %83 = arith.addf %81, %82 : vector<16x16x32xf32>
    %cst_28 = arith.constant 0.000000e+00 : f32
    %84 = vector.broadcast %cst_28 : f32 to vector<16x16x32xf32>
    %85 = arith.cmpf ogt, %83, %84 : vector<16x16x32xf32>
    %cst_29 = arith.constant 2.000000e-01 : f32
    %86 = vector.broadcast %cst_29 : f32 to vector<16x16x32xf32>
    %87 = arith.mulf %86, %83 : vector<16x16x32xf32>
    %88 = arith.select %85, %83, %87 : vector<16x16x32xi1>, vector<16x16x32xf32>
    %c2 = arith.constant 2 : index
    %c0_30 = arith.constant 0 : index
    %89 = vector.load %arg7[%c2, %c0_30] : memref<5x32xf32, #tpu.memory_space<vmem>>, vector<1x32xf32>
    %90 = vector.shape_cast %89 : vector<1x32xf32> to vector<32xf32>
    %91 = vector.shape_cast %90 : vector<32xf32> to vector<1x1x32xf32>
    %92 = vector.broadcast %91 : vector<1x1x32xf32> to vector<16x16x32xf32>
    %93 = arith.mulf %88, %92 : vector<16x16x32xf32>
    %cst_31 = arith.constant dense<0.000000e+00> : vector<16x16xf32>
    %94 = vector.multi_reduction <add>, %93, %cst_31 [2] : vector<16x16x32xf32> to vector<16x16xf32>
    %cst_32 = arith.constant -1.000000e+30 : f32
    %95 = vector.broadcast %cst_32 : f32 to vector<16x16xf32>
    %96 = arith.select %2, %94, %95 : vector<16x16xi1>, vector<16x16xf32>
    %cst_33 = arith.constant dense<0xFF800000> : vector<16xf32>
    %97 = vector.multi_reduction <maximumf>, %96, %cst_33 [1] : vector<16x16xf32> to vector<16xf32>
    %98 = vector.shape_cast %97 : vector<16xf32> to vector<16x1xf32>
    %99 = vector.broadcast %98 : vector<16x1xf32> to vector<16x16xf32>
    %100 = arith.subf %96, %99 : vector<16x16xf32>
    %101 = math.exp %100 : vector<16x16xf32>
    %cst_34 = arith.constant dense<0.000000e+00> : vector<16xf32>
    %102 = vector.multi_reduction <add>, %101, %cst_34 [1] : vector<16x16xf32> to vector<16xf32>
    %103 = vector.shape_cast %102 : vector<16xf32> to vector<16x1xf32>
    %104 = tpu.reciprocal %103 {approx = true} : vector<16x1xf32> -> vector<16x1xf32>
    %105 = vector.broadcast %104 : vector<16x1xf32> to vector<16x16xf32>
    %106 = arith.mulf %101, %105 : vector<16x16xf32>
    %107 = vector.extract_strided_slice %10 {offsets = [0, 96], sizes = [16, 32], strides = [1, 1]} : vector<16x160xf32> to vector<16x32xf32>
    %108 = vector.extract_strided_slice %16 {offsets = [0, 96], sizes = [16, 32], strides = [1, 1]} : vector<16x160xf32> to vector<16x32xf32>
    %109 = vector.shape_cast %108 : vector<16x32xf32> to vector<16x1x32xf32>
    %110 = vector.shape_cast %107 : vector<16x32xf32> to vector<1x16x32xf32>
    %111 = vector.broadcast %109 : vector<16x1x32xf32> to vector<16x16x32xf32>
    %112 = vector.broadcast %110 : vector<1x16x32xf32> to vector<16x16x32xf32>
    %113 = arith.addf %111, %112 : vector<16x16x32xf32>
    %cst_35 = arith.constant 0.000000e+00 : f32
    %114 = vector.broadcast %cst_35 : f32 to vector<16x16x32xf32>
    %115 = arith.cmpf ogt, %113, %114 : vector<16x16x32xf32>
    %cst_36 = arith.constant 2.000000e-01 : f32
    %116 = vector.broadcast %cst_36 : f32 to vector<16x16x32xf32>
    %117 = arith.mulf %116, %113 : vector<16x16x32xf32>
    %118 = arith.select %115, %113, %117 : vector<16x16x32xi1>, vector<16x16x32xf32>
    %c3 = arith.constant 3 : index
    %c0_37 = arith.constant 0 : index
    %119 = vector.load %arg7[%c3, %c0_37] : memref<5x32xf32, #tpu.memory_space<vmem>>, vector<1x32xf32>
    %120 = vector.shape_cast %119 : vector<1x32xf32> to vector<32xf32>
    %121 = vector.shape_cast %120 : vector<32xf32> to vector<1x1x32xf32>
    %122 = vector.broadcast %121 : vector<1x1x32xf32> to vector<16x16x32xf32>
    %123 = arith.mulf %118, %122 : vector<16x16x32xf32>
    %cst_38 = arith.constant dense<0.000000e+00> : vector<16x16xf32>
    %124 = vector.multi_reduction <add>, %123, %cst_38 [2] : vector<16x16x32xf32> to vector<16x16xf32>
    %cst_39 = arith.constant -1.000000e+30 : f32
    %125 = vector.broadcast %cst_39 : f32 to vector<16x16xf32>
    %126 = arith.select %2, %124, %125 : vector<16x16xi1>, vector<16x16xf32>
    %cst_40 = arith.constant dense<0xFF800000> : vector<16xf32>
    %127 = vector.multi_reduction <maximumf>, %126, %cst_40 [1] : vector<16x16xf32> to vector<16xf32>
    %128 = vector.shape_cast %127 : vector<16xf32> to vector<16x1xf32>
    %129 = vector.broadcast %128 : vector<16x1xf32> to vector<16x16xf32>
    %130 = arith.subf %126, %129 : vector<16x16xf32>
    %131 = math.exp %130 : vector<16x16xf32>
    %cst_41 = arith.constant dense<0.000000e+00> : vector<16xf32>
    %132 = vector.multi_reduction <add>, %131, %cst_41 [1] : vector<16x16xf32> to vector<16xf32>
    %133 = vector.shape_cast %132 : vector<16xf32> to vector<16x1xf32>
    %134 = tpu.reciprocal %133 {approx = true} : vector<16x1xf32> -> vector<16x1xf32>
    %135 = vector.broadcast %134 : vector<16x1xf32> to vector<16x16xf32>
    %136 = arith.mulf %131, %135 : vector<16x16xf32>
    %137 = vector.extract_strided_slice %10 {offsets = [0, 128], sizes = [16, 32], strides = [1, 1]} : vector<16x160xf32> to vector<16x32xf32>
    %138 = vector.extract_strided_slice %16 {offsets = [0, 128], sizes = [16, 32], strides = [1, 1]} : vector<16x160xf32> to vector<16x32xf32>
    %139 = vector.shape_cast %138 : vector<16x32xf32> to vector<16x1x32xf32>
    %140 = vector.shape_cast %137 : vector<16x32xf32> to vector<1x16x32xf32>
    %141 = vector.broadcast %139 : vector<16x1x32xf32> to vector<16x16x32xf32>
    %142 = vector.broadcast %140 : vector<1x16x32xf32> to vector<16x16x32xf32>
    %143 = arith.addf %141, %142 : vector<16x16x32xf32>
    %cst_42 = arith.constant 0.000000e+00 : f32
    %144 = vector.broadcast %cst_42 : f32 to vector<16x16x32xf32>
    %145 = arith.cmpf ogt, %143, %144 : vector<16x16x32xf32>
    %cst_43 = arith.constant 2.000000e-01 : f32
    %146 = vector.broadcast %cst_43 : f32 to vector<16x16x32xf32>
    %147 = arith.mulf %146, %143 : vector<16x16x32xf32>
    %148 = arith.select %145, %143, %147 : vector<16x16x32xi1>, vector<16x16x32xf32>
    %c4 = arith.constant 4 : index
    %c0_44 = arith.constant 0 : index
    %149 = vector.load %arg7[%c4, %c0_44] : memref<5x32xf32, #tpu.memory_space<vmem>>, vector<1x32xf32>
    %150 = vector.shape_cast %149 : vector<1x32xf32> to vector<32xf32>
    %151 = vector.shape_cast %150 : vector<32xf32> to vector<1x1x32xf32>
    %152 = vector.broadcast %151 : vector<1x1x32xf32> to vector<16x16x32xf32>
    %153 = arith.mulf %148, %152 : vector<16x16x32xf32>
    %cst_45 = arith.constant dense<0.000000e+00> : vector<16x16xf32>
    %154 = vector.multi_reduction <add>, %153, %cst_45 [2] : vector<16x16x32xf32> to vector<16x16xf32>
    %cst_46 = arith.constant -1.000000e+30 : f32
    %155 = vector.broadcast %cst_46 : f32 to vector<16x16xf32>
    %156 = arith.select %2, %154, %155 : vector<16x16xi1>, vector<16x16xf32>
    %cst_47 = arith.constant dense<0xFF800000> : vector<16xf32>
    %157 = vector.multi_reduction <maximumf>, %156, %cst_47 [1] : vector<16x16xf32> to vector<16xf32>
    %158 = vector.shape_cast %157 : vector<16xf32> to vector<16x1xf32>
    %159 = vector.broadcast %158 : vector<16x1xf32> to vector<16x16xf32>
    %160 = arith.subf %156, %159 : vector<16x16xf32>
    %161 = math.exp %160 : vector<16x16xf32>
    %cst_48 = arith.constant dense<0.000000e+00> : vector<16xf32>
    %162 = vector.multi_reduction <add>, %161, %cst_48 [1] : vector<16x16xf32> to vector<16xf32>
    %163 = vector.shape_cast %162 : vector<16xf32> to vector<16x1xf32>
    %164 = tpu.reciprocal %163 {approx = true} : vector<16x1xf32> -> vector<16x1xf32>
    %165 = vector.broadcast %164 : vector<16x1xf32> to vector<16x16xf32>
    %166 = arith.mulf %161, %165 : vector<16x16xf32>
    %167 = tpu.concatenate %46, %76, %106, %136, %166 in 1 : vector<16x16xf32>, vector<16x16xf32>, vector<16x16xf32>, vector<16x16xf32>, vector<16x16xf32> -> vector<16x80xf32>
    %168 = tpu.concatenate %17, %47, %77, %107, %137 in 0 : vector<16x32xf32>, vector<16x32xf32>, vector<16x32xf32>, vector<16x32xf32>, vector<16x32xf32> -> vector<80x32xf32>
    %169 = arith.truncf %167 : vector<16x80xf32> to vector<16x80xbf16>
    %170 = arith.truncf %168 : vector<80x32xf32> to vector<80x32xbf16>
    %cst_49 = arith.constant dense<0.000000e+00> : vector<16x32xf32>
    %171 = tpu.matmul %169, %170, %cst_49 {dimension_numbers = #tpu.dot_dimension_numbers<[1], [0], [0], [1], [0, 0, 1, 1], [], []>} : vector<16x80xbf16>, vector<80x32xbf16>, vector<16x32xf32> -> vector<16x32xf32>
    %cst_50 = arith.constant 2.000000e-01 : f32
    %172 = vector.broadcast %cst_50 : f32 to vector<16x32xf32>
    %173 = arith.mulf %171, %172 : vector<16x32xf32>
    %c0_51 = arith.constant 0 : index
    %c0_52 = arith.constant 0 : index
    %174 = vector.load %arg8[%c0_51, %c0_52] : memref<1x32xf32, #tpu.memory_space<vmem>>, vector<1x32xf32>
    %175 = vector.broadcast %174 : vector<1x32xf32> to vector<16x32xf32>
    %176 = arith.addf %173, %175 : vector<16x32xf32>
    %cst_53 = arith.constant 0.000000e+00 : f32
    %177 = vector.broadcast %cst_53 : f32 to vector<16x32xf32>
    %178 = arith.maximumf %176, %177 : vector<16x32xf32>
    %179 = arith.truncf %178 : vector<16x32xf32> to vector<16x32xbf16>
    %c0_54 = arith.constant 0 : index
    %c0_55 = arith.constant 0 : index
    %180 = vector.load %arg9[%c0_54, %c0_55] : memref<32x160xf32, #tpu.memory_space<vmem>>, vector<32x160xf32>
    %181 = arith.truncf %180 : vector<32x160xf32> to vector<32x160xbf16>
    %cst_56 = arith.constant dense<0.000000e+00> : vector<16x160xf32>
    %182 = tpu.matmul %179, %181, %cst_56 {dimension_numbers = #tpu.dot_dimension_numbers<[1], [0], [0], [1], [0, 0, 1, 1], [], []>} : vector<16x32xbf16>, vector<32x160xbf16>, vector<16x160xf32> -> vector<16x160xf32>
    %c0_57 = arith.constant 0 : index
    %c0_58 = arith.constant 0 : index
    %183 = vector.load %arg10[%c0_57, %c0_58] : memref<1x160xf32, #tpu.memory_space<vmem>>, vector<1x160xf32>
    %184 = vector.broadcast %183 : vector<1x160xf32> to vector<16x160xf32>
    %185 = arith.addf %182, %184 : vector<16x160xf32>
    %c0_59 = arith.constant 0 : index
    %c0_60 = arith.constant 0 : index
    %186 = vector.load %arg11[%c0_59, %c0_60] : memref<32x160xf32, #tpu.memory_space<vmem>>, vector<32x160xf32>
    %187 = arith.truncf %186 : vector<32x160xf32> to vector<32x160xbf16>
    %cst_61 = arith.constant dense<0.000000e+00> : vector<16x160xf32>
    %188 = tpu.matmul %179, %187, %cst_61 {dimension_numbers = #tpu.dot_dimension_numbers<[1], [0], [0], [1], [0, 0, 1, 1], [], []>} : vector<16x32xbf16>, vector<32x160xbf16>, vector<16x160xf32> -> vector<16x160xf32>
    %c0_62 = arith.constant 0 : index
    %c0_63 = arith.constant 0 : index
    %189 = vector.load %arg12[%c0_62, %c0_63] : memref<1x160xf32, #tpu.memory_space<vmem>>, vector<1x160xf32>
    %190 = vector.broadcast %189 : vector<1x160xf32> to vector<16x160xf32>
    %191 = arith.addf %188, %190 : vector<16x160xf32>
    %192 = vector.extract_strided_slice %185 {offsets = [0, 0], sizes = [16, 32], strides = [1, 1]} : vector<16x160xf32> to vector<16x32xf32>
    %193 = vector.extract_strided_slice %191 {offsets = [0, 0], sizes = [16, 32], strides = [1, 1]} : vector<16x160xf32> to vector<16x32xf32>
    %194 = vector.shape_cast %193 : vector<16x32xf32> to vector<16x1x32xf32>
    %195 = vector.shape_cast %192 : vector<16x32xf32> to vector<1x16x32xf32>
    %196 = vector.broadcast %194 : vector<16x1x32xf32> to vector<16x16x32xf32>
    %197 = vector.broadcast %195 : vector<1x16x32xf32> to vector<16x16x32xf32>
    %198 = arith.addf %196, %197 : vector<16x16x32xf32>
    %cst_64 = arith.constant 0.000000e+00 : f32
    %199 = vector.broadcast %cst_64 : f32 to vector<16x16x32xf32>
    %200 = arith.cmpf ogt, %198, %199 : vector<16x16x32xf32>
    %cst_65 = arith.constant 2.000000e-01 : f32
    %201 = vector.broadcast %cst_65 : f32 to vector<16x16x32xf32>
    %202 = arith.mulf %201, %198 : vector<16x16x32xf32>
    %203 = arith.select %200, %198, %202 : vector<16x16x32xi1>, vector<16x16x32xf32>
    %c0_66 = arith.constant 0 : index
    %c0_67 = arith.constant 0 : index
    %204 = vector.load %arg13[%c0_66, %c0_67] : memref<5x32xf32, #tpu.memory_space<vmem>>, vector<1x32xf32>
    %205 = vector.shape_cast %204 : vector<1x32xf32> to vector<32xf32>
    %206 = vector.shape_cast %205 : vector<32xf32> to vector<1x1x32xf32>
    %207 = vector.broadcast %206 : vector<1x1x32xf32> to vector<16x16x32xf32>
    %208 = arith.mulf %203, %207 : vector<16x16x32xf32>
    %cst_68 = arith.constant dense<0.000000e+00> : vector<16x16xf32>
    %209 = vector.multi_reduction <add>, %208, %cst_68 [2] : vector<16x16x32xf32> to vector<16x16xf32>
    %cst_69 = arith.constant -1.000000e+30 : f32
    %210 = vector.broadcast %cst_69 : f32 to vector<16x16xf32>
    %211 = arith.select %2, %209, %210 : vector<16x16xi1>, vector<16x16xf32>
    %cst_70 = arith.constant dense<0xFF800000> : vector<16xf32>
    %212 = vector.multi_reduction <maximumf>, %211, %cst_70 [1] : vector<16x16xf32> to vector<16xf32>
    %213 = vector.shape_cast %212 : vector<16xf32> to vector<16x1xf32>
    %214 = vector.broadcast %213 : vector<16x1xf32> to vector<16x16xf32>
    %215 = arith.subf %211, %214 : vector<16x16xf32>
    %216 = math.exp %215 : vector<16x16xf32>
    %cst_71 = arith.constant dense<0.000000e+00> : vector<16xf32>
    %217 = vector.multi_reduction <add>, %216, %cst_71 [1] : vector<16x16xf32> to vector<16xf32>
    %218 = vector.shape_cast %217 : vector<16xf32> to vector<16x1xf32>
    %219 = tpu.reciprocal %218 {approx = true} : vector<16x1xf32> -> vector<16x1xf32>
    %220 = vector.broadcast %219 : vector<16x1xf32> to vector<16x16xf32>
    %221 = arith.mulf %216, %220 : vector<16x16xf32>
    %222 = vector.extract_strided_slice %185 {offsets = [0, 32], sizes = [16, 32], strides = [1, 1]} : vector<16x160xf32> to vector<16x32xf32>
    %223 = vector.extract_strided_slice %191 {offsets = [0, 32], sizes = [16, 32], strides = [1, 1]} : vector<16x160xf32> to vector<16x32xf32>
    %224 = vector.shape_cast %223 : vector<16x32xf32> to vector<16x1x32xf32>
    %225 = vector.shape_cast %222 : vector<16x32xf32> to vector<1x16x32xf32>
    %226 = vector.broadcast %224 : vector<16x1x32xf32> to vector<16x16x32xf32>
    %227 = vector.broadcast %225 : vector<1x16x32xf32> to vector<16x16x32xf32>
    %228 = arith.addf %226, %227 : vector<16x16x32xf32>
    %cst_72 = arith.constant 0.000000e+00 : f32
    %229 = vector.broadcast %cst_72 : f32 to vector<16x16x32xf32>
    %230 = arith.cmpf ogt, %228, %229 : vector<16x16x32xf32>
    %cst_73 = arith.constant 2.000000e-01 : f32
    %231 = vector.broadcast %cst_73 : f32 to vector<16x16x32xf32>
    %232 = arith.mulf %231, %228 : vector<16x16x32xf32>
    %233 = arith.select %230, %228, %232 : vector<16x16x32xi1>, vector<16x16x32xf32>
    %c1_74 = arith.constant 1 : index
    %c0_75 = arith.constant 0 : index
    %234 = vector.load %arg13[%c1_74, %c0_75] : memref<5x32xf32, #tpu.memory_space<vmem>>, vector<1x32xf32>
    %235 = vector.shape_cast %234 : vector<1x32xf32> to vector<32xf32>
    %236 = vector.shape_cast %235 : vector<32xf32> to vector<1x1x32xf32>
    %237 = vector.broadcast %236 : vector<1x1x32xf32> to vector<16x16x32xf32>
    %238 = arith.mulf %233, %237 : vector<16x16x32xf32>
    %cst_76 = arith.constant dense<0.000000e+00> : vector<16x16xf32>
    %239 = vector.multi_reduction <add>, %238, %cst_76 [2] : vector<16x16x32xf32> to vector<16x16xf32>
    %cst_77 = arith.constant -1.000000e+30 : f32
    %240 = vector.broadcast %cst_77 : f32 to vector<16x16xf32>
    %241 = arith.select %2, %239, %240 : vector<16x16xi1>, vector<16x16xf32>
    %cst_78 = arith.constant dense<0xFF800000> : vector<16xf32>
    %242 = vector.multi_reduction <maximumf>, %241, %cst_78 [1] : vector<16x16xf32> to vector<16xf32>
    %243 = vector.shape_cast %242 : vector<16xf32> to vector<16x1xf32>
    %244 = vector.broadcast %243 : vector<16x1xf32> to vector<16x16xf32>
    %245 = arith.subf %241, %244 : vector<16x16xf32>
    %246 = math.exp %245 : vector<16x16xf32>
    %cst_79 = arith.constant dense<0.000000e+00> : vector<16xf32>
    %247 = vector.multi_reduction <add>, %246, %cst_79 [1] : vector<16x16xf32> to vector<16xf32>
    %248 = vector.shape_cast %247 : vector<16xf32> to vector<16x1xf32>
    %249 = tpu.reciprocal %248 {approx = true} : vector<16x1xf32> -> vector<16x1xf32>
    %250 = vector.broadcast %249 : vector<16x1xf32> to vector<16x16xf32>
    %251 = arith.mulf %246, %250 : vector<16x16xf32>
    %252 = vector.extract_strided_slice %185 {offsets = [0, 64], sizes = [16, 32], strides = [1, 1]} : vector<16x160xf32> to vector<16x32xf32>
    %253 = vector.extract_strided_slice %191 {offsets = [0, 64], sizes = [16, 32], strides = [1, 1]} : vector<16x160xf32> to vector<16x32xf32>
    %254 = vector.shape_cast %253 : vector<16x32xf32> to vector<16x1x32xf32>
    %255 = vector.shape_cast %252 : vector<16x32xf32> to vector<1x16x32xf32>
    %256 = vector.broadcast %254 : vector<16x1x32xf32> to vector<16x16x32xf32>
    %257 = vector.broadcast %255 : vector<1x16x32xf32> to vector<16x16x32xf32>
    %258 = arith.addf %256, %257 : vector<16x16x32xf32>
    %cst_80 = arith.constant 0.000000e+00 : f32
    %259 = vector.broadcast %cst_80 : f32 to vector<16x16x32xf32>
    %260 = arith.cmpf ogt, %258, %259 : vector<16x16x32xf32>
    %cst_81 = arith.constant 2.000000e-01 : f32
    %261 = vector.broadcast %cst_81 : f32 to vector<16x16x32xf32>
    %262 = arith.mulf %261, %258 : vector<16x16x32xf32>
    %263 = arith.select %260, %258, %262 : vector<16x16x32xi1>, vector<16x16x32xf32>
    %c2_82 = arith.constant 2 : index
    %c0_83 = arith.constant 0 : index
    %264 = vector.load %arg13[%c2_82, %c0_83] : memref<5x32xf32, #tpu.memory_space<vmem>>, vector<1x32xf32>
    %265 = vector.shape_cast %264 : vector<1x32xf32> to vector<32xf32>
    %266 = vector.shape_cast %265 : vector<32xf32> to vector<1x1x32xf32>
    %267 = vector.broadcast %266 : vector<1x1x32xf32> to vector<16x16x32xf32>
    %268 = arith.mulf %263, %267 : vector<16x16x32xf32>
    %cst_84 = arith.constant dense<0.000000e+00> : vector<16x16xf32>
    %269 = vector.multi_reduction <add>, %268, %cst_84 [2] : vector<16x16x32xf32> to vector<16x16xf32>
    %cst_85 = arith.constant -1.000000e+30 : f32
    %270 = vector.broadcast %cst_85 : f32 to vector<16x16xf32>
    %271 = arith.select %2, %269, %270 : vector<16x16xi1>, vector<16x16xf32>
    %cst_86 = arith.constant dense<0xFF800000> : vector<16xf32>
    %272 = vector.multi_reduction <maximumf>, %271, %cst_86 [1] : vector<16x16xf32> to vector<16xf32>
    %273 = vector.shape_cast %272 : vector<16xf32> to vector<16x1xf32>
    %274 = vector.broadcast %273 : vector<16x1xf32> to vector<16x16xf32>
    %275 = arith.subf %271, %274 : vector<16x16xf32>
    %276 = math.exp %275 : vector<16x16xf32>
    %cst_87 = arith.constant dense<0.000000e+00> : vector<16xf32>
    %277 = vector.multi_reduction <add>, %276, %cst_87 [1] : vector<16x16xf32> to vector<16xf32>
    %278 = vector.shape_cast %277 : vector<16xf32> to vector<16x1xf32>
    %279 = tpu.reciprocal %278 {approx = true} : vector<16x1xf32> -> vector<16x1xf32>
    %280 = vector.broadcast %279 : vector<16x1xf32> to vector<16x16xf32>
    %281 = arith.mulf %276, %280 : vector<16x16xf32>
    %282 = vector.extract_strided_slice %185 {offsets = [0, 96], sizes = [16, 32], strides = [1, 1]} : vector<16x160xf32> to vector<16x32xf32>
    %283 = vector.extract_strided_slice %191 {offsets = [0, 96], sizes = [16, 32], strides = [1, 1]} : vector<16x160xf32> to vector<16x32xf32>
    %284 = vector.shape_cast %283 : vector<16x32xf32> to vector<16x1x32xf32>
    %285 = vector.shape_cast %282 : vector<16x32xf32> to vector<1x16x32xf32>
    %286 = vector.broadcast %284 : vector<16x1x32xf32> to vector<16x16x32xf32>
    %287 = vector.broadcast %285 : vector<1x16x32xf32> to vector<16x16x32xf32>
    %288 = arith.addf %286, %287 : vector<16x16x32xf32>
    %cst_88 = arith.constant 0.000000e+00 : f32
    %289 = vector.broadcast %cst_88 : f32 to vector<16x16x32xf32>
    %290 = arith.cmpf ogt, %288, %289 : vector<16x16x32xf32>
    %cst_89 = arith.constant 2.000000e-01 : f32
    %291 = vector.broadcast %cst_89 : f32 to vector<16x16x32xf32>
    %292 = arith.mulf %291, %288 : vector<16x16x32xf32>
    %293 = arith.select %290, %288, %292 : vector<16x16x32xi1>, vector<16x16x32xf32>
    %c3_90 = arith.constant 3 : index
    %c0_91 = arith.constant 0 : index
    %294 = vector.load %arg13[%c3_90, %c0_91] : memref<5x32xf32, #tpu.memory_space<vmem>>, vector<1x32xf32>
    %295 = vector.shape_cast %294 : vector<1x32xf32> to vector<32xf32>
    %296 = vector.shape_cast %295 : vector<32xf32> to vector<1x1x32xf32>
    %297 = vector.broadcast %296 : vector<1x1x32xf32> to vector<16x16x32xf32>
    %298 = arith.mulf %293, %297 : vector<16x16x32xf32>
    %cst_92 = arith.constant dense<0.000000e+00> : vector<16x16xf32>
    %299 = vector.multi_reduction <add>, %298, %cst_92 [2] : vector<16x16x32xf32> to vector<16x16xf32>
    %cst_93 = arith.constant -1.000000e+30 : f32
    %300 = vector.broadcast %cst_93 : f32 to vector<16x16xf32>
    %301 = arith.select %2, %299, %300 : vector<16x16xi1>, vector<16x16xf32>
    %cst_94 = arith.constant dense<0xFF800000> : vector<16xf32>
    %302 = vector.multi_reduction <maximumf>, %301, %cst_94 [1] : vector<16x16xf32> to vector<16xf32>
    %303 = vector.shape_cast %302 : vector<16xf32> to vector<16x1xf32>
    %304 = vector.broadcast %303 : vector<16x1xf32> to vector<16x16xf32>
    %305 = arith.subf %301, %304 : vector<16x16xf32>
    %306 = math.exp %305 : vector<16x16xf32>
    %cst_95 = arith.constant dense<0.000000e+00> : vector<16xf32>
    %307 = vector.multi_reduction <add>, %306, %cst_95 [1] : vector<16x16xf32> to vector<16xf32>
    %308 = vector.shape_cast %307 : vector<16xf32> to vector<16x1xf32>
    %309 = tpu.reciprocal %308 {approx = true} : vector<16x1xf32> -> vector<16x1xf32>
    %310 = vector.broadcast %309 : vector<16x1xf32> to vector<16x16xf32>
    %311 = arith.mulf %306, %310 : vector<16x16xf32>
    %312 = vector.extract_strided_slice %185 {offsets = [0, 128], sizes = [16, 32], strides = [1, 1]} : vector<16x160xf32> to vector<16x32xf32>
    %313 = vector.extract_strided_slice %191 {offsets = [0, 128], sizes = [16, 32], strides = [1, 1]} : vector<16x160xf32> to vector<16x32xf32>
    %314 = vector.shape_cast %313 : vector<16x32xf32> to vector<16x1x32xf32>
    %315 = vector.shape_cast %312 : vector<16x32xf32> to vector<1x16x32xf32>
    %316 = vector.broadcast %314 : vector<16x1x32xf32> to vector<16x16x32xf32>
    %317 = vector.broadcast %315 : vector<1x16x32xf32> to vector<16x16x32xf32>
    %318 = arith.addf %316, %317 : vector<16x16x32xf32>
    %cst_96 = arith.constant 0.000000e+00 : f32
    %319 = vector.broadcast %cst_96 : f32 to vector<16x16x32xf32>
    %320 = arith.cmpf ogt, %318, %319 : vector<16x16x32xf32>
    %cst_97 = arith.constant 2.000000e-01 : f32
    %321 = vector.broadcast %cst_97 : f32 to vector<16x16x32xf32>
    %322 = arith.mulf %321, %318 : vector<16x16x32xf32>
    %323 = arith.select %320, %318, %322 : vector<16x16x32xi1>, vector<16x16x32xf32>
    %c4_98 = arith.constant 4 : index
    %c0_99 = arith.constant 0 : index
    %324 = vector.load %arg13[%c4_98, %c0_99] : memref<5x32xf32, #tpu.memory_space<vmem>>, vector<1x32xf32>
    %325 = vector.shape_cast %324 : vector<1x32xf32> to vector<32xf32>
    %326 = vector.shape_cast %325 : vector<32xf32> to vector<1x1x32xf32>
    %327 = vector.broadcast %326 : vector<1x1x32xf32> to vector<16x16x32xf32>
    %328 = arith.mulf %323, %327 : vector<16x16x32xf32>
    %cst_100 = arith.constant dense<0.000000e+00> : vector<16x16xf32>
    %329 = vector.multi_reduction <add>, %328, %cst_100 [2] : vector<16x16x32xf32> to vector<16x16xf32>
    %cst_101 = arith.constant -1.000000e+30 : f32
    %330 = vector.broadcast %cst_101 : f32 to vector<16x16xf32>
    %331 = arith.select %2, %329, %330 : vector<16x16xi1>, vector<16x16xf32>
    %cst_102 = arith.constant dense<0xFF800000> : vector<16xf32>
    %332 = vector.multi_reduction <maximumf>, %331, %cst_102 [1] : vector<16x16xf32> to vector<16xf32>
    %333 = vector.shape_cast %332 : vector<16xf32> to vector<16x1xf32>
    %334 = vector.broadcast %333 : vector<16x1xf32> to vector<16x16xf32>
    %335 = arith.subf %331, %334 : vector<16x16xf32>
    %336 = math.exp %335 : vector<16x16xf32>
    %cst_103 = arith.constant dense<0.000000e+00> : vector<16xf32>
    %337 = vector.multi_reduction <add>, %336, %cst_103 [1] : vector<16x16xf32> to vector<16xf32>
    %338 = vector.shape_cast %337 : vector<16xf32> to vector<16x1xf32>
    %339 = tpu.reciprocal %338 {approx = true} : vector<16x1xf32> -> vector<16x1xf32>
    %340 = vector.broadcast %339 : vector<16x1xf32> to vector<16x16xf32>
    %341 = arith.mulf %336, %340 : vector<16x16xf32>
    %342 = tpu.concatenate %221, %251, %281, %311, %341 in 1 : vector<16x16xf32>, vector<16x16xf32>, vector<16x16xf32>, vector<16x16xf32>, vector<16x16xf32> -> vector<16x80xf32>
    %343 = tpu.concatenate %192, %222, %252, %282, %312 in 0 : vector<16x32xf32>, vector<16x32xf32>, vector<16x32xf32>, vector<16x32xf32>, vector<16x32xf32> -> vector<80x32xf32>
    %344 = arith.truncf %342 : vector<16x80xf32> to vector<16x80xbf16>
    %345 = arith.truncf %343 : vector<80x32xf32> to vector<80x32xbf16>
    %cst_104 = arith.constant dense<0.000000e+00> : vector<16x32xf32>
    %346 = tpu.matmul %344, %345, %cst_104 {dimension_numbers = #tpu.dot_dimension_numbers<[1], [0], [0], [1], [0, 0, 1, 1], [], []>} : vector<16x80xbf16>, vector<80x32xbf16>, vector<16x32xf32> -> vector<16x32xf32>
    %cst_105 = arith.constant 2.000000e-01 : f32
    %347 = vector.broadcast %cst_105 : f32 to vector<16x32xf32>
    %348 = arith.mulf %346, %347 : vector<16x32xf32>
    %c0_106 = arith.constant 0 : index
    %c0_107 = arith.constant 0 : index
    %349 = vector.load %arg14[%c0_106, %c0_107] : memref<1x32xf32, #tpu.memory_space<vmem>>, vector<1x32xf32>
    %350 = vector.broadcast %349 : vector<1x32xf32> to vector<16x32xf32>
    %351 = arith.addf %348, %350 : vector<16x32xf32>
    %cst_108 = arith.constant 0.000000e+00 : f32
    %352 = vector.broadcast %cst_108 : f32 to vector<16x32xf32>
    %353 = arith.maximumf %351, %352 : vector<16x32xf32>
    %354 = arith.truncf %353 : vector<16x32xf32> to vector<16x32xbf16>
    %c0_109 = arith.constant 0 : index
    %c0_110 = arith.constant 0 : index
    %355 = vector.load %arg15[%c0_109, %c0_110] : memref<32x160xf32, #tpu.memory_space<vmem>>, vector<32x160xf32>
    %356 = arith.truncf %355 : vector<32x160xf32> to vector<32x160xbf16>
    %cst_111 = arith.constant dense<0.000000e+00> : vector<16x160xf32>
    %357 = tpu.matmul %354, %356, %cst_111 {dimension_numbers = #tpu.dot_dimension_numbers<[1], [0], [0], [1], [0, 0, 1, 1], [], []>} : vector<16x32xbf16>, vector<32x160xbf16>, vector<16x160xf32> -> vector<16x160xf32>
    %c0_112 = arith.constant 0 : index
    %c0_113 = arith.constant 0 : index
    %358 = vector.load %arg16[%c0_112, %c0_113] : memref<1x160xf32, #tpu.memory_space<vmem>>, vector<1x160xf32>
    %359 = vector.broadcast %358 : vector<1x160xf32> to vector<16x160xf32>
    %360 = arith.addf %357, %359 : vector<16x160xf32>
    %c0_114 = arith.constant 0 : index
    %c0_115 = arith.constant 0 : index
    %361 = vector.load %arg17[%c0_114, %c0_115] : memref<32x160xf32, #tpu.memory_space<vmem>>, vector<32x160xf32>
    %362 = arith.truncf %361 : vector<32x160xf32> to vector<32x160xbf16>
    %cst_116 = arith.constant dense<0.000000e+00> : vector<16x160xf32>
    %363 = tpu.matmul %354, %362, %cst_116 {dimension_numbers = #tpu.dot_dimension_numbers<[1], [0], [0], [1], [0, 0, 1, 1], [], []>} : vector<16x32xbf16>, vector<32x160xbf16>, vector<16x160xf32> -> vector<16x160xf32>
    %c0_117 = arith.constant 0 : index
    %c0_118 = arith.constant 0 : index
    %364 = vector.load %arg18[%c0_117, %c0_118] : memref<1x160xf32, #tpu.memory_space<vmem>>, vector<1x160xf32>
    %365 = vector.broadcast %364 : vector<1x160xf32> to vector<16x160xf32>
    %366 = arith.addf %363, %365 : vector<16x160xf32>
    %367 = vector.extract_strided_slice %360 {offsets = [0, 0], sizes = [16, 32], strides = [1, 1]} : vector<16x160xf32> to vector<16x32xf32>
    %368 = vector.extract_strided_slice %366 {offsets = [0, 0], sizes = [16, 32], strides = [1, 1]} : vector<16x160xf32> to vector<16x32xf32>
    %369 = vector.shape_cast %368 : vector<16x32xf32> to vector<16x1x32xf32>
    %370 = vector.shape_cast %367 : vector<16x32xf32> to vector<1x16x32xf32>
    %371 = vector.broadcast %369 : vector<16x1x32xf32> to vector<16x16x32xf32>
    %372 = vector.broadcast %370 : vector<1x16x32xf32> to vector<16x16x32xf32>
    %373 = arith.addf %371, %372 : vector<16x16x32xf32>
    %cst_119 = arith.constant 0.000000e+00 : f32
    %374 = vector.broadcast %cst_119 : f32 to vector<16x16x32xf32>
    %375 = arith.cmpf ogt, %373, %374 : vector<16x16x32xf32>
    %cst_120 = arith.constant 2.000000e-01 : f32
    %376 = vector.broadcast %cst_120 : f32 to vector<16x16x32xf32>
    %377 = arith.mulf %376, %373 : vector<16x16x32xf32>
    %378 = arith.select %375, %373, %377 : vector<16x16x32xi1>, vector<16x16x32xf32>
    %c0_121 = arith.constant 0 : index
    %c0_122 = arith.constant 0 : index
    %379 = vector.load %arg19[%c0_121, %c0_122] : memref<5x32xf32, #tpu.memory_space<vmem>>, vector<1x32xf32>
    %380 = vector.shape_cast %379 : vector<1x32xf32> to vector<32xf32>
    %381 = vector.shape_cast %380 : vector<32xf32> to vector<1x1x32xf32>
    %382 = vector.broadcast %381 : vector<1x1x32xf32> to vector<16x16x32xf32>
    %383 = arith.mulf %378, %382 : vector<16x16x32xf32>
    %cst_123 = arith.constant dense<0.000000e+00> : vector<16x16xf32>
    %384 = vector.multi_reduction <add>, %383, %cst_123 [2] : vector<16x16x32xf32> to vector<16x16xf32>
    %cst_124 = arith.constant -1.000000e+30 : f32
    %385 = vector.broadcast %cst_124 : f32 to vector<16x16xf32>
    %386 = arith.select %2, %384, %385 : vector<16x16xi1>, vector<16x16xf32>
    %cst_125 = arith.constant dense<0xFF800000> : vector<16xf32>
    %387 = vector.multi_reduction <maximumf>, %386, %cst_125 [1] : vector<16x16xf32> to vector<16xf32>
    %388 = vector.shape_cast %387 : vector<16xf32> to vector<16x1xf32>
    %389 = vector.broadcast %388 : vector<16x1xf32> to vector<16x16xf32>
    %390 = arith.subf %386, %389 : vector<16x16xf32>
    %391 = math.exp %390 : vector<16x16xf32>
    %cst_126 = arith.constant dense<0.000000e+00> : vector<16xf32>
    %392 = vector.multi_reduction <add>, %391, %cst_126 [1] : vector<16x16xf32> to vector<16xf32>
    %393 = vector.shape_cast %392 : vector<16xf32> to vector<16x1xf32>
    %394 = tpu.reciprocal %393 {approx = true} : vector<16x1xf32> -> vector<16x1xf32>
    %395 = vector.broadcast %394 : vector<16x1xf32> to vector<16x16xf32>
    %396 = arith.mulf %391, %395 : vector<16x16xf32>
    %397 = vector.extract_strided_slice %360 {offsets = [0, 32], sizes = [16, 32], strides = [1, 1]} : vector<16x160xf32> to vector<16x32xf32>
    %398 = vector.extract_strided_slice %366 {offsets = [0, 32], sizes = [16, 32], strides = [1, 1]} : vector<16x160xf32> to vector<16x32xf32>
    %399 = vector.shape_cast %398 : vector<16x32xf32> to vector<16x1x32xf32>
    %400 = vector.shape_cast %397 : vector<16x32xf32> to vector<1x16x32xf32>
    %401 = vector.broadcast %399 : vector<16x1x32xf32> to vector<16x16x32xf32>
    %402 = vector.broadcast %400 : vector<1x16x32xf32> to vector<16x16x32xf32>
    %403 = arith.addf %401, %402 : vector<16x16x32xf32>
    %cst_127 = arith.constant 0.000000e+00 : f32
    %404 = vector.broadcast %cst_127 : f32 to vector<16x16x32xf32>
    %405 = arith.cmpf ogt, %403, %404 : vector<16x16x32xf32>
    %cst_128 = arith.constant 2.000000e-01 : f32
    %406 = vector.broadcast %cst_128 : f32 to vector<16x16x32xf32>
    %407 = arith.mulf %406, %403 : vector<16x16x32xf32>
    %408 = arith.select %405, %403, %407 : vector<16x16x32xi1>, vector<16x16x32xf32>
    %c1_129 = arith.constant 1 : index
    %c0_130 = arith.constant 0 : index
    %409 = vector.load %arg19[%c1_129, %c0_130] : memref<5x32xf32, #tpu.memory_space<vmem>>, vector<1x32xf32>
    %410 = vector.shape_cast %409 : vector<1x32xf32> to vector<32xf32>
    %411 = vector.shape_cast %410 : vector<32xf32> to vector<1x1x32xf32>
    %412 = vector.broadcast %411 : vector<1x1x32xf32> to vector<16x16x32xf32>
    %413 = arith.mulf %408, %412 : vector<16x16x32xf32>
    %cst_131 = arith.constant dense<0.000000e+00> : vector<16x16xf32>
    %414 = vector.multi_reduction <add>, %413, %cst_131 [2] : vector<16x16x32xf32> to vector<16x16xf32>
    %cst_132 = arith.constant -1.000000e+30 : f32
    %415 = vector.broadcast %cst_132 : f32 to vector<16x16xf32>
    %416 = arith.select %2, %414, %415 : vector<16x16xi1>, vector<16x16xf32>
    %cst_133 = arith.constant dense<0xFF800000> : vector<16xf32>
    %417 = vector.multi_reduction <maximumf>, %416, %cst_133 [1] : vector<16x16xf32> to vector<16xf32>
    %418 = vector.shape_cast %417 : vector<16xf32> to vector<16x1xf32>
    %419 = vector.broadcast %418 : vector<16x1xf32> to vector<16x16xf32>
    %420 = arith.subf %416, %419 : vector<16x16xf32>
    %421 = math.exp %420 : vector<16x16xf32>
    %cst_134 = arith.constant dense<0.000000e+00> : vector<16xf32>
    %422 = vector.multi_reduction <add>, %421, %cst_134 [1] : vector<16x16xf32> to vector<16xf32>
    %423 = vector.shape_cast %422 : vector<16xf32> to vector<16x1xf32>
    %424 = tpu.reciprocal %423 {approx = true} : vector<16x1xf32> -> vector<16x1xf32>
    %425 = vector.broadcast %424 : vector<16x1xf32> to vector<16x16xf32>
    %426 = arith.mulf %421, %425 : vector<16x16xf32>
    %427 = vector.extract_strided_slice %360 {offsets = [0, 64], sizes = [16, 32], strides = [1, 1]} : vector<16x160xf32> to vector<16x32xf32>
    %428 = vector.extract_strided_slice %366 {offsets = [0, 64], sizes = [16, 32], strides = [1, 1]} : vector<16x160xf32> to vector<16x32xf32>
    %429 = vector.shape_cast %428 : vector<16x32xf32> to vector<16x1x32xf32>
    %430 = vector.shape_cast %427 : vector<16x32xf32> to vector<1x16x32xf32>
    %431 = vector.broadcast %429 : vector<16x1x32xf32> to vector<16x16x32xf32>
    %432 = vector.broadcast %430 : vector<1x16x32xf32> to vector<16x16x32xf32>
    %433 = arith.addf %431, %432 : vector<16x16x32xf32>
    %cst_135 = arith.constant 0.000000e+00 : f32
    %434 = vector.broadcast %cst_135 : f32 to vector<16x16x32xf32>
    %435 = arith.cmpf ogt, %433, %434 : vector<16x16x32xf32>
    %cst_136 = arith.constant 2.000000e-01 : f32
    %436 = vector.broadcast %cst_136 : f32 to vector<16x16x32xf32>
    %437 = arith.mulf %436, %433 : vector<16x16x32xf32>
    %438 = arith.select %435, %433, %437 : vector<16x16x32xi1>, vector<16x16x32xf32>
    %c2_137 = arith.constant 2 : index
    %c0_138 = arith.constant 0 : index
    %439 = vector.load %arg19[%c2_137, %c0_138] : memref<5x32xf32, #tpu.memory_space<vmem>>, vector<1x32xf32>
    %440 = vector.shape_cast %439 : vector<1x32xf32> to vector<32xf32>
    %441 = vector.shape_cast %440 : vector<32xf32> to vector<1x1x32xf32>
    %442 = vector.broadcast %441 : vector<1x1x32xf32> to vector<16x16x32xf32>
    %443 = arith.mulf %438, %442 : vector<16x16x32xf32>
    %cst_139 = arith.constant dense<0.000000e+00> : vector<16x16xf32>
    %444 = vector.multi_reduction <add>, %443, %cst_139 [2] : vector<16x16x32xf32> to vector<16x16xf32>
    %cst_140 = arith.constant -1.000000e+30 : f32
    %445 = vector.broadcast %cst_140 : f32 to vector<16x16xf32>
    %446 = arith.select %2, %444, %445 : vector<16x16xi1>, vector<16x16xf32>
    %cst_141 = arith.constant dense<0xFF800000> : vector<16xf32>
    %447 = vector.multi_reduction <maximumf>, %446, %cst_141 [1] : vector<16x16xf32> to vector<16xf32>
    %448 = vector.shape_cast %447 : vector<16xf32> to vector<16x1xf32>
    %449 = vector.broadcast %448 : vector<16x1xf32> to vector<16x16xf32>
    %450 = arith.subf %446, %449 : vector<16x16xf32>
    %451 = math.exp %450 : vector<16x16xf32>
    %cst_142 = arith.constant dense<0.000000e+00> : vector<16xf32>
    %452 = vector.multi_reduction <add>, %451, %cst_142 [1] : vector<16x16xf32> to vector<16xf32>
    %453 = vector.shape_cast %452 : vector<16xf32> to vector<16x1xf32>
    %454 = tpu.reciprocal %453 {approx = true} : vector<16x1xf32> -> vector<16x1xf32>
    %455 = vector.broadcast %454 : vector<16x1xf32> to vector<16x16xf32>
    %456 = arith.mulf %451, %455 : vector<16x16xf32>
    %457 = vector.extract_strided_slice %360 {offsets = [0, 96], sizes = [16, 32], strides = [1, 1]} : vector<16x160xf32> to vector<16x32xf32>
    %458 = vector.extract_strided_slice %366 {offsets = [0, 96], sizes = [16, 32], strides = [1, 1]} : vector<16x160xf32> to vector<16x32xf32>
    %459 = vector.shape_cast %458 : vector<16x32xf32> to vector<16x1x32xf32>
    %460 = vector.shape_cast %457 : vector<16x32xf32> to vector<1x16x32xf32>
    %461 = vector.broadcast %459 : vector<16x1x32xf32> to vector<16x16x32xf32>
    %462 = vector.broadcast %460 : vector<1x16x32xf32> to vector<16x16x32xf32>
    %463 = arith.addf %461, %462 : vector<16x16x32xf32>
    %cst_143 = arith.constant 0.000000e+00 : f32
    %464 = vector.broadcast %cst_143 : f32 to vector<16x16x32xf32>
    %465 = arith.cmpf ogt, %463, %464 : vector<16x16x32xf32>
    %cst_144 = arith.constant 2.000000e-01 : f32
    %466 = vector.broadcast %cst_144 : f32 to vector<16x16x32xf32>
    %467 = arith.mulf %466, %463 : vector<16x16x32xf32>
    %468 = arith.select %465, %463, %467 : vector<16x16x32xi1>, vector<16x16x32xf32>
    %c3_145 = arith.constant 3 : index
    %c0_146 = arith.constant 0 : index
    %469 = vector.load %arg19[%c3_145, %c0_146] : memref<5x32xf32, #tpu.memory_space<vmem>>, vector<1x32xf32>
    %470 = vector.shape_cast %469 : vector<1x32xf32> to vector<32xf32>
    %471 = vector.shape_cast %470 : vector<32xf32> to vector<1x1x32xf32>
    %472 = vector.broadcast %471 : vector<1x1x32xf32> to vector<16x16x32xf32>
    %473 = arith.mulf %468, %472 : vector<16x16x32xf32>
    %cst_147 = arith.constant dense<0.000000e+00> : vector<16x16xf32>
    %474 = vector.multi_reduction <add>, %473, %cst_147 [2] : vector<16x16x32xf32> to vector<16x16xf32>
    %cst_148 = arith.constant -1.000000e+30 : f32
    %475 = vector.broadcast %cst_148 : f32 to vector<16x16xf32>
    %476 = arith.select %2, %474, %475 : vector<16x16xi1>, vector<16x16xf32>
    %cst_149 = arith.constant dense<0xFF800000> : vector<16xf32>
    %477 = vector.multi_reduction <maximumf>, %476, %cst_149 [1] : vector<16x16xf32> to vector<16xf32>
    %478 = vector.shape_cast %477 : vector<16xf32> to vector<16x1xf32>
    %479 = vector.broadcast %478 : vector<16x1xf32> to vector<16x16xf32>
    %480 = arith.subf %476, %479 : vector<16x16xf32>
    %481 = math.exp %480 : vector<16x16xf32>
    %cst_150 = arith.constant dense<0.000000e+00> : vector<16xf32>
    %482 = vector.multi_reduction <add>, %481, %cst_150 [1] : vector<16x16xf32> to vector<16xf32>
    %483 = vector.shape_cast %482 : vector<16xf32> to vector<16x1xf32>
    %484 = tpu.reciprocal %483 {approx = true} : vector<16x1xf32> -> vector<16x1xf32>
    %485 = vector.broadcast %484 : vector<16x1xf32> to vector<16x16xf32>
    %486 = arith.mulf %481, %485 : vector<16x16xf32>
    %487 = vector.extract_strided_slice %360 {offsets = [0, 128], sizes = [16, 32], strides = [1, 1]} : vector<16x160xf32> to vector<16x32xf32>
    %488 = vector.extract_strided_slice %366 {offsets = [0, 128], sizes = [16, 32], strides = [1, 1]} : vector<16x160xf32> to vector<16x32xf32>
    %489 = vector.shape_cast %488 : vector<16x32xf32> to vector<16x1x32xf32>
    %490 = vector.shape_cast %487 : vector<16x32xf32> to vector<1x16x32xf32>
    %491 = vector.broadcast %489 : vector<16x1x32xf32> to vector<16x16x32xf32>
    %492 = vector.broadcast %490 : vector<1x16x32xf32> to vector<16x16x32xf32>
    %493 = arith.addf %491, %492 : vector<16x16x32xf32>
    %cst_151 = arith.constant 0.000000e+00 : f32
    %494 = vector.broadcast %cst_151 : f32 to vector<16x16x32xf32>
    %495 = arith.cmpf ogt, %493, %494 : vector<16x16x32xf32>
    %cst_152 = arith.constant 2.000000e-01 : f32
    %496 = vector.broadcast %cst_152 : f32 to vector<16x16x32xf32>
    %497 = arith.mulf %496, %493 : vector<16x16x32xf32>
    %498 = arith.select %495, %493, %497 : vector<16x16x32xi1>, vector<16x16x32xf32>
    %c4_153 = arith.constant 4 : index
    %c0_154 = arith.constant 0 : index
    %499 = vector.load %arg19[%c4_153, %c0_154] : memref<5x32xf32, #tpu.memory_space<vmem>>, vector<1x32xf32>
    %500 = vector.shape_cast %499 : vector<1x32xf32> to vector<32xf32>
    %501 = vector.shape_cast %500 : vector<32xf32> to vector<1x1x32xf32>
    %502 = vector.broadcast %501 : vector<1x1x32xf32> to vector<16x16x32xf32>
    %503 = arith.mulf %498, %502 : vector<16x16x32xf32>
    %cst_155 = arith.constant dense<0.000000e+00> : vector<16x16xf32>
    %504 = vector.multi_reduction <add>, %503, %cst_155 [2] : vector<16x16x32xf32> to vector<16x16xf32>
    %cst_156 = arith.constant -1.000000e+30 : f32
    %505 = vector.broadcast %cst_156 : f32 to vector<16x16xf32>
    %506 = arith.select %2, %504, %505 : vector<16x16xi1>, vector<16x16xf32>
    %cst_157 = arith.constant dense<0xFF800000> : vector<16xf32>
    %507 = vector.multi_reduction <maximumf>, %506, %cst_157 [1] : vector<16x16xf32> to vector<16xf32>
    %508 = vector.shape_cast %507 : vector<16xf32> to vector<16x1xf32>
    %509 = vector.broadcast %508 : vector<16x1xf32> to vector<16x16xf32>
    %510 = arith.subf %506, %509 : vector<16x16xf32>
    %511 = math.exp %510 : vector<16x16xf32>
    %cst_158 = arith.constant dense<0.000000e+00> : vector<16xf32>
    %512 = vector.multi_reduction <add>, %511, %cst_158 [1] : vector<16x16xf32> to vector<16xf32>
    %513 = vector.shape_cast %512 : vector<16xf32> to vector<16x1xf32>
    %514 = tpu.reciprocal %513 {approx = true} : vector<16x1xf32> -> vector<16x1xf32>
    %515 = vector.broadcast %514 : vector<16x1xf32> to vector<16x16xf32>
    %516 = arith.mulf %511, %515 : vector<16x16xf32>
    %517 = tpu.concatenate %396, %426, %456, %486, %516 in 1 : vector<16x16xf32>, vector<16x16xf32>, vector<16x16xf32>, vector<16x16xf32>, vector<16x16xf32> -> vector<16x80xf32>
    %518 = tpu.concatenate %367, %397, %427, %457, %487 in 0 : vector<16x32xf32>, vector<16x32xf32>, vector<16x32xf32>, vector<16x32xf32>, vector<16x32xf32> -> vector<80x32xf32>
    %519 = arith.truncf %517 : vector<16x80xf32> to vector<16x80xbf16>
    %520 = arith.truncf %518 : vector<80x32xf32> to vector<80x32xbf16>
    %cst_159 = arith.constant dense<0.000000e+00> : vector<16x32xf32>
    %521 = tpu.matmul %519, %520, %cst_159 {dimension_numbers = #tpu.dot_dimension_numbers<[1], [0], [0], [1], [0, 0, 1, 1], [], []>} : vector<16x80xbf16>, vector<80x32xbf16>, vector<16x32xf32> -> vector<16x32xf32>
    %cst_160 = arith.constant 2.000000e-01 : f32
    %522 = vector.broadcast %cst_160 : f32 to vector<16x32xf32>
    %523 = arith.mulf %521, %522 : vector<16x32xf32>
    %c0_161 = arith.constant 0 : index
    %c0_162 = arith.constant 0 : index
    %524 = vector.load %arg20[%c0_161, %c0_162] : memref<1x32xf32, #tpu.memory_space<vmem>>, vector<1x32xf32>
    %525 = vector.broadcast %524 : vector<1x32xf32> to vector<16x32xf32>
    %526 = arith.addf %523, %525 : vector<16x32xf32>
    %c0_163 = arith.constant 0 : index
    %c0_164 = arith.constant 0 : index
    %527 = vector.load %arg2[%c0_163, %c0_164] : memref<2x16xf32, #tpu.memory_space<vmem>>, vector<2x16xf32>
    %528 = arith.truncf %527 : vector<2x16xf32> to vector<2x16xbf16>
    %529 = arith.truncf %526 : vector<16x32xf32> to vector<16x32xbf16>
    %cst_165 = arith.constant dense<0.000000e+00> : vector<2x32xf32>
    %530 = tpu.matmul %528, %529, %cst_165 {dimension_numbers = #tpu.dot_dimension_numbers<[1], [0], [0], [1], [0, 0, 1, 1], [], []>} : vector<2x16xbf16>, vector<16x32xbf16>, vector<2x32xf32> -> vector<2x32xf32>
    %531 = arith.truncf %530 : vector<2x32xf32> to vector<2x32xbf16>
    %c0_166 = arith.constant 0 : index
    %c0_167 = arith.constant 0 : index
    %532 = vector.load %arg21[%c0_166, %c0_167] : memref<32x32xf32, #tpu.memory_space<vmem>>, vector<32x32xf32>
    %533 = arith.truncf %532 : vector<32x32xf32> to vector<32x32xbf16>
    %cst_168 = arith.constant dense<0.000000e+00> : vector<2x32xf32>
    %534 = tpu.matmul %531, %533, %cst_168 {dimension_numbers = #tpu.dot_dimension_numbers<[1], [0], [0], [1], [0, 0, 1, 1], [], []>} : vector<2x32xbf16>, vector<32x32xbf16>, vector<2x32xf32> -> vector<2x32xf32>
    %c0_169 = arith.constant 0 : index
    %c0_170 = arith.constant 0 : index
    %535 = vector.load %arg22[%c0_169, %c0_170] : memref<1x32xf32, #tpu.memory_space<vmem>>, vector<1x32xf32>
    %536 = vector.broadcast %535 : vector<1x32xf32> to vector<2x32xf32>
    %537 = arith.addf %534, %536 : vector<2x32xf32>
    %cst_171 = arith.constant 0.000000e+00 : f32
    %538 = vector.broadcast %cst_171 : f32 to vector<2x32xf32>
    %539 = arith.maximumf %537, %538 : vector<2x32xf32>
    %540 = arith.truncf %539 : vector<2x32xf32> to vector<2x32xbf16>
    %c0_172 = arith.constant 0 : index
    %c0_173 = arith.constant 0 : index
    %541 = vector.load %arg23[%c0_172, %c0_173] : memref<32x16xf32, #tpu.memory_space<vmem>>, vector<32x16xf32>
    %542 = arith.truncf %541 : vector<32x16xf32> to vector<32x16xbf16>
    %cst_174 = arith.constant dense<0.000000e+00> : vector<2x16xf32>
    %543 = tpu.matmul %540, %542, %cst_174 {dimension_numbers = #tpu.dot_dimension_numbers<[1], [0], [0], [1], [0, 0, 1, 1], [], []>} : vector<2x32xbf16>, vector<32x16xbf16>, vector<2x16xf32> -> vector<2x16xf32>
    %c0_175 = arith.constant 0 : index
    %c0_176 = arith.constant 0 : index
    %544 = vector.load %arg24[%c0_175, %c0_176] : memref<1x16xf32, #tpu.memory_space<vmem>>, vector<1x16xf32>
    %545 = vector.broadcast %544 : vector<1x16xf32> to vector<2x16xf32>
    %546 = arith.addf %543, %545 : vector<2x16xf32>
    %c0_177 = arith.constant 0 : index
    %c0_178 = arith.constant 0 : index
    %547 = vector.load %arg25[%c0_177, %c0_178] : memref<2x16xf32, #tpu.memory_space<vmem>>, vector<2x16xf32>
    tpu.vector_store %arg25[%c0_177, %c0_178], %546 {strides = array<i32>} : memref<2x16xf32, #tpu.memory_space<vmem>>, vector<2x16xf32>,
    return
  }
}

</mosaic_0001>

<llo_original>
// kernel: tpu_custom_call.1
$region0: #{tpu_custom_call.1}
  #allocation0 [shape = 'u32[]', space=smem, size = 0x4, offset = 0x4, fixed_abs, tag = 'smem constant byte address 0x4 - core index']
  #allocation1 [shape = 'u32[144,128]{1,0:T(1,128)}', space=vmem, size = 0x12000, scoped, tag = 'internal scratch']
  %s0 = inlined_call_operand.vmem [shape: f32[16,8], index: 0, kind: input, shape index: {}]
  %s1 = inlined_call_operand.hbm [shape: f32[16,16], index: 1, kind: input, shape index: {}]
  %s2 = inlined_call_operand.hbm [shape: f32[2,16], index: 2, kind: input, shape index: {}]
  %s3 = inlined_call_operand.hbm [shape: f32[8,160], index: 3, kind: input, shape index: {}]
  %s4 = inlined_call_operand.hbm [shape: f32[1,160], index: 4, kind: input, shape index: {}]
  %s5 = inlined_call_operand.hbm [shape: f32[8,160], index: 5, kind: input, shape index: {}]
  %s6 = inlined_call_operand.hbm [shape: f32[1,160], index: 6, kind: input, shape index: {}]
  %s7 = inlined_call_operand.hbm [shape: f32[5,32], index: 7, kind: input, shape index: {}]
  %s8 = inlined_call_operand.hbm [shape: f32[1,32], index: 8, kind: input, shape index: {}]
  %s9 = inlined_call_operand.vmem [shape: f32[32,160], index: 9, kind: input, shape index: {}]
  %s10 = inlined_call_operand.hbm [shape: f32[1,160], index: 10, kind: input, shape index: {}]
  %s11 = inlined_call_operand.hbm [shape: f32[32,160], index: 11, kind: input, shape index: {}]
  %s12 = inlined_call_operand.hbm [shape: f32[1,160], index: 12, kind: input, shape index: {}]
  %s13 = inlined_call_operand.hbm [shape: f32[5,32], index: 13, kind: input, shape index: {}]
  %s14 = inlined_call_operand.hbm [shape: f32[1,32], index: 14, kind: input, shape index: {}]
  %s15 = inlined_call_operand.vmem [shape: f32[32,160], index: 15, kind: input, shape index: {}]
  %s16 = inlined_call_operand.vmem [shape: f32[1,160], index: 16, kind: input, shape index: {}]
  %s17 = inlined_call_operand.hbm [shape: f32[32,160], index: 17, kind: input, shape index: {}]
  %s18 = inlined_call_operand.hbm [shape: f32[1,160], index: 18, kind: input, shape index: {}]
  %s19 = inlined_call_operand.hbm [shape: f32[5,32], index: 19, kind: input, shape index: {}]
  %s20 = inlined_call_operand.vmem [shape: f32[1,32], index: 20, kind: input, shape index: {}]
  %s21 = inlined_call_operand.hbm [shape: f32[32,32], index: 21, kind: input, shape index: {}]
  %s22 = inlined_call_operand.vmem [shape: f32[1,32], index: 22, kind: input, shape index: {}]
  %s23 = inlined_call_operand.vmem [shape: f32[32,16], index: 23, kind: input, shape index: {}]
  %s24 = inlined_call_operand.vmem [shape: f32[1,16], index: 24, kind: input, shape index: {}]
  %s25 = inlined_call_operand.hbm [shape: f32[2,16], index: 25, kind: output, shape index: {}]
  %s26 = sld [smem:[#allocation0]]
  $region178: #{tpu_custom_call.1} parent=0
    _
  %s28 = ssub.s32 1, %s26
  %s29 = scalar_select 0, %s28, %s26
  $region1: #{tpu_custom_call.1} parent=0
    #allocation2 [shape = 'u8[8192]{0}', space=vmem, size = 0x2000, scoped, tag = 'input window, operand 1, single buffered']
    #allocation3 [shape = 's32[1]{0}', space=sflag, size = 0x4, scoped, tag = 'scoped memory for tpu_custom_call.1']
    #allocation4 [shape = 's32[1]{0}', space=sflag, size = 0x4, scoped, tag = 'scoped memory for tpu_custom_call.1']
    #allocation5 [shape = 'u8[1024]{0}', space=vmem, size = 0x400, scoped, tag = 'input window, operand 2, single buffered']
    #allocation6 [shape = 's32[1]{0}', space=sflag, size = 0x4, scoped, tag = 'scoped memory for tpu_custom_call.1']
    #allocation7 [shape = 'u8[8192]{0}', space=vmem, size = 0x2000, scoped, tag = 'input window, operand 3, single buffered']
    #allocation8 [shape = 'u8[1024]{0}', space=vmem, size = 0x400, scoped, tag = 'input window, operand 4, single buffered']
    #allocation9 [shape = 's32[1]{0}', space=sflag, size = 0x4, scoped, tag = 'scoped memory for tpu_custom_call.1']
    #allocation10 [shape = 'u8[8192]{0}', space=vmem, size = 0x2000, scoped, tag = 'input window, operand 5, single buffered']
    #allocation11 [shape = 'u8[1024]{0}', space=vmem, size = 0x400, scoped, tag = 'input window, operand 6, single buffered']
    #allocation12 [shape = 's32[1]{0}', space=sflag, size = 0x4, scoped, tag = 'scoped memory for tpu_custom_call.1']
    #allocation13 [shape = 'u8[4096]{0}', space=vmem, size = 0x1000, scoped, tag = 'input window, operand 7, single buffered']
    #allocation14 [shape = 'u8[512]{0}', space=vmem, size = 0x400, scoped, tag = 'input window, operand 8, single buffered']
    #allocation15 [shape = 's32[1]{0}', space=sflag, size = 0x4, scoped, tag = 'scoped memory for tpu_custom_call.1']
    #allocation16 [shape = 'u8[1024]{0}', space=vmem, size = 0x400, scoped, tag = 'input window, operand 10, single buffered']
    #allocation17 [shape = 'u8[32768]{0}', space=vmem, size = 0x8000, scoped, tag = 'input window, operand 11, single buffered']
    #allocation18 [shape = 's32[1]{0}', space=sflag, size = 0x4, scoped, tag = 'scoped memory for tpu_custom_call.1']
    #allocation19 [shape = 'u8[1024]{0}', space=vmem, size = 0x400, scoped, tag = 'input window, operand 12, single buffered']
    #allocation20 [shape = 'u8[4096]{0}', space=vmem, size = 0x1000, scoped, tag = 'input window, operand 13, single buffered']
    #allocation21 [shape = 's32[1]{0}', space=sflag, size = 0x4, scoped, tag = 'scoped memory for tpu_custom_call.1']
    #allocation22 [shape = 'u8[512]{0}', space=vmem, size = 0x400, scoped, tag = 'input window, operand 14, single buffered']
    #allocation23 [shape = 'u8[32768]{0}', space=vmem, size = 0x8000, scoped, tag = 'input window, operand 17, single buffered']
    #allocation24 [shape = 's32[1]{0}', space=sflag, size = 0x4, scoped, tag = 'scoped memory for tpu_custom_call.1']
    #allocation25 [shape = 'u8[1024]{0}', space=vmem, size = 0x400, scoped, tag = 'input window, operand 18, single buffered']
    #allocation26 [shape = 'u8[4096]{0}', space=vmem, size = 0x1000, scoped, tag = 'input window, operand 19, single buffered']
    #allocation27 [shape = 's32[1]{0}', space=sflag, size = 0x4, scoped, tag = 'scoped memory for tpu_custom_call.1']
    #allocation28 [shape = 'u8[16384]{0}', space=vmem, size = 0x4000, scoped, tag = 'input window, operand 21, single buffered']
    #allocation29 [shape = 'u8[1024]{0}', space=vmem, size = 0x400, scoped, tag = 'output window, operand 0, single buffered']
    %30 = vsyncpa [#allocation3], 0
    %31 = vsyncpa [#allocation6], 0
    %32 = vsyncpa [#allocation9], 0
    %33 = vsyncpa [#allocation12], 0
    %34 = vsyncpa [#allocation15], 0
    %35 = vsyncpa [#allocation18], 0
    %36 = vsyncpa [#allocation21], 0
    %37 = vsyncpa [#allocation24], 0
    %38 = vsyncpa [#allocation27], 0
    %39 = vsyncpa [#allocation4], 0
    // Predicated region
    $region2: #{tpu_custom_call.1} parent=1 // pred_check
      _
    $region3: #{tpu_custom_call.1} parent=1 // pred_check_branch
      %41 = sbr.rel (0) target = $region5
    $region4: #{tpu_custom_call.1} parent=1 // pred_region
      _
    $region5: #{tpu_custom_call.1} parent=1 // pred_fallthru
      _
    // Predicated region
    $region6: #{tpu_custom_call.1} parent=1 // pred_check
      _
    $region7: #{tpu_custom_call.1} parent=1 // pred_check_branch
      %43 = sbr.rel (0) target = $region9
    $region8: #{tpu_custom_call.1} parent=1 // pred_region
      %s45 = ssub.s32 256, 256
      %46 = vsyncadd [#allocation3], %s45
      %s47 = sshll.u32 [#allocation2], 4
      %s48 = int_to_ptr.vmem [resolvable:$true] %s47
      %53 = dma.hbm_to_vmem [thread:$0]  %s1, 256, %s48, [#allocation3], 128, 128, 8
    $region9: #{tpu_custom_call.1} parent=1 // pred_fallthru
      _
    // Predicated region
    $region10: #{tpu_custom_call.1} parent=1 // pred_check
      _
    $region11: #{tpu_custom_call.1} parent=1 // pred_check_branch
      %55 = sbr.rel (0) target = $region13
    $region12: #{tpu_custom_call.1} parent=1 // pred_region
      %s57 = ssub.s32 32, 32
      %58 = vsyncadd [#allocation6], %s57
      %s60 = sshll.u32 [#allocation5], 4
      %s61 = int_to_ptr.vmem [resolvable:$true] %s60
      %63 = dma.hbm_to_vmem [thread:$0]  %s2, 32, %s61, [#allocation6]
    $region13: #{tpu_custom_call.1} parent=1 // pred_fallthru
      _
    // Predicated region
    $region14: #{tpu_custom_call.1} parent=1 // pred_check
      _
    $region15: #{tpu_custom_call.1} parent=1 // pred_check_branch
      %65 = sbr.rel (0) target = $region17
    $region16: #{tpu_custom_call.1} parent=1 // pred_region
      %s67 = ssub.s32 256, 256
      %68 = vsyncadd [#allocation6], %s67
      %s70 = sshll.u32 [#allocation7], 4
      %s71 = int_to_ptr.vmem [resolvable:$true] %s70
      %73 = dma.hbm_to_vmem [thread:$0]  %s3, 256, %s71, [#allocation6]
    $region17: #{tpu_custom_call.1} parent=1 // pred_fallthru
      _
    // Predicated region
    $region18: #{tpu_custom_call.1} parent=1 // pred_check
      _
    $region19: #{tpu_custom_call.1} parent=1 // pred_check_branch
      %75 = sbr.rel (0) target = $region21
    $region20: #{tpu_custom_call.1} parent=1 // pred_region
      %s77 = ssub.s32 32, 32
      %78 = vsyncadd [#allocation9], %s77
      %s80 = sshll.u32 [#allocation8], 4
      %s81 = int_to_ptr.vmem [resolvable:$true] %s80
      %83 = dma.hbm_to_vmem [thread:$0]  %s4, 32, %s81, [#allocation9]
    $region21: #{tpu_custom_call.1} parent=1 // pred_fallthru
      _
    // Predicated region
    $region22: #{tpu_custom_call.1} parent=1 // pred_check
      _
    $region23: #{tpu_custom_call.1} parent=1 // pred_check_branch
      %85 = sbr.rel (0) target = $region25
    $region24: #{tpu_custom_call.1} parent=1 // pred_region
      %s87 = ssub.s32 256, 256
      %88 = vsyncadd [#allocation9], %s87
      %s90 = sshll.u32 [#allocation10], 4
      %s91 = int_to_ptr.vmem [resolvable:$true] %s90
      %93 = dma.hbm_to_vmem [thread:$0]  %s5, 256, %s91, [#allocation9]
    $region25: #{tpu_custom_call.1} parent=1 // pred_fallthru
      _
    // Predicated region
    $region26: #{tpu_custom_call.1} parent=1 // pred_check
      _
    $region27: #{tpu_custom_call.1} parent=1 // pred_check_branch
      %95 = sbr.rel (0) target = $region29
    $region28: #{tpu_custom_call.1} parent=1 // pred_region
      %s97 = ssub.s32 32, 32
      %98 = vsyncadd [#allocation12], %s97
      %s100 = sshll.u32 [#allocation11], 4
      %s101 = int_to_ptr.vmem [resolvable:$true] %s100
      %103 = dma.hbm_to_vmem [thread:$0]  %s6, 32, %s101, [#allocation12]
    $region29: #{tpu_custom_call.1} parent=1 // pred_fallthru
      _
    // Predicated region
    $region30: #{tpu_custom_call.1} parent=1 // pred_check
      _
    $region31: #{tpu_custom_call.1} parent=1 // pred_check_branch
      %105 = sbr.rel (0) target = $region33
    $region32: #{tpu_custom_call.1} parent=1 // pred_region
      %s107 = ssub.s32 128, 128
      %108 = vsyncadd [#allocation12], %s107
      %s110 = sshll.u32 [#allocation13], 4
      %s111 = int_to_ptr.vmem [resolvable:$true] %s110
      %113 = dma.hbm_to_vmem [thread:$0]  %s7, 128, %s111, [#allocation12]
    $region33: #{tpu_custom_call.1} parent=1 // pred_fallthru
      _
    // Predicated region
    $region34: #{tpu_custom_call.1} parent=1 // pred_check
      _
    $region35: #{tpu_custom_call.1} parent=1 // pred_check_branch
      %115 = sbr.rel (0) target = $region37
    $region36: #{tpu_custom_call.1} parent=1 // pred_region
      %s117 = ssub.s32 16, 16
      %118 = vsyncadd [#allocation15], %s117
      %s120 = sshll.u32 [#allocation14], 4
      %s121 = int_to_ptr.vmem [resolvable:$true] %s120
      %123 = dma.hbm_to_vmem [thread:$0]  %s8, 16, %s121, [#allocation15]
    $region37: #{tpu_custom_call.1} parent=1 // pred_fallthru
      _
    // Predicated region
    $region38: #{tpu_custom_call.1} parent=1 // pred_check
      _
    $region39: #{tpu_custom_call.1} parent=1 // pred_check_branch
      %125 = sbr.rel (0) target = $region41
    $region40: #{tpu_custom_call.1} parent=1 // pred_region
      _
    $region41: #{tpu_custom_call.1} parent=1 // pred_fallthru
      _
    // Predicated region
    $region42: #{tpu_custom_call.1} parent=1 // pred_check
      _
    $region43: #{tpu_custom_call.1} parent=1 // pred_check_branch
      %127 = sbr.rel (0) target = $region45
    $region44: #{tpu_custom_call.1} parent=1 // pred_region
      %s129 = ssub.s32 32, 32
      %130 = vsyncadd [#allocation15], %s129
      %s132 = sshll.u32 [#allocation16], 4
      %s133 = int_to_ptr.vmem [resolvable:$true] %s132
      %135 = dma.hbm_to_vmem [thread:$0]  %s10, 32, %s133, [#allocation15]
    $region45: #{tpu_custom_call.1} parent=1 // pred_fallthru
      _
    // Predicated region
    $region46: #{tpu_custom_call.1} parent=1 // pred_check
      _
    $region47: #{tpu_custom_call.1} parent=1 // pred_check_branch
      %137 = sbr.rel (0) target = $region49
    $region48: #{tpu_custom_call.1} parent=1 // pred_region
      %s139 = ssub.s32 1024, 1024
      %140 = vsyncadd [#allocation18], %s139
      %s141 = sshll.u32 [#allocation17], 4
      %s142 = int_to_ptr.vmem [resolvable:$true] %s141
      %147 = dma.hbm_to_vmem [thread:$0]  %s11, 1024, %s142, [#allocation18], 256, 256, 16
    $region49: #{tpu_custom_call.1} parent=1 // pred_fallthru
      _
    // Predicated region
    $region50: #{tpu_custom_call.1} parent=1 // pred_check
      _
    $region51: #{tpu_custom_call.1} parent=1 // pred_check_branch
      %149 = sbr.rel (0) target = $region53
    $region52: #{tpu_custom_call.1} parent=1 // pred_region
      %s151 = ssub.s32 32, 32
      %152 = vsyncadd [#allocation18], %s151
      %s154 = sshll.u32 [#allocation19], 4
      %s155 = int_to_ptr.vmem [resolvable:$true] %s154
      %157 = dma.hbm_to_vmem [thread:$0]  %s12, 32, %s155, [#allocation18]
    $region53: #{tpu_custom_call.1} parent=1 // pred_fallthru
      _
    // Predicated region
    $region54: #{tpu_custom_call.1} parent=1 // pred_check
      _
    $region55: #{tpu_custom_call.1} parent=1 // pred_check_branch
      %159 = sbr.rel (0) target = $region57
    $region56: #{tpu_custom_call.1} parent=1 // pred_region
      %s161 = ssub.s32 128, 128
      %162 = vsyncadd [#allocation21], %s161
      %s164 = sshll.u32 [#allocation20], 4
      %s165 = int_to_ptr.vmem [resolvable:$true] %s164
      %167 = dma.hbm_to_vmem [thread:$0]  %s13, 128, %s165, [#allocation21]
    $region57: #{tpu_custom_call.1} parent=1 // pred_fallthru
      _
    // Predicated region
    $region58: #{tpu_custom_call.1} parent=1 // pred_check
      _
    $region59: #{tpu_custom_call.1} parent=1 // pred_check_branch
      %169 = sbr.rel (0) target = $region61
    $region60: #{tpu_custom_call.1} parent=1 // pred_region
      %s171 = ssub.s32 16, 16
      %172 = vsyncadd [#allocation21], %s171
      %s174 = sshll.u32 [#allocation22], 4
      %s175 = int_to_ptr.vmem [resolvable:$true] %s174
      %177 = dma.hbm_to_vmem [thread:$0]  %s14, 16, %s175, [#allocation21]
    $region61: #{tpu_custom_call.1} parent=1 // pred_fallthru
      _
    // Predicated region
    $region62: #{tpu_custom_call.1} parent=1 // pred_check
      _
    $region63: #{tpu_custom_call.1} parent=1 // pred_check_branch
      %179 = sbr.rel (0) target = $region65
    $region64: #{tpu_custom_call.1} parent=1 // pred_region
      _
    $region65: #{tpu_custom_call.1} parent=1 // pred_fallthru
      _
    // Predicated region
    $region66: #{tpu_custom_call.1} parent=1 // pred_check
      _
    $region67: #{tpu_custom_call.1} parent=1 // pred_check_branch
      %181 = sbr.rel (0) target = $region69
    $region68: #{tpu_custom_call.1} parent=1 // pred_region
      _
    $region69: #{tpu_custom_call.1} parent=1 // pred_fallthru
      _
    // Predicated region
    $region70: #{tpu_custom_call.1} parent=1 // pred_check
      _
    $region71: #{tpu_custom_call.1} parent=1 // pred_check_branch
      %183 = sbr.rel (0) target = $region73
    $region72: #{tpu_custom_call.1} parent=1 // pred_region
      %s185 = ssub.s32 1024, 1024
      %186 = vsyncadd [#allocation24], %s185
      %s187 = sshll.u32 [#allocation23], 4
      %s188 = int_to_ptr.vmem [resolvable:$true] %s187
      %193 = dma.hbm_to_vmem [thread:$0]  %s17, 1024, %s188, [#allocation24], 256, 256, 16
    $region73: #{tpu_custom_call.1} parent=1 // pred_fallthru
      _
    // Predicated region
    $region74: #{tpu_custom_call.1} parent=1 // pred_check
      _
    $region75: #{tpu_custom_call.1} parent=1 // pred_check_branch
      %195 = sbr.rel (0) target = $region77
    $region76: #{tpu_custom_call.1} parent=1 // pred_region
      %s197 = ssub.s32 32, 32
      %198 = vsyncadd [#allocation24], %s197
      %s200 = sshll.u32 [#allocation25], 4
      %s201 = int_to_ptr.vmem [resolvable:$true] %s200
      %203 = dma.hbm_to_vmem [thread:$0]  %s18, 32, %s201, [#allocation24]
    $region77: #{tpu_custom_call.1} parent=1 // pred_fallthru
      _
    // Predicated region
    $region78: #{tpu_custom_call.1} parent=1 // pred_check
      _
    $region79: #{tpu_custom_call.1} parent=1 // pred_check_branch
      %205 = sbr.rel (0) target = $region81
    $region80: #{tpu_custom_call.1} parent=1 // pred_region
      %s207 = ssub.s32 128, 128
      %208 = vsyncadd [#allocation27], %s207
      %s210 = sshll.u32 [#allocation26], 4
      %s211 = int_to_ptr.vmem [resolvable:$true] %s210
      %213 = dma.hbm_to_vmem [thread:$0]  %s19, 128, %s211, [#allocation27]
    $region81: #{tpu_custom_call.1} parent=1 // pred_fallthru
      _
    // Predicated region
    $region82: #{tpu_custom_call.1} parent=1 // pred_check
      _
    $region83: #{tpu_custom_call.1} parent=1 // pred_check_branch
      %215 = sbr.rel (0) target = $region85
    $region84: #{tpu_custom_call.1} parent=1 // pred_region
      _
    $region85: #{tpu_custom_call.1} parent=1 // pred_fallthru
      _
    // Predicated region
    $region86: #{tpu_custom_call.1} parent=1 // pred_check
      _
    $region87: #{tpu_custom_call.1} parent=1 // pred_check_branch
      %217 = sbr.rel (0) target = $region89
    $region88: #{tpu_custom_call.1} parent=1 // pred_region
      %s219 = ssub.s32 512, 512
      %220 = vsyncadd [#allocation27], %s219
      %s221 = sshll.u32 [#allocation28], 4
      %s222 = int_to_ptr.vmem [resolvable:$true] %s221
      %227 = dma.hbm_to_vmem [thread:$0]  %s21, 512, %s222, [#allocation27], 128, 128, 8
    $region89: #{tpu_custom_call.1} parent=1 // pred_fallthru
      _
    // Predicated region
    $region90: #{tpu_custom_call.1} parent=1 // pred_check
      _
    $region91: #{tpu_custom_call.1} parent=1 // pred_check_branch
      %229 = sbr.rel (0) target = $region93
    $region92: #{tpu_custom_call.1} parent=1 // pred_region
      _
    $region93: #{tpu_custom_call.1} parent=1 // pred_fallthru
      _
    // Predicated region
    $region94: #{tpu_custom_call.1} parent=1 // pred_check
      _
    $region95: #{tpu_custom_call.1} parent=1 // pred_check_branch
      %231 = sbr.rel (0) target = $region97
    $region96: #{tpu_custom_call.1} parent=1 // pred_region
      _
    $region97: #{tpu_custom_call.1} parent=1 // pred_fallthru
      _
    // Predicated region
    $region98: #{tpu_custom_call.1} parent=1 // pred_check
      _
    $region99: #{tpu_custom_call.1} parent=1 // pred_check_branch
      %233 = sbr.rel (0) target = $region101
    $region100: #{tpu_custom_call.1} parent=1 // pred_region
      _
    $region101: #{tpu_custom_call.1} parent=1 // pred_fallthru
      _
    // Predicated region
    $region102: #{tpu_custom_call.1} parent=1 // pred_check
      _
    $region103: #{tpu_custom_call.1} parent=1 // pred_check_branch
      %235 = sbr.rel (0) target = $region105
    $region104: #{tpu_custom_call.1} parent=1 // pred_region
      %236 = dma.done [#allocation3], 256
    $region105: #{tpu_custom_call.1} parent=1 // pred_fallthru
      _
    // Predicated region
    $region106: #{tpu_custom_call.1} parent=1 // pred_check
      _
    $region107: #{tpu_custom_call.1} parent=1 // pred_check_branch
      %238 = sbr.rel (0) target = $region109
    $region108: #{tpu_custom_call.1} parent=1 // pred_region
      %239 = dma.done [#allocation6], 32
    $region109: #{tpu_custom_call.1} parent=1 // pred_fallthru
      _
    // Predicated region
    $region110: #{tpu_custom_call.1} parent=1 // pred_check
      _
    $region111: #{tpu_custom_call.1} parent=1 // pred_check_branch
      %241 = sbr.rel (0) target = $region113
    $region112: #{tpu_custom_call.1} parent=1 // pred_region
      %242 = dma.done [#allocation6], 256
    $region113: #{tpu_custom_call.1} parent=1 // pred_fallthru
      _
    // Predicated region
    $region114: #{tpu_custom_call.1} parent=1 // pred_check
      _
    $region115: #{tpu_custom_call.1} parent=1 // pred_check_branch
      %244 = sbr.rel (0) target = $region117
    $region116: #{tpu_custom_call.1} parent=1 // pred_region
      %245 = dma.done [#allocation9], 32
    $region117: #{tpu_custom_call.1} parent=1 // pred_fallthru
      _
    // Predicated region
    $region118: #{tpu_custom_call.1} parent=1 // pred_check
      _
    $region119: #{tpu_custom_call.1} parent=1 // pred_check_branch
      %247 = sbr.rel (0) target = $region121
    $region120: #{tpu_custom_call.1} parent=1 // pred_region
      %248 = dma.done [#allocation9], 256
    $region121: #{tpu_custom_call.1} parent=1 // pred_fallthru
      _
    // Predicated region
    $region122: #{tpu_custom_call.1} parent=1 // pred_check
      _
    $region123: #{tpu_custom_call.1} parent=1 // pred_check_branch
      %250 = sbr.rel (0) target = $region125
    $region124: #{tpu_custom_call.1} parent=1 // pred_region
      %251 = dma.done [#allocation12], 32
    $region125: #{tpu_custom_call.1} parent=1 // pred_fallthru
      _
    // Predicated region
    $region126: #{tpu_custom_call.1} parent=1 // pred_check
      _
    $region127: #{tpu_custom_call.1} parent=1 // pred_check_branch
      %253 = sbr.rel (0) target = $region129
    $region128: #{tpu_custom_call.1} parent=1 // pred_region
      %254 = dma.done [#allocation12], 128
    $region129: #{tpu_custom_call.1} parent=1 // pred_fallthru
      _
    // Predicated region
    $region130: #{tpu_custom_call.1} parent=1 // pred_check
      _
    $region131: #{tpu_custom_call.1} parent=1 // pred_check_branch
      %256 = sbr.rel (0) target = $region133
    $region132: #{tpu_custom_call.1} parent=1 // pred_region
      %257 = dma.done [#allocation15], 16
    $region133: #{tpu_custom_call.1} parent=1 // pred_fallthru
      _
    // Predicated region
    $region134: #{tpu_custom_call.1} parent=1 // pred_check
      _
    $region135: #{tpu_custom_call.1} parent=1 // pred_check_branch
      %259 = sbr.rel (0) target = $region137
    $region136: #{tpu_custom_call.1} parent=1 // pred_region
      %260 = dma.done [#allocation15], 32
    $region137: #{tpu_custom_call.1} parent=1 // pred_fallthru
      _
    // Predicated region
    $region138: #{tpu_custom_call.1} parent=1 // pred_check
      _
    $region139: #{tpu_custom_call.1} parent=1 // pred_check_branch
      %262 = sbr.rel (0) target = $region141
    $region140: #{tpu_custom_call.1} parent=1 // pred_region
      %263 = dma.done [#allocation18], 1024
    $region141: #{tpu_custom_call.1} parent=1 // pred_fallthru
      _
    // Predicated region
    $region142: #{tpu_custom_call.1} parent=1 // pred_check
      _
    $region143: #{tpu_custom_call.1} parent=1 // pred_check_branch
      %265 = sbr.rel (0) target = $region145
    $region144: #{tpu_custom_call.1} parent=1 // pred_region
      %266 = dma.done [#allocation18], 32
    $region145: #{tpu_custom_call.1} parent=1 // pred_fallthru
      _
    // Predicated region
    $region146: #{tpu_custom_call.1} parent=1 // pred_check
      _
    $region147: #{tpu_custom_call.1} parent=1 // pred_check_branch
      %268 = sbr.rel (0) target = $region149
    $region148: #{tpu_custom_call.1} parent=1 // pred_region
      %269 = dma.done [#allocation21], 128
    $region149: #{tpu_custom_call.1} parent=1 // pred_fallthru
      _
    // Predicated region
    $region150: #{tpu_custom_call.1} parent=1 // pred_check
      _
    $region151: #{tpu_custom_call.1} parent=1 // pred_check_branch
      %271 = sbr.rel (0) target = $region153
    $region152: #{tpu_custom_call.1} parent=1 // pred_region
      %272 = dma.done [#allocation21], 16
    $region153: #{tpu_custom_call.1} parent=1 // pred_fallthru
      _
    // Predicated region
    $region154: #{tpu_custom_call.1} parent=1 // pred_check
      _
    $region155: #{tpu_custom_call.1} parent=1 // pred_check_branch
      %274 = sbr.rel (0) target = $region157
    $region156: #{tpu_custom_call.1} parent=1 // pred_region
      %275 = dma.done [#allocation24], 1024
    $region157: #{tpu_custom_call.1} parent=1 // pred_fallthru
      _
    // Predicated region
    $region158: #{tpu_custom_call.1} parent=1 // pred_check
      _
    $region159: #{tpu_custom_call.1} parent=1 // pred_check_branch
      %277 = sbr.rel (0) target = $region161
    $region160: #{tpu_custom_call.1} parent=1 // pred_region
      %278 = dma.done [#allocation24], 32
    $region161: #{tpu_custom_call.1} parent=1 // pred_fallthru
      _
    // Predicated region
    $region162: #{tpu_custom_call.1} parent=1 // pred_check
      _
    $region163: #{tpu_custom_call.1} parent=1 // pred_check_branch
      %280 = sbr.rel (0) target = $region165
    $region164: #{tpu_custom_call.1} parent=1 // pred_region
      %281 = dma.done [#allocation27], 128
    $region165: #{tpu_custom_call.1} parent=1 // pred_fallthru
      _
    // Predicated region
    $region166: #{tpu_custom_call.1} parent=1 // pred_check
      _
    $region167: #{tpu_custom_call.1} parent=1 // pred_check_branch
      %283 = sbr.rel (0) target = $region169
    $region168: #{tpu_custom_call.1} parent=1 // pred_region
      %284 = dma.done [#allocation27], 512
    $region169: #{tpu_custom_call.1} parent=1 // pred_fallthru
      _
    %v286 = vld [vmem:[#allocation2] sm:$0xff]
    %v287 = vld [vmem:[#allocation2 + $0x8] sm:$0xff]
    %vm288 = vcmp.gt.f32.partialorder %v286, 0.0
    %vm289 = vcmp.gt.f32.partialorder %v287, 0.0
    %v290 = vld [vmem:[%s0] sm:$0xff]
    %v291 = vld [vmem:[%s0 + $0x8] sm:$0xff]
    %v292 = vpack.c.bf16 %v291, %v290
    %v293 = vld [vmem:[#allocation7] sm:$0xff]
    %v294 = vld [vmem:[#allocation7 + $0x8] sm:$0xff]
    %v295 = vpack.c.bf16 %v293, %v293
    %v296 = vpack.c.bf16 %v294, %v294
    %v297 = vld [vmem:[#allocation8] sm:$0x3]
    %v299 = vlaneseq
    %v300 = vshrl.u32 %v299, 7
    %v301 = vsub.s32 0, %v300
    %v302 = vrot.slane %v297, %v301
    %v303 = vlaneseq
    %v304 = vshrl.u32 %v303, 7
    %v305 = vsub.s32 1, %v304
    %v306 = vrot.slane %v297, %v305
    %vm309 = vcmask 64512
    %v311 = vsel %vm309, %v292, 0
    %vm313 = vcmask 1043456
    %v315 = vsel %vm313, %v295, 0
    %v318 = vsel %vm313, %v296, 0
    %320 = vmatprep.subr.bf16.mxu0 %v318
    %321 = vmatpush1.bf16.msra.mxu0 %v315
    %322 = vmatprep.subr.bf16.mxu0 0
    %323 = vmatpush1.bf16.msra.mxu0 0
    %324 = vmatprep.subr.bf16.mxu0 0
    %325 = vmatpush1.bf16.msra.mxu0 0
    %326 = vmatprep.subr.bf16.mxu0 0
    %327 = vmatpush1.bf16.msra.mxu0 0
    %328 = vmatprep.subr.bf16.mxu0 0
    %329 = vmatpush1.bf16.msra.mxu0 0
    %330 = vmatprep.subr.bf16.mxu0 0
    %331 = vmatpush1.bf16.msra.mxu0 0
    %332 = vmatprep.subr.bf16.mxu0 0
    %333 = vmatpush1.bf16.msra.mxu0 0
    %334 = vmatprep.subr.bf16.mxu0 0
    %335 = vmatpush1.bf16.msra.mxu0 0
    %336 = vmatprep.subr.bf16.mxu0 0
    %337 = vmatpush1.bf16.msra.mxu0 0
    %338 = vmatprep.subr.bf16.mxu0 0
    %339 = vmatpush1.bf16.msra.mxu0 0
    %340 = vmatprep.subr.bf16.mxu0 0
    %341 = vmatpush1.bf16.msra.mxu0 0
    %342 = vmatprep.subr.bf16.mxu0 0
    %343 = vmatpush1.bf16.msra.mxu0 0
    %344 = vmatprep.subr.bf16.mxu0 0
    %345 = vmatpush1.bf16.msra.mxu0 0
    %346 = vmatprep.subr.bf16.mxu0 0
    %347 = vmatpush1.bf16.msra.mxu0 0
    %348 = vmatprep.subr.bf16.mxu0 0
    %349 = vmatpush1.bf16.msra.mxu0 0
    %350 = vmatprep.subr.bf16.mxu0 0
    %351 = vmatpush1.bf16.msra.mxu0 0
    %352 = vmatprep.mubr.bf16.mxu0 0
    %353 = vmatmul.mubr.bf16.gmra.mrb[0].mxu0 %v311
    %v354 = vpop.f32.mrb[0].mxu0
    %v355 = vadd.f32 %v302, %v354
    %v356 = vpop.f32.mrb[0].mxu0
    %v357 = vadd.f32 %v306, %v356
    %v358 = vpop.f32.mrb[0].mxu0
    %v359 = vadd.f32 %v302, %v358
    %v360 = vpop.f32.mrb[0].mxu0
    %v361 = vadd.f32 %v306, %v360
    %362 = vdwg.mxu0
    %v363 = vld [vmem:[#allocation10] sm:$0xff]
    %v364 = vld [vmem:[#allocation10 + $0x8] sm:$0xff]
    %v365 = vpack.c.bf16 %v363, %v363
    %v366 = vpack.c.bf16 %v364, %v364
    %v367 = vld [vmem:[#allocation11] sm:$0x3]
    %v369 = vlaneseq
    %v370 = vshrl.u32 %v369, 7
    %v371 = vsub.s32 0, %v370
    %v372 = vrot.slane %v367, %v371
    %v373 = vlaneseq
    %v374 = vshrl.u32 %v373, 7
    %v375 = vsub.s32 1, %v374
    %v376 = vrot.slane %v367, %v375
    %v380 = vsel %vm313, %v365, 0
    %v383 = vsel %vm313, %v366, 0
    %385 = vmatprep.subr.bf16.mxu0 %v383
    %386 = vmatpush1.bf16.msra.mxu0 %v380
    %387 = vmatprep.subr.bf16.mxu0 0
    %388 = vmatpush1.bf16.msra.mxu0 0
    %389 = vmatprep.subr.bf16.mxu0 0
    %390 = vmatpush1.bf16.msra.mxu0 0
    %391 = vmatprep.subr.bf16.mxu0 0
    %392 = vmatpush1.bf16.msra.mxu0 0
    %393 = vmatprep.subr.bf16.mxu0 0
    %394 = vmatpush1.bf16.msra.mxu0 0
    %395 = vmatprep.subr.bf16.mxu0 0
    %396 = vmatpush1.bf16.msra.mxu0 0
    %397 = vmatprep.subr.bf16.mxu0 0
    %398 = vmatpush1.bf16.msra.mxu0 0
    %399 = vmatprep.subr.bf16.mxu0 0
    %400 = vmatpush1.bf16.msra.mxu0 0
    %401 = vmatprep.subr.bf16.mxu0 0
    %402 = vmatpush1.bf16.msra.mxu0 0
    %403 = vmatprep.subr.bf16.mxu0 0
    %404 = vmatpush1.bf16.msra.mxu0 0
    %405 = vmatprep.subr.bf16.mxu0 0
    %406 = vmatpush1.bf16.msra.mxu0 0
    %407 = vmatprep.subr.bf16.mxu0 0
    %408 = vmatpush1.bf16.msra.mxu0 0
    %409 = vmatprep.subr.bf16.mxu0 0
    %410 = vmatpush1.bf16.msra.mxu0 0
    %411 = vmatprep.subr.bf16.mxu0 0
    %412 = vmatpush1.bf16.msra.mxu0 0
    %413 = vmatprep.subr.bf16.mxu0 0
    %414 = vmatpush1.bf16.msra.mxu0 0
    %415 = vmatprep.subr.bf16.mxu0 0
    %416 = vmatpush1.bf16.msra.mxu0 0
    %417 = vmatprep.mubr.bf16.mxu0 0
    %418 = vmatmul.mubr.bf16.gmra.mrb[0].mxu0 %v311
    %v419 = vpop.f32.mrb[0].mxu0
    %v420 = vadd.f32 %v372, %v419
    %v421 = vpop.f32.mrb[0].mxu0
    %v422 = vadd.f32 %v376, %v421
    %v423 = vpop.f32.mrb[0].mxu0
    %v424 = vadd.f32 %v372, %v423
    %v425 = vpop.f32.mrb[0].mxu0
    %v426 = vadd.f32 %v376, %v425
    %427 = vdwg.mxu0
    %v430 = vcombine.high %v420, %v420
    %v432 = vunpack.c.l.s4 1966171168
    %v433 = vunpack.c.0.s8 %v432
    %v434 = vlaneseq
    %v435 = vshrl.u32 %v434, 7
    %v436 = vsub.s32 %v433, %v435
    %v437 = vrot.slane %v420, %v436
    %v439 = vunpack.c.l.s4 1966171168
    %v440 = vunpack.c.0.s8 %v439
    %v441 = vlaneseq
    %v442 = vshrl.u32 %v441, 7
    %v443 = vsub.s32 %v440, %v442
    %v444 = vrot.slane %v430, %v443
    %v445 = vcombine.high %v437, %v437
    %v446 = vcombine.high %v444, %v444
    %v448 = vunpack.c.l.s4 1966171168
    %v449 = vunpack.c.0.s8 %v448
    %v450 = vlaneseq
    %v451 = vshrl.u32 %v450, 7
    %v452 = vsub.s32 %v449, %v451
    %v453 = vrot.slane %v437, %v452
    %v455 = vunpack.c.l.s4 1966171168
    %v456 = vunpack.c.0.s8 %v455
    %v457 = vlaneseq
    %v458 = vshrl.u32 %v457, 7
    %v459 = vsub.s32 %v456, %v458
    %v460 = vrot.slane %v444, %v459
    %v462 = vunpack.c.l.s4 1966171168
    %v463 = vunpack.c.0.s8 %v462
    %v464 = vlaneseq
    %v465 = vshrl.u32 %v464, 7
    %v466 = vsub.s32 %v463, %v465
    %v467 = vrot.slane %v445, %v466
    %v469 = vunpack.c.l.s4 1966171168
    %v470 = vunpack.c.0.s8 %v469
    %v471 = vlaneseq
    %v472 = vshrl.u32 %v471, 7
    %v473 = vsub.s32 %v470, %v472
    %v474 = vrot.slane %v446, %v473
    %v475 = vcombine.high %v453, %v453
    %v476 = vcombine.high %v460, %v460
    %v477 = vcombine.high %v467, %v467
    %v478 = vcombine.high %v474, %v474
    %v479 = vcombine.high %v424, %v424
    %v481 = vunpack.c.l.s4 1966171168
    %v482 = vunpack.c.0.s8 %v481
    %v483 = vlaneseq
    %v484 = vshrl.u32 %v483, 7
    %v485 = vsub.s32 %v482, %v484
    %v486 = vrot.slane %v424, %v485
    %v488 = vunpack.c.l.s4 1966171168
    %v489 = vunpack.c.0.s8 %v488
    %v490 = vlaneseq
    %v491 = vshrl.u32 %v490, 7
    %v492 = vsub.s32 %v489, %v491
    %v493 = vrot.slane %v479, %v492
    %v494 = vcombine.high %v486, %v486
    %v495 = vcombine.high %v493, %v493
    %v497 = vunpack.c.l.s4 1966171168
    %v498 = vunpack.c.0.s8 %v497
    %v499 = vlaneseq
    %v500 = vshrl.u32 %v499, 7
    %v501 = vsub.s32 %v498, %v500
    %v502 = vrot.slane %v486, %v501
    %v504 = vunpack.c.l.s4 1966171168
    %v505 = vunpack.c.0.s8 %v504
    %v506 = vlaneseq
    %v507 = vshrl.u32 %v506, 7
    %v508 = vsub.s32 %v505, %v507
    %v509 = vrot.slane %v493, %v508
    %v511 = vunpack.c.l.s4 1966171168
    %v512 = vunpack.c.0.s8 %v511
    %v513 = vlaneseq
    %v514 = vshrl.u32 %v513, 7
    %v515 = vsub.s32 %v512, %v514
    %v516 = vrot.slane %v494, %v515
    %v518 = vunpack.c.l.s4 1966171168
    %v519 = vunpack.c.0.s8 %v518
    %v520 = vlaneseq
    %v521 = vshrl.u32 %v520, 7
    %v522 = vsub.s32 %v519, %v521
    %v523 = vrot.slane %v495, %v522
    %v524 = vcombine.high %v502, %v502
    %v525 = vcombine.high %v509, %v509
    %v526 = vcombine.high %v516, %v516
    %v527 = vcombine.high %v523, %v523
    %v528 = vlaneseq
    %v529 = vshrl.u32 %v528, 7
    %v530 = vsub.s32 0, %v529
    %v531 = vrot.slane %v453, %v530
    %v532 = vlaneseq
    %v533 = vshrl.u32 %v532, 7
    %v534 = vsub.s32 0, %v533
    %v535 = vrot.slane %v467, %v534
    %v536 = vlaneseq
    %v537 = vshrl.u32 %v536, 7
    %v538 = vsub.s32 0, %v537
    %v539 = vrot.slane %v475, %v538
    %v540 = vlaneseq
    %v541 = vshrl.u32 %v540, 7
    %v542 = vsub.s32 0, %v541
    %v543 = vrot.slane %v477, %v542
    %v544 = vlaneseq
    %v545 = vshrl.u32 %v544, 7
    %v546 = vsub.s32 0, %v545
    %v547 = vrot.slane %v460, %v546
    %v548 = vlaneseq
    %v549 = vshrl.u32 %v548, 7
    %v550 = vsub.s32 0, %v549
    %v551 = vrot.slane %v474, %v550
    %v552 = vlaneseq
    %v553 = vshrl.u32 %v552, 7
    %v554 = vsub.s32 0, %v553
    %v555 = vrot.slane %v476, %v554
    %v556 = vlaneseq
    %v557 = vshrl.u32 %v556, 7
    %v558 = vsub.s32 0, %v557
    %v559 = vrot.slane %v478, %v558
    %v560 = vlaneseq
    %v561 = vshrl.u32 %v560, 7
    %v562 = vsub.s32 0, %v561
    %v563 = vrot.slane %v502, %v562
    %v564 = vlaneseq
    %v565 = vshrl.u32 %v564, 7
    %v566 = vsub.s32 0, %v565
    %v567 = vrot.slane %v516, %v566
    %v568 = vlaneseq
    %v569 = vshrl.u32 %v568, 7
    %v570 = vsub.s32 0, %v569
    %v571 = vrot.slane %v524, %v570
    %v572 = vlaneseq
    %v573 = vshrl.u32 %v572, 7
    %v574 = vsub.s32 0, %v573
    %v575 = vrot.slane %v526, %v574
    %v576 = vlaneseq
    %v577 = vshrl.u32 %v576, 7
    %v578 = vsub.s32 0, %v577
    %v579 = vrot.slane %v509, %v578
    %v580 = vlaneseq
    %v581 = vshrl.u32 %v580, 7
    %v582 = vsub.s32 0, %v581
    %v583 = vrot.slane %v523, %v582
    %v584 = vlaneseq
    %v585 = vshrl.u32 %v584, 7
    %v586 = vsub.s32 0, %v585
    %v587 = vrot.slane %v525, %v586
    %v588 = vlaneseq
    %v589 = vshrl.u32 %v588, 7
    %v590 = vsub.s32 0, %v589
    %v591 = vrot.slane %v527, %v590
    %v608 = vadd.f32 %v531, %v355
    %v609 = vadd.f32 %v531, %v359
    %v610 = vadd.f32 %v535, %v355
    %v611 = vadd.f32 %v535, %v359
    %v612 = vadd.f32 %v539, %v355
    %v613 = vadd.f32 %v539, %v359
    %v614 = vadd.f32 %v543, %v355
    %v615 = vadd.f32 %v543, %v359
    %v616 = vadd.f32 %v547, %v355
    %v617 = vadd.f32 %v547, %v359
    %v618 = vadd.f32 %v551, %v355
    %v619 = vadd.f32 %v551, %v359
    %v620 = vadd.f32 %v555, %v355
    %v621 = vadd.f32 %v555, %v359
    %v622 = vadd.f32 %v559, %v355
    %v623 = vadd.f32 %v559, %v359
    %v624 = vadd.f32 %v563, %v355
    %v625 = vadd.f32 %v563, %v359
    %v626 = vadd.f32 %v567, %v355
    %v627 = vadd.f32 %v567, %v359
    %v628 = vadd.f32 %v571, %v355
    %v629 = vadd.f32 %v571, %v359
    %v630 = vadd.f32 %v575, %v355
    %v631 = vadd.f32 %v575, %v359
    %v632 = vadd.f32 %v579, %v355
    %v633 = vadd.f32 %v579, %v359
    %v634 = vadd.f32 %v583, %v355
    %v635 = vadd.f32 %v583, %v359
    %v636 = vadd.f32 %v587, %v355
    %v637 = vadd.f32 %v587, %v359
    %v638 = vadd.f32 %v591, %v355
    %v639 = vadd.f32 %v591, %v359
    %vm640 = vcmp.gt.f32.partialorder %v608, 0.0
    %vm641 = vcmp.gt.f32.partialorder %v609, 0.0
    %vm642 = vcmp.gt.f32.partialorder %v610, 0.0
    %vm643 = vcmp.gt.f32.partialorder %v611, 0.0
    %vm644 = vcmp.gt.f32.partialorder %v612, 0.0
    %vm645 = vcmp.gt.f32.partialorder %v613, 0.0
    %vm646 = vcmp.gt.f32.partialorder %v614, 0.0
    %vm647 = vcmp.gt.f32.partialorder %v615, 0.0
    %vm648 = vcmp.gt.f32.partialorder %v616, 0.0
    %vm649 = vcmp.gt.f32.partialorder %v617, 0.0
    %vm650 = vcmp.gt.f32.partialorder %v618, 0.0
    %vm651 = vcmp.gt.f32.partialorder %v619, 0.0
    %vm652 = vcmp.gt.f32.partialorder %v620, 0.0
    %vm653 = vcmp.gt.f32.partialorder %v621, 0.0
    %vm654 = vcmp.gt.f32.partialorder %v622, 0.0
    %vm655 = vcmp.gt.f32.partialorder %v623, 0.0
    %vm656 = vcmp.gt.f32.partialorder %v624, 0.0
    %vm657 = vcmp.gt.f32.partialorder %v625, 0.0
    %vm658 = vcmp.gt.f32.partialorder %v626, 0.0
    %vm659 = vcmp.gt.f32.partialorder %v627, 0.0
    %vm660 = vcmp.gt.f32.partialorder %v628, 0.0
    %vm661 = vcmp.gt.f32.partialorder %v629, 0.0
    %vm662 = vcmp.gt.f32.partialorder %v630, 0.0
    %vm663 = vcmp.gt.f32.partialorder %v631, 0.0
    %vm664 = vcmp.gt.f32.partialorder %v632, 0.0
    %vm665 = vcmp.gt.f32.partialorder %v633, 0.0
    %vm666 = vcmp.gt.f32.partialorder %v634, 0.0
    %vm667 = vcmp.gt.f32.partialorder %v635, 0.0
    %vm668 = vcmp.gt.f32.partialorder %v636, 0.0
    %vm669 = vcmp.gt.f32.partialorder %v637, 0.0
    %vm670 = vcmp.gt.f32.partialorder %v638, 0.0
    %vm671 = vcmp.gt.f32.partialorder %v639, 0.0
    %v672 = vmul.f32 %v608, 0.2
    %v673 = vmul.f32 %v609, 0.2
    %v674 = vmul.f32 %v610, 0.2
    %v675 = vmul.f32 %v611, 0.2
    %v676 = vmul.f32 %v612, 0.2
    %v677 = vmul.f32 %v613, 0.2
    %v678 = vmul.f32 %v614, 0.2
    %v679 = vmul.f32 %v615, 0.2
    %v680 = vmul.f32 %v616, 0.2
    %v681 = vmul.f32 %v617, 0.2
    %v682 = vmul.f32 %v618, 0.2
    %v683 = vmul.f32 %v619, 0.2
    %v684 = vmul.f32 %v620, 0.2
    %v685 = vmul.f32 %v621, 0.2
    %v686 = vmul.f32 %v622, 0.2
    %v687 = vmul.f32 %v623, 0.2
    %v688 = vmul.f32 %v624, 0.2
    %v689 = vmul.f32 %v625, 0.2
    %v690 = vmul.f32 %v626, 0.2
    %v691 = vmul.f32 %v627, 0.2
    %v692 = vmul.f32 %v628, 0.2
    %v693 = vmul.f32 %v629, 0.2
    %v694 = vmul.f32 %v630, 0.2
    %v695 = vmul.f32 %v631, 0.2
    %v696 = vmul.f32 %v632, 0.2
    %v697 = vmul.f32 %v633, 0.2
    %v698 = vmul.f32 %v634, 0.2
    %v699 = vmul.f32 %v635, 0.2
    %v700 = vmul.f32 %v636, 0.2
    %v701 = vmul.f32 %v637, 0.2
    %v702 = vmul.f32 %v638, 0.2
    %v703 = vmul.f32 %v639, 0.2
    %v704 = vsel %vm640, %v608, %v672
    %v705 = vsel %vm641, %v609, %v673
    %v706 = vsel %vm642, %v610, %v674
    %v707 = vsel %vm643, %v611, %v675
    %v708 = vsel %vm644, %v612, %v676
    %v709 = vsel %vm645, %v613, %v677
    %v710 = vsel %vm646, %v614, %v678
    %v711 = vsel %vm647, %v615, %v679
    %v712 = vsel %vm648, %v616, %v680
    %v713 = vsel %vm649, %v617, %v681
    %v714 = vsel %vm650, %v618, %v682
    %v715 = vsel %vm651, %v619, %v683
    %v716 = vsel %vm652, %v620, %v684
    %v717 = vsel %vm653, %v621, %v685
    %v718 = vsel %vm654, %v622, %v686
    %v719 = vsel %vm655, %v623, %v687
    %v720 = vsel %vm656, %v624, %v688
    %v721 = vsel %vm657, %v625, %v689
    %v722 = vsel %vm658, %v626, %v690
    %v723 = vsel %vm659, %v627, %v691
    %v724 = vsel %vm660, %v628, %v692
    %v725 = vsel %vm661, %v629, %v693
    %v726 = vsel %vm662, %v630, %v694
    %v727 = vsel %vm663, %v631, %v695
    %v728 = vsel %vm664, %v632, %v696
    %v729 = vsel %vm665, %v633, %v697
    %v730 = vsel %vm666, %v634, %v698
    %v731 = vsel %vm667, %v635, %v699
    %v732 = vsel %vm668, %v636, %v700
    %v733 = vsel %vm669, %v637, %v701
    %v734 = vsel %vm670, %v638, %v702
    %v735 = vsel %vm671, %v639, %v703
    %v736 = vld [vmem:[#allocation13] sm:$0x1]
    %v737 = vlaneseq
    %v738 = vshrl.u32 %v737, 7
    %v739 = vsub.s32 0, %v738
    %v740 = vrot.slane %v736, %v739
    %v741 = vmul.f32 %v704, %v740
    %v742 = vmul.f32 %v705, %v740
    %v743 = vmul.f32 %v706, %v740
    %v744 = vmul.f32 %v707, %v740
    %v745 = vmul.f32 %v708, %v740
    %v746 = vmul.f32 %v709, %v740
    %v747 = vmul.f32 %v710, %v740
    %v748 = vmul.f32 %v711, %v740
    %v749 = vmul.f32 %v712, %v740
    %v750 = vmul.f32 %v713, %v740
    %v751 = vmul.f32 %v714, %v740
    %v752 = vmul.f32 %v715, %v740
    %v753 = vmul.f32 %v716, %v740
    %v754 = vmul.f32 %v717, %v740
    %v755 = vmul.f32 %v718, %v740
    %v756 = vmul.f32 %v719, %v740
    %v757 = vmul.f32 %v720, %v740
    %v758 = vmul.f32 %v721, %v740
    %v759 = vmul.f32 %v722, %v740
    %v760 = vmul.f32 %v723, %v740
    %v761 = vmul.f32 %v724, %v740
    %v762 = vmul.f32 %v725, %v740
    %v763 = vmul.f32 %v726, %v740
    %v764 = vmul.f32 %v727, %v740
    %v765 = vmul.f32 %v728, %v740
    %v766 = vmul.f32 %v729, %v740
    %v767 = vmul.f32 %v730, %v740
    %v768 = vmul.f32 %v731, %v740
    %v769 = vmul.f32 %v732, %v740
    %v770 = vmul.f32 %v733, %v740
    %v771 = vmul.f32 %v734, %v740
    %v772 = vmul.f32 %v735, %v740
    %vm773 = vcmask 261120
    %v774 = vsel %vm773, %v741, 0.0
    %775 = vadd.xlane.f32.xlu0 %v774
    %v776 = vpop.xlane.xlu0 %775
    %v777 = vsel %vm773, %v742, 0.0
    %778 = vadd.xlane.f32.xlu0 %v777
    %v779 = vpop.xlane.xlu0 %778
    %v780 = vsel %vm773, %v743, 0.0
    %781 = vadd.xlane.f32.xlu0 %v780
    %v782 = vpop.xlane.xlu0 %781
    %v783 = vsel %vm773, %v744, 0.0
    %784 = vadd.xlane.f32.xlu0 %v783
    %v785 = vpop.xlane.xlu0 %784
    %v786 = vsel %vm773, %v745, 0.0
    %787 = vadd.xlane.f32.xlu0 %v786
    %v788 = vpop.xlane.xlu0 %787
    %v789 = vsel %vm773, %v746, 0.0
    %790 = vadd.xlane.f32.xlu0 %v789
    %v791 = vpop.xlane.xlu0 %790
    %v792 = vsel %vm773, %v747, 0.0
    %793 = vadd.xlane.f32.xlu0 %v792
    %v794 = vpop.xlane.xlu0 %793
    %v795 = vsel %vm773, %v748, 0.0
    %796 = vadd.xlane.f32.xlu0 %v795
    %v797 = vpop.xlane.xlu0 %796
    %v798 = vsel %vm773, %v749, 0.0
    %799 = vadd.xlane.f32.xlu0 %v798
    %v800 = vpop.xlane.xlu0 %799
    %v801 = vsel %vm773, %v750, 0.0
    %802 = vadd.xlane.f32.xlu0 %v801
    %v803 = vpop.xlane.xlu0 %802
    %v804 = vsel %vm773, %v751, 0.0
    %805 = vadd.xlane.f32.xlu0 %v804
    %v806 = vpop.xlane.xlu0 %805
    %v807 = vsel %vm773, %v752, 0.0
    %808 = vadd.xlane.f32.xlu0 %v807
    %v809 = vpop.xlane.xlu0 %808
    %v810 = vsel %vm773, %v753, 0.0
    %811 = vadd.xlane.f32.xlu0 %v810
    %v812 = vpop.xlane.xlu0 %811
    %v813 = vsel %vm773, %v754, 0.0
    %814 = vadd.xlane.f32.xlu0 %v813
    %v815 = vpop.xlane.xlu0 %814
    %v816 = vsel %vm773, %v755, 0.0
    %817 = vadd.xlane.f32.xlu0 %v816
    %v818 = vpop.xlane.xlu0 %817
    %v819 = vsel %vm773, %v756, 0.0
    %820 = vadd.xlane.f32.xlu0 %v819
    %v821 = vpop.xlane.xlu0 %820
    %v822 = vsel %vm773, %v757, 0.0
    %823 = vadd.xlane.f32.xlu0 %v822
    %v824 = vpop.xlane.xlu0 %823
    %v825 = vsel %vm773, %v758, 0.0
    %826 = vadd.xlane.f32.xlu0 %v825
    %v827 = vpop.xlane.xlu0 %826
    %v828 = vsel %vm773, %v759, 0.0
    %829 = vadd.xlane.f32.xlu0 %v828
    %v830 = vpop.xlane.xlu0 %829
    %v831 = vsel %vm773, %v760, 0.0
    %832 = vadd.xlane.f32.xlu0 %v831
    %v833 = vpop.xlane.xlu0 %832
    %v834 = vsel %vm773, %v761, 0.0
    %835 = vadd.xlane.f32.xlu0 %v834
    %v836 = vpop.xlane.xlu0 %835
    %v837 = vsel %vm773, %v762, 0.0
    %838 = vadd.xlane.f32.xlu0 %v837
    %v839 = vpop.xlane.xlu0 %838
    %v840 = vsel %vm773, %v763, 0.0
    %841 = vadd.xlane.f32.xlu0 %v840
    %v842 = vpop.xlane.xlu0 %841
    %v843 = vsel %vm773, %v764, 0.0
    %844 = vadd.xlane.f32.xlu0 %v843
    %v845 = vpop.xlane.xlu0 %844
    %v846 = vsel %vm773, %v765, 0.0
    %847 = vadd.xlane.f32.xlu0 %v846
    %v848 = vpop.xlane.xlu0 %847
    %v849 = vsel %vm773, %v766, 0.0
    %850 = vadd.xlane.f32.xlu0 %v849
    %v851 = vpop.xlane.xlu0 %850
    %v852 = vsel %vm773, %v767, 0.0
    %853 = vadd.xlane.f32.xlu0 %v852
    %v854 = vpop.xlane.xlu0 %853
    %v855 = vsel %vm773, %v768, 0.0
    %856 = vadd.xlane.f32.xlu0 %v855
    %v857 = vpop.xlane.xlu0 %856
    %v858 = vsel %vm773, %v769, 0.0
    %859 = vadd.xlane.f32.xlu0 %v858
    %v860 = vpop.xlane.xlu0 %859
    %v861 = vsel %vm773, %v770, 0.0
    %862 = vadd.xlane.f32.xlu0 %v861
    %v863 = vpop.xlane.xlu0 %862
    %v864 = vsel %vm773, %v771, 0.0
    %865 = vadd.xlane.f32.xlu0 %v864
    %v866 = vpop.xlane.xlu0 %865
    %v867 = vsel %vm773, %v772, 0.0
    %868 = vadd.xlane.f32.xlu0 %v867
    %v869 = vpop.xlane.xlu0 %868
    %v902 = vlaneseq
    %v903 = vand.u32 %v902, 127
    %v904 = vlaneseq
    %v905 = vshrl.u32 %v904, 7
    %v906 = vsub.s32 %v903, %v905
    %v907 = vrot.slane %v776, %v906
    %v908 = vadd.s32 %v903, 4294967288
    %v909 = vlaneseq
    %v910 = vshrl.u32 %v909, 7
    %v911 = vsub.s32 %v908, %v910
    %v912 = vrot.slane %v779, %v911
    %vm913 = vcmask 130112
    %v914 = vsel %vm913, %v912, %v907
    %v915 = vlaneseq
    %v916 = vshrl.u32 %v915, 7
    %v917 = vsub.s32 %v903, %v916
    %v918 = vrot.slane %v782, %v917
    %v919 = vlaneseq
    %v920 = vshrl.u32 %v919, 7
    %v921 = vsub.s32 %v908, %v920
    %v922 = vrot.slane %v785, %v921
    %v923 = vsel %vm913, %v922, %v918
    %v924 = vlaneseq
    %v925 = vshrl.u32 %v924, 7
    %v926 = vsub.s32 %v903, %v925
    %v927 = vrot.slane %v788, %v926
    %v928 = vlaneseq
    %v929 = vshrl.u32 %v928, 7
    %v930 = vsub.s32 %v908, %v929
    %v931 = vrot.slane %v791, %v930
    %v932 = vsel %vm913, %v931, %v927
    %v933 = vlaneseq
    %v934 = vshrl.u32 %v933, 7
    %v935 = vsub.s32 %v903, %v934
    %v936 = vrot.slane %v794, %v935
    %v937 = vlaneseq
    %v938 = vshrl.u32 %v937, 7
    %v939 = vsub.s32 %v908, %v938
    %v940 = vrot.slane %v797, %v939
    %v941 = vsel %vm913, %v940, %v936
    %v942 = vlaneseq
    %v943 = vshrl.u32 %v942, 7
    %v944 = vsub.s32 %v903, %v943
    %v945 = vrot.slane %v800, %v944
    %v946 = vlaneseq
    %v947 = vshrl.u32 %v946, 7
    %v948 = vsub.s32 %v908, %v947
    %v949 = vrot.slane %v803, %v948
    %v950 = vsel %vm913, %v949, %v945
    %v951 = vlaneseq
    %v952 = vshrl.u32 %v951, 7
    %v953 = vsub.s32 %v903, %v952
    %v954 = vrot.slane %v806, %v953
    %v955 = vlaneseq
    %v956 = vshrl.u32 %v955, 7
    %v957 = vsub.s32 %v908, %v956
    %v958 = vrot.slane %v809, %v957
    %v959 = vsel %vm913, %v958, %v954
    %v960 = vlaneseq
    %v961 = vshrl.u32 %v960, 7
    %v962 = vsub.s32 %v903, %v961
    %v963 = vrot.slane %v812, %v962
    %v964 = vlaneseq
    %v965 = vshrl.u32 %v964, 7
    %v966 = vsub.s32 %v908, %v965
    %v967 = vrot.slane %v815, %v966
    %v968 = vsel %vm913, %v967, %v963
    %v969 = vlaneseq
    %v970 = vshrl.u32 %v969, 7
    %v971 = vsub.s32 %v903, %v970
    %v972 = vrot.slane %v818, %v971
    %v973 = vlaneseq
    %v974 = vshrl.u32 %v973, 7
    %v975 = vsub.s32 %v908, %v974
    %v976 = vrot.slane %v821, %v975
    %v977 = vsel %vm913, %v976, %v972
    %v978 = vlaneseq
    %v979 = vshrl.u32 %v978, 7
    %v980 = vsub.s32 %v903, %v979
    %v981 = vrot.slane %v824, %v980
    %v982 = vlaneseq
    %v983 = vshrl.u32 %v982, 7
    %v984 = vsub.s32 %v908, %v983
    %v985 = vrot.slane %v827, %v984
    %v986 = vsel %vm913, %v985, %v981
    %v987 = vlaneseq
    %v988 = vshrl.u32 %v987, 7
    %v989 = vsub.s32 %v903, %v988
    %v990 = vrot.slane %v830, %v989
    %v991 = vlaneseq
    %v992 = vshrl.u32 %v991, 7
    %v993 = vsub.s32 %v908, %v992
    %v994 = vrot.slane %v833, %v993
    %v995 = vsel %vm913, %v994, %v990
    %v996 = vlaneseq
    %v997 = vshrl.u32 %v996, 7
    %v998 = vsub.s32 %v903, %v997
    %v999 = vrot.slane %v836, %v998
    %v1000 = vlaneseq
    %v1001 = vshrl.u32 %v1000, 7
    %v1002 = vsub.s32 %v908, %v1001
    %v1003 = vrot.slane %v839, %v1002
    %v1004 = vsel %vm913, %v1003, %v999
    %v1005 = vlaneseq
    %v1006 = vshrl.u32 %v1005, 7
    %v1007 = vsub.s32 %v903, %v1006
    %v1008 = vrot.slane %v842, %v1007
    %v1009 = vlaneseq
    %v1010 = vshrl.u32 %v1009, 7
    %v1011 = vsub.s32 %v908, %v1010
    %v1012 = vrot.slane %v845, %v1011
    %v1013 = vsel %vm913, %v1012, %v1008
    %v1014 = vlaneseq
    %v1015 = vshrl.u32 %v1014, 7
    %v1016 = vsub.s32 %v903, %v1015
    %v1017 = vrot.slane %v848, %v1016
    %v1018 = vlaneseq
    %v1019 = vshrl.u32 %v1018, 7
    %v1020 = vsub.s32 %v908, %v1019
    %v1021 = vrot.slane %v851, %v1020
    %v1022 = vsel %vm913, %v1021, %v1017
    %v1023 = vlaneseq
    %v1024 = vshrl.u32 %v1023, 7
    %v1025 = vsub.s32 %v903, %v1024
    %v1026 = vrot.slane %v854, %v1025
    %v1027 = vlaneseq
    %v1028 = vshrl.u32 %v1027, 7
    %v1029 = vsub.s32 %v908, %v1028
    %v1030 = vrot.slane %v857, %v1029
    %v1031 = vsel %vm913, %v1030, %v1026
    %v1032 = vlaneseq
    %v1033 = vshrl.u32 %v1032, 7
    %v1034 = vsub.s32 %v903, %v1033
    %v1035 = vrot.slane %v860, %v1034
    %v1036 = vlaneseq
    %v1037 = vshrl.u32 %v1036, 7
    %v1038 = vsub.s32 %v908, %v1037
    %v1039 = vrot.slane %v863, %v1038
    %v1040 = vsel %vm913, %v1039, %v1035
    %v1041 = vlaneseq
    %v1042 = vshrl.u32 %v1041, 7
    %v1043 = vsub.s32 %v903, %v1042
    %v1044 = vrot.slane %v866, %v1043
    %v1045 = vlaneseq
    %v1046 = vshrl.u32 %v1045, 7
    %v1047 = vsub.s32 %v908, %v1046
    %v1048 = vrot.slane %v869, %v1047
    %v1049 = vsel %vm913, %v1048, %v1044
    %vm1050 = vcmask 1041409
    %v1051 = vsel %vm1050, %v923, %v914
    %vm1052 = vcmask 1042434
    %v1053 = vsel %vm1052, %v932, %v1051
    %vm1054 = vcmask 1043459
    %v1055 = vsel %vm1054, %v941, %v1053
    %vm1056 = vcmask 1044484
    %v1057 = vsel %vm1056, %v950, %v1055
    %vm1058 = vcmask 1045509
    %v1059 = vsel %vm1058, %v959, %v1057
    %vm1060 = vcmask 1046534
    %v1061 = vsel %vm1060, %v968, %v1059
    %vm1062 = vcmask 1047559
    %v1063 = vsel %vm1062, %v977, %v1061
    %v1064 = vsel %vm1050, %v995, %v986
    %v1065 = vsel %vm1052, %v1004, %v1064
    %v1066 = vsel %vm1054, %v1013, %v1065
    %v1067 = vsel %vm1056, %v1022, %v1066
    %v1068 = vsel %vm1058, %v1031, %v1067
    %v1069 = vsel %vm1060, %v1040, %v1068
    %v1070 = vsel %vm1062, %v1049, %v1069
    %v1073 = vsel %vm288, %v1063, -1e+30
    %v1074 = vsel %vm289, %v1070, -1e+30
    %vm1075 = vcmask 130048
    %v1076 = vsel %vm1075, %v1073, -inf
    %1077 = vmax.xlane.f32.xlu0 %v1076
    %v1078 = vpop.xlane.xlu0 %1077
    %v1079 = vsel %vm1075, %v1074, -inf
    %1080 = vmax.xlane.f32.xlu0 %v1079
    %v1081 = vpop.xlane.xlu0 %1080
    %v1082 = vsub.f32 %v1073, %v1078
    %v1083 = vsub.f32 %v1074, %v1081
    %v1084 = vmul.f32 %v1082, 1.442695
    %v1085 = vpow.pop %v1084
    %v1086 = vmul.f32 %v1083, 1.442695
    %v1087 = vpow.pop %v1086
    %v1088 = vsel %vm1075, %v1085, 0.0
    %1089 = vadd.xlane.f32.xlu0 %v1088
    %v1090 = vpop.xlane.xlu0 %1089
    %v1091 = vsel %vm1075, %v1087, 0.0
    %1092 = vadd.xlane.f32.xlu0 %v1091
    %v1093 = vpop.xlane.xlu0 %1092
    %v1094 = vrcp.pop %v1090
    %v1095 = vrcp.pop %v1093
    %v1096 = vmul.f32 %v1085, %v1094
    %v1097 = vmul.f32 %v1087, %v1095
    %v1098 = vld [vmem:[#allocation13 + $0x1] sm:$0x1]
    %v1099 = vlaneseq
    %v1100 = vshrl.u32 %v1099, 7
    %v1101 = vsub.s32 0, %v1100
    %v1102 = vrot.slane %v1098, %v1101
    %1104 = vrot.lane.b32.xlu0 %v1102, 32
    %v1105 = vpop.permute.xlu0 %1104
    %v1107 = vmul.f32 %v704, %v1105
    %v1108 = vmul.f32 %v705, %v1105
    %v1109 = vmul.f32 %v706, %v1105
    %v1110 = vmul.f32 %v707, %v1105
    %v1111 = vmul.f32 %v708, %v1105
    %v1112 = vmul.f32 %v709, %v1105
    %v1113 = vmul.f32 %v710, %v1105
    %v1114 = vmul.f32 %v711, %v1105
    %v1115 = vmul.f32 %v712, %v1105
    %v1116 = vmul.f32 %v713, %v1105
    %v1117 = vmul.f32 %v714, %v1105
    %v1118 = vmul.f32 %v715, %v1105
    %v1119 = vmul.f32 %v716, %v1105
    %v1120 = vmul.f32 %v717, %v1105
    %v1121 = vmul.f32 %v718, %v1105
    %v1122 = vmul.f32 %v719, %v1105
    %v1123 = vmul.f32 %v720, %v1105
    %v1124 = vmul.f32 %v721, %v1105
    %v1125 = vmul.f32 %v722, %v1105
    %v1126 = vmul.f32 %v723, %v1105
    %v1127 = vmul.f32 %v724, %v1105
    %v1128 = vmul.f32 %v725, %v1105
    %v1129 = vmul.f32 %v726, %v1105
    %v1130 = vmul.f32 %v727, %v1105
    %v1131 = vmul.f32 %v728, %v1105
    %v1132 = vmul.f32 %v729, %v1105
    %v1133 = vmul.f32 %v730, %v1105
    %v1134 = vmul.f32 %v731, %v1105
    %v1135 = vmul.f32 %v732, %v1105
    %v1136 = vmul.f32 %v733, %v1105
    %v1137 = vmul.f32 %v734, %v1105
    %v1138 = vmul.f32 %v735, %v1105
    %1171 = vrot.lane.b32.xlu0 %v1107, 96
    %v1172 = vpop.permute.xlu0 %1171
    %1173 = vrot.lane.b32.xlu0 %v1108, 96
    %v1174 = vpop.permute.xlu0 %1173
    %1175 = vrot.lane.b32.xlu0 %v1109, 96
    %v1176 = vpop.permute.xlu0 %1175
    %1177 = vrot.lane.b32.xlu0 %v1110, 96
    %v1178 = vpop.permute.xlu0 %1177
    %1179 = vrot.lane.b32.xlu0 %v1111, 96
    %v1180 = vpop.permute.xlu0 %1179
    %1181 = vrot.lane.b32.xlu0 %v1112, 96
    %v1182 = vpop.permute.xlu0 %1181
    %1183 = vrot.lane.b32.xlu0 %v1113, 96
    %v1184 = vpop.permute.xlu0 %1183
    %1185 = vrot.lane.b32.xlu0 %v1114, 96
    %v1186 = vpop.permute.xlu0 %1185
    %1187 = vrot.lane.b32.xlu0 %v1115, 96
    %v1188 = vpop.permute.xlu0 %1187
    %1189 = vrot.lane.b32.xlu0 %v1116, 96
    %v1190 = vpop.permute.xlu0 %1189
    %1191 = vrot.lane.b32.xlu0 %v1117, 96
    %v1192 = vpop.permute.xlu0 %1191
    %1193 = vrot.lane.b32.xlu0 %v1118, 96
    %v1194 = vpop.permute.xlu0 %1193
    %1195 = vrot.lane.b32.xlu0 %v1119, 96
    %v1196 = vpop.permute.xlu0 %1195
    %1197 = vrot.lane.b32.xlu0 %v1120, 96
    %v1198 = vpop.permute.xlu0 %1197
    %1199 = vrot.lane.b32.xlu0 %v1121, 96
    %v1200 = vpop.permute.xlu0 %1199
    %1201 = vrot.lane.b32.xlu0 %v1122, 96
    %v1202 = vpop.permute.xlu0 %1201
    %1203 = vrot.lane.b32.xlu0 %v1123, 96
    %v1204 = vpop.permute.xlu0 %1203
    %1205 = vrot.lane.b32.xlu0 %v1124, 96
    %v1206 = vpop.permute.xlu0 %1205
    %1207 = vrot.lane.b32.xlu0 %v1125, 96
    %v1208 = vpop.permute.xlu0 %1207
    %1209 = vrot.lane.b32.xlu0 %v1126, 96
    %v1210 = vpop.permute.xlu0 %1209
    %1211 = vrot.lane.b32.xlu0 %v1127, 96
    %v1212 = vpop.permute.xlu0 %1211
    %1213 = vrot.lane.b32.xlu0 %v1128, 96
    %v1214 = vpop.permute.xlu0 %1213
    %1215 = vrot.lane.b32.xlu0 %v1129, 96
    %v1216 = vpop.permute.xlu0 %1215
    %1217 = vrot.lane.b32.xlu0 %v1130, 96
    %v1218 = vpop.permute.xlu0 %1217
    %1219 = vrot.lane.b32.xlu0 %v1131, 96
    %v1220 = vpop.permute.xlu0 %1219
    %1221 = vrot.lane.b32.xlu0 %v1132, 96
    %v1222 = vpop.permute.xlu0 %1221
    %1223 = vrot.lane.b32.xlu0 %v1133, 96
    %v1224 = vpop.permute.xlu0 %1223
    %1225 = vrot.lane.b32.xlu0 %v1134, 96
    %v1226 = vpop.permute.xlu0 %1225
    %1227 = vrot.lane.b32.xlu0 %v1135, 96
    %v1228 = vpop.permute.xlu0 %1227
    %1229 = vrot.lane.b32.xlu0 %v1136, 96
    %v1230 = vpop.permute.xlu0 %1229
    %1231 = vrot.lane.b32.xlu0 %v1137, 96
    %v1232 = vpop.permute.xlu0 %1231
    %1233 = vrot.lane.b32.xlu0 %v1138, 96
    %v1234 = vpop.permute.xlu0 %1233
    %v1267 = vsel %vm773, %v1172, 0.0
    %1268 = vadd.xlane.f32.xlu0 %v1267
    %v1269 = vpop.xlane.xlu0 %1268
    %v1270 = vsel %vm773, %v1174, 0.0
    %1271 = vadd.xlane.f32.xlu0 %v1270
    %v1272 = vpop.xlane.xlu0 %1271
    %v1273 = vsel %vm773, %v1176, 0.0
    %1274 = vadd.xlane.f32.xlu0 %v1273
    %v1275 = vpop.xlane.xlu0 %1274
    %v1276 = vsel %vm773, %v1178, 0.0
    %1277 = vadd.xlane.f32.xlu0 %v1276
    %v1278 = vpop.xlane.xlu0 %1277
    %v1279 = vsel %vm773, %v1180, 0.0
    %1280 = vadd.xlane.f32.xlu0 %v1279
    %v1281 = vpop.xlane.xlu0 %1280
    %v1282 = vsel %vm773, %v1182, 0.0
    %1283 = vadd.xlane.f32.xlu0 %v1282
    %v1284 = vpop.xlane.xlu0 %1283
    %v1285 = vsel %vm773, %v1184, 0.0
    %1286 = vadd.xlane.f32.xlu0 %v1285
    %v1287 = vpop.xlane.xlu0 %1286
    %v1288 = vsel %vm773, %v1186, 0.0
    %1289 = vadd.xlane.f32.xlu0 %v1288
    %v1290 = vpop.xlane.xlu0 %1289
    %v1291 = vsel %vm773, %v1188, 0.0
    %1292 = vadd.xlane.f32.xlu0 %v1291
    %v1293 = vpop.xlane.xlu0 %1292
    %v1294 = vsel %vm773, %v1190, 0.0
    %1295 = vadd.xlane.f32.xlu0 %v1294
    %v1296 = vpop.xlane.xlu0 %1295
    %v1297 = vsel %vm773, %v1192, 0.0
    %1298 = vadd.xlane.f32.xlu0 %v1297
    %v1299 = vpop.xlane.xlu0 %1298
    %v1300 = vsel %vm773, %v1194, 0.0
    %1301 = vadd.xlane.f32.xlu0 %v1300
    %v1302 = vpop.xlane.xlu0 %1301
    %v1303 = vsel %vm773, %v1196, 0.0
    %1304 = vadd.xlane.f32.xlu0 %v1303
    %v1305 = vpop.xlane.xlu0 %1304
    %v1306 = vsel %vm773, %v1198, 0.0
    %1307 = vadd.xlane.f32.xlu0 %v1306
    %v1308 = vpop.xlane.xlu0 %1307
    %v1309 = vsel %vm773, %v1200, 0.0
    %1310 = vadd.xlane.f32.xlu0 %v1309
    %v1311 = vpop.xlane.xlu0 %1310
    %v1312 = vsel %vm773, %v1202, 0.0
    %1313 = vadd.xlane.f32.xlu0 %v1312
    %v1314 = vpop.xlane.xlu0 %1313
    %v1315 = vsel %vm773, %v1204, 0.0
    %1316 = vadd.xlane.f32.xlu0 %v1315
    %v1317 = vpop.xlane.xlu0 %1316
    %v1318 = vsel %vm773, %v1206, 0.0
    %1319 = vadd.xlane.f32.xlu0 %v1318
    %v1320 = vpop.xlane.xlu0 %1319
    %v1321 = vsel %vm773, %v1208, 0.0
    %1322 = vadd.xlane.f32.xlu0 %v1321
    %v1323 = vpop.xlane.xlu0 %1322
    %v1324 = vsel %vm773, %v1210, 0.0
    %1325 = vadd.xlane.f32.xlu0 %v1324
    %v1326 = vpop.xlane.xlu0 %1325
    %v1327 = vsel %vm773, %v1212, 0.0
    %1328 = vadd.xlane.f32.xlu0 %v1327
    %v1329 = vpop.xlane.xlu0 %1328
    %v1330 = vsel %vm773, %v1214, 0.0
    %1331 = vadd.xlane.f32.xlu0 %v1330
    %v1332 = vpop.xlane.xlu0 %1331
    %v1333 = vsel %vm773, %v1216, 0.0
    %1334 = vadd.xlane.f32.xlu0 %v1333
    %v1335 = vpop.xlane.xlu0 %1334
    %v1336 = vsel %vm773, %v1218, 0.0
    %1337 = vadd.xlane.f32.xlu0 %v1336
    %v1338 = vpop.xlane.xlu0 %1337
    %v1339 = vsel %vm773, %v1220, 0.0
    %1340 = vadd.xlane.f32.xlu0 %v1339
    %v1341 = vpop.xlane.xlu0 %1340
    %v1342 = vsel %vm773, %v1222, 0.0
    %1343 = vadd.xlane.f32.xlu0 %v1342
    %v1344 = vpop.xlane.xlu0 %1343
    %v1345 = vsel %vm773, %v1224, 0.0
    %1346 = vadd.xlane.f32.xlu0 %v1345
    %v1347 = vpop.xlane.xlu0 %1346
    %v1348 = vsel %vm773, %v1226, 0.0
    %1349 = vadd.xlane.f32.xlu0 %v1348
    %v1350 = vpop.xlane.xlu0 %1349
    %v1351 = vsel %vm773, %v1228, 0.0
    %1352 = vadd.xlane.f32.xlu0 %v1351
    %v1353 = vpop.xlane.xlu0 %1352
    %v1354 = vsel %vm773, %v1230, 0.0
    %1355 = vadd.xlane.f32.xlu0 %v1354
    %v1356 = vpop.xlane.xlu0 %1355
    %v1357 = vsel %vm773, %v1232, 0.0
    %1358 = vadd.xlane.f32.xlu0 %v1357
    %v1359 = vpop.xlane.xlu0 %1358
    %v1360 = vsel %vm773, %v1234, 0.0
    %1361 = vadd.xlane.f32.xlu0 %v1360
    %v1362 = vpop.xlane.xlu0 %1361
    %v1395 = vlaneseq
    %v1396 = vshrl.u32 %v1395, 7
    %v1397 = vsub.s32 %v903, %v1396
    %v1398 = vrot.slane %v1269, %v1397
    %v1399 = vlaneseq
    %v1400 = vshrl.u32 %v1399, 7
    %v1401 = vsub.s32 %v908, %v1400
    %v1402 = vrot.slane %v1272, %v1401
    %v1403 = vsel %vm913, %v1402, %v1398
    %v1404 = vlaneseq
    %v1405 = vshrl.u32 %v1404, 7
    %v1406 = vsub.s32 %v903, %v1405
    %v1407 = vrot.slane %v1275, %v1406
    %v1408 = vlaneseq
    %v1409 = vshrl.u32 %v1408, 7
    %v1410 = vsub.s32 %v908, %v1409
    %v1411 = vrot.slane %v1278, %v1410
    %v1412 = vsel %vm913, %v1411, %v1407
    %v1413 = vlaneseq
    %v1414 = vshrl.u32 %v1413, 7
    %v1415 = vsub.s32 %v903, %v1414
    %v1416 = vrot.slane %v1281, %v1415
    %v1417 = vlaneseq
    %v1418 = vshrl.u32 %v1417, 7
    %v1419 = vsub.s32 %v908, %v1418
    %v1420 = vrot.slane %v1284, %v1419
    %v1421 = vsel %vm913, %v1420, %v1416
    %v1422 = vlaneseq
    %v1423 = vshrl.u32 %v1422, 7
    %v1424 = vsub.s32 %v903, %v1423
    %v1425 = vrot.slane %v1287, %v1424
    %v1426 = vlaneseq
    %v1427 = vshrl.u32 %v1426, 7
    %v1428 = vsub.s32 %v908, %v1427
    %v1429 = vrot.slane %v1290, %v1428
    %v1430 = vsel %vm913, %v1429, %v1425
    %v1431 = vlaneseq
    %v1432 = vshrl.u32 %v1431, 7
    %v1433 = vsub.s32 %v903, %v1432
    %v1434 = vrot.slane %v1293, %v1433
    %v1435 = vlaneseq
    %v1436 = vshrl.u32 %v1435, 7
    %v1437 = vsub.s32 %v908, %v1436
    %v1438 = vrot.slane %v1296, %v1437
    %v1439 = vsel %vm913, %v1438, %v1434
    %v1440 = vlaneseq
    %v1441 = vshrl.u32 %v1440, 7
    %v1442 = vsub.s32 %v903, %v1441
    %v1443 = vrot.slane %v1299, %v1442
    %v1444 = vlaneseq
    %v1445 = vshrl.u32 %v1444, 7
    %v1446 = vsub.s32 %v908, %v1445
    %v1447 = vrot.slane %v1302, %v1446
    %v1448 = vsel %vm913, %v1447, %v1443
    %v1449 = vlaneseq
    %v1450 = vshrl.u32 %v1449, 7
    %v1451 = vsub.s32 %v903, %v1450
    %v1452 = vrot.slane %v1305, %v1451
    %v1453 = vlaneseq
    %v1454 = vshrl.u32 %v1453, 7
    %v1455 = vsub.s32 %v908, %v1454
    %v1456 = vrot.slane %v1308, %v1455
    %v1457 = vsel %vm913, %v1456, %v1452
    %v1458 = vlaneseq
    %v1459 = vshrl.u32 %v1458, 7
    %v1460 = vsub.s32 %v903, %v1459
    %v1461 = vrot.slane %v1311, %v1460
    %v1462 = vlaneseq
    %v1463 = vshrl.u32 %v1462, 7
    %v1464 = vsub.s32 %v908, %v1463
    %v1465 = vrot.slane %v1314, %v1464
    %v1466 = vsel %vm913, %v1465, %v1461
    %v1467 = vlaneseq
    %v1468 = vshrl.u32 %v1467, 7
    %v1469 = vsub.s32 %v903, %v1468
    %v1470 = vrot.slane %v1317, %v1469
    %v1471 = vlaneseq
    %v1472 = vshrl.u32 %v1471, 7
    %v1473 = vsub.s32 %v908, %v1472
    %v1474 = vrot.slane %v1320, %v1473
    %v1475 = vsel %vm913, %v1474, %v1470
    %v1476 = vlaneseq
    %v1477 = vshrl.u32 %v1476, 7
    %v1478 = vsub.s32 %v903, %v1477
    %v1479 = vrot.slane %v1323, %v1478
    %v1480 = vlaneseq
    %v1481 = vshrl.u32 %v1480, 7
    %v1482 = vsub.s32 %v908, %v1481
    %v1483 = vrot.slane %v1326, %v1482
    %v1484 = vsel %vm913, %v1483, %v1479
    %v1485 = vlaneseq
    %v1486 = vshrl.u32 %v1485, 7
    %v1487 = vsub.s32 %v903, %v1486
    %v1488 = vrot.slane %v1329, %v1487
    %v1489 = vlaneseq
    %v1490 = vshrl.u32 %v1489, 7
    %v1491 = vsub.s32 %v908, %v1490
    %v1492 = vrot.slane %v1332, %v1491
    %v1493 = vsel %vm913, %v1492, %v1488
    %v1494 = vlaneseq
    %v1495 = vshrl.u32 %v1494, 7
    %v1496 = vsub.s32 %v903, %v1495
    %v1497 = vrot.slane %v1335, %v1496
    %v1498 = vlaneseq
    %v1499 = vshrl.u32 %v1498, 7
    %v1500 = vsub.s32 %v908, %v1499
    %v1501 = vrot.slane %v1338, %v1500
    %v1502 = vsel %vm913, %v1501, %v1497
    %v1503 = vlaneseq
    %v1504 = vshrl.u32 %v1503, 7
    %v1505 = vsub.s32 %v903, %v1504
    %v1506 = vrot.slane %v1341, %v1505
    %v1507 = vlaneseq
    %v1508 = vshrl.u32 %v1507, 7
    %v1509 = vsub.s32 %v908, %v1508
    %v1510 = vrot.slane %v1344, %v1509
    %v1511 = vsel %vm913, %v1510, %v1506
    %v1512 = vlaneseq
    %v1513 = vshrl.u32 %v1512, 7
    %v1514 = vsub.s32 %v903, %v1513
    %v1515 = vrot.slane %v1347, %v1514
    %v1516 = vlaneseq
    %v1517 = vshrl.u32 %v1516, 7
    %v1518 = vsub.s32 %v908, %v1517
    %v1519 = vrot.slane %v1350, %v1518
    %v1520 = vsel %vm913, %v1519, %v1515
    %v1521 = vlaneseq
    %v1522 = vshrl.u32 %v1521, 7
    %v1523 = vsub.s32 %v903, %v1522
    %v1524 = vrot.slane %v1353, %v1523
    %v1525 = vlaneseq
    %v1526 = vshrl.u32 %v1525, 7
    %v1527 = vsub.s32 %v908, %v1526
    %v1528 = vrot.slane %v1356, %v1527
    %v1529 = vsel %vm913, %v1528, %v1524
    %v1530 = vlaneseq
    %v1531 = vshrl.u32 %v1530, 7
    %v1532 = vsub.s32 %v903, %v1531
    %v1533 = vrot.slane %v1359, %v1532
    %v1534 = vlaneseq
    %v1535 = vshrl.u32 %v1534, 7
    %v1536 = vsub.s32 %v908, %v1535
    %v1537 = vrot.slane %v1362, %v1536
    %v1538 = vsel %vm913, %v1537, %v1533
    %v1539 = vsel %vm1050, %v1412, %v1403
    %v1540 = vsel %vm1052, %v1421, %v1539
    %v1541 = vsel %vm1054, %v1430, %v1540
    %v1542 = vsel %vm1056, %v1439, %v1541
    %v1543 = vsel %vm1058, %v1448, %v1542
    %v1544 = vsel %vm1060, %v1457, %v1543
    %v1545 = vsel %vm1062, %v1466, %v1544
    %v1546 = vsel %vm1050, %v1484, %v1475
    %v1547 = vsel %vm1052, %v1493, %v1546
    %v1548 = vsel %vm1054, %v1502, %v1547
    %v1549 = vsel %vm1056, %v1511, %v1548
    %v1550 = vsel %vm1058, %v1520, %v1549
    %v1551 = vsel %vm1060, %v1529, %v1550
    %v1552 = vsel %vm1062, %v1538, %v1551
    %v1555 = vsel %vm288, %v1545, -1e+30
    %v1556 = vsel %vm289, %v1552, -1e+30
    %v1557 = vsel %vm1075, %v1555, -inf
    %1558 = vmax.xlane.f32.xlu0 %v1557
    %v1559 = vpop.xlane.xlu0 %1558
    %v1560 = vsel %vm1075, %v1556, -inf
    %1561 = vmax.xlane.f32.xlu0 %v1560
    %v1562 = vpop.xlane.xlu0 %1561
    %v1563 = vsub.f32 %v1555, %v1559
    %v1564 = vsub.f32 %v1556, %v1562
    %v1565 = vmul.f32 %v1563, 1.442695
    %v1566 = vpow.pop %v1565
    %v1567 = vmul.f32 %v1564, 1.442695
    %v1568 = vpow.pop %v1567
    %v1569 = vsel %vm1075, %v1566, 0.0
    %1570 = vadd.xlane.f32.xlu0 %v1569
    %v1571 = vpop.xlane.xlu0 %1570
    %v1572 = vsel %vm1075, %v1568, 0.0
    %1573 = vadd.xlane.f32.xlu0 %v1572
    %v1574 = vpop.xlane.xlu0 %1573
    %v1575 = vrcp.pop %v1571
    %v1576 = vrcp.pop %v1574
    %v1577 = vmul.f32 %v1566, %v1575
    %v1578 = vmul.f32 %v1568, %v1576
    %v1579 = vld [vmem:[#allocation13 + $0x2] sm:$0x1]
    %v1580 = vlaneseq
    %v1581 = vshrl.u32 %v1580, 7
    %v1582 = vsub.s32 0, %v1581
    %v1583 = vrot.slane %v1579, %v1582
    %1585 = vrot.lane.b32.xlu0 %v1583, 64
    %v1586 = vpop.permute.xlu0 %1585
    %v1588 = vmul.f32 %v704, %v1586
    %v1589 = vmul.f32 %v705, %v1586
    %v1590 = vmul.f32 %v706, %v1586
    %v1591 = vmul.f32 %v707, %v1586
    %v1592 = vmul.f32 %v708, %v1586
    %v1593 = vmul.f32 %v709, %v1586
    %v1594 = vmul.f32 %v710, %v1586
    %v1595 = vmul.f32 %v711, %v1586
    %v1596 = vmul.f32 %v712, %v1586
    %v1597 = vmul.f32 %v713, %v1586
    %v1598 = vmul.f32 %v714, %v1586
    %v1599 = vmul.f32 %v715, %v1586
    %v1600 = vmul.f32 %v716, %v1586
    %v1601 = vmul.f32 %v717, %v1586
    %v1602 = vmul.f32 %v718, %v1586
    %v1603 = vmul.f32 %v719, %v1586
    %v1604 = vmul.f32 %v720, %v1586
    %v1605 = vmul.f32 %v721, %v1586
    %v1606 = vmul.f32 %v722, %v1586
    %v1607 = vmul.f32 %v723, %v1586
    %v1608 = vmul.f32 %v724, %v1586
    %v1609 = vmul.f32 %v725, %v1586
    %v1610 = vmul.f32 %v726, %v1586
    %v1611 = vmul.f32 %v727, %v1586
    %v1612 = vmul.f32 %v728, %v1586
    %v1613 = vmul.f32 %v729, %v1586
    %v1614 = vmul.f32 %v730, %v1586
    %v1615 = vmul.f32 %v731, %v1586
    %v1616 = vmul.f32 %v732, %v1586
    %v1617 = vmul.f32 %v733, %v1586
    %v1618 = vmul.f32 %v734, %v1586
    %v1619 = vmul.f32 %v735, %v1586
    %1652 = vrot.lane.b32.xlu0 %v1588, 64
    %v1653 = vpop.permute.xlu0 %1652
    %1654 = vrot.lane.b32.xlu0 %v1589, 64
    %v1655 = vpop.permute.xlu0 %1654
    %1656 = vrot.lane.b32.xlu0 %v1590, 64
    %v1657 = vpop.permute.xlu0 %1656
    %1658 = vrot.lane.b32.xlu0 %v1591, 64
    %v1659 = vpop.permute.xlu0 %1658
    %1660 = vrot.lane.b32.xlu0 %v1592, 64
    %v1661 = vpop.permute.xlu0 %1660
    %1662 = vrot.lane.b32.xlu0 %v1593, 64
    %v1663 = vpop.permute.xlu0 %1662
    %1664 = vrot.lane.b32.xlu0 %v1594, 64
    %v1665 = vpop.permute.xlu0 %1664
    %1666 = vrot.lane.b32.xlu0 %v1595, 64
    %v1667 = vpop.permute.xlu0 %1666
    %1668 = vrot.lane.b32.xlu0 %v1596, 64
    %v1669 = vpop.permute.xlu0 %1668
    %1670 = vrot.lane.b32.xlu0 %v1597, 64
    %v1671 = vpop.permute.xlu0 %1670
    %1672 = vrot.lane.b32.xlu0 %v1598, 64
    %v1673 = vpop.permute.xlu0 %1672
    %1674 = vrot.lane.b32.xlu0 %v1599, 64
    %v1675 = vpop.permute.xlu0 %1674
    %1676 = vrot.lane.b32.xlu0 %v1600, 64
    %v1677 = vpop.permute.xlu0 %1676
    %1678 = vrot.lane.b32.xlu0 %v1601, 64
    %v1679 = vpop.permute.xlu0 %1678
    %1680 = vrot.lane.b32.xlu0 %v1602, 64
    %v1681 = vpop.permute.xlu0 %1680
    %1682 = vrot.lane.b32.xlu0 %v1603, 64
    %v1683 = vpop.permute.xlu0 %1682
    %1684 = vrot.lane.b32.xlu0 %v1604, 64
    %v1685 = vpop.permute.xlu0 %1684
    %1686 = vrot.lane.b32.xlu0 %v1605, 64
    %v1687 = vpop.permute.xlu0 %1686
    %1688 = vrot.lane.b32.xlu0 %v1606, 64
    %v1689 = vpop.permute.xlu0 %1688
    %1690 = vrot.lane.b32.xlu0 %v1607, 64
    %v1691 = vpop.permute.xlu0 %1690
    %1692 = vrot.lane.b32.xlu0 %v1608, 64
    %v1693 = vpop.permute.xlu0 %1692
    %1694 = vrot.lane.b32.xlu0 %v1609, 64
    %v1695 = vpop.permute.xlu0 %1694
    %1696 = vrot.lane.b32.xlu0 %v1610, 64
    %v1697 = vpop.permute.xlu0 %1696
    %1698 = vrot.lane.b32.xlu0 %v1611, 64
    %v1699 = vpop.permute.xlu0 %1698
    %1700 = vrot.lane.b32.xlu0 %v1612, 64
    %v1701 = vpop.permute.xlu0 %1700
    %1702 = vrot.lane.b32.xlu0 %v1613, 64
    %v1703 = vpop.permute.xlu0 %1702
    %1704 = vrot.lane.b32.xlu0 %v1614, 64
    %v1705 = vpop.permute.xlu0 %1704
    %1706 = vrot.lane.b32.xlu0 %v1615, 64
    %v1707 = vpop.permute.xlu0 %1706
    %1708 = vrot.lane.b32.xlu0 %v1616, 64
    %v1709 = vpop.permute.xlu0 %1708
    %1710 = vrot.lane.b32.xlu0 %v1617, 64
    %v1711 = vpop.permute.xlu0 %1710
    %1712 = vrot.lane.b32.xlu0 %v1618, 64
    %v1713 = vpop.permute.xlu0 %1712
    %1714 = vrot.lane.b32.xlu0 %v1619, 64
    %v1715 = vpop.permute.xlu0 %1714
    %v1748 = vsel %vm773, %v1653, 0.0
    %1749 = vadd.xlane.f32.xlu0 %v1748
    %v1750 = vpop.xlane.xlu0 %1749
    %v1751 = vsel %vm773, %v1655, 0.0
    %1752 = vadd.xlane.f32.xlu0 %v1751
    %v1753 = vpop.xlane.xlu0 %1752
    %v1754 = vsel %vm773, %v1657, 0.0
    %1755 = vadd.xlane.f32.xlu0 %v1754
    %v1756 = vpop.xlane.xlu0 %1755
    %v1757 = vsel %vm773, %v1659, 0.0
    %1758 = vadd.xlane.f32.xlu0 %v1757
    %v1759 = vpop.xlane.xlu0 %1758
    %v1760 = vsel %vm773, %v1661, 0.0
    %1761 = vadd.xlane.f32.xlu0 %v1760
    %v1762 = vpop.xlane.xlu0 %1761
    %v1763 = vsel %vm773, %v1663, 0.0
    %1764 = vadd.xlane.f32.xlu0 %v1763
    %v1765 = vpop.xlane.xlu0 %1764
    %v1766 = vsel %vm773, %v1665, 0.0
    %1767 = vadd.xlane.f32.xlu0 %v1766
    %v1768 = vpop.xlane.xlu0 %1767
    %v1769 = vsel %vm773, %v1667, 0.0
    %1770 = vadd.xlane.f32.xlu0 %v1769
    %v1771 = vpop.xlane.xlu0 %1770
    %v1772 = vsel %vm773, %v1669, 0.0
    %1773 = vadd.xlane.f32.xlu0 %v1772
    %v1774 = vpop.xlane.xlu0 %1773
    %v1775 = vsel %vm773, %v1671, 0.0
    %1776 = vadd.xlane.f32.xlu0 %v1775
    %v1777 = vpop.xlane.xlu0 %1776
    %v1778 = vsel %vm773, %v1673, 0.0
    %1779 = vadd.xlane.f32.xlu0 %v1778
    %v1780 = vpop.xlane.xlu0 %1779
    %v1781 = vsel %vm773, %v1675, 0.0
    %1782 = vadd.xlane.f32.xlu0 %v1781
    %v1783 = vpop.xlane.xlu0 %1782
    %v1784 = vsel %vm773, %v1677, 0.0
    %1785 = vadd.xlane.f32.xlu0 %v1784
    %v1786 = vpop.xlane.xlu0 %1785
    %v1787 = vsel %vm773, %v1679, 0.0
    %1788 = vadd.xlane.f32.xlu0 %v1787
    %v1789 = vpop.xlane.xlu0 %1788
    %v1790 = vsel %vm773, %v1681, 0.0
    %1791 = vadd.xlane.f32.xlu0 %v1790
    %v1792 = vpop.xlane.xlu0 %1791
    %v1793 = vsel %vm773, %v1683, 0.0
    %1794 = vadd.xlane.f32.xlu0 %v1793
    %v1795 = vpop.xlane.xlu0 %1794
    %v1796 = vsel %vm773, %v1685, 0.0
    %1797 = vadd.xlane.f32.xlu0 %v1796
    %v1798 = vpop.xlane.xlu0 %1797
    %v1799 = vsel %vm773, %v1687, 0.0
    %1800 = vadd.xlane.f32.xlu0 %v1799
    %v1801 = vpop.xlane.xlu0 %1800
    %v1802 = vsel %vm773, %v1689, 0.0
    %1803 = vadd.xlane.f32.xlu0 %v1802
    %v1804 = vpop.xlane.xlu0 %1803
    %v1805 = vsel %vm773, %v1691, 0.0
    %1806 = vadd.xlane.f32.xlu0 %v1805
    %v1807 = vpop.xlane.xlu0 %1806
    %v1808 = vsel %vm773, %v1693, 0.0
    %1809 = vadd.xlane.f32.xlu0 %v1808
    %v1810 = vpop.xlane.xlu0 %1809
    %v1811 = vsel %vm773, %v1695, 0.0
    %1812 = vadd.xlane.f32.xlu0 %v1811
    %v1813 = vpop.xlane.xlu0 %1812
    %v1814 = vsel %vm773, %v1697, 0.0
    %1815 = vadd.xlane.f32.xlu0 %v1814
    %v1816 = vpop.xlane.xlu0 %1815
    %v1817 = vsel %vm773, %v1699, 0.0
    %1818 = vadd.xlane.f32.xlu0 %v1817
    %v1819 = vpop.xlane.xlu0 %1818
    %v1820 = vsel %vm773, %v1701, 0.0
    %1821 = vadd.xlane.f32.xlu0 %v1820
    %v1822 = vpop.xlane.xlu0 %1821
    %v1823 = vsel %vm773, %v1703, 0.0
    %1824 = vadd.xlane.f32.xlu0 %v1823
    %v1825 = vpop.xlane.xlu0 %1824
    %v1826 = vsel %vm773, %v1705, 0.0
    %1827 = vadd.xlane.f32.xlu0 %v1826
    %v1828 = vpop.xlane.xlu0 %1827
    %v1829 = vsel %vm773, %v1707, 0.0
    %1830 = vadd.xlane.f32.xlu0 %v1829
    %v1831 = vpop.xlane.xlu0 %1830
    %v1832 = vsel %vm773, %v1709, 0.0
    %1833 = vadd.xlane.f32.xlu0 %v1832
    %v1834 = vpop.xlane.xlu0 %1833
    %v1835 = vsel %vm773, %v1711, 0.0
    %1836 = vadd.xlane.f32.xlu0 %v1835
    %v1837 = vpop.xlane.xlu0 %1836
    %v1838 = vsel %vm773, %v1713, 0.0
    %1839 = vadd.xlane.f32.xlu0 %v1838
    %v1840 = vpop.xlane.xlu0 %1839
    %v1841 = vsel %vm773, %v1715, 0.0
    %1842 = vadd.xlane.f32.xlu0 %v1841
    %v1843 = vpop.xlane.xlu0 %1842
    %v1876 = vlaneseq
    %v1877 = vshrl.u32 %v1876, 7
    %v1878 = vsub.s32 %v903, %v1877
    %v1879 = vrot.slane %v1750, %v1878
    %v1880 = vlaneseq
    %v1881 = vshrl.u32 %v1880, 7
    %v1882 = vsub.s32 %v908, %v1881
    %v1883 = vrot.slane %v1753, %v1882
    %v1884 = vsel %vm913, %v1883, %v1879
    %v1885 = vlaneseq
    %v1886 = vshrl.u32 %v1885, 7
    %v1887 = vsub.s32 %v903, %v1886
    %v1888 = vrot.slane %v1756, %v1887
    %v1889 = vlaneseq
    %v1890 = vshrl.u32 %v1889, 7
    %v1891 = vsub.s32 %v908, %v1890
    %v1892 = vrot.slane %v1759, %v1891
    %v1893 = vsel %vm913, %v1892, %v1888
    %v1894 = vlaneseq
    %v1895 = vshrl.u32 %v1894, 7
    %v1896 = vsub.s32 %v903, %v1895
    %v1897 = vrot.slane %v1762, %v1896
    %v1898 = vlaneseq
    %v1899 = vshrl.u32 %v1898, 7
    %v1900 = vsub.s32 %v908, %v1899
    %v1901 = vrot.slane %v1765, %v1900
    %v1902 = vsel %vm913, %v1901, %v1897
    %v1903 = vlaneseq
    %v1904 = vshrl.u32 %v1903, 7
    %v1905 = vsub.s32 %v903, %v1904
    %v1906 = vrot.slane %v1768, %v1905
    %v1907 = vlaneseq
    %v1908 = vshrl.u32 %v1907, 7
    %v1909 = vsub.s32 %v908, %v1908
    %v1910 = vrot.slane %v1771, %v1909
    %v1911 = vsel %vm913, %v1910, %v1906
    %v1912 = vlaneseq
    %v1913 = vshrl.u32 %v1912, 7
    %v1914 = vsub.s32 %v903, %v1913
    %v1915 = vrot.slane %v1774, %v1914
    %v1916 = vlaneseq
    %v1917 = vshrl.u32 %v1916, 7
    %v1918 = vsub.s32 %v908, %v1917
    %v1919 = vrot.slane %v1777, %v1918
    %v1920 = vsel %vm913, %v1919, %v1915
    %v1921 = vlaneseq
    %v1922 = vshrl.u32 %v1921, 7
    %v1923 = vsub.s32 %v903, %v1922
    %v1924 = vrot.slane %v1780, %v1923
    %v1925 = vlaneseq
    %v1926 = vshrl.u32 %v1925, 7
    %v1927 = vsub.s32 %v908, %v1926
    %v1928 = vrot.slane %v1783, %v1927
    %v1929 = vsel %vm913, %v1928, %v1924
    %v1930 = vlaneseq
    %v1931 = vshrl.u32 %v1930, 7
    %v1932 = vsub.s32 %v903, %v1931
    %v1933 = vrot.slane %v1786, %v1932
    %v1934 = vlaneseq
    %v1935 = vshrl.u32 %v1934, 7
    %v1936 = vsub.s32 %v908, %v1935
    %v1937 = vrot.slane %v1789, %v1936
    %v1938 = vsel %vm913, %v1937, %v1933
    %v1939 = vlaneseq
    %v1940 = vshrl.u32 %v1939, 7
    %v1941 = vsub.s32 %v903, %v1940
    %v1942 = vrot.slane %v1792, %v1941
    %v1943 = vlaneseq
    %v1944 = vshrl.u32 %v1943, 7
    %v1945 = vsub.s32 %v908, %v1944
    %v1946 = vrot.slane %v1795, %v1945
    %v1947 = vsel %vm913, %v1946, %v1942
    %v1948 = vlaneseq
    %v1949 = vshrl.u32 %v1948, 7
    %v1950 = vsub.s32 %v903, %v1949
    %v1951 = vrot.slane %v1798, %v1950
    %v1952 = vlaneseq
    %v1953 = vshrl.u32 %v1952, 7
    %v1954 = vsub.s32 %v908, %v1953
    %v1955 = vrot.slane %v1801, %v1954
    %v1956 = vsel %vm913, %v1955, %v1951
    %v1957 = vlaneseq
    %v1958 = vshrl.u32 %v1957, 7
    %v1959 = vsub.s32 %v903, %v1958
    %v1960 = vrot.slane %v1804, %v1959
    %v1961 = vlaneseq
    %v1962 = vshrl.u32 %v1961, 7
    %v1963 = vsub.s32 %v908, %v1962
    %v1964 = vrot.slane %v1807, %v1963
    %v1965 = vsel %vm913, %v1964, %v1960
    %v1966 = vlaneseq
    %v1967 = vshrl.u32 %v1966, 7
    %v1968 = vsub.s32 %v903, %v1967
    %v1969 = vrot.slane %v1810, %v1968
    %v1970 = vlaneseq
    %v1971 = vshrl.u32 %v1970, 7
    %v1972 = vsub.s32 %v908, %v1971
    %v1973 = vrot.slane %v1813, %v1972
    %v1974 = vsel %vm913, %v1973, %v1969
    %v1975 = vlaneseq
    %v1976 = vshrl.u32 %v1975, 7
    %v1977 = vsub.s32 %v903, %v1976
    %v1978 = vrot.slane %v1816, %v1977
    %v1979 = vlaneseq
    %v1980 = vshrl.u32 %v1979, 7
    %v1981 = vsub.s32 %v908, %v1980
    %v1982 = vrot.slane %v1819, %v1981
    %v1983 = vsel %vm913, %v1982, %v1978
    %v1984 = vlaneseq
    %v1985 = vshrl.u32 %v1984, 7
    %v1986 = vsub.s32 %v903, %v1985
    %v1987 = vrot.slane %v1822, %v1986
    %v1988 = vlaneseq
    %v1989 = vshrl.u32 %v1988, 7
    %v1990 = vsub.s32 %v908, %v1989
    %v1991 = vrot.slane %v1825, %v1990
    %v1992 = vsel %vm913, %v1991, %v1987
    %v1993 = vlaneseq
    %v1994 = vshrl.u32 %v1993, 7
    %v1995 = vsub.s32 %v903, %v1994
    %v1996 = vrot.slane %v1828, %v1995
    %v1997 = vlaneseq
    %v1998 = vshrl.u32 %v1997, 7
    %v1999 = vsub.s32 %v908, %v1998
    %v2000 = vrot.slane %v1831, %v1999
    %v2001 = vsel %vm913, %v2000, %v1996
    %v2002 = vlaneseq
    %v2003 = vshrl.u32 %v2002, 7
    %v2004 = vsub.s32 %v903, %v2003
    %v2005 = vrot.slane %v1834, %v2004
    %v2006 = vlaneseq
    %v2007 = vshrl.u32 %v2006, 7
    %v2008 = vsub.s32 %v908, %v2007
    %v2009 = vrot.slane %v1837, %v2008
    %v2010 = vsel %vm913, %v2009, %v2005
    %v2011 = vlaneseq
    %v2012 = vshrl.u32 %v2011, 7
    %v2013 = vsub.s32 %v903, %v2012
    %v2014 = vrot.slane %v1840, %v2013
    %v2015 = vlaneseq
    %v2016 = vshrl.u32 %v2015, 7
    %v2017 = vsub.s32 %v908, %v2016
    %v2018 = vrot.slane %v1843, %v2017
    %v2019 = vsel %vm913, %v2018, %v2014
    %v2020 = vsel %vm1050, %v1893, %v1884
    %v2021 = vsel %vm1052, %v1902, %v2020
    %v2022 = vsel %vm1054, %v1911, %v2021
    %v2023 = vsel %vm1056, %v1920, %v2022
    %v2024 = vsel %vm1058, %v1929, %v2023
    %v2025 = vsel %vm1060, %v1938, %v2024
    %v2026 = vsel %vm1062, %v1947, %v2025
    %v2027 = vsel %vm1050, %v1965, %v1956
    %v2028 = vsel %vm1052, %v1974, %v2027
    %v2029 = vsel %vm1054, %v1983, %v2028
    %v2030 = vsel %vm1056, %v1992, %v2029
    %v2031 = vsel %vm1058, %v2001, %v2030
    %v2032 = vsel %vm1060, %v2010, %v2031
    %v2033 = vsel %vm1062, %v2019, %v2032
    %v2036 = vsel %vm288, %v2026, -1e+30
    %v2037 = vsel %vm289, %v2033, -1e+30
    %v2038 = vsel %vm1075, %v2036, -inf
    %2039 = vmax.xlane.f32.xlu0 %v2038
    %v2040 = vpop.xlane.xlu0 %2039
    %v2041 = vsel %vm1075, %v2037, -inf
    %2042 = vmax.xlane.f32.xlu0 %v2041
    %v2043 = vpop.xlane.xlu0 %2042
    %v2044 = vsub.f32 %v2036, %v2040
    %v2045 = vsub.f32 %v2037, %v2043
    %v2046 = vmul.f32 %v2044, 1.442695
    %v2047 = vpow.pop %v2046
    %v2048 = vmul.f32 %v2045, 1.442695
    %v2049 = vpow.pop %v2048
    %v2050 = vsel %vm1075, %v2047, 0.0
    %2051 = vadd.xlane.f32.xlu0 %v2050
    %v2052 = vpop.xlane.xlu0 %2051
    %v2053 = vsel %vm1075, %v2049, 0.0
    %2054 = vadd.xlane.f32.xlu0 %v2053
    %v2055 = vpop.xlane.xlu0 %2054
    %v2056 = vrcp.pop %v2052
    %v2057 = vrcp.pop %v2055
    %v2058 = vmul.f32 %v2047, %v2056
    %v2059 = vmul.f32 %v2049, %v2057
    %v2060 = vld [vmem:[#allocation13 + $0x3] sm:$0x1]
    %v2061 = vlaneseq
    %v2062 = vshrl.u32 %v2061, 7
    %v2063 = vsub.s32 0, %v2062
    %v2064 = vrot.slane %v2060, %v2063
    %2066 = vrot.lane.b32.xlu0 %v2064, 96
    %v2067 = vpop.permute.xlu0 %2066
    %v2069 = vmul.f32 %v704, %v2067
    %v2070 = vmul.f32 %v705, %v2067
    %v2071 = vmul.f32 %v706, %v2067
    %v2072 = vmul.f32 %v707, %v2067
    %v2073 = vmul.f32 %v708, %v2067
    %v2074 = vmul.f32 %v709, %v2067
    %v2075 = vmul.f32 %v710, %v2067
    %v2076 = vmul.f32 %v711, %v2067
    %v2077 = vmul.f32 %v712, %v2067
    %v2078 = vmul.f32 %v713, %v2067
    %v2079 = vmul.f32 %v714, %v2067
    %v2080 = vmul.f32 %v715, %v2067
    %v2081 = vmul.f32 %v716, %v2067
    %v2082 = vmul.f32 %v717, %v2067
    %v2083 = vmul.f32 %v718, %v2067
    %v2084 = vmul.f32 %v719, %v2067
    %v2085 = vmul.f32 %v720, %v2067
    %v2086 = vmul.f32 %v721, %v2067
    %v2087 = vmul.f32 %v722, %v2067
    %v2088 = vmul.f32 %v723, %v2067
    %v2089 = vmul.f32 %v724, %v2067
    %v2090 = vmul.f32 %v725, %v2067
    %v2091 = vmul.f32 %v726, %v2067
    %v2092 = vmul.f32 %v727, %v2067
    %v2093 = vmul.f32 %v728, %v2067
    %v2094 = vmul.f32 %v729, %v2067
    %v2095 = vmul.f32 %v730, %v2067
    %v2096 = vmul.f32 %v731, %v2067
    %v2097 = vmul.f32 %v732, %v2067
    %v2098 = vmul.f32 %v733, %v2067
    %v2099 = vmul.f32 %v734, %v2067
    %v2100 = vmul.f32 %v735, %v2067
    %2133 = vrot.lane.b32.xlu0 %v2069, 32
    %v2134 = vpop.permute.xlu0 %2133
    %2135 = vrot.lane.b32.xlu0 %v2070, 32
    %v2136 = vpop.permute.xlu0 %2135
    %2137 = vrot.lane.b32.xlu0 %v2071, 32
    %v2138 = vpop.permute.xlu0 %2137
    %2139 = vrot.lane.b32.xlu0 %v2072, 32
    %v2140 = vpop.permute.xlu0 %2139
    %2141 = vrot.lane.b32.xlu0 %v2073, 32
    %v2142 = vpop.permute.xlu0 %2141
    %2143 = vrot.lane.b32.xlu0 %v2074, 32
    %v2144 = vpop.permute.xlu0 %2143
    %2145 = vrot.lane.b32.xlu0 %v2075, 32
    %v2146 = vpop.permute.xlu0 %2145
    %2147 = vrot.lane.b32.xlu0 %v2076, 32
    %v2148 = vpop.permute.xlu0 %2147
    %2149 = vrot.lane.b32.xlu0 %v2077, 32
    %v2150 = vpop.permute.xlu0 %2149
    %2151 = vrot.lane.b32.xlu0 %v2078, 32
    %v2152 = vpop.permute.xlu0 %2151
    %2153 = vrot.lane.b32.xlu0 %v2079, 32
    %v2154 = vpop.permute.xlu0 %2153
    %2155 = vrot.lane.b32.xlu0 %v2080, 32
    %v2156 = vpop.permute.xlu0 %2155
    %2157 = vrot.lane.b32.xlu0 %v2081, 32
    %v2158 = vpop.permute.xlu0 %2157
    %2159 = vrot.lane.b32.xlu0 %v2082, 32
    %v2160 = vpop.permute.xlu0 %2159
    %2161 = vrot.lane.b32.xlu0 %v2083, 32
    %v2162 = vpop.permute.xlu0 %2161
    %2163 = vrot.lane.b32.xlu0 %v2084, 32
    %v2164 = vpop.permute.xlu0 %2163
    %2165 = vrot.lane.b32.xlu0 %v2085, 32
    %v2166 = vpop.permute.xlu0 %2165
    %2167 = vrot.lane.b32.xlu0 %v2086, 32
    %v2168 = vpop.permute.xlu0 %2167
    %2169 = vrot.lane.b32.xlu0 %v2087, 32
    %v2170 = vpop.permute.xlu0 %2169
    %2171 = vrot.lane.b32.xlu0 %v2088, 32
    %v2172 = vpop.permute.xlu0 %2171
    %2173 = vrot.lane.b32.xlu0 %v2089, 32
    %v2174 = vpop.permute.xlu0 %2173
    %2175 = vrot.lane.b32.xlu0 %v2090, 32
    %v2176 = vpop.permute.xlu0 %2175
    %2177 = vrot.lane.b32.xlu0 %v2091, 32
    %v2178 = vpop.permute.xlu0 %2177
    %2179 = vrot.lane.b32.xlu0 %v2092, 32
    %v2180 = vpop.permute.xlu0 %2179
    %2181 = vrot.lane.b32.xlu0 %v2093, 32
    %v2182 = vpop.permute.xlu0 %2181
    %2183 = vrot.lane.b32.xlu0 %v2094, 32
    %v2184 = vpop.permute.xlu0 %2183
    %2185 = vrot.lane.b32.xlu0 %v2095, 32
    %v2186 = vpop.permute.xlu0 %2185
    %2187 = vrot.lane.b32.xlu0 %v2096, 32
    %v2188 = vpop.permute.xlu0 %2187
    %2189 = vrot.lane.b32.xlu0 %v2097, 32
    %v2190 = vpop.permute.xlu0 %2189
    %2191 = vrot.lane.b32.xlu0 %v2098, 32
    %v2192 = vpop.permute.xlu0 %2191
    %2193 = vrot.lane.b32.xlu0 %v2099, 32
    %v2194 = vpop.permute.xlu0 %2193
    %2195 = vrot.lane.b32.xlu0 %v2100, 32
    %v2196 = vpop.permute.xlu0 %2195
    %v2229 = vsel %vm773, %v2134, 0.0
    %2230 = vadd.xlane.f32.xlu0 %v2229
    %v2231 = vpop.xlane.xlu0 %2230
    %v2232 = vsel %vm773, %v2136, 0.0
    %2233 = vadd.xlane.f32.xlu0 %v2232
    %v2234 = vpop.xlane.xlu0 %2233
    %v2235 = vsel %vm773, %v2138, 0.0
    %2236 = vadd.xlane.f32.xlu0 %v2235
    %v2237 = vpop.xlane.xlu0 %2236
    %v2238 = vsel %vm773, %v2140, 0.0
    %2239 = vadd.xlane.f32.xlu0 %v2238
    %v2240 = vpop.xlane.xlu0 %2239
    %v2241 = vsel %vm773, %v2142, 0.0
    %2242 = vadd.xlane.f32.xlu0 %v2241
    %v2243 = vpop.xlane.xlu0 %2242
    %v2244 = vsel %vm773, %v2144, 0.0
    %2245 = vadd.xlane.f32.xlu0 %v2244
    %v2246 = vpop.xlane.xlu0 %2245
    %v2247 = vsel %vm773, %v2146, 0.0
    %2248 = vadd.xlane.f32.xlu0 %v2247
    %v2249 = vpop.xlane.xlu0 %2248
    %v2250 = vsel %vm773, %v2148, 0.0
    %2251 = vadd.xlane.f32.xlu0 %v2250
    %v2252 = vpop.xlane.xlu0 %2251
    %v2253 = vsel %vm773, %v2150, 0.0
    %2254 = vadd.xlane.f32.xlu0 %v2253
    %v2255 = vpop.xlane.xlu0 %2254
    %v2256 = vsel %vm773, %v2152, 0.0
    %2257 = vadd.xlane.f32.xlu0 %v2256
    %v2258 = vpop.xlane.xlu0 %2257
    %v2259 = vsel %vm773, %v2154, 0.0
    %2260 = vadd.xlane.f32.xlu0 %v2259
    %v2261 = vpop.xlane.xlu0 %2260
    %v2262 = vsel %vm773, %v2156, 0.0
    %2263 = vadd.xlane.f32.xlu0 %v2262
    %v2264 = vpop.xlane.xlu0 %2263
    %v2265 = vsel %vm773, %v2158, 0.0
    %2266 = vadd.xlane.f32.xlu0 %v2265
    %v2267 = vpop.xlane.xlu0 %2266
    %v2268 = vsel %vm773, %v2160, 0.0
    %2269 = vadd.xlane.f32.xlu0 %v2268
    %v2270 = vpop.xlane.xlu0 %2269
    %v2271 = vsel %vm773, %v2162, 0.0
    %2272 = vadd.xlane.f32.xlu0 %v2271
    %v2273 = vpop.xlane.xlu0 %2272
    %v2274 = vsel %vm773, %v2164, 0.0
    %2275 = vadd.xlane.f32.xlu0 %v2274
    %v2276 = vpop.xlane.xlu0 %2275
    %v2277 = vsel %vm773, %v2166, 0.0
    %2278 = vadd.xlane.f32.xlu0 %v2277
    %v2279 = vpop.xlane.xlu0 %2278
    %v2280 = vsel %vm773, %v2168, 0.0
    %2281 = vadd.xlane.f32.xlu0 %v2280
    %v2282 = vpop.xlane.xlu0 %2281
    %v2283 = vsel %vm773, %v2170, 0.0
    %2284 = vadd.xlane.f32.xlu0 %v2283
    %v2285 = vpop.xlane.xlu0 %2284
    %v2286 = vsel %vm773, %v2172, 0.0
    %2287 = vadd.xlane.f32.xlu0 %v2286
    %v2288 = vpop.xlane.xlu0 %2287
    %v2289 = vsel %vm773, %v2174, 0.0
    %2290 = vadd.xlane.f32.xlu0 %v2289
    %v2291 = vpop.xlane.xlu0 %2290
    %v2292 = vsel %vm773, %v2176, 0.0
    %2293 = vadd.xlane.f32.xlu0 %v2292
    %v2294 = vpop.xlane.xlu0 %2293
    %v2295 = vsel %vm773, %v2178, 0.0
    %2296 = vadd.xlane.f32.xlu0 %v2295
    %v2297 = vpop.xlane.xlu0 %2296
    %v2298 = vsel %vm773, %v2180, 0.0
    %2299 = vadd.xlane.f32.xlu0 %v2298
    %v2300 = vpop.xlane.xlu0 %2299
    %v2301 = vsel %vm773, %v2182, 0.0
    %2302 = vadd.xlane.f32.xlu0 %v2301
    %v2303 = vpop.xlane.xlu0 %2302
    %v2304 = vsel %vm773, %v2184, 0.0
    %2305 = vadd.xlane.f32.xlu0 %v2304
    %v2306 = vpop.xlane.xlu0 %2305
    %v2307 = vsel %vm773, %v2186, 0.0
    %2308 = vadd.xlane.f32.xlu0 %v2307
    %v2309 = vpop.xlane.xlu0 %2308
    %v2310 = vsel %vm773, %v2188, 0.0
    %2311 = vadd.xlane.f32.xlu0 %v2310
    %v2312 = vpop.xlane.xlu0 %2311
    %v2313 = vsel %vm773, %v2190, 0.0
    %2314 = vadd.xlane.f32.xlu0 %v2313
    %v2315 = vpop.xlane.xlu0 %2314
    %v2316 = vsel %vm773, %v2192, 0.0
    %2317 = vadd.xlane.f32.xlu0 %v2316
    %v2318 = vpop.xlane.xlu0 %2317
    %v2319 = vsel %vm773, %v2194, 0.0
    %2320 = vadd.xlane.f32.xlu0 %v2319
    %v2321 = vpop.xlane.xlu0 %2320
    %v2322 = vsel %vm773, %v2196, 0.0
    %2323 = vadd.xlane.f32.xlu0 %v2322
    %v2324 = vpop.xlane.xlu0 %2323
    %v2357 = vlaneseq
    %v2358 = vshrl.u32 %v2357, 7
    %v2359 = vsub.s32 %v903, %v2358
    %v2360 = vrot.slane %v2231, %v2359
    %v2361 = vlaneseq
    %v2362 = vshrl.u32 %v2361, 7
    %v2363 = vsub.s32 %v908, %v2362
    %v2364 = vrot.slane %v2234, %v2363
    %v2365 = vsel %vm913, %v2364, %v2360
    %v2366 = vlaneseq
    %v2367 = vshrl.u32 %v2366, 7
    %v2368 = vsub.s32 %v903, %v2367
    %v2369 = vrot.slane %v2237, %v2368
    %v2370 = vlaneseq
    %v2371 = vshrl.u32 %v2370, 7
    %v2372 = vsub.s32 %v908, %v2371
    %v2373 = vrot.slane %v2240, %v2372
    %v2374 = vsel %vm913, %v2373, %v2369
    %v2375 = vlaneseq
    %v2376 = vshrl.u32 %v2375, 7
    %v2377 = vsub.s32 %v903, %v2376
    %v2378 = vrot.slane %v2243, %v2377
    %v2379 = vlaneseq
    %v2380 = vshrl.u32 %v2379, 7
    %v2381 = vsub.s32 %v908, %v2380
    %v2382 = vrot.slane %v2246, %v2381
    %v2383 = vsel %vm913, %v2382, %v2378
    %v2384 = vlaneseq
    %v2385 = vshrl.u32 %v2384, 7
    %v2386 = vsub.s32 %v903, %v2385
    %v2387 = vrot.slane %v2249, %v2386
    %v2388 = vlaneseq
    %v2389 = vshrl.u32 %v2388, 7
    %v2390 = vsub.s32 %v908, %v2389
    %v2391 = vrot.slane %v2252, %v2390
    %v2392 = vsel %vm913, %v2391, %v2387
    %v2393 = vlaneseq
    %v2394 = vshrl.u32 %v2393, 7
    %v2395 = vsub.s32 %v903, %v2394
    %v2396 = vrot.slane %v2255, %v2395
    %v2397 = vlaneseq
    %v2398 = vshrl.u32 %v2397, 7
    %v2399 = vsub.s32 %v908, %v2398
    %v2400 = vrot.slane %v2258, %v2399
    %v2401 = vsel %vm913, %v2400, %v2396
    %v2402 = vlaneseq
    %v2403 = vshrl.u32 %v2402, 7
    %v2404 = vsub.s32 %v903, %v2403
    %v2405 = vrot.slane %v2261, %v2404
    %v2406 = vlaneseq
    %v2407 = vshrl.u32 %v2406, 7
    %v2408 = vsub.s32 %v908, %v2407
    %v2409 = vrot.slane %v2264, %v2408
    %v2410 = vsel %vm913, %v2409, %v2405
    %v2411 = vlaneseq
    %v2412 = vshrl.u32 %v2411, 7
    %v2413 = vsub.s32 %v903, %v2412
    %v2414 = vrot.slane %v2267, %v2413
    %v2415 = vlaneseq
    %v2416 = vshrl.u32 %v2415, 7
    %v2417 = vsub.s32 %v908, %v2416
    %v2418 = vrot.slane %v2270, %v2417
    %v2419 = vsel %vm913, %v2418, %v2414
    %v2420 = vlaneseq
    %v2421 = vshrl.u32 %v2420, 7
    %v2422 = vsub.s32 %v903, %v2421
    %v2423 = vrot.slane %v2273, %v2422
    %v2424 = vlaneseq
    %v2425 = vshrl.u32 %v2424, 7
    %v2426 = vsub.s32 %v908, %v2425
    %v2427 = vrot.slane %v2276, %v2426
    %v2428 = vsel %vm913, %v2427, %v2423
    %v2429 = vlaneseq
    %v2430 = vshrl.u32 %v2429, 7
    %v2431 = vsub.s32 %v903, %v2430
    %v2432 = vrot.slane %v2279, %v2431
    %v2433 = vlaneseq
    %v2434 = vshrl.u32 %v2433, 7
    %v2435 = vsub.s32 %v908, %v2434
    %v2436 = vrot.slane %v2282, %v2435
    %v2437 = vsel %vm913, %v2436, %v2432
    %v2438 = vlaneseq
    %v2439 = vshrl.u32 %v2438, 7
    %v2440 = vsub.s32 %v903, %v2439
    %v2441 = vrot.slane %v2285, %v2440
    %v2442 = vlaneseq
    %v2443 = vshrl.u32 %v2442, 7
    %v2444 = vsub.s32 %v908, %v2443
    %v2445 = vrot.slane %v2288, %v2444
    %v2446 = vsel %vm913, %v2445, %v2441
    %v2447 = vlaneseq
    %v2448 = vshrl.u32 %v2447, 7
    %v2449 = vsub.s32 %v903, %v2448
    %v2450 = vrot.slane %v2291, %v2449
    %v2451 = vlaneseq
    %v2452 = vshrl.u32 %v2451, 7
    %v2453 = vsub.s32 %v908, %v2452
    %v2454 = vrot.slane %v2294, %v2453
    %v2455 = vsel %vm913, %v2454, %v2450
    %v2456 = vlaneseq
    %v2457 = vshrl.u32 %v2456, 7
    %v2458 = vsub.s32 %v903, %v2457
    %v2459 = vrot.slane %v2297, %v2458
    %v2460 = vlaneseq
    %v2461 = vshrl.u32 %v2460, 7
    %v2462 = vsub.s32 %v908, %v2461
    %v2463 = vrot.slane %v2300, %v2462
    %v2464 = vsel %vm913, %v2463, %v2459
    %v2465 = vlaneseq
    %v2466 = vshrl.u32 %v2465, 7
    %v2467 = vsub.s32 %v903, %v2466
    %v2468 = vrot.slane %v2303, %v2467
    %v2469 = vlaneseq
    %v2470 = vshrl.u32 %v2469, 7
    %v2471 = vsub.s32 %v908, %v2470
    %v2472 = vrot.slane %v2306, %v2471
    %v2473 = vsel %vm913, %v2472, %v2468
    %v2474 = vlaneseq
    %v2475 = vshrl.u32 %v2474, 7
    %v2476 = vsub.s32 %v903, %v2475
    %v2477 = vrot.slane %v2309, %v2476
    %v2478 = vlaneseq
    %v2479 = vshrl.u32 %v2478, 7
    %v2480 = vsub.s32 %v908, %v2479
    %v2481 = vrot.slane %v2312, %v2480
    %v2482 = vsel %vm913, %v2481, %v2477
    %v2483 = vlaneseq
    %v2484 = vshrl.u32 %v2483, 7
    %v2485 = vsub.s32 %v903, %v2484
    %v2486 = vrot.slane %v2315, %v2485
    %v2487 = vlaneseq
    %v2488 = vshrl.u32 %v2487, 7
    %v2489 = vsub.s32 %v908, %v2488
    %v2490 = vrot.slane %v2318, %v2489
    %v2491 = vsel %vm913, %v2490, %v2486
    %v2492 = vlaneseq
    %v2493 = vshrl.u32 %v2492, 7
    %v2494 = vsub.s32 %v903, %v2493
    %v2495 = vrot.slane %v2321, %v2494
    %v2496 = vlaneseq
    %v2497 = vshrl.u32 %v2496, 7
    %v2498 = vsub.s32 %v908, %v2497
    %v2499 = vrot.slane %v2324, %v2498
    %v2500 = vsel %vm913, %v2499, %v2495
    %v2501 = vsel %vm1050, %v2374, %v2365
    %v2502 = vsel %vm1052, %v2383, %v2501
    %v2503 = vsel %vm1054, %v2392, %v2502
    %v2504 = vsel %vm1056, %v2401, %v2503
    %v2505 = vsel %vm1058, %v2410, %v2504
    %v2506 = vsel %vm1060, %v2419, %v2505
    %v2507 = vsel %vm1062, %v2428, %v2506
    %v2508 = vsel %vm1050, %v2446, %v2437
    %v2509 = vsel %vm1052, %v2455, %v2508
    %v2510 = vsel %vm1054, %v2464, %v2509
    %v2511 = vsel %vm1056, %v2473, %v2510
    %v2512 = vsel %vm1058, %v2482, %v2511
    %v2513 = vsel %vm1060, %v2491, %v2512
    %v2514 = vsel %vm1062, %v2500, %v2513
    %v2517 = vsel %vm288, %v2507, -1e+30
    %v2518 = vsel %vm289, %v2514, -1e+30
    %v2519 = vsel %vm1075, %v2517, -inf
    %2520 = vmax.xlane.f32.xlu0 %v2519
    %v2521 = vpop.xlane.xlu0 %2520
    %v2522 = vsel %vm1075, %v2518, -inf
    %2523 = vmax.xlane.f32.xlu0 %v2522
    %v2524 = vpop.xlane.xlu0 %2523
    %v2525 = vsub.f32 %v2517, %v2521
    %v2526 = vsub.f32 %v2518, %v2524
    %v2527 = vmul.f32 %v2525, 1.442695
    %v2528 = vpow.pop %v2527
    %v2529 = vmul.f32 %v2526, 1.442695
    %v2530 = vpow.pop %v2529
    %v2531 = vsel %vm1075, %v2528, 0.0
    %2532 = vadd.xlane.f32.xlu0 %v2531
    %v2533 = vpop.xlane.xlu0 %2532
    %v2534 = vsel %vm1075, %v2530, 0.0
    %2535 = vadd.xlane.f32.xlu0 %v2534
    %v2536 = vpop.xlane.xlu0 %2535
    %v2537 = vrcp.pop %v2533
    %v2538 = vrcp.pop %v2536
    %v2539 = vmul.f32 %v2528, %v2537
    %v2540 = vmul.f32 %v2530, %v2538
    %v2543 = vcombine.high %v422, %v422
    %v2545 = vunpack.c.l.s4 1966171168
    %v2546 = vunpack.c.0.s8 %v2545
    %v2547 = vlaneseq
    %v2548 = vshrl.u32 %v2547, 7
    %v2549 = vsub.s32 %v2546, %v2548
    %v2550 = vrot.slane %v422, %v2549
    %v2552 = vunpack.c.l.s4 1966171168
    %v2553 = vunpack.c.0.s8 %v2552
    %v2554 = vlaneseq
    %v2555 = vshrl.u32 %v2554, 7
    %v2556 = vsub.s32 %v2553, %v2555
    %v2557 = vrot.slane %v2543, %v2556
    %v2558 = vcombine.high %v2550, %v2550
    %v2559 = vcombine.high %v2557, %v2557
    %v2561 = vunpack.c.l.s4 1966171168
    %v2562 = vunpack.c.0.s8 %v2561
    %v2563 = vlaneseq
    %v2564 = vshrl.u32 %v2563, 7
    %v2565 = vsub.s32 %v2562, %v2564
    %v2566 = vrot.slane %v2550, %v2565
    %v2568 = vunpack.c.l.s4 1966171168
    %v2569 = vunpack.c.0.s8 %v2568
    %v2570 = vlaneseq
    %v2571 = vshrl.u32 %v2570, 7
    %v2572 = vsub.s32 %v2569, %v2571
    %v2573 = vrot.slane %v2557, %v2572
    %v2575 = vunpack.c.l.s4 1966171168
    %v2576 = vunpack.c.0.s8 %v2575
    %v2577 = vlaneseq
    %v2578 = vshrl.u32 %v2577, 7
    %v2579 = vsub.s32 %v2576, %v2578
    %v2580 = vrot.slane %v2558, %v2579
    %v2582 = vunpack.c.l.s4 1966171168
    %v2583 = vunpack.c.0.s8 %v2582
    %v2584 = vlaneseq
    %v2585 = vshrl.u32 %v2584, 7
    %v2586 = vsub.s32 %v2583, %v2585
    %v2587 = vrot.slane %v2559, %v2586
    %v2588 = vcombine.high %v2566, %v2566
    %v2589 = vcombine.high %v2573, %v2573
    %v2590 = vcombine.high %v2580, %v2580
    %v2591 = vcombine.high %v2587, %v2587
    %v2592 = vcombine.high %v426, %v426
    %v2594 = vunpack.c.l.s4 1966171168
    %v2595 = vunpack.c.0.s8 %v2594
    %v2596 = vlaneseq
    %v2597 = vshrl.u32 %v2596, 7
    %v2598 = vsub.s32 %v2595, %v2597
    %v2599 = vrot.slane %v426, %v2598
    %v2601 = vunpack.c.l.s4 1966171168
    %v2602 = vunpack.c.0.s8 %v2601
    %v2603 = vlaneseq
    %v2604 = vshrl.u32 %v2603, 7
    %v2605 = vsub.s32 %v2602, %v2604
    %v2606 = vrot.slane %v2592, %v2605
    %v2607 = vcombine.high %v2599, %v2599
    %v2608 = vcombine.high %v2606, %v2606
    %v2610 = vunpack.c.l.s4 1966171168
    %v2611 = vunpack.c.0.s8 %v2610
    %v2612 = vlaneseq
    %v2613 = vshrl.u32 %v2612, 7
    %v2614 = vsub.s32 %v2611, %v2613
    %v2615 = vrot.slane %v2599, %v2614
    %v2617 = vunpack.c.l.s4 1966171168
    %v2618 = vunpack.c.0.s8 %v2617
    %v2619 = vlaneseq
    %v2620 = vshrl.u32 %v2619, 7
    %v2621 = vsub.s32 %v2618, %v2620
    %v2622 = vrot.slane %v2606, %v2621
    %v2624 = vunpack.c.l.s4 1966171168
    %v2625 = vunpack.c.0.s8 %v2624
    %v2626 = vlaneseq
    %v2627 = vshrl.u32 %v2626, 7
    %v2628 = vsub.s32 %v2625, %v2627
    %v2629 = vrot.slane %v2607, %v2628
    %v2631 = vunpack.c.l.s4 1966171168
    %v2632 = vunpack.c.0.s8 %v2631
    %v2633 = vlaneseq
    %v2634 = vshrl.u32 %v2633, 7
    %v2635 = vsub.s32 %v2632, %v2634
    %v2636 = vrot.slane %v2608, %v2635
    %v2637 = vcombine.high %v2615, %v2615
    %v2638 = vcombine.high %v2622, %v2622
    %v2639 = vcombine.high %v2629, %v2629
    %v2640 = vcombine.high %v2636, %v2636
    %v2641 = vlaneseq
    %v2642 = vshrl.u32 %v2641, 7
    %v2643 = vsub.s32 0, %v2642
    %v2644 = vrot.slane %v2566, %v2643
    %v2645 = vlaneseq
    %v2646 = vshrl.u32 %v2645, 7
    %v2647 = vsub.s32 0, %v2646
    %v2648 = vrot.slane %v2580, %v2647
    %v2649 = vlaneseq
    %v2650 = vshrl.u32 %v2649, 7
    %v2651 = vsub.s32 0, %v2650
    %v2652 = vrot.slane %v2588, %v2651
    %v2653 = vlaneseq
    %v2654 = vshrl.u32 %v2653, 7
    %v2655 = vsub.s32 0, %v2654
    %v2656 = vrot.slane %v2590, %v2655
    %v2657 = vlaneseq
    %v2658 = vshrl.u32 %v2657, 7
    %v2659 = vsub.s32 0, %v2658
    %v2660 = vrot.slane %v2573, %v2659
    %v2661 = vlaneseq
    %v2662 = vshrl.u32 %v2661, 7
    %v2663 = vsub.s32 0, %v2662
    %v2664 = vrot.slane %v2587, %v2663
    %v2665 = vlaneseq
    %v2666 = vshrl.u32 %v2665, 7
    %v2667 = vsub.s32 0, %v2666
    %v2668 = vrot.slane %v2589, %v2667
    %v2669 = vlaneseq
    %v2670 = vshrl.u32 %v2669, 7
    %v2671 = vsub.s32 0, %v2670
    %v2672 = vrot.slane %v2591, %v2671
    %v2673 = vlaneseq
    %v2674 = vshrl.u32 %v2673, 7
    %v2675 = vsub.s32 0, %v2674
    %v2676 = vrot.slane %v2615, %v2675
    %v2677 = vlaneseq
    %v2678 = vshrl.u32 %v2677, 7
    %v2679 = vsub.s32 0, %v2678
    %v2680 = vrot.slane %v2629, %v2679
    %v2681 = vlaneseq
    %v2682 = vshrl.u32 %v2681, 7
    %v2683 = vsub.s32 0, %v2682
    %v2684 = vrot.slane %v2637, %v2683
    %v2685 = vlaneseq
    %v2686 = vshrl.u32 %v2685, 7
    %v2687 = vsub.s32 0, %v2686
    %v2688 = vrot.slane %v2639, %v2687
    %v2689 = vlaneseq
    %v2690 = vshrl.u32 %v2689, 7
    %v2691 = vsub.s32 0, %v2690
    %v2692 = vrot.slane %v2622, %v2691
    %v2693 = vlaneseq
    %v2694 = vshrl.u32 %v2693, 7
    %v2695 = vsub.s32 0, %v2694
    %v2696 = vrot.slane %v2636, %v2695
    %v2697 = vlaneseq
    %v2698 = vshrl.u32 %v2697, 7
    %v2699 = vsub.s32 0, %v2698
    %v2700 = vrot.slane %v2638, %v2699
    %v2701 = vlaneseq
    %v2702 = vshrl.u32 %v2701, 7
    %v2703 = vsub.s32 0, %v2702
    %v2704 = vrot.slane %v2640, %v2703
    %v2721 = vadd.f32 %v2644, %v357
    %v2722 = vadd.f32 %v2644, %v361
    %v2723 = vadd.f32 %v2648, %v357
    %v2724 = vadd.f32 %v2648, %v361
    %v2725 = vadd.f32 %v2652, %v357
    %v2726 = vadd.f32 %v2652, %v361
    %v2727 = vadd.f32 %v2656, %v357
    %v2728 = vadd.f32 %v2656, %v361
    %v2729 = vadd.f32 %v2660, %v357
    %v2730 = vadd.f32 %v2660, %v361
    %v2731 = vadd.f32 %v2664, %v357
    %v2732 = vadd.f32 %v2664, %v361
    %v2733 = vadd.f32 %v2668, %v357
    %v2734 = vadd.f32 %v2668, %v361
    %v2735 = vadd.f32 %v2672, %v357
    %v2736 = vadd.f32 %v2672, %v361
    %v2737 = vadd.f32 %v2676, %v357
    %v2738 = vadd.f32 %v2676, %v361
    %v2739 = vadd.f32 %v2680, %v357
    %v2740 = vadd.f32 %v2680, %v361
    %v2741 = vadd.f32 %v2684, %v357
    %v2742 = vadd.f32 %v2684, %v361
    %v2743 = vadd.f32 %v2688, %v357
    %v2744 = vadd.f32 %v2688, %v361
    %v2745 = vadd.f32 %v2692, %v357
    %v2746 = vadd.f32 %v2692, %v361
    %v2747 = vadd.f32 %v2696, %v357
    %v2748 = vadd.f32 %v2696, %v361
    %v2749 = vadd.f32 %v2700, %v357
    %v2750 = vadd.f32 %v2700, %v361
    %v2751 = vadd.f32 %v2704, %v357
    %v2752 = vadd.f32 %v2704, %v361
    %vm2753 = vcmp.gt.f32.partialorder %v2721, 0.0
    %vm2754 = vcmp.gt.f32.partialorder %v2722, 0.0
    %vm2755 = vcmp.gt.f32.partialorder %v2723, 0.0
    %vm2756 = vcmp.gt.f32.partialorder %v2724, 0.0
    %vm2757 = vcmp.gt.f32.partialorder %v2725, 0.0
    %vm2758 = vcmp.gt.f32.partialorder %v2726, 0.0
    %vm2759 = vcmp.gt.f32.partialorder %v2727, 0.0
    %vm2760 = vcmp.gt.f32.partialorder %v2728, 0.0
    %vm2761 = vcmp.gt.f32.partialorder %v2729, 0.0
    %vm2762 = vcmp.gt.f32.partialorder %v2730, 0.0
    %vm2763 = vcmp.gt.f32.partialorder %v2731, 0.0
    %vm2764 = vcmp.gt.f32.partialorder %v2732, 0.0
    %vm2765 = vcmp.gt.f32.partialorder %v2733, 0.0
    %vm2766 = vcmp.gt.f32.partialorder %v2734, 0.0
    %vm2767 = vcmp.gt.f32.partialorder %v2735, 0.0
    %vm2768 = vcmp.gt.f32.partialorder %v2736, 0.0
    %vm2769 = vcmp.gt.f32.partialorder %v2737, 0.0
    %vm2770 = vcmp.gt.f32.partialorder %v2738, 0.0
    %vm2771 = vcmp.gt.f32.partialorder %v2739, 0.0
    %vm2772 = vcmp.gt.f32.partialorder %v2740, 0.0
    %vm2773 = vcmp.gt.f32.partialorder %v2741, 0.0
    %vm2774 = vcmp.gt.f32.partialorder %v2742, 0.0
    %vm2775 = vcmp.gt.f32.partialorder %v2743, 0.0
    %vm2776 = vcmp.gt.f32.partialorder %v2744, 0.0
    %vm2777 = vcmp.gt.f32.partialorder %v2745, 0.0
    %vm2778 = vcmp.gt.f32.partialorder %v2746, 0.0
    %vm2779 = vcmp.gt.f32.partialorder %v2747, 0.0
    %vm2780 = vcmp.gt.f32.partialorder %v2748, 0.0
    %vm2781 = vcmp.gt.f32.partialorder %v2749, 0.0
    %vm2782 = vcmp.gt.f32.partialorder %v2750, 0.0
    %vm2783 = vcmp.gt.f32.partialorder %v2751, 0.0
    %vm2784 = vcmp.gt.f32.partialorder %v2752, 0.0
    %v2785 = vmul.f32 %v2721, 0.2
    %v2786 = vmul.f32 %v2722, 0.2
    %v2787 = vmul.f32 %v2723, 0.2
    %v2788 = vmul.f32 %v2724, 0.2
    %v2789 = vmul.f32 %v2725, 0.2
    %v2790 = vmul.f32 %v2726, 0.2
    %v2791 = vmul.f32 %v2727, 0.2
    %v2792 = vmul.f32 %v2728, 0.2
    %v2793 = vmul.f32 %v2729, 0.2
    %v2794 = vmul.f32 %v2730, 0.2
    %v2795 = vmul.f32 %v2731, 0.2
    %v2796 = vmul.f32 %v2732, 0.2
    %v2797 = vmul.f32 %v2733, 0.2
    %v2798 = vmul.f32 %v2734, 0.2
    %v2799 = vmul.f32 %v2735, 0.2
    %v2800 = vmul.f32 %v2736, 0.2
    %v2801 = vmul.f32 %v2737, 0.2
    %v2802 = vmul.f32 %v2738, 0.2
    %v2803 = vmul.f32 %v2739, 0.2
    %v2804 = vmul.f32 %v2740, 0.2
    %v2805 = vmul.f32 %v2741, 0.2
    %v2806 = vmul.f32 %v2742, 0.2
    %v2807 = vmul.f32 %v2743, 0.2
    %v2808 = vmul.f32 %v2744, 0.2
    %v2809 = vmul.f32 %v2745, 0.2
    %v2810 = vmul.f32 %v2746, 0.2
    %v2811 = vmul.f32 %v2747, 0.2
    %v2812 = vmul.f32 %v2748, 0.2
    %v2813 = vmul.f32 %v2749, 0.2
    %v2814 = vmul.f32 %v2750, 0.2
    %v2815 = vmul.f32 %v2751, 0.2
    %v2816 = vmul.f32 %v2752, 0.2
    %v2817 = vsel %vm2753, %v2721, %v2785
    %v2818 = vsel %vm2754, %v2722, %v2786
    %v2819 = vsel %vm2755, %v2723, %v2787
    %v2820 = vsel %vm2756, %v2724, %v2788
    %v2821 = vsel %vm2757, %v2725, %v2789
    %v2822 = vsel %vm2758, %v2726, %v2790
    %v2823 = vsel %vm2759, %v2727, %v2791
    %v2824 = vsel %vm2760, %v2728, %v2792
    %v2825 = vsel %vm2761, %v2729, %v2793
    %v2826 = vsel %vm2762, %v2730, %v2794
    %v2827 = vsel %vm2763, %v2731, %v2795
    %v2828 = vsel %vm2764, %v2732, %v2796
    %v2829 = vsel %vm2765, %v2733, %v2797
    %v2830 = vsel %vm2766, %v2734, %v2798
    %v2831 = vsel %vm2767, %v2735, %v2799
    %v2832 = vsel %vm2768, %v2736, %v2800
    %v2833 = vsel %vm2769, %v2737, %v2801
    %v2834 = vsel %vm2770, %v2738, %v2802
    %v2835 = vsel %vm2771, %v2739, %v2803
    %v2836 = vsel %vm2772, %v2740, %v2804
    %v2837 = vsel %vm2773, %v2741, %v2805
    %v2838 = vsel %vm2774, %v2742, %v2806
    %v2839 = vsel %vm2775, %v2743, %v2807
    %v2840 = vsel %vm2776, %v2744, %v2808
    %v2841 = vsel %vm2777, %v2745, %v2809
    %v2842 = vsel %vm2778, %v2746, %v2810
    %v2843 = vsel %vm2779, %v2747, %v2811
    %v2844 = vsel %vm2780, %v2748, %v2812
    %v2845 = vsel %vm2781, %v2749, %v2813
    %v2846 = vsel %vm2782, %v2750, %v2814
    %v2847 = vsel %vm2783, %v2751, %v2815
    %v2848 = vsel %vm2784, %v2752, %v2816
    %v2849 = vld [vmem:[#allocation13 + $0x4] sm:$0x1]
    %v2850 = vlaneseq
    %v2851 = vshrl.u32 %v2850, 7
    %v2852 = vsub.s32 0, %v2851
    %v2853 = vrot.slane %v2849, %v2852
    %v2854 = vmul.f32 %v2817, %v2853
    %v2855 = vmul.f32 %v2818, %v2853
    %v2856 = vmul.f32 %v2819, %v2853
    %v2857 = vmul.f32 %v2820, %v2853
    %v2858 = vmul.f32 %v2821, %v2853
    %v2859 = vmul.f32 %v2822, %v2853
    %v2860 = vmul.f32 %v2823, %v2853
    %v2861 = vmul.f32 %v2824, %v2853
    %v2862 = vmul.f32 %v2825, %v2853
    %v2863 = vmul.f32 %v2826, %v2853
    %v2864 = vmul.f32 %v2827, %v2853
    %v2865 = vmul.f32 %v2828, %v2853
    %v2866 = vmul.f32 %v2829, %v2853
    %v2867 = vmul.f32 %v2830, %v2853
    %v2868 = vmul.f32 %v2831, %v2853
    %v2869 = vmul.f32 %v2832, %v2853
    %v2870 = vmul.f32 %v2833, %v2853
    %v2871 = vmul.f32 %v2834, %v2853
    %v2872 = vmul.f32 %v2835, %v2853
    %v2873 = vmul.f32 %v2836, %v2853
    %v2874 = vmul.f32 %v2837, %v2853
    %v2875 = vmul.f32 %v2838, %v2853
    %v2876 = vmul.f32 %v2839, %v2853
    %v2877 = vmul.f32 %v2840, %v2853
    %v2878 = vmul.f32 %v2841, %v2853
    %v2879 = vmul.f32 %v2842, %v2853
    %v2880 = vmul.f32 %v2843, %v2853
    %v2881 = vmul.f32 %v2844, %v2853
    %v2882 = vmul.f32 %v2845, %v2853
    %v2883 = vmul.f32 %v2846, %v2853
    %v2884 = vmul.f32 %v2847, %v2853
    %v2885 = vmul.f32 %v2848, %v2853
    %v2886 = vsel %vm773, %v2854, 0.0
    %2887 = vadd.xlane.f32.xlu0 %v2886
    %v2888 = vpop.xlane.xlu0 %2887
    %v2889 = vsel %vm773, %v2855, 0.0
    %2890 = vadd.xlane.f32.xlu0 %v2889
    %v2891 = vpop.xlane.xlu0 %2890
    %v2892 = vsel %vm773, %v2856, 0.0
    %2893 = vadd.xlane.f32.xlu0 %v2892
    %v2894 = vpop.xlane.xlu0 %2893
    %v2895 = vsel %vm773, %v2857, 0.0
    %2896 = vadd.xlane.f32.xlu0 %v2895
    %v2897 = vpop.xlane.xlu0 %2896
    %v2898 = vsel %vm773, %v2858, 0.0
    %2899 = vadd.xlane.f32.xlu0 %v2898
    %v2900 = vpop.xlane.xlu0 %2899
    %v2901 = vsel %vm773, %v2859, 0.0
    %2902 = vadd.xlane.f32.xlu0 %v2901
    %v2903 = vpop.xlane.xlu0 %2902
    %v2904 = vsel %vm773, %v2860, 0.0
    %2905 = vadd.xlane.f32.xlu0 %v2904
    %v2906 = vpop.xlane.xlu0 %2905
    %v2907 = vsel %vm773, %v2861, 0.0
    %2908 = vadd.xlane.f32.xlu0 %v2907
    %v2909 = vpop.xlane.xlu0 %2908
    %v2910 = vsel %vm773, %v2862, 0.0
    %2911 = vadd.xlane.f32.xlu0 %v2910
    %v2912 = vpop.xlane.xlu0 %2911
    %v2913 = vsel %vm773, %v2863, 0.0
    %2914 = vadd.xlane.f32.xlu0 %v2913
    %v2915 = vpop.xlane.xlu0 %2914
    %v2916 = vsel %vm773, %v2864, 0.0
    %2917 = vadd.xlane.f32.xlu0 %v2916
    %v2918 = vpop.xlane.xlu0 %2917
    %v2919 = vsel %vm773, %v2865, 0.0
    %2920 = vadd.xlane.f32.xlu0 %v2919
    %v2921 = vpop.xlane.xlu0 %2920
    %v2922 = vsel %vm773, %v2866, 0.0
    %2923 = vadd.xlane.f32.xlu0 %v2922
    %v2924 = vpop.xlane.xlu0 %2923
    %v2925 = vsel %vm773, %v2867, 0.0
    %2926 = vadd.xlane.f32.xlu0 %v2925
    %v2927 = vpop.xlane.xlu0 %2926
    %v2928 = vsel %vm773, %v2868, 0.0
    %2929 = vadd.xlane.f32.xlu0 %v2928
    %v2930 = vpop.xlane.xlu0 %2929
    %v2931 = vsel %vm773, %v2869, 0.0
    %2932 = vadd.xlane.f32.xlu0 %v2931
    %v2933 = vpop.xlane.xlu0 %2932
    %v2934 = vsel %vm773, %v2870, 0.0
    %2935 = vadd.xlane.f32.xlu0 %v2934
    %v2936 = vpop.xlane.xlu0 %2935
    %v2937 = vsel %vm773, %v2871, 0.0
    %2938 = vadd.xlane.f32.xlu0 %v2937
    %v2939 = vpop.xlane.xlu0 %2938
    %v2940 = vsel %vm773, %v2872, 0.0
    %2941 = vadd.xlane.f32.xlu0 %v2940
    %v2942 = vpop.xlane.xlu0 %2941
    %v2943 = vsel %vm773, %v2873, 0.0
    %2944 = vadd.xlane.f32.xlu0 %v2943
    %v2945 = vpop.xlane.xlu0 %2944
    %v2946 = vsel %vm773, %v2874, 0.0
    %2947 = vadd.xlane.f32.xlu0 %v2946
    %v2948 = vpop.xlane.xlu0 %2947
    %v2949 = vsel %vm773, %v2875, 0.0
    %2950 = vadd.xlane.f32.xlu0 %v2949
    %v2951 = vpop.xlane.xlu0 %2950
    %v2952 = vsel %vm773, %v2876, 0.0
    %2953 = vadd.xlane.f32.xlu0 %v2952
    %v2954 = vpop.xlane.xlu0 %2953
    %v2955 = vsel %vm773, %v2877, 0.0
    %2956 = vadd.xlane.f32.xlu0 %v2955
    %v2957 = vpop.xlane.xlu0 %2956
    %v2958 = vsel %vm773, %v2878, 0.0
    %2959 = vadd.xlane.f32.xlu0 %v2958
    %v2960 = vpop.xlane.xlu0 %2959
    %v2961 = vsel %vm773, %v2879, 0.0
    %2962 = vadd.xlane.f32.xlu0 %v2961
    %v2963 = vpop.xlane.xlu0 %2962
    %v2964 = vsel %vm773, %v2880, 0.0
    %2965 = vadd.xlane.f32.xlu0 %v2964
    %v2966 = vpop.xlane.xlu0 %2965
    %v2967 = vsel %vm773, %v2881, 0.0
    %2968 = vadd.xlane.f32.xlu0 %v2967
    %v2969 = vpop.xlane.xlu0 %2968
    %v2970 = vsel %vm773, %v2882, 0.0
    %2971 = vadd.xlane.f32.xlu0 %v2970
    %v2972 = vpop.xlane.xlu0 %2971
    %v2973 = vsel %vm773, %v2883, 0.0
    %2974 = vadd.xlane.f32.xlu0 %v2973
    %v2975 = vpop.xlane.xlu0 %2974
    %v2976 = vsel %vm773, %v2884, 0.0
    %2977 = vadd.xlane.f32.xlu0 %v2976
    %v2978 = vpop.xlane.xlu0 %2977
    %v2979 = vsel %vm773, %v2885, 0.0
    %2980 = vadd.xlane.f32.xlu0 %v2979
    %v2981 = vpop.xlane.xlu0 %2980
    %v3014 = vlaneseq
    %v3015 = vshrl.u32 %v3014, 7
    %v3016 = vsub.s32 %v903, %v3015
    %v3017 = vrot.slane %v2888, %v3016
    %v3018 = vlaneseq
    %v3019 = vshrl.u32 %v3018, 7
    %v3020 = vsub.s32 %v908, %v3019
    %v3021 = vrot.slane %v2891, %v3020
    %v3022 = vsel %vm913, %v3021, %v3017
    %v3023 = vlaneseq
    %v3024 = vshrl.u32 %v3023, 7
    %v3025 = vsub.s32 %v903, %v3024
    %v3026 = vrot.slane %v2894, %v3025
    %v3027 = vlaneseq
    %v3028 = vshrl.u32 %v3027, 7
    %v3029 = vsub.s32 %v908, %v3028
    %v3030 = vrot.slane %v2897, %v3029
    %v3031 = vsel %vm913, %v3030, %v3026
    %v3032 = vlaneseq
    %v3033 = vshrl.u32 %v3032, 7
    %v3034 = vsub.s32 %v903, %v3033
    %v3035 = vrot.slane %v2900, %v3034
    %v3036 = vlaneseq
    %v3037 = vshrl.u32 %v3036, 7
    %v3038 = vsub.s32 %v908, %v3037
    %v3039 = vrot.slane %v2903, %v3038
    %v3040 = vsel %vm913, %v3039, %v3035
    %v3041 = vlaneseq
    %v3042 = vshrl.u32 %v3041, 7
    %v3043 = vsub.s32 %v903, %v3042
    %v3044 = vrot.slane %v2906, %v3043
    %v3045 = vlaneseq
    %v3046 = vshrl.u32 %v3045, 7
    %v3047 = vsub.s32 %v908, %v3046
    %v3048 = vrot.slane %v2909, %v3047
    %v3049 = vsel %vm913, %v3048, %v3044
    %v3050 = vlaneseq
    %v3051 = vshrl.u32 %v3050, 7
    %v3052 = vsub.s32 %v903, %v3051
    %v3053 = vrot.slane %v2912, %v3052
    %v3054 = vlaneseq
    %v3055 = vshrl.u32 %v3054, 7
    %v3056 = vsub.s32 %v908, %v3055
    %v3057 = vrot.slane %v2915, %v3056
    %v3058 = vsel %vm913, %v3057, %v3053
    %v3059 = vlaneseq
    %v3060 = vshrl.u32 %v3059, 7
    %v3061 = vsub.s32 %v903, %v3060
    %v3062 = vrot.slane %v2918, %v3061
    %v3063 = vlaneseq
    %v3064 = vshrl.u32 %v3063, 7
    %v3065 = vsub.s32 %v908, %v3064
    %v3066 = vrot.slane %v2921, %v3065
    %v3067 = vsel %vm913, %v3066, %v3062
    %v3068 = vlaneseq
    %v3069 = vshrl.u32 %v3068, 7
    %v3070 = vsub.s32 %v903, %v3069
    %v3071 = vrot.slane %v2924, %v3070
    %v3072 = vlaneseq
    %v3073 = vshrl.u32 %v3072, 7
    %v3074 = vsub.s32 %v908, %v3073
    %v3075 = vrot.slane %v2927, %v3074
    %v3076 = vsel %vm913, %v3075, %v3071
    %v3077 = vlaneseq
    %v3078 = vshrl.u32 %v3077, 7
    %v3079 = vsub.s32 %v903, %v3078
    %v3080 = vrot.slane %v2930, %v3079
    %v3081 = vlaneseq
    %v3082 = vshrl.u32 %v3081, 7
    %v3083 = vsub.s32 %v908, %v3082
    %v3084 = vrot.slane %v2933, %v3083
    %v3085 = vsel %vm913, %v3084, %v3080
    %v3086 = vlaneseq
    %v3087 = vshrl.u32 %v3086, 7
    %v3088 = vsub.s32 %v903, %v3087
    %v3089 = vrot.slane %v2936, %v3088
    %v3090 = vlaneseq
    %v3091 = vshrl.u32 %v3090, 7
    %v3092 = vsub.s32 %v908, %v3091
    %v3093 = vrot.slane %v2939, %v3092
    %v3094 = vsel %vm913, %v3093, %v3089
    %v3095 = vlaneseq
    %v3096 = vshrl.u32 %v3095, 7
    %v3097 = vsub.s32 %v903, %v3096
    %v3098 = vrot.slane %v2942, %v3097
    %v3099 = vlaneseq
    %v3100 = vshrl.u32 %v3099, 7
    %v3101 = vsub.s32 %v908, %v3100
    %v3102 = vrot.slane %v2945, %v3101
    %v3103 = vsel %vm913, %v3102, %v3098
    %v3104 = vlaneseq
    %v3105 = vshrl.u32 %v3104, 7
    %v3106 = vsub.s32 %v903, %v3105
    %v3107 = vrot.slane %v2948, %v3106
    %v3108 = vlaneseq
    %v3109 = vshrl.u32 %v3108, 7
    %v3110 = vsub.s32 %v908, %v3109
    %v3111 = vrot.slane %v2951, %v3110
    %v3112 = vsel %vm913, %v3111, %v3107
    %v3113 = vlaneseq
    %v3114 = vshrl.u32 %v3113, 7
    %v3115 = vsub.s32 %v903, %v3114
    %v3116 = vrot.slane %v2954, %v3115
    %v3117 = vlaneseq
    %v3118 = vshrl.u32 %v3117, 7
    %v3119 = vsub.s32 %v908, %v3118
    %v3120 = vrot.slane %v2957, %v3119
    %v3121 = vsel %vm913, %v3120, %v3116
    %v3122 = vlaneseq
    %v3123 = vshrl.u32 %v3122, 7
    %v3124 = vsub.s32 %v903, %v3123
    %v3125 = vrot.slane %v2960, %v3124
    %v3126 = vlaneseq
    %v3127 = vshrl.u32 %v3126, 7
    %v3128 = vsub.s32 %v908, %v3127
    %v3129 = vrot.slane %v2963, %v3128
    %v3130 = vsel %vm913, %v3129, %v3125
    %v3131 = vlaneseq
    %v3132 = vshrl.u32 %v3131, 7
    %v3133 = vsub.s32 %v903, %v3132
    %v3134 = vrot.slane %v2966, %v3133
    %v3135 = vlaneseq
    %v3136 = vshrl.u32 %v3135, 7
    %v3137 = vsub.s32 %v908, %v3136
    %v3138 = vrot.slane %v2969, %v3137
    %v3139 = vsel %vm913, %v3138, %v3134
    %v3140 = vlaneseq
    %v3141 = vshrl.u32 %v3140, 7
    %v3142 = vsub.s32 %v903, %v3141
    %v3143 = vrot.slane %v2972, %v3142
    %v3144 = vlaneseq
    %v3145 = vshrl.u32 %v3144, 7
    %v3146 = vsub.s32 %v908, %v3145
    %v3147 = vrot.slane %v2975, %v3146
    %v3148 = vsel %vm913, %v3147, %v3143
    %v3149 = vlaneseq
    %v3150 = vshrl.u32 %v3149, 7
    %v3151 = vsub.s32 %v903, %v3150
    %v3152 = vrot.slane %v2978, %v3151
    %v3153 = vlaneseq
    %v3154 = vshrl.u32 %v3153, 7
    %v3155 = vsub.s32 %v908, %v3154
    %v3156 = vrot.slane %v2981, %v3155
    %v3157 = vsel %vm913, %v3156, %v3152
    %v3158 = vsel %vm1050, %v3031, %v3022
    %v3159 = vsel %vm1052, %v3040, %v3158
    %v3160 = vsel %vm1054, %v3049, %v3159
    %v3161 = vsel %vm1056, %v3058, %v3160
    %v3162 = vsel %vm1058, %v3067, %v3161
    %v3163 = vsel %vm1060, %v3076, %v3162
    %v3164 = vsel %vm1062, %v3085, %v3163
    %v3165 = vsel %vm1050, %v3103, %v3094
    %v3166 = vsel %vm1052, %v3112, %v3165
    %v3167 = vsel %vm1054, %v3121, %v3166
    %v3168 = vsel %vm1056, %v3130, %v3167
    %v3169 = vsel %vm1058, %v3139, %v3168
    %v3170 = vsel %vm1060, %v3148, %v3169
    %v3171 = vsel %vm1062, %v3157, %v3170
    %v3174 = vsel %vm288, %v3164, -1e+30
    %v3175 = vsel %vm289, %v3171, -1e+30
    %v3176 = vsel %vm1075, %v3174, -inf
    %3177 = vmax.xlane.f32.xlu0 %v3176
    %v3178 = vpop.xlane.xlu0 %3177
    %v3179 = vsel %vm1075, %v3175, -inf
    %3180 = vmax.xlane.f32.xlu0 %v3179
    %v3181 = vpop.xlane.xlu0 %3180
    %v3182 = vsub.f32 %v3174, %v3178
    %v3183 = vsub.f32 %v3175, %v3181
    %v3184 = vmul.f32 %v3182, 1.442695
    %v3185 = vpow.pop %v3184
    %v3186 = vmul.f32 %v3183, 1.442695
    %v3187 = vpow.pop %v3186
    %v3188 = vsel %vm1075, %v3185, 0.0
    %3189 = vadd.xlane.f32.xlu0 %v3188
    %v3190 = vpop.xlane.xlu0 %3189
    %v3191 = vsel %vm1075, %v3187, 0.0
    %3192 = vadd.xlane.f32.xlu0 %v3191
    %v3193 = vpop.xlane.xlu0 %3192
    %v3194 = vrcp.pop %v3190
    %v3195 = vrcp.pop %v3193
    %v3196 = vmul.f32 %v3185, %v3194
    %v3197 = vmul.f32 %v3187, %v3195
    %3200 = vrot.lane.b32.xlu0 %v1577, 16
    %v3201 = vpop.permute.xlu0 %3200
    %3202 = vrot.lane.b32.xlu0 %v1578, 16
    %v3203 = vpop.permute.xlu0 %3202
    %3208 = vrot.lane.b32.xlu0 %v2058, 32
    %v3209 = vpop.permute.xlu0 %3208
    %3210 = vrot.lane.b32.xlu0 %v2059, 32
    %v3211 = vpop.permute.xlu0 %3210
    %3216 = vrot.lane.b32.xlu0 %v2539, 48
    %v3217 = vpop.permute.xlu0 %3216
    %3218 = vrot.lane.b32.xlu0 %v2540, 48
    %v3219 = vpop.permute.xlu0 %3218
    %3224 = vrot.lane.b32.xlu0 %v3196, 64
    %v3225 = vpop.permute.xlu0 %3224
    %3226 = vrot.lane.b32.xlu0 %v3197, 64
    %v3227 = vpop.permute.xlu0 %3226
    %v3230 = vsel %vm1075, %v1096, %v3201
    %v3231 = vsel %vm1075, %v1097, %v3203
    %v3232 = vsel %vm773, %v3230, %v3209
    %v3233 = vsel %vm773, %v3231, %v3211
    %vm3234 = vcmask 392192
    %v3235 = vsel %vm3234, %v3232, %v3217
    %v3236 = vsel %vm3234, %v3233, %v3219
    %vm3237 = vcmask 523264
    %v3238 = vsel %vm3237, %v3235, %v3225
    %v3239 = vsel %vm3237, %v3236, %v3227
    %3242 = vrot.lane.b32.xlu0 %v355, 96
    %v3243 = vpop.permute.xlu0 %3242
    %3244 = vrot.lane.b32.xlu0 %v359, 96
    %v3245 = vpop.permute.xlu0 %3244
    %3248 = vrot.lane.b32.xlu0 %v355, 64
    %v3249 = vpop.permute.xlu0 %3248
    %3250 = vrot.lane.b32.xlu0 %v359, 64
    %v3251 = vpop.permute.xlu0 %3250
    %3254 = vrot.lane.b32.xlu0 %v355, 32
    %v3255 = vpop.permute.xlu0 %3254
    %3256 = vrot.lane.b32.xlu0 %v359, 32
    %v3257 = vpop.permute.xlu0 %3256
    %v3260 = vpack.c.bf16 %v3239, %v3238
    %v3261 = vpack.c.bf16 %v359, %v355
    %v3262 = vpack.c.bf16 %v3245, %v3243
    %v3263 = vpack.c.bf16 %v3251, %v3249
    %v3264 = vpack.c.bf16 %v3257, %v3255
    %v3265 = vpack.c.bf16 %v361, %v357
    %vm3266 = vcmask 654336
    %v3268 = vsel %vm3266, %v3260, 0
    %3270 = vmatprep.subr.bf16.mxu0 0
    %3271 = vmatpush1.bf16.msra.mxu0 %v3261
    %3272 = vmatprep.subr.bf16.mxu0 0
    %3273 = vmatpush1.bf16.msra.mxu0 %v3262
    %3274 = vmatprep.subr.bf16.mxu0 0
    %3275 = vmatpush1.bf16.msra.mxu0 %v3263
    %3276 = vmatprep.subr.bf16.mxu0 0
    %3277 = vmatpush1.bf16.msra.mxu0 %v3264
    %3278 = vmatprep.subr.bf16.mxu0 0
    %3279 = vmatpush1.bf16.msra.mxu0 %v3265
    %3280 = vmatprep.subr.bf16.mxu0 0
    %3281 = vmatpush1.bf16.msra.mxu0 0
    %3282 = vmatprep.subr.bf16.mxu0 0
    %3283 = vmatpush1.bf16.msra.mxu0 0
    %3284 = vmatprep.subr.bf16.mxu0 0
    %3285 = vmatpush1.bf16.msra.mxu0 0
    %3286 = vmatprep.subr.bf16.mxu0 0
    %3287 = vmatpush1.bf16.msra.mxu0 0
    %3288 = vmatprep.subr.bf16.mxu0 0
    %3289 = vmatpush1.bf16.msra.mxu0 0
    %3290 = vmatprep.subr.bf16.mxu0 0
    %3291 = vmatpush1.bf16.msra.mxu0 0
    %3292 = vmatprep.subr.bf16.mxu0 0
    %3293 = vmatpush1.bf16.msra.mxu0 0
    %3294 = vmatprep.subr.bf16.mxu0 0
    %3295 = vmatpush1.bf16.msra.mxu0 0
    %3296 = vmatprep.subr.bf16.mxu0 0
    %3297 = vmatpush1.bf16.msra.mxu0 0
    %3298 = vmatprep.subr.bf16.mxu0 0
    %3299 = vmatpush1.bf16.msra.mxu0 0
    %3300 = vmatprep.subr.bf16.mxu0 0
    %3301 = vmatpush1.bf16.msra.mxu0 0
    %3302 = vmatprep.mubr.bf16.mxu0 0
    %3303 = vmatmul.mubr.bf16.gmra.mrb[0].mxu0 %v3268
    %v3304 = vpop.f32.mrb[0].mxu0
    %v3305 = vadd.f32 0.0, %v3304
    %v3306 = vpop.f32.mrb[0].mxu0
    %v3307 = vpop.f32.mrb[0].mxu0
    %v3308 = vadd.f32 0.0, %v3307
    %v3309 = vpop.f32.mrb[0].mxu0
    %3310 = vdwg.mxu0
    %v3311 = vmul.f32 %v3305, 0.2
    %v3312 = vmul.f32 %v3308, 0.2
    %v3313 = vld [vmem:[#allocation14] sm:$0x1]
    %v3315 = vlaneseq
    %v3316 = vshrl.u32 %v3315, 7
    %v3317 = vsub.s32 0, %v3316
    %v3318 = vrot.slane %v3313, %v3317
    %v3320 = vadd.f32 %v3311, %v3318
    %v3321 = vadd.f32 %v3312, %v3318
    %v3322 = vmax.f32 %v3320, 0.0
    %v3323 = vmax.f32 %v3321, 0.0
    %v3324 = vpack.c.bf16 %v3323, %v3322
    %v3325 = vld [vmem:[%s9] sm:$0xff]
    %v3326 = vld [vmem:[%s9 + $0x8] sm:$0xff]
    %v3327 = vld [vmem:[%s9 + $0x10] sm:$0xff]
    %v3328 = vld [vmem:[%s9 + $0x18] sm:$0xff]
    %v3329 = vld [vmem:[%s9 + $0x20] sm:$0xff]
    %v3330 = vld [vmem:[%s9 + $0x28] sm:$0xff]
    %v3331 = vld [vmem:[%s9 + $0x30] sm:$0xff]
    %v3332 = vld [vmem:[%s9 + $0x38] sm:$0xff]
    %v3333 = vpack.c.bf16 %v3327, %v3325
    %v3334 = vpack.c.bf16 %v3328, %v3326
    %v3335 = vpack.c.bf16 %v3331, %v3329
    %v3336 = vpack.c.bf16 %v3332, %v3330
    %v3337 = vld [vmem:[#allocation16] sm:$0x3]
    %v3339 = vlaneseq
    %v3340 = vshrl.u32 %v3339, 7
    %v3341 = vsub.s32 0, %v3340
    %v3342 = vrot.slane %v3337, %v3341
    %v3343 = vlaneseq
    %v3344 = vshrl.u32 %v3343, 7
    %v3345 = vsub.s32 1, %v3344
    %v3346 = vrot.slane %v3337, %v3345
    %v3350 = vsel %vm773, %v3324, 0
    %3352 = vmatprep.subr.bf16.mxu0 %v3334
    %3353 = vmatpush1.bf16.msra.mxu0 %v3333
    %3354 = vmatprep.subr.bf16.mxu0 %v3336
    %3355 = vmatpush1.bf16.msra.mxu0 %v3335
    %3356 = vmatprep.subr.bf16.mxu0 0
    %3357 = vmatpush1.bf16.msra.mxu0 0
    %3358 = vmatprep.subr.bf16.mxu0 0
    %3359 = vmatpush1.bf16.msra.mxu0 0
    %3360 = vmatprep.subr.bf16.mxu0 0
    %3361 = vmatpush1.bf16.msra.mxu0 0
    %3362 = vmatprep.subr.bf16.mxu0 0
    %3363 = vmatpush1.bf16.msra.mxu0 0
    %3364 = vmatprep.subr.bf16.mxu0 0
    %3365 = vmatpush1.bf16.msra.mxu0 0
    %3366 = vmatprep.subr.bf16.mxu0 0
    %3367 = vmatpush1.bf16.msra.mxu0 0
    %3368 = vmatprep.subr.bf16.mxu0 0
    %3369 = vmatpush1.bf16.msra.mxu0 0
    %3370 = vmatprep.subr.bf16.mxu0 0
    %3371 = vmatpush1.bf16.msra.mxu0 0
    %3372 = vmatprep.subr.bf16.mxu0 0
    %3373 = vmatpush1.bf16.msra.mxu0 0
    %3374 = vmatprep.subr.bf16.mxu0 0
    %3375 = vmatpush1.bf16.msra.mxu0 0
    %3376 = vmatprep.subr.bf16.mxu0 0
    %3377 = vmatpush1.bf16.msra.mxu0 0
    %3378 = vmatprep.subr.bf16.mxu0 0
    %3379 = vmatpush1.bf16.msra.mxu0 0
    %3380 = vmatprep.subr.bf16.mxu0 0
    %3381 = vmatpush1.bf16.msra.mxu0 0
    %3382 = vmatprep.subr.bf16.mxu0 0
    %3383 = vmatpush1.bf16.msra.mxu0 0
    %3384 = vmatprep.mubr.bf16.mxu0 0
    %3385 = vmatmul.mubr.bf16.gmra.mrb[0].mxu0 %v3350
    %v3386 = vpop.f32.mrb[0].mxu0
    %v3387 = vadd.f32 %v3342, %v3386
    %v3388 = vpop.f32.mrb[0].mxu0
    %v3389 = vadd.f32 %v3346, %v3388
    %v3390 = vpop.f32.mrb[0].mxu0
    %v3391 = vadd.f32 %v3342, %v3390
    %v3392 = vpop.f32.mrb[0].mxu0
    %v3393 = vadd.f32 %v3346, %v3392
    %3394 = vdwg.mxu0
    %v3395 = vld [vmem:[#allocation17] sm:$0xff]
    %v3396 = vld [vmem:[#allocation17 + $0x8] sm:$0xff]
    %v3397 = vld [vmem:[#allocation17 + $0x10] sm:$0xff]
    %v3398 = vld [vmem:[#allocation17 + $0x18] sm:$0xff]
    %v3399 = vld [vmem:[#allocation17 + $0x20] sm:$0xff]
    %v3400 = vld [vmem:[#allocation17 + $0x28] sm:$0xff]
    %v3401 = vld [vmem:[#allocation17 + $0x30] sm:$0xff]
    %v3402 = vld [vmem:[#allocation17 + $0x38] sm:$0xff]
    %v3403 = vpack.c.bf16 %v3397, %v3395
    %v3404 = vpack.c.bf16 %v3398, %v3396
    %v3405 = vpack.c.bf16 %v3401, %v3399
    %v3406 = vpack.c.bf16 %v3402, %v3400
    %v3407 = vld [vmem:[#allocation19] sm:$0x3]
    %v3409 = vlaneseq
    %v3410 = vshrl.u32 %v3409, 7
    %v3411 = vsub.s32 0, %v3410
    %v3412 = vrot.slane %v3407, %v3411
    %v3413 = vlaneseq
    %v3414 = vshrl.u32 %v3413, 7
    %v3415 = vsub.s32 1, %v3414
    %v3416 = vrot.slane %v3407, %v3415
    %3419 = vmatprep.subr.bf16.mxu0 %v3404
    %3420 = vmatpush1.bf16.msra.mxu0 %v3403
    %3421 = vmatprep.subr.bf16.mxu0 %v3406
    %3422 = vmatpush1.bf16.msra.mxu0 %v3405
    %3423 = vmatprep.subr.bf16.mxu0 0
    %3424 = vmatpush1.bf16.msra.mxu0 0
    %3425 = vmatprep.subr.bf16.mxu0 0
    %3426 = vmatpush1.bf16.msra.mxu0 0
    %3427 = vmatprep.subr.bf16.mxu0 0
    %3428 = vmatpush1.bf16.msra.mxu0 0
    %3429 = vmatprep.subr.bf16.mxu0 0
    %3430 = vmatpush1.bf16.msra.mxu0 0
    %3431 = vmatprep.subr.bf16.mxu0 0
    %3432 = vmatpush1.bf16.msra.mxu0 0
    %3433 = vmatprep.subr.bf16.mxu0 0
    %3434 = vmatpush1.bf16.msra.mxu0 0
    %3435 = vmatprep.subr.bf16.mxu0 0
    %3436 = vmatpush1.bf16.msra.mxu0 0
    %3437 = vmatprep.subr.bf16.mxu0 0
    %3438 = vmatpush1.bf16.msra.mxu0 0
    %3439 = vmatprep.subr.bf16.mxu0 0
    %3440 = vmatpush1.bf16.msra.mxu0 0
    %3441 = vmatprep.subr.bf16.mxu0 0
    %3442 = vmatpush1.bf16.msra.mxu0 0
    %3443 = vmatprep.subr.bf16.mxu0 0
    %3444 = vmatpush1.bf16.msra.mxu0 0
    %3445 = vmatprep.subr.bf16.mxu0 0
    %3446 = vmatpush1.bf16.msra.mxu0 0
    %3447 = vmatprep.subr.bf16.mxu0 0
    %3448 = vmatpush1.bf16.msra.mxu0 0
    %3449 = vmatprep.subr.bf16.mxu0 0
    %3450 = vmatpush1.bf16.msra.mxu0 0
    %3451 = vmatprep.mubr.bf16.mxu0 0
    %3452 = vmatmul.mubr.bf16.gmra.mrb[0].mxu0 %v3350
    %v3453 = vpop.f32.mrb[0].mxu0
    %v3454 = vadd.f32 %v3412, %v3453
    %v3455 = vpop.f32.mrb[0].mxu0
    %v3456 = vadd.f32 %v3416, %v3455
    %v3457 = vpop.f32.mrb[0].mxu0
    %v3458 = vadd.f32 %v3412, %v3457
    %v3459 = vpop.f32.mrb[0].mxu0
    %v3460 = vadd.f32 %v3416, %v3459
    %3461 = vdwg.mxu0
    %v3464 = vcombine.high %v3454, %v3454
    %v3466 = vunpack.c.l.s4 1966171168
    %v3467 = vunpack.c.0.s8 %v3466
    %v3468 = vlaneseq
    %v3469 = vshrl.u32 %v3468, 7
    %v3470 = vsub.s32 %v3467, %v3469
    %v3471 = vrot.slane %v3454, %v3470
    %v3473 = vunpack.c.l.s4 1966171168
    %v3474 = vunpack.c.0.s8 %v3473
    %v3475 = vlaneseq
    %v3476 = vshrl.u32 %v3475, 7
    %v3477 = vsub.s32 %v3474, %v3476
    %v3478 = vrot.slane %v3464, %v3477
    %v3479 = vcombine.high %v3471, %v3471
    %v3480 = vcombine.high %v3478, %v3478
    %v3482 = vunpack.c.l.s4 1966171168
    %v3483 = vunpack.c.0.s8 %v3482
    %v3484 = vlaneseq
    %v3485 = vshrl.u32 %v3484, 7
    %v3486 = vsub.s32 %v3483, %v3485
    %v3487 = vrot.slane %v3471, %v3486
    %v3489 = vunpack.c.l.s4 1966171168
    %v3490 = vunpack.c.0.s8 %v3489
    %v3491 = vlaneseq
    %v3492 = vshrl.u32 %v3491, 7
    %v3493 = vsub.s32 %v3490, %v3492
    %v3494 = vrot.slane %v3478, %v3493
    %v3496 = vunpack.c.l.s4 1966171168
    %v3497 = vunpack.c.0.s8 %v3496
    %v3498 = vlaneseq
    %v3499 = vshrl.u32 %v3498, 7
    %v3500 = vsub.s32 %v3497, %v3499
    %v3501 = vrot.slane %v3479, %v3500
    %v3503 = vunpack.c.l.s4 1966171168
    %v3504 = vunpack.c.0.s8 %v3503
    %v3505 = vlaneseq
    %v3506 = vshrl.u32 %v3505, 7
    %v3507 = vsub.s32 %v3504, %v3506
    %v3508 = vrot.slane %v3480, %v3507
    %v3509 = vcombine.high %v3487, %v3487
    %v3510 = vcombine.high %v3494, %v3494
    %v3511 = vcombine.high %v3501, %v3501
    %v3512 = vcombine.high %v3508, %v3508
    %v3513 = vcombine.high %v3458, %v3458
    %v3515 = vunpack.c.l.s4 1966171168
    %v3516 = vunpack.c.0.s8 %v3515
    %v3517 = vlaneseq
    %v3518 = vshrl.u32 %v3517, 7
    %v3519 = vsub.s32 %v3516, %v3518
    %v3520 = vrot.slane %v3458, %v3519
    %v3522 = vunpack.c.l.s4 1966171168
    %v3523 = vunpack.c.0.s8 %v3522
    %v3524 = vlaneseq
    %v3525 = vshrl.u32 %v3524, 7
    %v3526 = vsub.s32 %v3523, %v3525
    %v3527 = vrot.slane %v3513, %v3526
    %v3528 = vcombine.high %v3520, %v3520
    %v3529 = vcombine.high %v3527, %v3527
    %v3531 = vunpack.c.l.s4 1966171168
    %v3532 = vunpack.c.0.s8 %v3531
    %v3533 = vlaneseq
    %v3534 = vshrl.u32 %v3533, 7
    %v3535 = vsub.s32 %v3532, %v3534
    %v3536 = vrot.slane %v3520, %v3535
    %v3538 = vunpack.c.l.s4 1966171168
    %v3539 = vunpack.c.0.s8 %v3538
    %v3540 = vlaneseq
    %v3541 = vshrl.u32 %v3540, 7
    %v3542 = vsub.s32 %v3539, %v3541
    %v3543 = vrot.slane %v3527, %v3542
    %v3545 = vunpack.c.l.s4 1966171168
    %v3546 = vunpack.c.0.s8 %v3545
    %v3547 = vlaneseq
    %v3548 = vshrl.u32 %v3547, 7
    %v3549 = vsub.s32 %v3546, %v3548
    %v3550 = vrot.slane %v3528, %v3549
    %v3552 = vunpack.c.l.s4 1966171168
    %v3553 = vunpack.c.0.s8 %v3552
    %v3554 = vlaneseq
    %v3555 = vshrl.u32 %v3554, 7
    %v3556 = vsub.s32 %v3553, %v3555
    %v3557 = vrot.slane %v3529, %v3556
    %v3558 = vcombine.high %v3536, %v3536
    %v3559 = vcombine.high %v3543, %v3543
    %v3560 = vcombine.high %v3550, %v3550
    %v3561 = vcombine.high %v3557, %v3557
    %v3562 = vlaneseq
    %v3563 = vshrl.u32 %v3562, 7
    %v3564 = vsub.s32 0, %v3563
    %v3565 = vrot.slane %v3487, %v3564
    %v3566 = vlaneseq
    %v3567 = vshrl.u32 %v3566, 7
    %v3568 = vsub.s32 0, %v3567
    %v3569 = vrot.slane %v3501, %v3568
    %v3570 = vlaneseq
    %v3571 = vshrl.u32 %v3570, 7
    %v3572 = vsub.s32 0, %v3571
    %v3573 = vrot.slane %v3509, %v3572
    %v3574 = vlaneseq
    %v3575 = vshrl.u32 %v3574, 7
    %v3576 = vsub.s32 0, %v3575
    %v3577 = vrot.slane %v3511, %v3576
    %v3578 = vlaneseq
    %v3579 = vshrl.u32 %v3578, 7
    %v3580 = vsub.s32 0, %v3579
    %v3581 = vrot.slane %v3494, %v3580
    %v3582 = vlaneseq
    %v3583 = vshrl.u32 %v3582, 7
    %v3584 = vsub.s32 0, %v3583
    %v3585 = vrot.slane %v3508, %v3584
    %v3586 = vlaneseq
    %v3587 = vshrl.u32 %v3586, 7
    %v3588 = vsub.s32 0, %v3587
    %v3589 = vrot.slane %v3510, %v3588
    %v3590 = vlaneseq
    %v3591 = vshrl.u32 %v3590, 7
    %v3592 = vsub.s32 0, %v3591
    %v3593 = vrot.slane %v3512, %v3592
    %v3594 = vlaneseq
    %v3595 = vshrl.u32 %v3594, 7
    %v3596 = vsub.s32 0, %v3595
    %v3597 = vrot.slane %v3536, %v3596
    %v3598 = vlaneseq
    %v3599 = vshrl.u32 %v3598, 7
    %v3600 = vsub.s32 0, %v3599
    %v3601 = vrot.slane %v3550, %v3600
    %v3602 = vlaneseq
    %v3603 = vshrl.u32 %v3602, 7
    %v3604 = vsub.s32 0, %v3603
    %v3605 = vrot.slane %v3558, %v3604
    %v3606 = vlaneseq
    %v3607 = vshrl.u32 %v3606, 7
    %v3608 = vsub.s32 0, %v3607
    %v3609 = vrot.slane %v3560, %v3608
    %v3610 = vlaneseq
    %v3611 = vshrl.u32 %v3610, 7
    %v3612 = vsub.s32 0, %v3611
    %v3613 = vrot.slane %v3543, %v3612
    %v3614 = vlaneseq
    %v3615 = vshrl.u32 %v3614, 7
    %v3616 = vsub.s32 0, %v3615
    %v3617 = vrot.slane %v3557, %v3616
    %v3618 = vlaneseq
    %v3619 = vshrl.u32 %v3618, 7
    %v3620 = vsub.s32 0, %v3619
    %v3621 = vrot.slane %v3559, %v3620
    %v3622 = vlaneseq
    %v3623 = vshrl.u32 %v3622, 7
    %v3624 = vsub.s32 0, %v3623
    %v3625 = vrot.slane %v3561, %v3624
    %v3642 = vadd.f32 %v3565, %v3387
    %v3643 = vadd.f32 %v3565, %v3391
    %v3644 = vadd.f32 %v3569, %v3387
    %v3645 = vadd.f32 %v3569, %v3391
    %v3646 = vadd.f32 %v3573, %v3387
    %v3647 = vadd.f32 %v3573, %v3391
    %v3648 = vadd.f32 %v3577, %v3387
    %v3649 = vadd.f32 %v3577, %v3391
    %v3650 = vadd.f32 %v3581, %v3387
    %v3651 = vadd.f32 %v3581, %v3391
    %v3652 = vadd.f32 %v3585, %v3387
    %v3653 = vadd.f32 %v3585, %v3391
    %v3654 = vadd.f32 %v3589, %v3387
    %v3655 = vadd.f32 %v3589, %v3391
    %v3656 = vadd.f32 %v3593, %v3387
    %v3657 = vadd.f32 %v3593, %v3391
    %v3658 = vadd.f32 %v3597, %v3387
    %v3659 = vadd.f32 %v3597, %v3391
    %v3660 = vadd.f32 %v3601, %v3387
    %v3661 = vadd.f32 %v3601, %v3391
    %v3662 = vadd.f32 %v3605, %v3387
    %v3663 = vadd.f32 %v3605, %v3391
    %v3664 = vadd.f32 %v3609, %v3387
    %v3665 = vadd.f32 %v3609, %v3391
    %v3666 = vadd.f32 %v3613, %v3387
    %v3667 = vadd.f32 %v3613, %v3391
    %v3668 = vadd.f32 %v3617, %v3387
    %v3669 = vadd.f32 %v3617, %v3391
    %v3670 = vadd.f32 %v3621, %v3387
    %v3671 = vadd.f32 %v3621, %v3391
    %v3672 = vadd.f32 %v3625, %v3387
    %v3673 = vadd.f32 %v3625, %v3391
    %vm3674 = vcmp.gt.f32.partialorder %v3642, 0.0
    %vm3675 = vcmp.gt.f32.partialorder %v3643, 0.0
    %vm3676 = vcmp.gt.f32.partialorder %v3644, 0.0
    %vm3677 = vcmp.gt.f32.partialorder %v3645, 0.0
    %vm3678 = vcmp.gt.f32.partialorder %v3646, 0.0
    %vm3679 = vcmp.gt.f32.partialorder %v3647, 0.0
    %vm3680 = vcmp.gt.f32.partialorder %v3648, 0.0
    %vm3681 = vcmp.gt.f32.partialorder %v3649, 0.0
    %vm3682 = vcmp.gt.f32.partialorder %v3650, 0.0
    %vm3683 = vcmp.gt.f32.partialorder %v3651, 0.0
    %vm3684 = vcmp.gt.f32.partialorder %v3652, 0.0
    %vm3685 = vcmp.gt.f32.partialorder %v3653, 0.0
    %vm3686 = vcmp.gt.f32.partialorder %v3654, 0.0
    %vm3687 = vcmp.gt.f32.partialorder %v3655, 0.0
    %vm3688 = vcmp.gt.f32.partialorder %v3656, 0.0
    %vm3689 = vcmp.gt.f32.partialorder %v3657, 0.0
    %vm3690 = vcmp.gt.f32.partialorder %v3658, 0.0
    %vm3691 = vcmp.gt.f32.partialorder %v3659, 0.0
    %vm3692 = vcmp.gt.f32.partialorder %v3660, 0.0
    %vm3693 = vcmp.gt.f32.partialorder %v3661, 0.0
    %vm3694 = vcmp.gt.f32.partialorder %v3662, 0.0
    %vm3695 = vcmp.gt.f32.partialorder %v3663, 0.0
    %vm3696 = vcmp.gt.f32.partialorder %v3664, 0.0
    %vm3697 = vcmp.gt.f32.partialorder %v3665, 0.0
    %vm3698 = vcmp.gt.f32.partialorder %v3666, 0.0
    %vm3699 = vcmp.gt.f32.partialorder %v3667, 0.0
    %vm3700 = vcmp.gt.f32.partialorder %v3668, 0.0
    %vm3701 = vcmp.gt.f32.partialorder %v3669, 0.0
    %vm3702 = vcmp.gt.f32.partialorder %v3670, 0.0
    %vm3703 = vcmp.gt.f32.partialorder %v3671, 0.0
    %vm3704 = vcmp.gt.f32.partialorder %v3672, 0.0
    %vm3705 = vcmp.gt.f32.partialorder %v3673, 0.0
    %v3706 = vmul.f32 %v3642, 0.2
    %v3707 = vmul.f32 %v3643, 0.2
    %v3708 = vmul.f32 %v3644, 0.2
    %v3709 = vmul.f32 %v3645, 0.2
    %v3710 = vmul.f32 %v3646, 0.2
    %v3711 = vmul.f32 %v3647, 0.2
    %v3712 = vmul.f32 %v3648, 0.2
    %v3713 = vmul.f32 %v3649, 0.2
    %v3714 = vmul.f32 %v3650, 0.2
    %v3715 = vmul.f32 %v3651, 0.2
    %v3716 = vmul.f32 %v3652, 0.2
    %v3717 = vmul.f32 %v3653, 0.2
    %v3718 = vmul.f32 %v3654, 0.2
    %v3719 = vmul.f32 %v3655, 0.2
    %v3720 = vmul.f32 %v3656, 0.2
    %v3721 = vmul.f32 %v3657, 0.2
    %v3722 = vmul.f32 %v3658, 0.2
    %v3723 = vmul.f32 %v3659, 0.2
    %v3724 = vmul.f32 %v3660, 0.2
    %v3725 = vmul.f32 %v3661, 0.2
    %v3726 = vmul.f32 %v3662, 0.2
    %v3727 = vmul.f32 %v3663, 0.2
    %v3728 = vmul.f32 %v3664, 0.2
    %v3729 = vmul.f32 %v3665, 0.2
    %v3730 = vmul.f32 %v3666, 0.2
    %v3731 = vmul.f32 %v3667, 0.2
    %v3732 = vmul.f32 %v3668, 0.2
    %v3733 = vmul.f32 %v3669, 0.2
    %v3734 = vmul.f32 %v3670, 0.2
    %v3735 = vmul.f32 %v3671, 0.2
    %v3736 = vmul.f32 %v3672, 0.2
    %v3737 = vmul.f32 %v3673, 0.2
    %v3738 = vsel %vm3674, %v3642, %v3706
    %v3739 = vsel %vm3675, %v3643, %v3707
    %v3740 = vsel %vm3676, %v3644, %v3708
    %v3741 = vsel %vm3677, %v3645, %v3709
    %v3742 = vsel %vm3678, %v3646, %v3710
    %v3743 = vsel %vm3679, %v3647, %v3711
    %v3744 = vsel %vm3680, %v3648, %v3712
    %v3745 = vsel %vm3681, %v3649, %v3713
    %v3746 = vsel %vm3682, %v3650, %v3714
    %v3747 = vsel %vm3683, %v3651, %v3715
    %v3748 = vsel %vm3684, %v3652, %v3716
    %v3749 = vsel %vm3685, %v3653, %v3717
    %v3750 = vsel %vm3686, %v3654, %v3718
    %v3751 = vsel %vm3687, %v3655, %v3719
    %v3752 = vsel %vm3688, %v3656, %v3720
    %v3753 = vsel %vm3689, %v3657, %v3721
    %v3754 = vsel %vm3690, %v3658, %v3722
    %v3755 = vsel %vm3691, %v3659, %v3723
    %v3756 = vsel %vm3692, %v3660, %v3724
    %v3757 = vsel %vm3693, %v3661, %v3725
    %v3758 = vsel %vm3694, %v3662, %v3726
    %v3759 = vsel %vm3695, %v3663, %v3727
    %v3760 = vsel %vm3696, %v3664, %v3728
    %v3761 = vsel %vm3697, %v3665, %v3729
    %v3762 = vsel %vm3698, %v3666, %v3730
    %v3763 = vsel %vm3699, %v3667, %v3731
    %v3764 = vsel %vm3700, %v3668, %v3732
    %v3765 = vsel %vm3701, %v3669, %v3733
    %v3766 = vsel %vm3702, %v3670, %v3734
    %v3767 = vsel %vm3703, %v3671, %v3735
    %v3768 = vsel %vm3704, %v3672, %v3736
    %v3769 = vsel %vm3705, %v3673, %v3737
    %v3770 = vld [vmem:[#allocation20] sm:$0x1]
    %v3771 = vlaneseq
    %v3772 = vshrl.u32 %v3771, 7
    %v3773 = vsub.s32 0, %v3772
    %v3774 = vrot.slane %v3770, %v3773
    %v3775 = vmul.f32 %v3738, %v3774
    %v3776 = vmul.f32 %v3739, %v3774
    %v3777 = vmul.f32 %v3740, %v3774
    %v3778 = vmul.f32 %v3741, %v3774
    %v3779 = vmul.f32 %v3742, %v3774
    %v3780 = vmul.f32 %v3743, %v3774
    %v3781 = vmul.f32 %v3744, %v3774
    %v3782 = vmul.f32 %v3745, %v3774
    %v3783 = vmul.f32 %v3746, %v3774
    %v3784 = vmul.f32 %v3747, %v3774
    %v3785 = vmul.f32 %v3748, %v3774
    %v3786 = vmul.f32 %v3749, %v3774
    %v3787 = vmul.f32 %v3750, %v3774
    %v3788 = vmul.f32 %v3751, %v3774
    %v3789 = vmul.f32 %v3752, %v3774
    %v3790 = vmul.f32 %v3753, %v3774
    %v3791 = vmul.f32 %v3754, %v3774
    %v3792 = vmul.f32 %v3755, %v3774
    %v3793 = vmul.f32 %v3756, %v3774
    %v3794 = vmul.f32 %v3757, %v3774
    %v3795 = vmul.f32 %v3758, %v3774
    %v3796 = vmul.f32 %v3759, %v3774
    %v3797 = vmul.f32 %v3760, %v3774
    %v3798 = vmul.f32 %v3761, %v3774
    %v3799 = vmul.f32 %v3762, %v3774
    %v3800 = vmul.f32 %v3763, %v3774
    %v3801 = vmul.f32 %v3764, %v3774
    %v3802 = vmul.f32 %v3765, %v3774
    %v3803 = vmul.f32 %v3766, %v3774
    %v3804 = vmul.f32 %v3767, %v3774
    %v3805 = vmul.f32 %v3768, %v3774
    %v3806 = vmul.f32 %v3769, %v3774
    %v3807 = vsel %vm773, %v3775, 0.0
    %3808 = vadd.xlane.f32.xlu0 %v3807
    %v3809 = vpop.xlane.xlu0 %3808
    %v3810 = vsel %vm773, %v3776, 0.0
    %3811 = vadd.xlane.f32.xlu0 %v3810
    %v3812 = vpop.xlane.xlu0 %3811
    %v3813 = vsel %vm773, %v3777, 0.0
    %3814 = vadd.xlane.f32.xlu0 %v3813
    %v3815 = vpop.xlane.xlu0 %3814
    %v3816 = vsel %vm773, %v3778, 0.0
    %3817 = vadd.xlane.f32.xlu0 %v3816
    %v3818 = vpop.xlane.xlu0 %3817
    %v3819 = vsel %vm773, %v3779, 0.0
    %3820 = vadd.xlane.f32.xlu0 %v3819
    %v3821 = vpop.xlane.xlu0 %3820
    %v3822 = vsel %vm773, %v3780, 0.0
    %3823 = vadd.xlane.f32.xlu0 %v3822
    %v3824 = vpop.xlane.xlu0 %3823
    %v3825 = vsel %vm773, %v3781, 0.0
    %3826 = vadd.xlane.f32.xlu0 %v3825
    %v3827 = vpop.xlane.xlu0 %3826
    %v3828 = vsel %vm773, %v3782, 0.0
    %3829 = vadd.xlane.f32.xlu0 %v3828
    %v3830 = vpop.xlane.xlu0 %3829
    %v3831 = vsel %vm773, %v3783, 0.0
    %3832 = vadd.xlane.f32.xlu0 %v3831
    %v3833 = vpop.xlane.xlu0 %3832
    %v3834 = vsel %vm773, %v3784, 0.0
    %3835 = vadd.xlane.f32.xlu0 %v3834
    %v3836 = vpop.xlane.xlu0 %3835
    %v3837 = vsel %vm773, %v3785, 0.0
    %3838 = vadd.xlane.f32.xlu0 %v3837
    %v3839 = vpop.xlane.xlu0 %3838
    %v3840 = vsel %vm773, %v3786, 0.0
    %3841 = vadd.xlane.f32.xlu0 %v3840
    %v3842 = vpop.xlane.xlu0 %3841
    %v3843 = vsel %vm773, %v3787, 0.0
    %3844 = vadd.xlane.f32.xlu0 %v3843
    %v3845 = vpop.xlane.xlu0 %3844
    %v3846 = vsel %vm773, %v3788, 0.0
    %3847 = vadd.xlane.f32.xlu0 %v3846
    %v3848 = vpop.xlane.xlu0 %3847
    %v3849 = vsel %vm773, %v3789, 0.0
    %3850 = vadd.xlane.f32.xlu0 %v3849
    %v3851 = vpop.xlane.xlu0 %3850
    %v3852 = vsel %vm773, %v3790, 0.0
    %3853 = vadd.xlane.f32.xlu0 %v3852
    %v3854 = vpop.xlane.xlu0 %3853
    %v3855 = vsel %vm773, %v3791, 0.0
    %3856 = vadd.xlane.f32.xlu0 %v3855
    %v3857 = vpop.xlane.xlu0 %3856
    %v3858 = vsel %vm773, %v3792, 0.0
    %3859 = vadd.xlane.f32.xlu0 %v3858
    %v3860 = vpop.xlane.xlu0 %3859
    %v3861 = vsel %vm773, %v3793, 0.0
    %3862 = vadd.xlane.f32.xlu0 %v3861
    %v3863 = vpop.xlane.xlu0 %3862
    %v3864 = vsel %vm773, %v3794, 0.0
    %3865 = vadd.xlane.f32.xlu0 %v3864
    %v3866 = vpop.xlane.xlu0 %3865
    %v3867 = vsel %vm773, %v3795, 0.0
    %3868 = vadd.xlane.f32.xlu0 %v3867
    %v3869 = vpop.xlane.xlu0 %3868
    %v3870 = vsel %vm773, %v3796, 0.0
    %3871 = vadd.xlane.f32.xlu0 %v3870
    %v3872 = vpop.xlane.xlu0 %3871
    %v3873 = vsel %vm773, %v3797, 0.0
    %3874 = vadd.xlane.f32.xlu0 %v3873
    %v3875 = vpop.xlane.xlu0 %3874
    %v3876 = vsel %vm773, %v3798, 0.0
    %3877 = vadd.xlane.f32.xlu0 %v3876
    %v3878 = vpop.xlane.xlu0 %3877
    %v3879 = vsel %vm773, %v3799, 0.0
    %3880 = vadd.xlane.f32.xlu0 %v3879
    %v3881 = vpop.xlane.xlu0 %3880
    %v3882 = vsel %vm773, %v3800, 0.0
    %3883 = vadd.xlane.f32.xlu0 %v3882
    %v3884 = vpop.xlane.xlu0 %3883
    %v3885 = vsel %vm773, %v3801, 0.0
    %3886 = vadd.xlane.f32.xlu0 %v3885
    %v3887 = vpop.xlane.xlu0 %3886
    %v3888 = vsel %vm773, %v3802, 0.0
    %3889 = vadd.xlane.f32.xlu0 %v3888
    %v3890 = vpop.xlane.xlu0 %3889
    %v3891 = vsel %vm773, %v3803, 0.0
    %3892 = vadd.xlane.f32.xlu0 %v3891
    %v3893 = vpop.xlane.xlu0 %3892
    %v3894 = vsel %vm773, %v3804, 0.0
    %3895 = vadd.xlane.f32.xlu0 %v3894
    %v3896 = vpop.xlane.xlu0 %3895
    %v3897 = vsel %vm773, %v3805, 0.0
    %3898 = vadd.xlane.f32.xlu0 %v3897
    %v3899 = vpop.xlane.xlu0 %3898
    %v3900 = vsel %vm773, %v3806, 0.0
    %3901 = vadd.xlane.f32.xlu0 %v3900
    %v3902 = vpop.xlane.xlu0 %3901
    %v3935 = vlaneseq
    %v3936 = vshrl.u32 %v3935, 7
    %v3937 = vsub.s32 %v903, %v3936
    %v3938 = vrot.slane %v3809, %v3937
    %v3939 = vlaneseq
    %v3940 = vshrl.u32 %v3939, 7
    %v3941 = vsub.s32 %v908, %v3940
    %v3942 = vrot.slane %v3812, %v3941
    %v3943 = vsel %vm913, %v3942, %v3938
    %v3944 = vlaneseq
    %v3945 = vshrl.u32 %v3944, 7
    %v3946 = vsub.s32 %v903, %v3945
    %v3947 = vrot.slane %v3815, %v3946
    %v3948 = vlaneseq
    %v3949 = vshrl.u32 %v3948, 7
    %v3950 = vsub.s32 %v908, %v3949
    %v3951 = vrot.slane %v3818, %v3950
    %v3952 = vsel %vm913, %v3951, %v3947
    %v3953 = vlaneseq
    %v3954 = vshrl.u32 %v3953, 7
    %v3955 = vsub.s32 %v903, %v3954
    %v3956 = vrot.slane %v3821, %v3955
    %v3957 = vlaneseq
    %v3958 = vshrl.u32 %v3957, 7
    %v3959 = vsub.s32 %v908, %v3958
    %v3960 = vrot.slane %v3824, %v3959
    %v3961 = vsel %vm913, %v3960, %v3956
    %v3962 = vlaneseq
    %v3963 = vshrl.u32 %v3962, 7
    %v3964 = vsub.s32 %v903, %v3963
    %v3965 = vrot.slane %v3827, %v3964
    %v3966 = vlaneseq
    %v3967 = vshrl.u32 %v3966, 7
    %v3968 = vsub.s32 %v908, %v3967
    %v3969 = vrot.slane %v3830, %v3968
    %v3970 = vsel %vm913, %v3969, %v3965
    %v3971 = vlaneseq
    %v3972 = vshrl.u32 %v3971, 7
    %v3973 = vsub.s32 %v903, %v3972
    %v3974 = vrot.slane %v3833, %v3973
    %v3975 = vlaneseq
    %v3976 = vshrl.u32 %v3975, 7
    %v3977 = vsub.s32 %v908, %v3976
    %v3978 = vrot.slane %v3836, %v3977
    %v3979 = vsel %vm913, %v3978, %v3974
    %v3980 = vlaneseq
    %v3981 = vshrl.u32 %v3980, 7
    %v3982 = vsub.s32 %v903, %v3981
    %v3983 = vrot.slane %v3839, %v3982
    %v3984 = vlaneseq
    %v3985 = vshrl.u32 %v3984, 7
    %v3986 = vsub.s32 %v908, %v3985
    %v3987 = vrot.slane %v3842, %v3986
    %v3988 = vsel %vm913, %v3987, %v3983
    %v3989 = vlaneseq
    %v3990 = vshrl.u32 %v3989, 7
    %v3991 = vsub.s32 %v903, %v3990
    %v3992 = vrot.slane %v3845, %v3991
    %v3993 = vlaneseq
    %v3994 = vshrl.u32 %v3993, 7
    %v3995 = vsub.s32 %v908, %v3994
    %v3996 = vrot.slane %v3848, %v3995
    %v3997 = vsel %vm913, %v3996, %v3992
    %v3998 = vlaneseq
    %v3999 = vshrl.u32 %v3998, 7
    %v4000 = vsub.s32 %v903, %v3999
    %v4001 = vrot.slane %v3851, %v4000
    %v4002 = vlaneseq
    %v4003 = vshrl.u32 %v4002, 7
    %v4004 = vsub.s32 %v908, %v4003
    %v4005 = vrot.slane %v3854, %v4004
    %v4006 = vsel %vm913, %v4005, %v4001
    %v4007 = vlaneseq
    %v4008 = vshrl.u32 %v4007, 7
    %v4009 = vsub.s32 %v903, %v4008
    %v4010 = vrot.slane %v3857, %v4009
    %v4011 = vlaneseq
    %v4012 = vshrl.u32 %v4011, 7
    %v4013 = vsub.s32 %v908, %v4012
    %v4014 = vrot.slane %v3860, %v4013
    %v4015 = vsel %vm913, %v4014, %v4010
    %v4016 = vlaneseq
    %v4017 = vshrl.u32 %v4016, 7
    %v4018 = vsub.s32 %v903, %v4017
    %v4019 = vrot.slane %v3863, %v4018
    %v4020 = vlaneseq
    %v4021 = vshrl.u32 %v4020, 7
    %v4022 = vsub.s32 %v908, %v4021
    %v4023 = vrot.slane %v3866, %v4022
    %v4024 = vsel %vm913, %v4023, %v4019
    %v4025 = vlaneseq
    %v4026 = vshrl.u32 %v4025, 7
    %v4027 = vsub.s32 %v903, %v4026
    %v4028 = vrot.slane %v3869, %v4027
    %v4029 = vlaneseq
    %v4030 = vshrl.u32 %v4029, 7
    %v4031 = vsub.s32 %v908, %v4030
    %v4032 = vrot.slane %v3872, %v4031
    %v4033 = vsel %vm913, %v4032, %v4028
    %v4034 = vlaneseq
    %v4035 = vshrl.u32 %v4034, 7
    %v4036 = vsub.s32 %v903, %v4035
    %v4037 = vrot.slane %v3875, %v4036
    %v4038 = vlaneseq
    %v4039 = vshrl.u32 %v4038, 7
    %v4040 = vsub.s32 %v908, %v4039
    %v4041 = vrot.slane %v3878, %v4040
    %v4042 = vsel %vm913, %v4041, %v4037
    %v4043 = vlaneseq
    %v4044 = vshrl.u32 %v4043, 7
    %v4045 = vsub.s32 %v903, %v4044
    %v4046 = vrot.slane %v3881, %v4045
    %v4047 = vlaneseq
    %v4048 = vshrl.u32 %v4047, 7
    %v4049 = vsub.s32 %v908, %v4048
    %v4050 = vrot.slane %v3884, %v4049
    %v4051 = vsel %vm913, %v4050, %v4046
    %v4052 = vlaneseq
    %v4053 = vshrl.u32 %v4052, 7
    %v4054 = vsub.s32 %v903, %v4053
    %v4055 = vrot.slane %v3887, %v4054
    %v4056 = vlaneseq
    %v4057 = vshrl.u32 %v4056, 7
    %v4058 = vsub.s32 %v908, %v4057
    %v4059 = vrot.slane %v3890, %v4058
    %v4060 = vsel %vm913, %v4059, %v4055
    %v4061 = vlaneseq
    %v4062 = vshrl.u32 %v4061, 7
    %v4063 = vsub.s32 %v903, %v4062
    %v4064 = vrot.slane %v3893, %v4063
    %v4065 = vlaneseq
    %v4066 = vshrl.u32 %v4065, 7
    %v4067 = vsub.s32 %v908, %v4066
    %v4068 = vrot.slane %v3896, %v4067
    %v4069 = vsel %vm913, %v4068, %v4064
    %v4070 = vlaneseq
    %v4071 = vshrl.u32 %v4070, 7
    %v4072 = vsub.s32 %v903, %v4071
    %v4073 = vrot.slane %v3899, %v4072
    %v4074 = vlaneseq
    %v4075 = vshrl.u32 %v4074, 7
    %v4076 = vsub.s32 %v908, %v4075
    %v4077 = vrot.slane %v3902, %v4076
    %v4078 = vsel %vm913, %v4077, %v4073
    %v4079 = vsel %vm1050, %v3952, %v3943
    %v4080 = vsel %vm1052, %v3961, %v4079
    %v4081 = vsel %vm1054, %v3970, %v4080
    %v4082 = vsel %vm1056, %v3979, %v4081
    %v4083 = vsel %vm1058, %v3988, %v4082
    %v4084 = vsel %vm1060, %v3997, %v4083
    %v4085 = vsel %vm1062, %v4006, %v4084
    %v4086 = vsel %vm1050, %v4024, %v4015
    %v4087 = vsel %vm1052, %v4033, %v4086
    %v4088 = vsel %vm1054, %v4042, %v4087
    %v4089 = vsel %vm1056, %v4051, %v4088
    %v4090 = vsel %vm1058, %v4060, %v4089
    %v4091 = vsel %vm1060, %v4069, %v4090
    %v4092 = vsel %vm1062, %v4078, %v4091
    %v4095 = vsel %vm288, %v4085, -1e+30
    %v4096 = vsel %vm289, %v4092, -1e+30
    %v4097 = vsel %vm1075, %v4095, -inf
    %4098 = vmax.xlane.f32.xlu0 %v4097
    %v4099 = vpop.xlane.xlu0 %4098
    %v4100 = vsel %vm1075, %v4096, -inf
    %4101 = vmax.xlane.f32.xlu0 %v4100
    %v4102 = vpop.xlane.xlu0 %4101
    %v4103 = vsub.f32 %v4095, %v4099
    %v4104 = vsub.f32 %v4096, %v4102
    %v4105 = vmul.f32 %v4103, 1.442695
    %v4106 = vpow.pop %v4105
    %v4107 = vmul.f32 %v4104, 1.442695
    %v4108 = vpow.pop %v4107
    %v4109 = vsel %vm1075, %v4106, 0.0
    %4110 = vadd.xlane.f32.xlu0 %v4109
    %v4111 = vpop.xlane.xlu0 %4110
    %v4112 = vsel %vm1075, %v4108, 0.0
    %4113 = vadd.xlane.f32.xlu0 %v4112
    %v4114 = vpop.xlane.xlu0 %4113
    %v4115 = vrcp.pop %v4111
    %v4116 = vrcp.pop %v4114
    %v4117 = vmul.f32 %v4106, %v4115
    %v4118 = vmul.f32 %v4108, %v4116
    %v4119 = vld [vmem:[#allocation20 + $0x1] sm:$0x1]
    %v4120 = vlaneseq
    %v4121 = vshrl.u32 %v4120, 7
    %v4122 = vsub.s32 0, %v4121
    %v4123 = vrot.slane %v4119, %v4122
    %4125 = vrot.lane.b32.xlu0 %v4123, 32
    %v4126 = vpop.permute.xlu0 %4125
    %v4128 = vmul.f32 %v3738, %v4126
    %v4129 = vmul.f32 %v3739, %v4126
    %v4130 = vmul.f32 %v3740, %v4126
    %v4131 = vmul.f32 %v3741, %v4126
    %v4132 = vmul.f32 %v3742, %v4126
    %v4133 = vmul.f32 %v3743, %v4126
    %v4134 = vmul.f32 %v3744, %v4126
    %v4135 = vmul.f32 %v3745, %v4126
    %v4136 = vmul.f32 %v3746, %v4126
    %v4137 = vmul.f32 %v3747, %v4126
    %v4138 = vmul.f32 %v3748, %v4126
    %v4139 = vmul.f32 %v3749, %v4126
    %v4140 = vmul.f32 %v3750, %v4126
    %v4141 = vmul.f32 %v3751, %v4126
    %v4142 = vmul.f32 %v3752, %v4126
    %v4143 = vmul.f32 %v3753, %v4126
    %v4144 = vmul.f32 %v3754, %v4126
    %v4145 = vmul.f32 %v3755, %v4126
    %v4146 = vmul.f32 %v3756, %v4126
    %v4147 = vmul.f32 %v3757, %v4126
    %v4148 = vmul.f32 %v3758, %v4126
    %v4149 = vmul.f32 %v3759, %v4126
    %v4150 = vmul.f32 %v3760, %v4126
    %v4151 = vmul.f32 %v3761, %v4126
    %v4152 = vmul.f32 %v3762, %v4126
    %v4153 = vmul.f32 %v3763, %v4126
    %v4154 = vmul.f32 %v3764, %v4126
    %v4155 = vmul.f32 %v3765, %v4126
    %v4156 = vmul.f32 %v3766, %v4126
    %v4157 = vmul.f32 %v3767, %v4126
    %v4158 = vmul.f32 %v3768, %v4126
    %v4159 = vmul.f32 %v3769, %v4126
    %4192 = vrot.lane.b32.xlu0 %v4128, 96
    %v4193 = vpop.permute.xlu0 %4192
    %4194 = vrot.lane.b32.xlu0 %v4129, 96
    %v4195 = vpop.permute.xlu0 %4194
    %4196 = vrot.lane.b32.xlu0 %v4130, 96
    %v4197 = vpop.permute.xlu0 %4196
    %4198 = vrot.lane.b32.xlu0 %v4131, 96
    %v4199 = vpop.permute.xlu0 %4198
    %4200 = vrot.lane.b32.xlu0 %v4132, 96
    %v4201 = vpop.permute.xlu0 %4200
    %4202 = vrot.lane.b32.xlu0 %v4133, 96
    %v4203 = vpop.permute.xlu0 %4202
    %4204 = vrot.lane.b32.xlu0 %v4134, 96
    %v4205 = vpop.permute.xlu0 %4204
    %4206 = vrot.lane.b32.xlu0 %v4135, 96
    %v4207 = vpop.permute.xlu0 %4206
    %4208 = vrot.lane.b32.xlu0 %v4136, 96
    %v4209 = vpop.permute.xlu0 %4208
    %4210 = vrot.lane.b32.xlu0 %v4137, 96
    %v4211 = vpop.permute.xlu0 %4210
    %4212 = vrot.lane.b32.xlu0 %v4138, 96
    %v4213 = vpop.permute.xlu0 %4212
    %4214 = vrot.lane.b32.xlu0 %v4139, 96
    %v4215 = vpop.permute.xlu0 %4214
    %4216 = vrot.lane.b32.xlu0 %v4140, 96
    %v4217 = vpop.permute.xlu0 %4216
    %4218 = vrot.lane.b32.xlu0 %v4141, 96
    %v4219 = vpop.permute.xlu0 %4218
    %4220 = vrot.lane.b32.xlu0 %v4142, 96
    %v4221 = vpop.permute.xlu0 %4220
    %4222 = vrot.lane.b32.xlu0 %v4143, 96
    %v4223 = vpop.permute.xlu0 %4222
    %4224 = vrot.lane.b32.xlu0 %v4144, 96
    %v4225 = vpop.permute.xlu0 %4224
    %4226 = vrot.lane.b32.xlu0 %v4145, 96
    %v4227 = vpop.permute.xlu0 %4226
    %4228 = vrot.lane.b32.xlu0 %v4146, 96
    %v4229 = vpop.permute.xlu0 %4228
    %4230 = vrot.lane.b32.xlu0 %v4147, 96
    %v4231 = vpop.permute.xlu0 %4230
    %4232 = vrot.lane.b32.xlu0 %v4148, 96
    %v4233 = vpop.permute.xlu0 %4232
    %4234 = vrot.lane.b32.xlu0 %v4149, 96
    %v4235 = vpop.permute.xlu0 %4234
    %4236 = vrot.lane.b32.xlu0 %v4150, 96
    %v4237 = vpop.permute.xlu0 %4236
    %4238 = vrot.lane.b32.xlu0 %v4151, 96
    %v4239 = vpop.permute.xlu0 %4238
    %4240 = vrot.lane.b32.xlu0 %v4152, 96
    %v4241 = vpop.permute.xlu0 %4240
    %4242 = vrot.lane.b32.xlu0 %v4153, 96
    %v4243 = vpop.permute.xlu0 %4242
    %4244 = vrot.lane.b32.xlu0 %v4154, 96
    %v4245 = vpop.permute.xlu0 %4244
    %4246 = vrot.lane.b32.xlu0 %v4155, 96
    %v4247 = vpop.permute.xlu0 %4246
    %4248 = vrot.lane.b32.xlu0 %v4156, 96
    %v4249 = vpop.permute.xlu0 %4248
    %4250 = vrot.lane.b32.xlu0 %v4157, 96
    %v4251 = vpop.permute.xlu0 %4250
    %4252 = vrot.lane.b32.xlu0 %v4158, 96
    %v4253 = vpop.permute.xlu0 %4252
    %4254 = vrot.lane.b32.xlu0 %v4159, 96
    %v4255 = vpop.permute.xlu0 %4254
    %v4288 = vsel %vm773, %v4193, 0.0
    %4289 = vadd.xlane.f32.xlu0 %v4288
    %v4290 = vpop.xlane.xlu0 %4289
    %v4291 = vsel %vm773, %v4195, 0.0
    %4292 = vadd.xlane.f32.xlu0 %v4291
    %v4293 = vpop.xlane.xlu0 %4292
    %v4294 = vsel %vm773, %v4197, 0.0
    %4295 = vadd.xlane.f32.xlu0 %v4294
    %v4296 = vpop.xlane.xlu0 %4295
    %v4297 = vsel %vm773, %v4199, 0.0
    %4298 = vadd.xlane.f32.xlu0 %v4297
    %v4299 = vpop.xlane.xlu0 %4298
    %v4300 = vsel %vm773, %v4201, 0.0
    %4301 = vadd.xlane.f32.xlu0 %v4300
    %v4302 = vpop.xlane.xlu0 %4301
    %v4303 = vsel %vm773, %v4203, 0.0
    %4304 = vadd.xlane.f32.xlu0 %v4303
    %v4305 = vpop.xlane.xlu0 %4304
    %v4306 = vsel %vm773, %v4205, 0.0
    %4307 = vadd.xlane.f32.xlu0 %v4306
    %v4308 = vpop.xlane.xlu0 %4307
    %v4309 = vsel %vm773, %v4207, 0.0
    %4310 = vadd.xlane.f32.xlu0 %v4309
    %v4311 = vpop.xlane.xlu0 %4310
    %v4312 = vsel %vm773, %v4209, 0.0
    %4313 = vadd.xlane.f32.xlu0 %v4312
    %v4314 = vpop.xlane.xlu0 %4313
    %v4315 = vsel %vm773, %v4211, 0.0
    %4316 = vadd.xlane.f32.xlu0 %v4315
    %v4317 = vpop.xlane.xlu0 %4316
    %v4318 = vsel %vm773, %v4213, 0.0
    %4319 = vadd.xlane.f32.xlu0 %v4318
    %v4320 = vpop.xlane.xlu0 %4319
    %v4321 = vsel %vm773, %v4215, 0.0
    %4322 = vadd.xlane.f32.xlu0 %v4321
    %v4323 = vpop.xlane.xlu0 %4322
    %v4324 = vsel %vm773, %v4217, 0.0
    %4325 = vadd.xlane.f32.xlu0 %v4324
    %v4326 = vpop.xlane.xlu0 %4325
    %v4327 = vsel %vm773, %v4219, 0.0
    %4328 = vadd.xlane.f32.xlu0 %v4327
    %v4329 = vpop.xlane.xlu0 %4328
    %v4330 = vsel %vm773, %v4221, 0.0
    %4331 = vadd.xlane.f32.xlu0 %v4330
    %v4332 = vpop.xlane.xlu0 %4331
    %v4333 = vsel %vm773, %v4223, 0.0
    %4334 = vadd.xlane.f32.xlu0 %v4333
    %v4335 = vpop.xlane.xlu0 %4334
    %v4336 = vsel %vm773, %v4225, 0.0
    %4337 = vadd.xlane.f32.xlu0 %v4336
    %v4338 = vpop.xlane.xlu0 %4337
    %v4339 = vsel %vm773, %v4227, 0.0
    %4340 = vadd.xlane.f32.xlu0 %v4339
    %v4341 = vpop.xlane.xlu0 %4340
    %v4342 = vsel %vm773, %v4229, 0.0
    %4343 = vadd.xlane.f32.xlu0 %v4342
    %v4344 = vpop.xlane.xlu0 %4343
    %v4345 = vsel %vm773, %v4231, 0.0
    %4346 = vadd.xlane.f32.xlu0 %v4345
    %v4347 = vpop.xlane.xlu0 %4346
    %v4348 = vsel %vm773, %v4233, 0.0
    %4349 = vadd.xlane.f32.xlu0 %v4348
    %v4350 = vpop.xlane.xlu0 %4349
    %v4351 = vsel %vm773, %v4235, 0.0
    %4352 = vadd.xlane.f32.xlu0 %v4351
    %v4353 = vpop.xlane.xlu0 %4352
    %v4354 = vsel %vm773, %v4237, 0.0
    %4355 = vadd.xlane.f32.xlu0 %v4354
    %v4356 = vpop.xlane.xlu0 %4355
    %v4357 = vsel %vm773, %v4239, 0.0
    %4358 = vadd.xlane.f32.xlu0 %v4357
    %v4359 = vpop.xlane.xlu0 %4358
    %v4360 = vsel %vm773, %v4241, 0.0
    %4361 = vadd.xlane.f32.xlu0 %v4360
    %v4362 = vpop.xlane.xlu0 %4361
    %v4363 = vsel %vm773, %v4243, 0.0
    %4364 = vadd.xlane.f32.xlu0 %v4363
    %v4365 = vpop.xlane.xlu0 %4364
    %v4366 = vsel %vm773, %v4245, 0.0
    %4367 = vadd.xlane.f32.xlu0 %v4366
    %v4368 = vpop.xlane.xlu0 %4367
    %v4369 = vsel %vm773, %v4247, 0.0
    %4370 = vadd.xlane.f32.xlu0 %v4369
    %v4371 = vpop.xlane.xlu0 %4370
    %v4372 = vsel %vm773, %v4249, 0.0
    %4373 = vadd.xlane.f32.xlu0 %v4372
    %v4374 = vpop.xlane.xlu0 %4373
    %v4375 = vsel %vm773, %v4251, 0.0
    %4376 = vadd.xlane.f32.xlu0 %v4375
    %v4377 = vpop.xlane.xlu0 %4376
    %v4378 = vsel %vm773, %v4253, 0.0
    %4379 = vadd.xlane.f32.xlu0 %v4378
    %v4380 = vpop.xlane.xlu0 %4379
    %v4381 = vsel %vm773, %v4255, 0.0
    %4382 = vadd.xlane.f32.xlu0 %v4381
    %v4383 = vpop.xlane.xlu0 %4382
    %v4416 = vlaneseq
    %v4417 = vshrl.u32 %v4416, 7
    %v4418 = vsub.s32 %v903, %v4417
    %v4419 = vrot.slane %v4290, %v4418
    %v4420 = vlaneseq
    %v4421 = vshrl.u32 %v4420, 7
    %v4422 = vsub.s32 %v908, %v4421
    %v4423 = vrot.slane %v4293, %v4422
    %v4424 = vsel %vm913, %v4423, %v4419
    %v4425 = vlaneseq
    %v4426 = vshrl.u32 %v4425, 7
    %v4427 = vsub.s32 %v903, %v4426
    %v4428 = vrot.slane %v4296, %v4427
    %v4429 = vlaneseq
    %v4430 = vshrl.u32 %v4429, 7
    %v4431 = vsub.s32 %v908, %v4430
    %v4432 = vrot.slane %v4299, %v4431
    %v4433 = vsel %vm913, %v4432, %v4428
    %v4434 = vlaneseq
    %v4435 = vshrl.u32 %v4434, 7
    %v4436 = vsub.s32 %v903, %v4435
    %v4437 = vrot.slane %v4302, %v4436
    %v4438 = vlaneseq
    %v4439 = vshrl.u32 %v4438, 7
    %v4440 = vsub.s32 %v908, %v4439
    %v4441 = vrot.slane %v4305, %v4440
    %v4442 = vsel %vm913, %v4441, %v4437
    %v4443 = vlaneseq
    %v4444 = vshrl.u32 %v4443, 7
    %v4445 = vsub.s32 %v903, %v4444
    %v4446 = vrot.slane %v4308, %v4445
    %v4447 = vlaneseq
    %v4448 = vshrl.u32 %v4447, 7
    %v4449 = vsub.s32 %v908, %v4448
    %v4450 = vrot.slane %v4311, %v4449
    %v4451 = vsel %vm913, %v4450, %v4446
    %v4452 = vlaneseq
    %v4453 = vshrl.u32 %v4452, 7
    %v4454 = vsub.s32 %v903, %v4453
    %v4455 = vrot.slane %v4314, %v4454
    %v4456 = vlaneseq
    %v4457 = vshrl.u32 %v4456, 7
    %v4458 = vsub.s32 %v908, %v4457
    %v4459 = vrot.slane %v4317, %v4458
    %v4460 = vsel %vm913, %v4459, %v4455
    %v4461 = vlaneseq
    %v4462 = vshrl.u32 %v4461, 7
    %v4463 = vsub.s32 %v903, %v4462
    %v4464 = vrot.slane %v4320, %v4463
    %v4465 = vlaneseq
    %v4466 = vshrl.u32 %v4465, 7
    %v4467 = vsub.s32 %v908, %v4466
    %v4468 = vrot.slane %v4323, %v4467
    %v4469 = vsel %vm913, %v4468, %v4464
    %v4470 = vlaneseq
    %v4471 = vshrl.u32 %v4470, 7
    %v4472 = vsub.s32 %v903, %v4471
    %v4473 = vrot.slane %v4326, %v4472
    %v4474 = vlaneseq
    %v4475 = vshrl.u32 %v4474, 7
    %v4476 = vsub.s32 %v908, %v4475
    %v4477 = vrot.slane %v4329, %v4476
    %v4478 = vsel %vm913, %v4477, %v4473
    %v4479 = vlaneseq
    %v4480 = vshrl.u32 %v4479, 7
    %v4481 = vsub.s32 %v903, %v4480
    %v4482 = vrot.slane %v4332, %v4481
    %v4483 = vlaneseq
    %v4484 = vshrl.u32 %v4483, 7
    %v4485 = vsub.s32 %v908, %v4484
    %v4486 = vrot.slane %v4335, %v4485
    %v4487 = vsel %vm913, %v4486, %v4482
    %v4488 = vlaneseq
    %v4489 = vshrl.u32 %v4488, 7
    %v4490 = vsub.s32 %v903, %v4489
    %v4491 = vrot.slane %v4338, %v4490
    %v4492 = vlaneseq
    %v4493 = vshrl.u32 %v4492, 7
    %v4494 = vsub.s32 %v908, %v4493
    %v4495 = vrot.slane %v4341, %v4494
    %v4496 = vsel %vm913, %v4495, %v4491
    %v4497 = vlaneseq
    %v4498 = vshrl.u32 %v4497, 7
    %v4499 = vsub.s32 %v903, %v4498
    %v4500 = vrot.slane %v4344, %v4499
    %v4501 = vlaneseq
    %v4502 = vshrl.u32 %v4501, 7
    %v4503 = vsub.s32 %v908, %v4502
    %v4504 = vrot.slane %v4347, %v4503
    %v4505 = vsel %vm913, %v4504, %v4500
    %v4506 = vlaneseq
    %v4507 = vshrl.u32 %v4506, 7
    %v4508 = vsub.s32 %v903, %v4507
    %v4509 = vrot.slane %v4350, %v4508
    %v4510 = vlaneseq
    %v4511 = vshrl.u32 %v4510, 7
    %v4512 = vsub.s32 %v908, %v4511
    %v4513 = vrot.slane %v4353, %v4512
    %v4514 = vsel %vm913, %v4513, %v4509
    %v4515 = vlaneseq
    %v4516 = vshrl.u32 %v4515, 7
    %v4517 = vsub.s32 %v903, %v4516
    %v4518 = vrot.slane %v4356, %v4517
    %v4519 = vlaneseq
    %v4520 = vshrl.u32 %v4519, 7
    %v4521 = vsub.s32 %v908, %v4520
    %v4522 = vrot.slane %v4359, %v4521
    %v4523 = vsel %vm913, %v4522, %v4518
    %v4524 = vlaneseq
    %v4525 = vshrl.u32 %v4524, 7
    %v4526 = vsub.s32 %v903, %v4525
    %v4527 = vrot.slane %v4362, %v4526
    %v4528 = vlaneseq
    %v4529 = vshrl.u32 %v4528, 7
    %v4530 = vsub.s32 %v908, %v4529
    %v4531 = vrot.slane %v4365, %v4530
    %v4532 = vsel %vm913, %v4531, %v4527
    %v4533 = vlaneseq
    %v4534 = vshrl.u32 %v4533, 7
    %v4535 = vsub.s32 %v903, %v4534
    %v4536 = vrot.slane %v4368, %v4535
    %v4537 = vlaneseq
    %v4538 = vshrl.u32 %v4537, 7
    %v4539 = vsub.s32 %v908, %v4538
    %v4540 = vrot.slane %v4371, %v4539
    %v4541 = vsel %vm913, %v4540, %v4536
    %v4542 = vlaneseq
    %v4543 = vshrl.u32 %v4542, 7
    %v4544 = vsub.s32 %v903, %v4543
    %v4545 = vrot.slane %v4374, %v4544
    %v4546 = vlaneseq
    %v4547 = vshrl.u32 %v4546, 7
    %v4548 = vsub.s32 %v908, %v4547
    %v4549 = vrot.slane %v4377, %v4548
    %v4550 = vsel %vm913, %v4549, %v4545
    %v4551 = vlaneseq
    %v4552 = vshrl.u32 %v4551, 7
    %v4553 = vsub.s32 %v903, %v4552
    %v4554 = vrot.slane %v4380, %v4553
    %v4555 = vlaneseq
    %v4556 = vshrl.u32 %v4555, 7
    %v4557 = vsub.s32 %v908, %v4556
    %v4558 = vrot.slane %v4383, %v4557
    %v4559 = vsel %vm913, %v4558, %v4554
    %v4560 = vsel %vm1050, %v4433, %v4424
    %v4561 = vsel %vm1052, %v4442, %v4560
    %v4562 = vsel %vm1054, %v4451, %v4561
    %v4563 = vsel %vm1056, %v4460, %v4562
    %v4564 = vsel %vm1058, %v4469, %v4563
    %v4565 = vsel %vm1060, %v4478, %v4564
    %v4566 = vsel %vm1062, %v4487, %v4565
    %v4567 = vsel %vm1050, %v4505, %v4496
    %v4568 = vsel %vm1052, %v4514, %v4567
    %v4569 = vsel %vm1054, %v4523, %v4568
    %v4570 = vsel %vm1056, %v4532, %v4569
    %v4571 = vsel %vm1058, %v4541, %v4570
    %v4572 = vsel %vm1060, %v4550, %v4571
    %v4573 = vsel %vm1062, %v4559, %v4572
    %v4576 = vsel %vm288, %v4566, -1e+30
    %v4577 = vsel %vm289, %v4573, -1e+30
    %v4578 = vsel %vm1075, %v4576, -inf
    %4579 = vmax.xlane.f32.xlu0 %v4578
    %v4580 = vpop.xlane.xlu0 %4579
    %v4581 = vsel %vm1075, %v4577, -inf
    %4582 = vmax.xlane.f32.xlu0 %v4581
    %v4583 = vpop.xlane.xlu0 %4582
    %v4584 = vsub.f32 %v4576, %v4580
    %v4585 = vsub.f32 %v4577, %v4583
    %v4586 = vmul.f32 %v4584, 1.442695
    %v4587 = vpow.pop %v4586
    %v4588 = vmul.f32 %v4585, 1.442695
    %v4589 = vpow.pop %v4588
    %v4590 = vsel %vm1075, %v4587, 0.0
    %4591 = vadd.xlane.f32.xlu0 %v4590
    %v4592 = vpop.xlane.xlu0 %4591
    %v4593 = vsel %vm1075, %v4589, 0.0
    %4594 = vadd.xlane.f32.xlu0 %v4593
    %v4595 = vpop.xlane.xlu0 %4594
    %v4596 = vrcp.pop %v4592
    %v4597 = vrcp.pop %v4595
    %v4598 = vmul.f32 %v4587, %v4596
    %v4599 = vmul.f32 %v4589, %v4597
    %v4600 = vld [vmem:[#allocation20 + $0x2] sm:$0x1]
    %v4601 = vlaneseq
    %v4602 = vshrl.u32 %v4601, 7
    %v4603 = vsub.s32 0, %v4602
    %v4604 = vrot.slane %v4600, %v4603
    %4606 = vrot.lane.b32.xlu0 %v4604, 64
    %v4607 = vpop.permute.xlu0 %4606
    %v4609 = vmul.f32 %v3738, %v4607
    %v4610 = vmul.f32 %v3739, %v4607
    %v4611 = vmul.f32 %v3740, %v4607
    %v4612 = vmul.f32 %v3741, %v4607
    %v4613 = vmul.f32 %v3742, %v4607
    %v4614 = vmul.f32 %v3743, %v4607
    %v4615 = vmul.f32 %v3744, %v4607
    %v4616 = vmul.f32 %v3745, %v4607
    %v4617 = vmul.f32 %v3746, %v4607
    %v4618 = vmul.f32 %v3747, %v4607
    %v4619 = vmul.f32 %v3748, %v4607
    %v4620 = vmul.f32 %v3749, %v4607
    %v4621 = vmul.f32 %v3750, %v4607
    %v4622 = vmul.f32 %v3751, %v4607
    %v4623 = vmul.f32 %v3752, %v4607
    %v4624 = vmul.f32 %v3753, %v4607
    %v4625 = vmul.f32 %v3754, %v4607
    %v4626 = vmul.f32 %v3755, %v4607
    %v4627 = vmul.f32 %v3756, %v4607
    %v4628 = vmul.f32 %v3757, %v4607
    %v4629 = vmul.f32 %v3758, %v4607
    %v4630 = vmul.f32 %v3759, %v4607
    %v4631 = vmul.f32 %v3760, %v4607
    %v4632 = vmul.f32 %v3761, %v4607
    %v4633 = vmul.f32 %v3762, %v4607
    %v4634 = vmul.f32 %v3763, %v4607
    %v4635 = vmul.f32 %v3764, %v4607
    %v4636 = vmul.f32 %v3765, %v4607
    %v4637 = vmul.f32 %v3766, %v4607
    %v4638 = vmul.f32 %v3767, %v4607
    %v4639 = vmul.f32 %v3768, %v4607
    %v4640 = vmul.f32 %v3769, %v4607
    %4673 = vrot.lane.b32.xlu0 %v4609, 64
    %v4674 = vpop.permute.xlu0 %4673
    %4675 = vrot.lane.b32.xlu0 %v4610, 64
    %v4676 = vpop.permute.xlu0 %4675
    %4677 = vrot.lane.b32.xlu0 %v4611, 64
    %v4678 = vpop.permute.xlu0 %4677
    %4679 = vrot.lane.b32.xlu0 %v4612, 64
    %v4680 = vpop.permute.xlu0 %4679
    %4681 = vrot.lane.b32.xlu0 %v4613, 64
    %v4682 = vpop.permute.xlu0 %4681
    %4683 = vrot.lane.b32.xlu0 %v4614, 64
    %v4684 = vpop.permute.xlu0 %4683
    %4685 = vrot.lane.b32.xlu0 %v4615, 64
    %v4686 = vpop.permute.xlu0 %4685
    %4687 = vrot.lane.b32.xlu0 %v4616, 64
    %v4688 = vpop.permute.xlu0 %4687
    %4689 = vrot.lane.b32.xlu0 %v4617, 64
    %v4690 = vpop.permute.xlu0 %4689
    %4691 = vrot.lane.b32.xlu0 %v4618, 64
    %v4692 = vpop.permute.xlu0 %4691
    %4693 = vrot.lane.b32.xlu0 %v4619, 64
    %v4694 = vpop.permute.xlu0 %4693
    %4695 = vrot.lane.b32.xlu0 %v4620, 64
    %v4696 = vpop.permute.xlu0 %4695
    %4697 = vrot.lane.b32.xlu0 %v4621, 64
    %v4698 = vpop.permute.xlu0 %4697
    %4699 = vrot.lane.b32.xlu0 %v4622, 64
    %v4700 = vpop.permute.xlu0 %4699
    %4701 = vrot.lane.b32.xlu0 %v4623, 64
    %v4702 = vpop.permute.xlu0 %4701
    %4703 = vrot.lane.b32.xlu0 %v4624, 64
    %v4704 = vpop.permute.xlu0 %4703
    %4705 = vrot.lane.b32.xlu0 %v4625, 64
    %v4706 = vpop.permute.xlu0 %4705
    %4707 = vrot.lane.b32.xlu0 %v4626, 64
    %v4708 = vpop.permute.xlu0 %4707
    %4709 = vrot.lane.b32.xlu0 %v4627, 64
    %v4710 = vpop.permute.xlu0 %4709
    %4711 = vrot.lane.b32.xlu0 %v4628, 64
    %v4712 = vpop.permute.xlu0 %4711
    %4713 = vrot.lane.b32.xlu0 %v4629, 64
    %v4714 = vpop.permute.xlu0 %4713
    %4715 = vrot.lane.b32.xlu0 %v4630, 64
    %v4716 = vpop.permute.xlu0 %4715
    %4717 = vrot.lane.b32.xlu0 %v4631, 64
    %v4718 = vpop.permute.xlu0 %4717
    %4719 = vrot.lane.b32.xlu0 %v4632, 64
    %v4720 = vpop.permute.xlu0 %4719
    %4721 = vrot.lane.b32.xlu0 %v4633, 64
    %v4722 = vpop.permute.xlu0 %4721
    %4723 = vrot.lane.b32.xlu0 %v4634, 64
    %v4724 = vpop.permute.xlu0 %4723
    %4725 = vrot.lane.b32.xlu0 %v4635, 64
    %v4726 = vpop.permute.xlu0 %4725
    %4727 = vrot.lane.b32.xlu0 %v4636, 64
    %v4728 = vpop.permute.xlu0 %4727
    %4729 = vrot.lane.b32.xlu0 %v4637, 64
    %v4730 = vpop.permute.xlu0 %4729
    %4731 = vrot.lane.b32.xlu0 %v4638, 64
    %v4732 = vpop.permute.xlu0 %4731
    %4733 = vrot.lane.b32.xlu0 %v4639, 64
    %v4734 = vpop.permute.xlu0 %4733
    %4735 = vrot.lane.b32.xlu0 %v4640, 64
    %v4736 = vpop.permute.xlu0 %4735
    %v4769 = vsel %vm773, %v4674, 0.0
    %4770 = vadd.xlane.f32.xlu0 %v4769
    %v4771 = vpop.xlane.xlu0 %4770
    %v4772 = vsel %vm773, %v4676, 0.0
    %4773 = vadd.xlane.f32.xlu0 %v4772
    %v4774 = vpop.xlane.xlu0 %4773
    %v4775 = vsel %vm773, %v4678, 0.0
    %4776 = vadd.xlane.f32.xlu0 %v4775
    %v4777 = vpop.xlane.xlu0 %4776
    %v4778 = vsel %vm773, %v4680, 0.0
    %4779 = vadd.xlane.f32.xlu0 %v4778
    %v4780 = vpop.xlane.xlu0 %4779
    %v4781 = vsel %vm773, %v4682, 0.0
    %4782 = vadd.xlane.f32.xlu0 %v4781
    %v4783 = vpop.xlane.xlu0 %4782
    %v4784 = vsel %vm773, %v4684, 0.0
    %4785 = vadd.xlane.f32.xlu0 %v4784
    %v4786 = vpop.xlane.xlu0 %4785
    %v4787 = vsel %vm773, %v4686, 0.0
    %4788 = vadd.xlane.f32.xlu0 %v4787
    %v4789 = vpop.xlane.xlu0 %4788
    %v4790 = vsel %vm773, %v4688, 0.0
    %4791 = vadd.xlane.f32.xlu0 %v4790
    %v4792 = vpop.xlane.xlu0 %4791
    %v4793 = vsel %vm773, %v4690, 0.0
    %4794 = vadd.xlane.f32.xlu0 %v4793
    %v4795 = vpop.xlane.xlu0 %4794
    %v4796 = vsel %vm773, %v4692, 0.0
    %4797 = vadd.xlane.f32.xlu0 %v4796
    %v4798 = vpop.xlane.xlu0 %4797
    %v4799 = vsel %vm773, %v4694, 0.0
    %4800 = vadd.xlane.f32.xlu0 %v4799
    %v4801 = vpop.xlane.xlu0 %4800
    %v4802 = vsel %vm773, %v4696, 0.0
    %4803 = vadd.xlane.f32.xlu0 %v4802
    %v4804 = vpop.xlane.xlu0 %4803
    %v4805 = vsel %vm773, %v4698, 0.0
    %4806 = vadd.xlane.f32.xlu0 %v4805
    %v4807 = vpop.xlane.xlu0 %4806
    %v4808 = vsel %vm773, %v4700, 0.0
    %4809 = vadd.xlane.f32.xlu0 %v4808
    %v4810 = vpop.xlane.xlu0 %4809
    %v4811 = vsel %vm773, %v4702, 0.0
    %4812 = vadd.xlane.f32.xlu0 %v4811
    %v4813 = vpop.xlane.xlu0 %4812
    %v4814 = vsel %vm773, %v4704, 0.0
    %4815 = vadd.xlane.f32.xlu0 %v4814
    %v4816 = vpop.xlane.xlu0 %4815
    %v4817 = vsel %vm773, %v4706, 0.0
    %4818 = vadd.xlane.f32.xlu0 %v4817
    %v4819 = vpop.xlane.xlu0 %4818
    %v4820 = vsel %vm773, %v4708, 0.0
    %4821 = vadd.xlane.f32.xlu0 %v4820
    %v4822 = vpop.xlane.xlu0 %4821
    %v4823 = vsel %vm773, %v4710, 0.0
    %4824 = vadd.xlane.f32.xlu0 %v4823
    %v4825 = vpop.xlane.xlu0 %4824
    %v4826 = vsel %vm773, %v4712, 0.0
    %4827 = vadd.xlane.f32.xlu0 %v4826
    %v4828 = vpop.xlane.xlu0 %4827
    %v4829 = vsel %vm773, %v4714, 0.0
    %4830 = vadd.xlane.f32.xlu0 %v4829
    %v4831 = vpop.xlane.xlu0 %4830
    %v4832 = vsel %vm773, %v4716, 0.0
    %4833 = vadd.xlane.f32.xlu0 %v4832
    %v4834 = vpop.xlane.xlu0 %4833
    %v4835 = vsel %vm773, %v4718, 0.0
    %4836 = vadd.xlane.f32.xlu0 %v4835
    %v4837 = vpop.xlane.xlu0 %4836
    %v4838 = vsel %vm773, %v4720, 0.0
    %4839 = vadd.xlane.f32.xlu0 %v4838
    %v4840 = vpop.xlane.xlu0 %4839
    %v4841 = vsel %vm773, %v4722, 0.0
    %4842 = vadd.xlane.f32.xlu0 %v4841
    %v4843 = vpop.xlane.xlu0 %4842
    %v4844 = vsel %vm773, %v4724, 0.0
    %4845 = vadd.xlane.f32.xlu0 %v4844
    %v4846 = vpop.xlane.xlu0 %4845
    %v4847 = vsel %vm773, %v4726, 0.0
    %4848 = vadd.xlane.f32.xlu0 %v4847
    %v4849 = vpop.xlane.xlu0 %4848
    %v4850 = vsel %vm773, %v4728, 0.0
    %4851 = vadd.xlane.f32.xlu0 %v4850
    %v4852 = vpop.xlane.xlu0 %4851
    %v4853 = vsel %vm773, %v4730, 0.0
    %4854 = vadd.xlane.f32.xlu0 %v4853
    %v4855 = vpop.xlane.xlu0 %4854
    %v4856 = vsel %vm773, %v4732, 0.0
    %4857 = vadd.xlane.f32.xlu0 %v4856
    %v4858 = vpop.xlane.xlu0 %4857
    %v4859 = vsel %vm773, %v4734, 0.0
    %4860 = vadd.xlane.f32.xlu0 %v4859
    %v4861 = vpop.xlane.xlu0 %4860
    %v4862 = vsel %vm773, %v4736, 0.0
    %4863 = vadd.xlane.f32.xlu0 %v4862
    %v4864 = vpop.xlane.xlu0 %4863
    %v4897 = vlaneseq
    %v4898 = vshrl.u32 %v4897, 7
    %v4899 = vsub.s32 %v903, %v4898
    %v4900 = vrot.slane %v4771, %v4899
    %v4901 = vlaneseq
    %v4902 = vshrl.u32 %v4901, 7
    %v4903 = vsub.s32 %v908, %v4902
    %v4904 = vrot.slane %v4774, %v4903
    %v4905 = vsel %vm913, %v4904, %v4900
    %v4906 = vlaneseq
    %v4907 = vshrl.u32 %v4906, 7
    %v4908 = vsub.s32 %v903, %v4907
    %v4909 = vrot.slane %v4777, %v4908
    %v4910 = vlaneseq
    %v4911 = vshrl.u32 %v4910, 7
    %v4912 = vsub.s32 %v908, %v4911
    %v4913 = vrot.slane %v4780, %v4912
    %v4914 = vsel %vm913, %v4913, %v4909
    %v4915 = vlaneseq
    %v4916 = vshrl.u32 %v4915, 7
    %v4917 = vsub.s32 %v903, %v4916
    %v4918 = vrot.slane %v4783, %v4917
    %v4919 = vlaneseq
    %v4920 = vshrl.u32 %v4919, 7
    %v4921 = vsub.s32 %v908, %v4920
    %v4922 = vrot.slane %v4786, %v4921
    %v4923 = vsel %vm913, %v4922, %v4918
    %v4924 = vlaneseq
    %v4925 = vshrl.u32 %v4924, 7
    %v4926 = vsub.s32 %v903, %v4925
    %v4927 = vrot.slane %v4789, %v4926
    %v4928 = vlaneseq
    %v4929 = vshrl.u32 %v4928, 7
    %v4930 = vsub.s32 %v908, %v4929
    %v4931 = vrot.slane %v4792, %v4930
    %v4932 = vsel %vm913, %v4931, %v4927
    %v4933 = vlaneseq
    %v4934 = vshrl.u32 %v4933, 7
    %v4935 = vsub.s32 %v903, %v4934
    %v4936 = vrot.slane %v4795, %v4935
    %v4937 = vlaneseq
    %v4938 = vshrl.u32 %v4937, 7
    %v4939 = vsub.s32 %v908, %v4938
    %v4940 = vrot.slane %v4798, %v4939
    %v4941 = vsel %vm913, %v4940, %v4936
    %v4942 = vlaneseq
    %v4943 = vshrl.u32 %v4942, 7
    %v4944 = vsub.s32 %v903, %v4943
    %v4945 = vrot.slane %v4801, %v4944
    %v4946 = vlaneseq
    %v4947 = vshrl.u32 %v4946, 7
    %v4948 = vsub.s32 %v908, %v4947
    %v4949 = vrot.slane %v4804, %v4948
    %v4950 = vsel %vm913, %v4949, %v4945
    %v4951 = vlaneseq
    %v4952 = vshrl.u32 %v4951, 7
    %v4953 = vsub.s32 %v903, %v4952
    %v4954 = vrot.slane %v4807, %v4953
    %v4955 = vlaneseq
    %v4956 = vshrl.u32 %v4955, 7
    %v4957 = vsub.s32 %v908, %v4956
    %v4958 = vrot.slane %v4810, %v4957
    %v4959 = vsel %vm913, %v4958, %v4954
    %v4960 = vlaneseq
    %v4961 = vshrl.u32 %v4960, 7
    %v4962 = vsub.s32 %v903, %v4961
    %v4963 = vrot.slane %v4813, %v4962
    %v4964 = vlaneseq
    %v4965 = vshrl.u32 %v4964, 7
    %v4966 = vsub.s32 %v908, %v4965
    %v4967 = vrot.slane %v4816, %v4966
    %v4968 = vsel %vm913, %v4967, %v4963
    %v4969 = vlaneseq
    %v4970 = vshrl.u32 %v4969, 7
    %v4971 = vsub.s32 %v903, %v4970
    %v4972 = vrot.slane %v4819, %v4971
    %v4973 = vlaneseq
    %v4974 = vshrl.u32 %v4973, 7
    %v4975 = vsub.s32 %v908, %v4974
    %v4976 = vrot.slane %v4822, %v4975
    %v4977 = vsel %vm913, %v4976, %v4972
    %v4978 = vlaneseq
    %v4979 = vshrl.u32 %v4978, 7
    %v4980 = vsub.s32 %v903, %v4979
    %v4981 = vrot.slane %v4825, %v4980
    %v4982 = vlaneseq
    %v4983 = vshrl.u32 %v4982, 7
    %v4984 = vsub.s32 %v908, %v4983
    %v4985 = vrot.slane %v4828, %v4984
    %v4986 = vsel %vm913, %v4985, %v4981
    %v4987 = vlaneseq
    %v4988 = vshrl.u32 %v4987, 7
    %v4989 = vsub.s32 %v903, %v4988
    %v4990 = vrot.slane %v4831, %v4989
    %v4991 = vlaneseq
    %v4992 = vshrl.u32 %v4991, 7
    %v4993 = vsub.s32 %v908, %v4992
    %v4994 = vrot.slane %v4834, %v4993
    %v4995 = vsel %vm913, %v4994, %v4990
    %v4996 = vlaneseq
    %v4997 = vshrl.u32 %v4996, 7
    %v4998 = vsub.s32 %v903, %v4997
    %v4999 = vrot.slane %v4837, %v4998
    %v5000 = vlaneseq
    %v5001 = vshrl.u32 %v5000, 7
    %v5002 = vsub.s32 %v908, %v5001
    %v5003 = vrot.slane %v4840, %v5002
    %v5004 = vsel %vm913, %v5003, %v4999
    %v5005 = vlaneseq
    %v5006 = vshrl.u32 %v5005, 7
    %v5007 = vsub.s32 %v903, %v5006
    %v5008 = vrot.slane %v4843, %v5007
    %v5009 = vlaneseq
    %v5010 = vshrl.u32 %v5009, 7
    %v5011 = vsub.s32 %v908, %v5010
    %v5012 = vrot.slane %v4846, %v5011
    %v5013 = vsel %vm913, %v5012, %v5008
    %v5014 = vlaneseq
    %v5015 = vshrl.u32 %v5014, 7
    %v5016 = vsub.s32 %v903, %v5015
    %v5017 = vrot.slane %v4849, %v5016
    %v5018 = vlaneseq
    %v5019 = vshrl.u32 %v5018, 7
    %v5020 = vsub.s32 %v908, %v5019
    %v5021 = vrot.slane %v4852, %v5020
    %v5022 = vsel %vm913, %v5021, %v5017
    %v5023 = vlaneseq
    %v5024 = vshrl.u32 %v5023, 7
    %v5025 = vsub.s32 %v903, %v5024
    %v5026 = vrot.slane %v4855, %v5025
    %v5027 = vlaneseq
    %v5028 = vshrl.u32 %v5027, 7
    %v5029 = vsub.s32 %v908, %v5028
    %v5030 = vrot.slane %v4858, %v5029
    %v5031 = vsel %vm913, %v5030, %v5026
    %v5032 = vlaneseq
    %v5033 = vshrl.u32 %v5032, 7
    %v5034 = vsub.s32 %v903, %v5033
    %v5035 = vrot.slane %v4861, %v5034
    %v5036 = vlaneseq
    %v5037 = vshrl.u32 %v5036, 7
    %v5038 = vsub.s32 %v908, %v5037
    %v5039 = vrot.slane %v4864, %v5038
    %v5040 = vsel %vm913, %v5039, %v5035
    %v5041 = vsel %vm1050, %v4914, %v4905
    %v5042 = vsel %vm1052, %v4923, %v5041
    %v5043 = vsel %vm1054, %v4932, %v5042
    %v5044 = vsel %vm1056, %v4941, %v5043
    %v5045 = vsel %vm1058, %v4950, %v5044
    %v5046 = vsel %vm1060, %v4959, %v5045
    %v5047 = vsel %vm1062, %v4968, %v5046
    %v5048 = vsel %vm1050, %v4986, %v4977
    %v5049 = vsel %vm1052, %v4995, %v5048
    %v5050 = vsel %vm1054, %v5004, %v5049
    %v5051 = vsel %vm1056, %v5013, %v5050
    %v5052 = vsel %vm1058, %v5022, %v5051
    %v5053 = vsel %vm1060, %v5031, %v5052
    %v5054 = vsel %vm1062, %v5040, %v5053
    %v5057 = vsel %vm288, %v5047, -1e+30
    %v5058 = vsel %vm289, %v5054, -1e+30
    %v5059 = vsel %vm1075, %v5057, -inf
    %5060 = vmax.xlane.f32.xlu0 %v5059
    %v5061 = vpop.xlane.xlu0 %5060
    %v5062 = vsel %vm1075, %v5058, -inf
    %5063 = vmax.xlane.f32.xlu0 %v5062
    %v5064 = vpop.xlane.xlu0 %5063
    %v5065 = vsub.f32 %v5057, %v5061
    %v5066 = vsub.f32 %v5058, %v5064
    %v5067 = vmul.f32 %v5065, 1.442695
    %v5068 = vpow.pop %v5067
    %v5069 = vmul.f32 %v5066, 1.442695
    %v5070 = vpow.pop %v5069
    %v5071 = vsel %vm1075, %v5068, 0.0
    %5072 = vadd.xlane.f32.xlu0 %v5071
    %v5073 = vpop.xlane.xlu0 %5072
    %v5074 = vsel %vm1075, %v5070, 0.0
    %5075 = vadd.xlane.f32.xlu0 %v5074
    %v5076 = vpop.xlane.xlu0 %5075
    %v5077 = vrcp.pop %v5073
    %v5078 = vrcp.pop %v5076
    %v5079 = vmul.f32 %v5068, %v5077
    %v5080 = vmul.f32 %v5070, %v5078
    %v5081 = vld [vmem:[#allocation20 + $0x3] sm:$0x1]
    %v5082 = vlaneseq
    %v5083 = vshrl.u32 %v5082, 7
    %v5084 = vsub.s32 0, %v5083
    %v5085 = vrot.slane %v5081, %v5084
    %5087 = vrot.lane.b32.xlu0 %v5085, 96
    %v5088 = vpop.permute.xlu0 %5087
    %v5090 = vmul.f32 %v3738, %v5088
    %v5091 = vmul.f32 %v3739, %v5088
    %v5092 = vmul.f32 %v3740, %v5088
    %v5093 = vmul.f32 %v3741, %v5088
    %v5094 = vmul.f32 %v3742, %v5088
    %v5095 = vmul.f32 %v3743, %v5088
    %v5096 = vmul.f32 %v3744, %v5088
    %v5097 = vmul.f32 %v3745, %v5088
    %v5098 = vmul.f32 %v3746, %v5088
    %v5099 = vmul.f32 %v3747, %v5088
    %v5100 = vmul.f32 %v3748, %v5088
    %v5101 = vmul.f32 %v3749, %v5088
    %v5102 = vmul.f32 %v3750, %v5088
    %v5103 = vmul.f32 %v3751, %v5088
    %v5104 = vmul.f32 %v3752, %v5088
    %v5105 = vmul.f32 %v3753, %v5088
    %v5106 = vmul.f32 %v3754, %v5088
    %v5107 = vmul.f32 %v3755, %v5088
    %v5108 = vmul.f32 %v3756, %v5088
    %v5109 = vmul.f32 %v3757, %v5088
    %v5110 = vmul.f32 %v3758, %v5088
    %v5111 = vmul.f32 %v3759, %v5088
    %v5112 = vmul.f32 %v3760, %v5088
    %v5113 = vmul.f32 %v3761, %v5088
    %v5114 = vmul.f32 %v3762, %v5088
    %v5115 = vmul.f32 %v3763, %v5088
    %v5116 = vmul.f32 %v3764, %v5088
    %v5117 = vmul.f32 %v3765, %v5088
    %v5118 = vmul.f32 %v3766, %v5088
    %v5119 = vmul.f32 %v3767, %v5088
    %v5120 = vmul.f32 %v3768, %v5088
    %v5121 = vmul.f32 %v3769, %v5088
    %5154 = vrot.lane.b32.xlu0 %v5090, 32
    %v5155 = vpop.permute.xlu0 %5154
    %5156 = vrot.lane.b32.xlu0 %v5091, 32
    %v5157 = vpop.permute.xlu0 %5156
    %5158 = vrot.lane.b32.xlu0 %v5092, 32
    %v5159 = vpop.permute.xlu0 %5158
    %5160 = vrot.lane.b32.xlu0 %v5093, 32
    %v5161 = vpop.permute.xlu0 %5160
    %5162 = vrot.lane.b32.xlu0 %v5094, 32
    %v5163 = vpop.permute.xlu0 %5162
    %5164 = vrot.lane.b32.xlu0 %v5095, 32
    %v5165 = vpop.permute.xlu0 %5164
    %5166 = vrot.lane.b32.xlu0 %v5096, 32
    %v5167 = vpop.permute.xlu0 %5166
    %5168 = vrot.lane.b32.xlu0 %v5097, 32
    %v5169 = vpop.permute.xlu0 %5168
    %5170 = vrot.lane.b32.xlu0 %v5098, 32
    %v5171 = vpop.permute.xlu0 %5170
    %5172 = vrot.lane.b32.xlu0 %v5099, 32
    %v5173 = vpop.permute.xlu0 %5172
    %5174 = vrot.lane.b32.xlu0 %v5100, 32
    %v5175 = vpop.permute.xlu0 %5174
    %5176 = vrot.lane.b32.xlu0 %v5101, 32
    %v5177 = vpop.permute.xlu0 %5176
    %5178 = vrot.lane.b32.xlu0 %v5102, 32
    %v5179 = vpop.permute.xlu0 %5178
    %5180 = vrot.lane.b32.xlu0 %v5103, 32
    %v5181 = vpop.permute.xlu0 %5180
    %5182 = vrot.lane.b32.xlu0 %v5104, 32
    %v5183 = vpop.permute.xlu0 %5182
    %5184 = vrot.lane.b32.xlu0 %v5105, 32
    %v5185 = vpop.permute.xlu0 %5184
    %5186 = vrot.lane.b32.xlu0 %v5106, 32
    %v5187 = vpop.permute.xlu0 %5186
    %5188 = vrot.lane.b32.xlu0 %v5107, 32
    %v5189 = vpop.permute.xlu0 %5188
    %5190 = vrot.lane.b32.xlu0 %v5108, 32
    %v5191 = vpop.permute.xlu0 %5190
    %5192 = vrot.lane.b32.xlu0 %v5109, 32
    %v5193 = vpop.permute.xlu0 %5192
    %5194 = vrot.lane.b32.xlu0 %v5110, 32
    %v5195 = vpop.permute.xlu0 %5194
    %5196 = vrot.lane.b32.xlu0 %v5111, 32
    %v5197 = vpop.permute.xlu0 %5196
    %5198 = vrot.lane.b32.xlu0 %v5112, 32
    %v5199 = vpop.permute.xlu0 %5198
    %5200 = vrot.lane.b32.xlu0 %v5113, 32
    %v5201 = vpop.permute.xlu0 %5200
    %5202 = vrot.lane.b32.xlu0 %v5114, 32
    %v5203 = vpop.permute.xlu0 %5202
    %5204 = vrot.lane.b32.xlu0 %v5115, 32
    %v5205 = vpop.permute.xlu0 %5204
    %5206 = vrot.lane.b32.xlu0 %v5116, 32
    %v5207 = vpop.permute.xlu0 %5206
    %5208 = vrot.lane.b32.xlu0 %v5117, 32
    %v5209 = vpop.permute.xlu0 %5208
    %5210 = vrot.lane.b32.xlu0 %v5118, 32
    %v5211 = vpop.permute.xlu0 %5210
    %5212 = vrot.lane.b32.xlu0 %v5119, 32
    %v5213 = vpop.permute.xlu0 %5212
    %5214 = vrot.lane.b32.xlu0 %v5120, 32
    %v5215 = vpop.permute.xlu0 %5214
    %5216 = vrot.lane.b32.xlu0 %v5121, 32
    %v5217 = vpop.permute.xlu0 %5216
    %v5250 = vsel %vm773, %v5155, 0.0
    %5251 = vadd.xlane.f32.xlu0 %v5250
    %v5252 = vpop.xlane.xlu0 %5251
    %v5253 = vsel %vm773, %v5157, 0.0
    %5254 = vadd.xlane.f32.xlu0 %v5253
    %v5255 = vpop.xlane.xlu0 %5254
    %v5256 = vsel %vm773, %v5159, 0.0
    %5257 = vadd.xlane.f32.xlu0 %v5256
    %v5258 = vpop.xlane.xlu0 %5257
    %v5259 = vsel %vm773, %v5161, 0.0
    %5260 = vadd.xlane.f32.xlu0 %v5259
    %v5261 = vpop.xlane.xlu0 %5260
    %v5262 = vsel %vm773, %v5163, 0.0
    %5263 = vadd.xlane.f32.xlu0 %v5262
    %v5264 = vpop.xlane.xlu0 %5263
    %v5265 = vsel %vm773, %v5165, 0.0
    %5266 = vadd.xlane.f32.xlu0 %v5265
    %v5267 = vpop.xlane.xlu0 %5266
    %v5268 = vsel %vm773, %v5167, 0.0
    %5269 = vadd.xlane.f32.xlu0 %v5268
    %v5270 = vpop.xlane.xlu0 %5269
    %v5271 = vsel %vm773, %v5169, 0.0
    %5272 = vadd.xlane.f32.xlu0 %v5271
    %v5273 = vpop.xlane.xlu0 %5272
    %v5274 = vsel %vm773, %v5171, 0.0
    %5275 = vadd.xlane.f32.xlu0 %v5274
    %v5276 = vpop.xlane.xlu0 %5275
    %v5277 = vsel %vm773, %v5173, 0.0
    %5278 = vadd.xlane.f32.xlu0 %v5277
    %v5279 = vpop.xlane.xlu0 %5278
    %v5280 = vsel %vm773, %v5175, 0.0
    %5281 = vadd.xlane.f32.xlu0 %v5280
    %v5282 = vpop.xlane.xlu0 %5281
    %v5283 = vsel %vm773, %v5177, 0.0
    %5284 = vadd.xlane.f32.xlu0 %v5283
    %v5285 = vpop.xlane.xlu0 %5284
    %v5286 = vsel %vm773, %v5179, 0.0
    %5287 = vadd.xlane.f32.xlu0 %v5286
    %v5288 = vpop.xlane.xlu0 %5287
    %v5289 = vsel %vm773, %v5181, 0.0
    %5290 = vadd.xlane.f32.xlu0 %v5289
    %v5291 = vpop.xlane.xlu0 %5290
    %v5292 = vsel %vm773, %v5183, 0.0
    %5293 = vadd.xlane.f32.xlu0 %v5292
    %v5294 = vpop.xlane.xlu0 %5293
    %v5295 = vsel %vm773, %v5185, 0.0
    %5296 = vadd.xlane.f32.xlu0 %v5295
    %v5297 = vpop.xlane.xlu0 %5296
    %v5298 = vsel %vm773, %v5187, 0.0
    %5299 = vadd.xlane.f32.xlu0 %v5298
    %v5300 = vpop.xlane.xlu0 %5299
    %v5301 = vsel %vm773, %v5189, 0.0
    %5302 = vadd.xlane.f32.xlu0 %v5301
    %v5303 = vpop.xlane.xlu0 %5302
    %v5304 = vsel %vm773, %v5191, 0.0
    %5305 = vadd.xlane.f32.xlu0 %v5304
    %v5306 = vpop.xlane.xlu0 %5305
    %v5307 = vsel %vm773, %v5193, 0.0
    %5308 = vadd.xlane.f32.xlu0 %v5307
    %v5309 = vpop.xlane.xlu0 %5308
    %v5310 = vsel %vm773, %v5195, 0.0
    %5311 = vadd.xlane.f32.xlu0 %v5310
    %v5312 = vpop.xlane.xlu0 %5311
    %v5313 = vsel %vm773, %v5197, 0.0
    %5314 = vadd.xlane.f32.xlu0 %v5313
    %v5315 = vpop.xlane.xlu0 %5314
    %v5316 = vsel %vm773, %v5199, 0.0
    %5317 = vadd.xlane.f32.xlu0 %v5316
    %v5318 = vpop.xlane.xlu0 %5317
    %v5319 = vsel %vm773, %v5201, 0.0
    %5320 = vadd.xlane.f32.xlu0 %v5319
    %v5321 = vpop.xlane.xlu0 %5320
    %v5322 = vsel %vm773, %v5203, 0.0
    %5323 = vadd.xlane.f32.xlu0 %v5322
    %v5324 = vpop.xlane.xlu0 %5323
    %v5325 = vsel %vm773, %v5205, 0.0
    %5326 = vadd.xlane.f32.xlu0 %v5325
    %v5327 = vpop.xlane.xlu0 %5326
    %v5328 = vsel %vm773, %v5207, 0.0
    %5329 = vadd.xlane.f32.xlu0 %v5328
    %v5330 = vpop.xlane.xlu0 %5329
    %v5331 = vsel %vm773, %v5209, 0.0
    %5332 = vadd.xlane.f32.xlu0 %v5331
    %v5333 = vpop.xlane.xlu0 %5332
    %v5334 = vsel %vm773, %v5211, 0.0
    %5335 = vadd.xlane.f32.xlu0 %v5334
    %v5336 = vpop.xlane.xlu0 %5335
    %v5337 = vsel %vm773, %v5213, 0.0
    %5338 = vadd.xlane.f32.xlu0 %v5337
    %v5339 = vpop.xlane.xlu0 %5338
    %v5340 = vsel %vm773, %v5215, 0.0
    %5341 = vadd.xlane.f32.xlu0 %v5340
    %v5342 = vpop.xlane.xlu0 %5341
    %v5343 = vsel %vm773, %v5217, 0.0
    %5344 = vadd.xlane.f32.xlu0 %v5343
    %v5345 = vpop.xlane.xlu0 %5344
    %v5378 = vlaneseq
    %v5379 = vshrl.u32 %v5378, 7
    %v5380 = vsub.s32 %v903, %v5379
    %v5381 = vrot.slane %v5252, %v5380
    %v5382 = vlaneseq
    %v5383 = vshrl.u32 %v5382, 7
    %v5384 = vsub.s32 %v908, %v5383
    %v5385 = vrot.slane %v5255, %v5384
    %v5386 = vsel %vm913, %v5385, %v5381
    %v5387 = vlaneseq
    %v5388 = vshrl.u32 %v5387, 7
    %v5389 = vsub.s32 %v903, %v5388
    %v5390 = vrot.slane %v5258, %v5389
    %v5391 = vlaneseq
    %v5392 = vshrl.u32 %v5391, 7
    %v5393 = vsub.s32 %v908, %v5392
    %v5394 = vrot.slane %v5261, %v5393
    %v5395 = vsel %vm913, %v5394, %v5390
    %v5396 = vlaneseq
    %v5397 = vshrl.u32 %v5396, 7
    %v5398 = vsub.s32 %v903, %v5397
    %v5399 = vrot.slane %v5264, %v5398
    %v5400 = vlaneseq
    %v5401 = vshrl.u32 %v5400, 7
    %v5402 = vsub.s32 %v908, %v5401
    %v5403 = vrot.slane %v5267, %v5402
    %v5404 = vsel %vm913, %v5403, %v5399
    %v5405 = vlaneseq
    %v5406 = vshrl.u32 %v5405, 7
    %v5407 = vsub.s32 %v903, %v5406
    %v5408 = vrot.slane %v5270, %v5407
    %v5409 = vlaneseq
    %v5410 = vshrl.u32 %v5409, 7
    %v5411 = vsub.s32 %v908, %v5410
    %v5412 = vrot.slane %v5273, %v5411
    %v5413 = vsel %vm913, %v5412, %v5408
    %v5414 = vlaneseq
    %v5415 = vshrl.u32 %v5414, 7
    %v5416 = vsub.s32 %v903, %v5415
    %v5417 = vrot.slane %v5276, %v5416
    %v5418 = vlaneseq
    %v5419 = vshrl.u32 %v5418, 7
    %v5420 = vsub.s32 %v908, %v5419
    %v5421 = vrot.slane %v5279, %v5420
    %v5422 = vsel %vm913, %v5421, %v5417
    %v5423 = vlaneseq
    %v5424 = vshrl.u32 %v5423, 7
    %v5425 = vsub.s32 %v903, %v5424
    %v5426 = vrot.slane %v5282, %v5425
    %v5427 = vlaneseq
    %v5428 = vshrl.u32 %v5427, 7
    %v5429 = vsub.s32 %v908, %v5428
    %v5430 = vrot.slane %v5285, %v5429
    %v5431 = vsel %vm913, %v5430, %v5426
    %v5432 = vlaneseq
    %v5433 = vshrl.u32 %v5432, 7
    %v5434 = vsub.s32 %v903, %v5433
    %v5435 = vrot.slane %v5288, %v5434
    %v5436 = vlaneseq
    %v5437 = vshrl.u32 %v5436, 7
    %v5438 = vsub.s32 %v908, %v5437
    %v5439 = vrot.slane %v5291, %v5438
    %v5440 = vsel %vm913, %v5439, %v5435
    %v5441 = vlaneseq
    %v5442 = vshrl.u32 %v5441, 7
    %v5443 = vsub.s32 %v903, %v5442
    %v5444 = vrot.slane %v5294, %v5443
    %v5445 = vlaneseq
    %v5446 = vshrl.u32 %v5445, 7
    %v5447 = vsub.s32 %v908, %v5446
    %v5448 = vrot.slane %v5297, %v5447
    %v5449 = vsel %vm913, %v5448, %v5444
    %v5450 = vlaneseq
    %v5451 = vshrl.u32 %v5450, 7
    %v5452 = vsub.s32 %v903, %v5451
    %v5453 = vrot.slane %v5300, %v5452
    %v5454 = vlaneseq
    %v5455 = vshrl.u32 %v5454, 7
    %v5456 = vsub.s32 %v908, %v5455
    %v5457 = vrot.slane %v5303, %v5456
    %v5458 = vsel %vm913, %v5457, %v5453
    %v5459 = vlaneseq
    %v5460 = vshrl.u32 %v5459, 7
    %v5461 = vsub.s32 %v903, %v5460
    %v5462 = vrot.slane %v5306, %v5461
    %v5463 = vlaneseq
    %v5464 = vshrl.u32 %v5463, 7
    %v5465 = vsub.s32 %v908, %v5464
    %v5466 = vrot.slane %v5309, %v5465
    %v5467 = vsel %vm913, %v5466, %v5462
    %v5468 = vlaneseq
    %v5469 = vshrl.u32 %v5468, 7
    %v5470 = vsub.s32 %v903, %v5469
    %v5471 = vrot.slane %v5312, %v5470
    %v5472 = vlaneseq
    %v5473 = vshrl.u32 %v5472, 7
    %v5474 = vsub.s32 %v908, %v5473
    %v5475 = vrot.slane %v5315, %v5474
    %v5476 = vsel %vm913, %v5475, %v5471
    %v5477 = vlaneseq
    %v5478 = vshrl.u32 %v5477, 7
    %v5479 = vsub.s32 %v903, %v5478
    %v5480 = vrot.slane %v5318, %v5479
    %v5481 = vlaneseq
    %v5482 = vshrl.u32 %v5481, 7
    %v5483 = vsub.s32 %v908, %v5482
    %v5484 = vrot.slane %v5321, %v5483
    %v5485 = vsel %vm913, %v5484, %v5480
    %v5486 = vlaneseq
    %v5487 = vshrl.u32 %v5486, 7
    %v5488 = vsub.s32 %v903, %v5487
    %v5489 = vrot.slane %v5324, %v5488
    %v5490 = vlaneseq
    %v5491 = vshrl.u32 %v5490, 7
    %v5492 = vsub.s32 %v908, %v5491
    %v5493 = vrot.slane %v5327, %v5492
    %v5494 = vsel %vm913, %v5493, %v5489
    %v5495 = vlaneseq
    %v5496 = vshrl.u32 %v5495, 7
    %v5497 = vsub.s32 %v903, %v5496
    %v5498 = vrot.slane %v5330, %v5497
    %v5499 = vlaneseq
    %v5500 = vshrl.u32 %v5499, 7
    %v5501 = vsub.s32 %v908, %v5500
    %v5502 = vrot.slane %v5333, %v5501
    %v5503 = vsel %vm913, %v5502, %v5498
    %v5504 = vlaneseq
    %v5505 = vshrl.u32 %v5504, 7
    %v5506 = vsub.s32 %v903, %v5505
    %v5507 = vrot.slane %v5336, %v5506
    %v5508 = vlaneseq
    %v5509 = vshrl.u32 %v5508, 7
    %v5510 = vsub.s32 %v908, %v5509
    %v5511 = vrot.slane %v5339, %v5510
    %v5512 = vsel %vm913, %v5511, %v5507
    %v5513 = vlaneseq
    %v5514 = vshrl.u32 %v5513, 7
    %v5515 = vsub.s32 %v903, %v5514
    %v5516 = vrot.slane %v5342, %v5515
    %v5517 = vlaneseq
    %v5518 = vshrl.u32 %v5517, 7
    %v5519 = vsub.s32 %v908, %v5518
    %v5520 = vrot.slane %v5345, %v5519
    %v5521 = vsel %vm913, %v5520, %v5516
    %v5522 = vsel %vm1050, %v5395, %v5386
    %v5523 = vsel %vm1052, %v5404, %v5522
    %v5524 = vsel %vm1054, %v5413, %v5523
    %v5525 = vsel %vm1056, %v5422, %v5524
    %v5526 = vsel %vm1058, %v5431, %v5525
    %v5527 = vsel %vm1060, %v5440, %v5526
    %v5528 = vsel %vm1062, %v5449, %v5527
    %v5529 = vsel %vm1050, %v5467, %v5458
    %v5530 = vsel %vm1052, %v5476, %v5529
    %v5531 = vsel %vm1054, %v5485, %v5530
    %v5532 = vsel %vm1056, %v5494, %v5531
    %v5533 = vsel %vm1058, %v5503, %v5532
    %v5534 = vsel %vm1060, %v5512, %v5533
    %v5535 = vsel %vm1062, %v5521, %v5534
    %v5538 = vsel %vm288, %v5528, -1e+30
    %v5539 = vsel %vm289, %v5535, -1e+30
    %v5540 = vsel %vm1075, %v5538, -inf
    %5541 = vmax.xlane.f32.xlu0 %v5540
    %v5542 = vpop.xlane.xlu0 %5541
    %v5543 = vsel %vm1075, %v5539, -inf
    %5544 = vmax.xlane.f32.xlu0 %v5543
    %v5545 = vpop.xlane.xlu0 %5544
    %v5546 = vsub.f32 %v5538, %v5542
    %v5547 = vsub.f32 %v5539, %v5545
    %v5548 = vmul.f32 %v5546, 1.442695
    %v5549 = vpow.pop %v5548
    %v5550 = vmul.f32 %v5547, 1.442695
    %v5551 = vpow.pop %v5550
    %v5552 = vsel %vm1075, %v5549, 0.0
    %5553 = vadd.xlane.f32.xlu0 %v5552
    %v5554 = vpop.xlane.xlu0 %5553
    %v5555 = vsel %vm1075, %v5551, 0.0
    %5556 = vadd.xlane.f32.xlu0 %v5555
    %v5557 = vpop.xlane.xlu0 %5556
    %v5558 = vrcp.pop %v5554
    %v5559 = vrcp.pop %v5557
    %v5560 = vmul.f32 %v5549, %v5558
    %v5561 = vmul.f32 %v5551, %v5559
    %v5564 = vcombine.high %v3456, %v3456
    %v5566 = vunpack.c.l.s4 1966171168
    %v5567 = vunpack.c.0.s8 %v5566
    %v5568 = vlaneseq
    %v5569 = vshrl.u32 %v5568, 7
    %v5570 = vsub.s32 %v5567, %v5569
    %v5571 = vrot.slane %v3456, %v5570
    %v5573 = vunpack.c.l.s4 1966171168
    %v5574 = vunpack.c.0.s8 %v5573
    %v5575 = vlaneseq
    %v5576 = vshrl.u32 %v5575, 7
    %v5577 = vsub.s32 %v5574, %v5576
    %v5578 = vrot.slane %v5564, %v5577
    %v5579 = vcombine.high %v5571, %v5571
    %v5580 = vcombine.high %v5578, %v5578
    %v5582 = vunpack.c.l.s4 1966171168
    %v5583 = vunpack.c.0.s8 %v5582
    %v5584 = vlaneseq
    %v5585 = vshrl.u32 %v5584, 7
    %v5586 = vsub.s32 %v5583, %v5585
    %v5587 = vrot.slane %v5571, %v5586
    %v5589 = vunpack.c.l.s4 1966171168
    %v5590 = vunpack.c.0.s8 %v5589
    %v5591 = vlaneseq
    %v5592 = vshrl.u32 %v5591, 7
    %v5593 = vsub.s32 %v5590, %v5592
    %v5594 = vrot.slane %v5578, %v5593
    %v5596 = vunpack.c.l.s4 1966171168
    %v5597 = vunpack.c.0.s8 %v5596
    %v5598 = vlaneseq
    %v5599 = vshrl.u32 %v5598, 7
    %v5600 = vsub.s32 %v5597, %v5599
    %v5601 = vrot.slane %v5579, %v5600
    %v5603 = vunpack.c.l.s4 1966171168
    %v5604 = vunpack.c.0.s8 %v5603
    %v5605 = vlaneseq
    %v5606 = vshrl.u32 %v5605, 7
    %v5607 = vsub.s32 %v5604, %v5606
    %v5608 = vrot.slane %v5580, %v5607
    %v5609 = vcombine.high %v5587, %v5587
    %v5610 = vcombine.high %v5594, %v5594
    %v5611 = vcombine.high %v5601, %v5601
    %v5612 = vcombine.high %v5608, %v5608
    %v5613 = vcombine.high %v3460, %v3460
    %v5615 = vunpack.c.l.s4 1966171168
    %v5616 = vunpack.c.0.s8 %v5615
    %v5617 = vlaneseq
    %v5618 = vshrl.u32 %v5617, 7
    %v5619 = vsub.s32 %v5616, %v5618
    %v5620 = vrot.slane %v3460, %v5619
    %v5622 = vunpack.c.l.s4 1966171168
    %v5623 = vunpack.c.0.s8 %v5622
    %v5624 = vlaneseq
    %v5625 = vshrl.u32 %v5624, 7
    %v5626 = vsub.s32 %v5623, %v5625
    %v5627 = vrot.slane %v5613, %v5626
    %v5628 = vcombine.high %v5620, %v5620
    %v5629 = vcombine.high %v5627, %v5627
    %v5631 = vunpack.c.l.s4 1966171168
    %v5632 = vunpack.c.0.s8 %v5631
    %v5633 = vlaneseq
    %v5634 = vshrl.u32 %v5633, 7
    %v5635 = vsub.s32 %v5632, %v5634
    %v5636 = vrot.slane %v5620, %v5635
    %v5638 = vunpack.c.l.s4 1966171168
    %v5639 = vunpack.c.0.s8 %v5638
    %v5640 = vlaneseq
    %v5641 = vshrl.u32 %v5640, 7
    %v5642 = vsub.s32 %v5639, %v5641
    %v5643 = vrot.slane %v5627, %v5642
    %v5645 = vunpack.c.l.s4 1966171168
    %v5646 = vunpack.c.0.s8 %v5645
    %v5647 = vlaneseq
    %v5648 = vshrl.u32 %v5647, 7
    %v5649 = vsub.s32 %v5646, %v5648
    %v5650 = vrot.slane %v5628, %v5649
    %v5652 = vunpack.c.l.s4 1966171168
    %v5653 = vunpack.c.0.s8 %v5652
    %v5654 = vlaneseq
    %v5655 = vshrl.u32 %v5654, 7
    %v5656 = vsub.s32 %v5653, %v5655
    %v5657 = vrot.slane %v5629, %v5656
    %v5658 = vcombine.high %v5636, %v5636
    %v5659 = vcombine.high %v5643, %v5643
    %v5660 = vcombine.high %v5650, %v5650
    %v5661 = vcombine.high %v5657, %v5657
    %v5662 = vlaneseq
    %v5663 = vshrl.u32 %v5662, 7
    %v5664 = vsub.s32 0, %v5663
    %v5665 = vrot.slane %v5587, %v5664
    %v5666 = vlaneseq
    %v5667 = vshrl.u32 %v5666, 7
    %v5668 = vsub.s32 0, %v5667
    %v5669 = vrot.slane %v5601, %v5668
    %v5670 = vlaneseq
    %v5671 = vshrl.u32 %v5670, 7
    %v5672 = vsub.s32 0, %v5671
    %v5673 = vrot.slane %v5609, %v5672
    %v5674 = vlaneseq
    %v5675 = vshrl.u32 %v5674, 7
    %v5676 = vsub.s32 0, %v5675
    %v5677 = vrot.slane %v5611, %v5676
    %v5678 = vlaneseq
    %v5679 = vshrl.u32 %v5678, 7
    %v5680 = vsub.s32 0, %v5679
    %v5681 = vrot.slane %v5594, %v5680
    %v5682 = vlaneseq
    %v5683 = vshrl.u32 %v5682, 7
    %v5684 = vsub.s32 0, %v5683
    %v5685 = vrot.slane %v5608, %v5684
    %v5686 = vlaneseq
    %v5687 = vshrl.u32 %v5686, 7
    %v5688 = vsub.s32 0, %v5687
    %v5689 = vrot.slane %v5610, %v5688
    %v5690 = vlaneseq
    %v5691 = vshrl.u32 %v5690, 7
    %v5692 = vsub.s32 0, %v5691
    %v5693 = vrot.slane %v5612, %v5692
    %v5694 = vlaneseq
    %v5695 = vshrl.u32 %v5694, 7
    %v5696 = vsub.s32 0, %v5695
    %v5697 = vrot.slane %v5636, %v5696
    %v5698 = vlaneseq
    %v5699 = vshrl.u32 %v5698, 7
    %v5700 = vsub.s32 0, %v5699
    %v5701 = vrot.slane %v5650, %v5700
    %v5702 = vlaneseq
    %v5703 = vshrl.u32 %v5702, 7
    %v5704 = vsub.s32 0, %v5703
    %v5705 = vrot.slane %v5658, %v5704
    %v5706 = vlaneseq
    %v5707 = vshrl.u32 %v5706, 7
    %v5708 = vsub.s32 0, %v5707
    %v5709 = vrot.slane %v5660, %v5708
    %v5710 = vlaneseq
    %v5711 = vshrl.u32 %v5710, 7
    %v5712 = vsub.s32 0, %v5711
    %v5713 = vrot.slane %v5643, %v5712
    %v5714 = vlaneseq
    %v5715 = vshrl.u32 %v5714, 7
    %v5716 = vsub.s32 0, %v5715
    %v5717 = vrot.slane %v5657, %v5716
    %v5718 = vlaneseq
    %v5719 = vshrl.u32 %v5718, 7
    %v5720 = vsub.s32 0, %v5719
    %v5721 = vrot.slane %v5659, %v5720
    %v5722 = vlaneseq
    %v5723 = vshrl.u32 %v5722, 7
    %v5724 = vsub.s32 0, %v5723
    %v5725 = vrot.slane %v5661, %v5724
    %v5742 = vadd.f32 %v5665, %v3389
    %v5743 = vadd.f32 %v5665, %v3393
    %v5744 = vadd.f32 %v5669, %v3389
    %v5745 = vadd.f32 %v5669, %v3393
    %v5746 = vadd.f32 %v5673, %v3389
    %v5747 = vadd.f32 %v5673, %v3393
    %v5748 = vadd.f32 %v5677, %v3389
    %v5749 = vadd.f32 %v5677, %v3393
    %v5750 = vadd.f32 %v5681, %v3389
    %v5751 = vadd.f32 %v5681, %v3393
    %v5752 = vadd.f32 %v5685, %v3389
    %v5753 = vadd.f32 %v5685, %v3393
    %v5754 = vadd.f32 %v5689, %v3389
    %v5755 = vadd.f32 %v5689, %v3393
    %v5756 = vadd.f32 %v5693, %v3389
    %v5757 = vadd.f32 %v5693, %v3393
    %v5758 = vadd.f32 %v5697, %v3389
    %v5759 = vadd.f32 %v5697, %v3393
    %v5760 = vadd.f32 %v5701, %v3389
    %v5761 = vadd.f32 %v5701, %v3393
    %v5762 = vadd.f32 %v5705, %v3389
    %v5763 = vadd.f32 %v5705, %v3393
    %v5764 = vadd.f32 %v5709, %v3389
    %v5765 = vadd.f32 %v5709, %v3393
    %v5766 = vadd.f32 %v5713, %v3389
    %v5767 = vadd.f32 %v5713, %v3393
    %v5768 = vadd.f32 %v5717, %v3389
    %v5769 = vadd.f32 %v5717, %v3393
    %v5770 = vadd.f32 %v5721, %v3389
    %v5771 = vadd.f32 %v5721, %v3393
    %v5772 = vadd.f32 %v5725, %v3389
    %v5773 = vadd.f32 %v5725, %v3393
    %vm5774 = vcmp.gt.f32.partialorder %v5742, 0.0
    %vm5775 = vcmp.gt.f32.partialorder %v5743, 0.0
    %vm5776 = vcmp.gt.f32.partialorder %v5744, 0.0
    %vm5777 = vcmp.gt.f32.partialorder %v5745, 0.0
    %vm5778 = vcmp.gt.f32.partialorder %v5746, 0.0
    %vm5779 = vcmp.gt.f32.partialorder %v5747, 0.0
    %vm5780 = vcmp.gt.f32.partialorder %v5748, 0.0
    %vm5781 = vcmp.gt.f32.partialorder %v5749, 0.0
    %vm5782 = vcmp.gt.f32.partialorder %v5750, 0.0
    %vm5783 = vcmp.gt.f32.partialorder %v5751, 0.0
    %vm5784 = vcmp.gt.f32.partialorder %v5752, 0.0
    %vm5785 = vcmp.gt.f32.partialorder %v5753, 0.0
    %vm5786 = vcmp.gt.f32.partialorder %v5754, 0.0
    %vm5787 = vcmp.gt.f32.partialorder %v5755, 0.0
    %vm5788 = vcmp.gt.f32.partialorder %v5756, 0.0
    %vm5789 = vcmp.gt.f32.partialorder %v5757, 0.0
    %vm5790 = vcmp.gt.f32.partialorder %v5758, 0.0
    %vm5791 = vcmp.gt.f32.partialorder %v5759, 0.0
    %vm5792 = vcmp.gt.f32.partialorder %v5760, 0.0
    %vm5793 = vcmp.gt.f32.partialorder %v5761, 0.0
    %vm5794 = vcmp.gt.f32.partialorder %v5762, 0.0
    %vm5795 = vcmp.gt.f32.partialorder %v5763, 0.0
    %vm5796 = vcmp.gt.f32.partialorder %v5764, 0.0
    %vm5797 = vcmp.gt.f32.partialorder %v5765, 0.0
    %vm5798 = vcmp.gt.f32.partialorder %v5766, 0.0
    %vm5799 = vcmp.gt.f32.partialorder %v5767, 0.0
    %vm5800 = vcmp.gt.f32.partialorder %v5768, 0.0
    %vm5801 = vcmp.gt.f32.partialorder %v5769, 0.0
    %vm5802 = vcmp.gt.f32.partialorder %v5770, 0.0
    %vm5803 = vcmp.gt.f32.partialorder %v5771, 0.0
    %vm5804 = vcmp.gt.f32.partialorder %v5772, 0.0
    %vm5805 = vcmp.gt.f32.partialorder %v5773, 0.0
    %v5806 = vmul.f32 %v5742, 0.2
    %v5807 = vmul.f32 %v5743, 0.2
    %v5808 = vmul.f32 %v5744, 0.2
    %v5809 = vmul.f32 %v5745, 0.2
    %v5810 = vmul.f32 %v5746, 0.2
    %v5811 = vmul.f32 %v5747, 0.2
    %v5812 = vmul.f32 %v5748, 0.2
    %v5813 = vmul.f32 %v5749, 0.2
    %v5814 = vmul.f32 %v5750, 0.2
    %v5815 = vmul.f32 %v5751, 0.2
    %v5816 = vmul.f32 %v5752, 0.2
    %v5817 = vmul.f32 %v5753, 0.2
    %v5818 = vmul.f32 %v5754, 0.2
    %v5819 = vmul.f32 %v5755, 0.2
    %v5820 = vmul.f32 %v5756, 0.2
    %v5821 = vmul.f32 %v5757, 0.2
    %v5822 = vmul.f32 %v5758, 0.2
    %v5823 = vmul.f32 %v5759, 0.2
    %v5824 = vmul.f32 %v5760, 0.2
    %v5825 = vmul.f32 %v5761, 0.2
    %v5826 = vmul.f32 %v5762, 0.2
    %v5827 = vmul.f32 %v5763, 0.2
    %v5828 = vmul.f32 %v5764, 0.2
    %v5829 = vmul.f32 %v5765, 0.2
    %v5830 = vmul.f32 %v5766, 0.2
    %v5831 = vmul.f32 %v5767, 0.2
    %v5832 = vmul.f32 %v5768, 0.2
    %v5833 = vmul.f32 %v5769, 0.2
    %v5834 = vmul.f32 %v5770, 0.2
    %v5835 = vmul.f32 %v5771, 0.2
    %v5836 = vmul.f32 %v5772, 0.2
    %v5837 = vmul.f32 %v5773, 0.2
    %v5838 = vsel %vm5774, %v5742, %v5806
    %v5839 = vsel %vm5775, %v5743, %v5807
    %v5840 = vsel %vm5776, %v5744, %v5808
    %v5841 = vsel %vm5777, %v5745, %v5809
    %v5842 = vsel %vm5778, %v5746, %v5810
    %v5843 = vsel %vm5779, %v5747, %v5811
    %v5844 = vsel %vm5780, %v5748, %v5812
    %v5845 = vsel %vm5781, %v5749, %v5813
    %v5846 = vsel %vm5782, %v5750, %v5814
    %v5847 = vsel %vm5783, %v5751, %v5815
    %v5848 = vsel %vm5784, %v5752, %v5816
    %v5849 = vsel %vm5785, %v5753, %v5817
    %v5850 = vsel %vm5786, %v5754, %v5818
    %v5851 = vsel %vm5787, %v5755, %v5819
    %v5852 = vsel %vm5788, %v5756, %v5820
    %v5853 = vsel %vm5789, %v5757, %v5821
    %v5854 = vsel %vm5790, %v5758, %v5822
    %v5855 = vsel %vm5791, %v5759, %v5823
    %v5856 = vsel %vm5792, %v5760, %v5824
    %v5857 = vsel %vm5793, %v5761, %v5825
    %v5858 = vsel %vm5794, %v5762, %v5826
    %v5859 = vsel %vm5795, %v5763, %v5827
    %v5860 = vsel %vm5796, %v5764, %v5828
    %v5861 = vsel %vm5797, %v5765, %v5829
    %v5862 = vsel %vm5798, %v5766, %v5830
    %v5863 = vsel %vm5799, %v5767, %v5831
    %v5864 = vsel %vm5800, %v5768, %v5832
    %v5865 = vsel %vm5801, %v5769, %v5833
    %v5866 = vsel %vm5802, %v5770, %v5834
    %v5867 = vsel %vm5803, %v5771, %v5835
    %v5868 = vsel %vm5804, %v5772, %v5836
    %v5869 = vsel %vm5805, %v5773, %v5837
    %v5870 = vld [vmem:[#allocation20 + $0x4] sm:$0x1]
    %v5871 = vlaneseq
    %v5872 = vshrl.u32 %v5871, 7
    %v5873 = vsub.s32 0, %v5872
    %v5874 = vrot.slane %v5870, %v5873
    %v5875 = vmul.f32 %v5838, %v5874
    %v5876 = vmul.f32 %v5839, %v5874
    %v5877 = vmul.f32 %v5840, %v5874
    %v5878 = vmul.f32 %v5841, %v5874
    %v5879 = vmul.f32 %v5842, %v5874
    %v5880 = vmul.f32 %v5843, %v5874
    %v5881 = vmul.f32 %v5844, %v5874
    %v5882 = vmul.f32 %v5845, %v5874
    %v5883 = vmul.f32 %v5846, %v5874
    %v5884 = vmul.f32 %v5847, %v5874
    %v5885 = vmul.f32 %v5848, %v5874
    %v5886 = vmul.f32 %v5849, %v5874
    %v5887 = vmul.f32 %v5850, %v5874
    %v5888 = vmul.f32 %v5851, %v5874
    %v5889 = vmul.f32 %v5852, %v5874
    %v5890 = vmul.f32 %v5853, %v5874
    %v5891 = vmul.f32 %v5854, %v5874
    %v5892 = vmul.f32 %v5855, %v5874
    %v5893 = vmul.f32 %v5856, %v5874
    %v5894 = vmul.f32 %v5857, %v5874
    %v5895 = vmul.f32 %v5858, %v5874
    %v5896 = vmul.f32 %v5859, %v5874
    %v5897 = vmul.f32 %v5860, %v5874
    %v5898 = vmul.f32 %v5861, %v5874
    %v5899 = vmul.f32 %v5862, %v5874
    %v5900 = vmul.f32 %v5863, %v5874
    %v5901 = vmul.f32 %v5864, %v5874
    %v5902 = vmul.f32 %v5865, %v5874
    %v5903 = vmul.f32 %v5866, %v5874
    %v5904 = vmul.f32 %v5867, %v5874
    %v5905 = vmul.f32 %v5868, %v5874
    %v5906 = vmul.f32 %v5869, %v5874
    %v5907 = vsel %vm773, %v5875, 0.0
    %5908 = vadd.xlane.f32.xlu0 %v5907
    %v5909 = vpop.xlane.xlu0 %5908
    %v5910 = vsel %vm773, %v5876, 0.0
    %5911 = vadd.xlane.f32.xlu0 %v5910
    %v5912 = vpop.xlane.xlu0 %5911
    %v5913 = vsel %vm773, %v5877, 0.0
    %5914 = vadd.xlane.f32.xlu0 %v5913
    %v5915 = vpop.xlane.xlu0 %5914
    %v5916 = vsel %vm773, %v5878, 0.0
    %5917 = vadd.xlane.f32.xlu0 %v5916
    %v5918 = vpop.xlane.xlu0 %5917
    %v5919 = vsel %vm773, %v5879, 0.0
    %5920 = vadd.xlane.f32.xlu0 %v5919
    %v5921 = vpop.xlane.xlu0 %5920
    %v5922 = vsel %vm773, %v5880, 0.0
    %5923 = vadd.xlane.f32.xlu0 %v5922
    %v5924 = vpop.xlane.xlu0 %5923
    %v5925 = vsel %vm773, %v5881, 0.0
    %5926 = vadd.xlane.f32.xlu0 %v5925
    %v5927 = vpop.xlane.xlu0 %5926
    %v5928 = vsel %vm773, %v5882, 0.0
    %5929 = vadd.xlane.f32.xlu0 %v5928
    %v5930 = vpop.xlane.xlu0 %5929
    %v5931 = vsel %vm773, %v5883, 0.0
    %5932 = vadd.xlane.f32.xlu0 %v5931
    %v5933 = vpop.xlane.xlu0 %5932
    %v5934 = vsel %vm773, %v5884, 0.0
    %5935 = vadd.xlane.f32.xlu0 %v5934
    %v5936 = vpop.xlane.xlu0 %5935
    %v5937 = vsel %vm773, %v5885, 0.0
    %5938 = vadd.xlane.f32.xlu0 %v5937
    %v5939 = vpop.xlane.xlu0 %5938
    %v5940 = vsel %vm773, %v5886, 0.0
    %5941 = vadd.xlane.f32.xlu0 %v5940
    %v5942 = vpop.xlane.xlu0 %5941
    %v5943 = vsel %vm773, %v5887, 0.0
    %5944 = vadd.xlane.f32.xlu0 %v5943
    %v5945 = vpop.xlane.xlu0 %5944
    %v5946 = vsel %vm773, %v5888, 0.0
    %5947 = vadd.xlane.f32.xlu0 %v5946
    %v5948 = vpop.xlane.xlu0 %5947
    %v5949 = vsel %vm773, %v5889, 0.0
    %5950 = vadd.xlane.f32.xlu0 %v5949
    %v5951 = vpop.xlane.xlu0 %5950
    %v5952 = vsel %vm773, %v5890, 0.0
    %5953 = vadd.xlane.f32.xlu0 %v5952
    %v5954 = vpop.xlane.xlu0 %5953
    %v5955 = vsel %vm773, %v5891, 0.0
    %5956 = vadd.xlane.f32.xlu0 %v5955
    %v5957 = vpop.xlane.xlu0 %5956
    %v5958 = vsel %vm773, %v5892, 0.0
    %5959 = vadd.xlane.f32.xlu0 %v5958
    %v5960 = vpop.xlane.xlu0 %5959
    %v5961 = vsel %vm773, %v5893, 0.0
    %5962 = vadd.xlane.f32.xlu0 %v5961
    %v5963 = vpop.xlane.xlu0 %5962
    %v5964 = vsel %vm773, %v5894, 0.0
    %5965 = vadd.xlane.f32.xlu0 %v5964
    %v5966 = vpop.xlane.xlu0 %5965
    %v5967 = vsel %vm773, %v5895, 0.0
    %5968 = vadd.xlane.f32.xlu0 %v5967
    %v5969 = vpop.xlane.xlu0 %5968
    %v5970 = vsel %vm773, %v5896, 0.0
    %5971 = vadd.xlane.f32.xlu0 %v5970
    %v5972 = vpop.xlane.xlu0 %5971
    %v5973 = vsel %vm773, %v5897, 0.0
    %5974 = vadd.xlane.f32.xlu0 %v5973
    %v5975 = vpop.xlane.xlu0 %5974
    %v5976 = vsel %vm773, %v5898, 0.0
    %5977 = vadd.xlane.f32.xlu0 %v5976
    %v5978 = vpop.xlane.xlu0 %5977
    %v5979 = vsel %vm773, %v5899, 0.0
    %5980 = vadd.xlane.f32.xlu0 %v5979
    %v5981 = vpop.xlane.xlu0 %5980
    %v5982 = vsel %vm773, %v5900, 0.0
    %5983 = vadd.xlane.f32.xlu0 %v5982
    %v5984 = vpop.xlane.xlu0 %5983
    %v5985 = vsel %vm773, %v5901, 0.0
    %5986 = vadd.xlane.f32.xlu0 %v5985
    %v5987 = vpop.xlane.xlu0 %5986
    %v5988 = vsel %vm773, %v5902, 0.0
    %5989 = vadd.xlane.f32.xlu0 %v5988
    %v5990 = vpop.xlane.xlu0 %5989
    %v5991 = vsel %vm773, %v5903, 0.0
    %5992 = vadd.xlane.f32.xlu0 %v5991
    %v5993 = vpop.xlane.xlu0 %5992
    %v5994 = vsel %vm773, %v5904, 0.0
    %5995 = vadd.xlane.f32.xlu0 %v5994
    %v5996 = vpop.xlane.xlu0 %5995
    %v5997 = vsel %vm773, %v5905, 0.0
    %5998 = vadd.xlane.f32.xlu0 %v5997
    %v5999 = vpop.xlane.xlu0 %5998
    %v6000 = vsel %vm773, %v5906, 0.0
    %6001 = vadd.xlane.f32.xlu0 %v6000
    %v6002 = vpop.xlane.xlu0 %6001
    %v6035 = vlaneseq
    %v6036 = vshrl.u32 %v6035, 7
    %v6037 = vsub.s32 %v903, %v6036
    %v6038 = vrot.slane %v5909, %v6037
    %v6039 = vlaneseq
    %v6040 = vshrl.u32 %v6039, 7
    %v6041 = vsub.s32 %v908, %v6040
    %v6042 = vrot.slane %v5912, %v6041
    %v6043 = vsel %vm913, %v6042, %v6038
    %v6044 = vlaneseq
    %v6045 = vshrl.u32 %v6044, 7
    %v6046 = vsub.s32 %v903, %v6045
    %v6047 = vrot.slane %v5915, %v6046
    %v6048 = vlaneseq
    %v6049 = vshrl.u32 %v6048, 7
    %v6050 = vsub.s32 %v908, %v6049
    %v6051 = vrot.slane %v5918, %v6050
    %v6052 = vsel %vm913, %v6051, %v6047
    %v6053 = vlaneseq
    %v6054 = vshrl.u32 %v6053, 7
    %v6055 = vsub.s32 %v903, %v6054
    %v6056 = vrot.slane %v5921, %v6055
    %v6057 = vlaneseq
    %v6058 = vshrl.u32 %v6057, 7
    %v6059 = vsub.s32 %v908, %v6058
    %v6060 = vrot.slane %v5924, %v6059
    %v6061 = vsel %vm913, %v6060, %v6056
    %v6062 = vlaneseq
    %v6063 = vshrl.u32 %v6062, 7
    %v6064 = vsub.s32 %v903, %v6063
    %v6065 = vrot.slane %v5927, %v6064
    %v6066 = vlaneseq
    %v6067 = vshrl.u32 %v6066, 7
    %v6068 = vsub.s32 %v908, %v6067
    %v6069 = vrot.slane %v5930, %v6068
    %v6070 = vsel %vm913, %v6069, %v6065
    %v6071 = vlaneseq
    %v6072 = vshrl.u32 %v6071, 7
    %v6073 = vsub.s32 %v903, %v6072
    %v6074 = vrot.slane %v5933, %v6073
    %v6075 = vlaneseq
    %v6076 = vshrl.u32 %v6075, 7
    %v6077 = vsub.s32 %v908, %v6076
    %v6078 = vrot.slane %v5936, %v6077
    %v6079 = vsel %vm913, %v6078, %v6074
    %v6080 = vlaneseq
    %v6081 = vshrl.u32 %v6080, 7
    %v6082 = vsub.s32 %v903, %v6081
    %v6083 = vrot.slane %v5939, %v6082
    %v6084 = vlaneseq
    %v6085 = vshrl.u32 %v6084, 7
    %v6086 = vsub.s32 %v908, %v6085
    %v6087 = vrot.slane %v5942, %v6086
    %v6088 = vsel %vm913, %v6087, %v6083
    %v6089 = vlaneseq
    %v6090 = vshrl.u32 %v6089, 7
    %v6091 = vsub.s32 %v903, %v6090
    %v6092 = vrot.slane %v5945, %v6091
    %v6093 = vlaneseq
    %v6094 = vshrl.u32 %v6093, 7
    %v6095 = vsub.s32 %v908, %v6094
    %v6096 = vrot.slane %v5948, %v6095
    %v6097 = vsel %vm913, %v6096, %v6092
    %v6098 = vlaneseq
    %v6099 = vshrl.u32 %v6098, 7
    %v6100 = vsub.s32 %v903, %v6099
    %v6101 = vrot.slane %v5951, %v6100
    %v6102 = vlaneseq
    %v6103 = vshrl.u32 %v6102, 7
    %v6104 = vsub.s32 %v908, %v6103
    %v6105 = vrot.slane %v5954, %v6104
    %v6106 = vsel %vm913, %v6105, %v6101
    %v6107 = vlaneseq
    %v6108 = vshrl.u32 %v6107, 7
    %v6109 = vsub.s32 %v903, %v6108
    %v6110 = vrot.slane %v5957, %v6109
    %v6111 = vlaneseq
    %v6112 = vshrl.u32 %v6111, 7
    %v6113 = vsub.s32 %v908, %v6112
    %v6114 = vrot.slane %v5960, %v6113
    %v6115 = vsel %vm913, %v6114, %v6110
    %v6116 = vlaneseq
    %v6117 = vshrl.u32 %v6116, 7
    %v6118 = vsub.s32 %v903, %v6117
    %v6119 = vrot.slane %v5963, %v6118
    %v6120 = vlaneseq
    %v6121 = vshrl.u32 %v6120, 7
    %v6122 = vsub.s32 %v908, %v6121
    %v6123 = vrot.slane %v5966, %v6122
    %v6124 = vsel %vm913, %v6123, %v6119
    %v6125 = vlaneseq
    %v6126 = vshrl.u32 %v6125, 7
    %v6127 = vsub.s32 %v903, %v6126
    %v6128 = vrot.slane %v5969, %v6127
    %v6129 = vlaneseq
    %v6130 = vshrl.u32 %v6129, 7
    %v6131 = vsub.s32 %v908, %v6130
    %v6132 = vrot.slane %v5972, %v6131
    %v6133 = vsel %vm913, %v6132, %v6128
    %v6134 = vlaneseq
    %v6135 = vshrl.u32 %v6134, 7
    %v6136 = vsub.s32 %v903, %v6135
    %v6137 = vrot.slane %v5975, %v6136
    %v6138 = vlaneseq
    %v6139 = vshrl.u32 %v6138, 7
    %v6140 = vsub.s32 %v908, %v6139
    %v6141 = vrot.slane %v5978, %v6140
    %v6142 = vsel %vm913, %v6141, %v6137
    %v6143 = vlaneseq
    %v6144 = vshrl.u32 %v6143, 7
    %v6145 = vsub.s32 %v903, %v6144
    %v6146 = vrot.slane %v5981, %v6145
    %v6147 = vlaneseq
    %v6148 = vshrl.u32 %v6147, 7
    %v6149 = vsub.s32 %v908, %v6148
    %v6150 = vrot.slane %v5984, %v6149
    %v6151 = vsel %vm913, %v6150, %v6146
    %v6152 = vlaneseq
    %v6153 = vshrl.u32 %v6152, 7
    %v6154 = vsub.s32 %v903, %v6153
    %v6155 = vrot.slane %v5987, %v6154
    %v6156 = vlaneseq
    %v6157 = vshrl.u32 %v6156, 7
    %v6158 = vsub.s32 %v908, %v6157
    %v6159 = vrot.slane %v5990, %v6158
    %v6160 = vsel %vm913, %v6159, %v6155
    %v6161 = vlaneseq
    %v6162 = vshrl.u32 %v6161, 7
    %v6163 = vsub.s32 %v903, %v6162
    %v6164 = vrot.slane %v5993, %v6163
    %v6165 = vlaneseq
    %v6166 = vshrl.u32 %v6165, 7
    %v6167 = vsub.s32 %v908, %v6166
    %v6168 = vrot.slane %v5996, %v6167
    %v6169 = vsel %vm913, %v6168, %v6164
    %v6170 = vlaneseq
    %v6171 = vshrl.u32 %v6170, 7
    %v6172 = vsub.s32 %v903, %v6171
    %v6173 = vrot.slane %v5999, %v6172
    %v6174 = vlaneseq
    %v6175 = vshrl.u32 %v6174, 7
    %v6176 = vsub.s32 %v908, %v6175
    %v6177 = vrot.slane %v6002, %v6176
    %v6178 = vsel %vm913, %v6177, %v6173
    %v6179 = vsel %vm1050, %v6052, %v6043
    %v6180 = vsel %vm1052, %v6061, %v6179
    %v6181 = vsel %vm1054, %v6070, %v6180
    %v6182 = vsel %vm1056, %v6079, %v6181
    %v6183 = vsel %vm1058, %v6088, %v6182
    %v6184 = vsel %vm1060, %v6097, %v6183
    %v6185 = vsel %vm1062, %v6106, %v6184
    %v6186 = vsel %vm1050, %v6124, %v6115
    %v6187 = vsel %vm1052, %v6133, %v6186
    %v6188 = vsel %vm1054, %v6142, %v6187
    %v6189 = vsel %vm1056, %v6151, %v6188
    %v6190 = vsel %vm1058, %v6160, %v6189
    %v6191 = vsel %vm1060, %v6169, %v6190
    %v6192 = vsel %vm1062, %v6178, %v6191
    %v6195 = vsel %vm288, %v6185, -1e+30
    %v6196 = vsel %vm289, %v6192, -1e+30
    %v6197 = vsel %vm1075, %v6195, -inf
    %6198 = vmax.xlane.f32.xlu0 %v6197
    %v6199 = vpop.xlane.xlu0 %6198
    %v6200 = vsel %vm1075, %v6196, -inf
    %6201 = vmax.xlane.f32.xlu0 %v6200
    %v6202 = vpop.xlane.xlu0 %6201
    %v6203 = vsub.f32 %v6195, %v6199
    %v6204 = vsub.f32 %v6196, %v6202
    %v6205 = vmul.f32 %v6203, 1.442695
    %v6206 = vpow.pop %v6205
    %v6207 = vmul.f32 %v6204, 1.442695
    %v6208 = vpow.pop %v6207
    %v6209 = vsel %vm1075, %v6206, 0.0
    %6210 = vadd.xlane.f32.xlu0 %v6209
    %v6211 = vpop.xlane.xlu0 %6210
    %v6212 = vsel %vm1075, %v6208, 0.0
    %6213 = vadd.xlane.f32.xlu0 %v6212
    %v6214 = vpop.xlane.xlu0 %6213
    %v6215 = vrcp.pop %v6211
    %v6216 = vrcp.pop %v6214
    %v6217 = vmul.f32 %v6206, %v6215
    %v6218 = vmul.f32 %v6208, %v6216
    %6221 = vrot.lane.b32.xlu0 %v4598, 16
    %v6222 = vpop.permute.xlu0 %6221
    %6223 = vrot.lane.b32.xlu0 %v4599, 16
    %v6224 = vpop.permute.xlu0 %6223
    %6229 = vrot.lane.b32.xlu0 %v5079, 32
    %v6230 = vpop.permute.xlu0 %6229
    %6231 = vrot.lane.b32.xlu0 %v5080, 32
    %v6232 = vpop.permute.xlu0 %6231
    %6237 = vrot.lane.b32.xlu0 %v5560, 48
    %v6238 = vpop.permute.xlu0 %6237
    %6239 = vrot.lane.b32.xlu0 %v5561, 48
    %v6240 = vpop.permute.xlu0 %6239
    %6245 = vrot.lane.b32.xlu0 %v6217, 64
    %v6246 = vpop.permute.xlu0 %6245
    %6247 = vrot.lane.b32.xlu0 %v6218, 64
    %v6248 = vpop.permute.xlu0 %6247
    %v6251 = vsel %vm1075, %v4117, %v6222
    %v6252 = vsel %vm1075, %v4118, %v6224
    %v6253 = vsel %vm773, %v6251, %v6230
    %v6254 = vsel %vm773, %v6252, %v6232
    %v6255 = vsel %vm3234, %v6253, %v6238
    %v6256 = vsel %vm3234, %v6254, %v6240
    %v6257 = vsel %vm3237, %v6255, %v6246
    %v6258 = vsel %vm3237, %v6256, %v6248
    %6261 = vrot.lane.b32.xlu0 %v3387, 96
    %v6262 = vpop.permute.xlu0 %6261
    %6263 = vrot.lane.b32.xlu0 %v3391, 96
    %v6264 = vpop.permute.xlu0 %6263
    %6267 = vrot.lane.b32.xlu0 %v3387, 64
    %v6268 = vpop.permute.xlu0 %6267
    %6269 = vrot.lane.b32.xlu0 %v3391, 64
    %v6270 = vpop.permute.xlu0 %6269
    %6273 = vrot.lane.b32.xlu0 %v3387, 32
    %v6274 = vpop.permute.xlu0 %6273
    %6275 = vrot.lane.b32.xlu0 %v3391, 32
    %v6276 = vpop.permute.xlu0 %6275
    %v6279 = vpack.c.bf16 %v6258, %v6257
    %v6280 = vpack.c.bf16 %v3391, %v3387
    %v6281 = vpack.c.bf16 %v6264, %v6262
    %v6282 = vpack.c.bf16 %v6270, %v6268
    %v6283 = vpack.c.bf16 %v6276, %v6274
    %v6284 = vpack.c.bf16 %v3393, %v3389
    %v6286 = vsel %vm3266, %v6279, 0
    %6288 = vmatprep.subr.bf16.mxu0 0
    %6289 = vmatpush1.bf16.msra.mxu0 %v6280
    %6290 = vmatprep.subr.bf16.mxu0 0
    %6291 = vmatpush1.bf16.msra.mxu0 %v6281
    %6292 = vmatprep.subr.bf16.mxu0 0
    %6293 = vmatpush1.bf16.msra.mxu0 %v6282
    %6294 = vmatprep.subr.bf16.mxu0 0
    %6295 = vmatpush1.bf16.msra.mxu0 %v6283
    %6296 = vmatprep.subr.bf16.mxu0 0
    %6297 = vmatpush1.bf16.msra.mxu0 %v6284
    %6298 = vmatprep.subr.bf16.mxu0 0
    %6299 = vmatpush1.bf16.msra.mxu0 0
    %6300 = vmatprep.subr.bf16.mxu0 0
    %6301 = vmatpush1.bf16.msra.mxu0 0
    %6302 = vmatprep.subr.bf16.mxu0 0
    %6303 = vmatpush1.bf16.msra.mxu0 0
    %6304 = vmatprep.subr.bf16.mxu0 0
    %6305 = vmatpush1.bf16.msra.mxu0 0
    %6306 = vmatprep.subr.bf16.mxu0 0
    %6307 = vmatpush1.bf16.msra.mxu0 0
    %6308 = vmatprep.subr.bf16.mxu0 0
    %6309 = vmatpush1.bf16.msra.mxu0 0
    %6310 = vmatprep.subr.bf16.mxu0 0
    %6311 = vmatpush1.bf16.msra.mxu0 0
    %6312 = vmatprep.subr.bf16.mxu0 0
    %6313 = vmatpush1.bf16.msra.mxu0 0
    %6314 = vmatprep.subr.bf16.mxu0 0
    %6315 = vmatpush1.bf16.msra.mxu0 0
    %6316 = vmatprep.subr.bf16.mxu0 0
    %6317 = vmatpush1.bf16.msra.mxu0 0
    %6318 = vmatprep.subr.bf16.mxu0 0
    %6319 = vmatpush1.bf16.msra.mxu0 0
    %6320 = vmatprep.mubr.bf16.mxu0 0
    %6321 = vmatmul.mubr.bf16.gmra.mrb[0].mxu0 %v6286
    %v6322 = vpop.f32.mrb[0].mxu0
    %v6323 = vadd.f32 0.0, %v6322
    %v6324 = vpop.f32.mrb[0].mxu0
    %v6325 = vpop.f32.mrb[0].mxu0
    %v6326 = vadd.f32 0.0, %v6325
    %v6327 = vpop.f32.mrb[0].mxu0
    %6328 = vdwg.mxu0
    %v6329 = vmul.f32 %v6323, 0.2
    %v6330 = vmul.f32 %v6326, 0.2
    %v6331 = vld [vmem:[#allocation22] sm:$0x1]
    %v6333 = vlaneseq
    %v6334 = vshrl.u32 %v6333, 7
    %v6335 = vsub.s32 0, %v6334
    %v6336 = vrot.slane %v6331, %v6335
    %v6338 = vadd.f32 %v6329, %v6336
    %v6339 = vadd.f32 %v6330, %v6336
    %v6340 = vmax.f32 %v6338, 0.0
    %v6341 = vmax.f32 %v6339, 0.0
    %v6342 = vpack.c.bf16 %v6341, %v6340
    %v6343 = vld [vmem:[%s15] sm:$0xff]
    %v6344 = vld [vmem:[%s15 + $0x8] sm:$0xff]
    %v6345 = vld [vmem:[%s15 + $0x10] sm:$0xff]
    %v6346 = vld [vmem:[%s15 + $0x18] sm:$0xff]
    %v6347 = vld [vmem:[%s15 + $0x20] sm:$0xff]
    %v6348 = vld [vmem:[%s15 + $0x28] sm:$0xff]
    %v6349 = vld [vmem:[%s15 + $0x30] sm:$0xff]
    %v6350 = vld [vmem:[%s15 + $0x38] sm:$0xff]
    %v6351 = vpack.c.bf16 %v6345, %v6343
    %v6352 = vpack.c.bf16 %v6346, %v6344
    %v6353 = vpack.c.bf16 %v6349, %v6347
    %v6354 = vpack.c.bf16 %v6350, %v6348
    %v6355 = vld [vmem:[%s16] sm:$0x3]
    %v6357 = vlaneseq
    %v6358 = vshrl.u32 %v6357, 7
    %v6359 = vsub.s32 0, %v6358
    %v6360 = vrot.slane %v6355, %v6359
    %v6361 = vlaneseq
    %v6362 = vshrl.u32 %v6361, 7
    %v6363 = vsub.s32 1, %v6362
    %v6364 = vrot.slane %v6355, %v6363
    %v6368 = vsel %vm773, %v6342, 0
    %6370 = vmatprep.subr.bf16.mxu0 %v6352
    %6371 = vmatpush1.bf16.msra.mxu0 %v6351
    %6372 = vmatprep.subr.bf16.mxu0 %v6354
    %6373 = vmatpush1.bf16.msra.mxu0 %v6353
    %6374 = vmatprep.subr.bf16.mxu0 0
    %6375 = vmatpush1.bf16.msra.mxu0 0
    %6376 = vmatprep.subr.bf16.mxu0 0
    %6377 = vmatpush1.bf16.msra.mxu0 0
    %6378 = vmatprep.subr.bf16.mxu0 0
    %6379 = vmatpush1.bf16.msra.mxu0 0
    %6380 = vmatprep.subr.bf16.mxu0 0
    %6381 = vmatpush1.bf16.msra.mxu0 0
    %6382 = vmatprep.subr.bf16.mxu0 0
    %6383 = vmatpush1.bf16.msra.mxu0 0
    %6384 = vmatprep.subr.bf16.mxu0 0
    %6385 = vmatpush1.bf16.msra.mxu0 0
    %6386 = vmatprep.subr.bf16.mxu0 0
    %6387 = vmatpush1.bf16.msra.mxu0 0
    %6388 = vmatprep.subr.bf16.mxu0 0
    %6389 = vmatpush1.bf16.msra.mxu0 0
    %6390 = vmatprep.subr.bf16.mxu0 0
    %6391 = vmatpush1.bf16.msra.mxu0 0
    %6392 = vmatprep.subr.bf16.mxu0 0
    %6393 = vmatpush1.bf16.msra.mxu0 0
    %6394 = vmatprep.subr.bf16.mxu0 0
    %6395 = vmatpush1.bf16.msra.mxu0 0
    %6396 = vmatprep.subr.bf16.mxu0 0
    %6397 = vmatpush1.bf16.msra.mxu0 0
    %6398 = vmatprep.subr.bf16.mxu0 0
    %6399 = vmatpush1.bf16.msra.mxu0 0
    %6400 = vmatprep.subr.bf16.mxu0 0
    %6401 = vmatpush1.bf16.msra.mxu0 0
    %6402 = vmatprep.mubr.bf16.mxu0 0
    %6403 = vmatmul.mubr.bf16.gmra.mrb[0].mxu0 %v6368
    %v6404 = vpop.f32.mrb[0].mxu0
    %v6405 = vadd.f32 %v6360, %v6404
    %v6406 = vpop.f32.mrb[0].mxu0
    %v6407 = vadd.f32 %v6364, %v6406
    %v6408 = vpop.f32.mrb[0].mxu0
    %v6409 = vadd.f32 %v6360, %v6408
    %v6410 = vpop.f32.mrb[0].mxu0
    %v6411 = vadd.f32 %v6364, %v6410
    %6412 = vdwg.mxu0
    %v6413 = vld [vmem:[#allocation23] sm:$0xff]
    %v6414 = vld [vmem:[#allocation23 + $0x8] sm:$0xff]
    %v6415 = vld [vmem:[#allocation23 + $0x10] sm:$0xff]
    %v6416 = vld [vmem:[#allocation23 + $0x18] sm:$0xff]
    %v6417 = vld [vmem:[#allocation23 + $0x20] sm:$0xff]
    %v6418 = vld [vmem:[#allocation23 + $0x28] sm:$0xff]
    %v6419 = vld [vmem:[#allocation23 + $0x30] sm:$0xff]
    %v6420 = vld [vmem:[#allocation23 + $0x38] sm:$0xff]
    %v6421 = vpack.c.bf16 %v6415, %v6413
    %v6422 = vpack.c.bf16 %v6416, %v6414
    %v6423 = vpack.c.bf16 %v6419, %v6417
    %v6424 = vpack.c.bf16 %v6420, %v6418
    %v6425 = vld [vmem:[#allocation25] sm:$0x3]
    %v6427 = vlaneseq
    %v6428 = vshrl.u32 %v6427, 7
    %v6429 = vsub.s32 0, %v6428
    %v6430 = vrot.slane %v6425, %v6429
    %v6431 = vlaneseq
    %v6432 = vshrl.u32 %v6431, 7
    %v6433 = vsub.s32 1, %v6432
    %v6434 = vrot.slane %v6425, %v6433
    %6437 = vmatprep.subr.bf16.mxu0 %v6422
    %6438 = vmatpush1.bf16.msra.mxu0 %v6421
    %6439 = vmatprep.subr.bf16.mxu0 %v6424
    %6440 = vmatpush1.bf16.msra.mxu0 %v6423
    %6441 = vmatprep.subr.bf16.mxu0 0
    %6442 = vmatpush1.bf16.msra.mxu0 0
    %6443 = vmatprep.subr.bf16.mxu0 0
    %6444 = vmatpush1.bf16.msra.mxu0 0
    %6445 = vmatprep.subr.bf16.mxu0 0
    %6446 = vmatpush1.bf16.msra.mxu0 0
    %6447 = vmatprep.subr.bf16.mxu0 0
    %6448 = vmatpush1.bf16.msra.mxu0 0
    %6449 = vmatprep.subr.bf16.mxu0 0
    %6450 = vmatpush1.bf16.msra.mxu0 0
    %6451 = vmatprep.subr.bf16.mxu0 0
    %6452 = vmatpush1.bf16.msra.mxu0 0
    %6453 = vmatprep.subr.bf16.mxu0 0
    %6454 = vmatpush1.bf16.msra.mxu0 0
    %6455 = vmatprep.subr.bf16.mxu0 0
    %6456 = vmatpush1.bf16.msra.mxu0 0
    %6457 = vmatprep.subr.bf16.mxu0 0
    %6458 = vmatpush1.bf16.msra.mxu0 0
    %6459 = vmatprep.subr.bf16.mxu0 0
    %6460 = vmatpush1.bf16.msra.mxu0 0
    %6461 = vmatprep.subr.bf16.mxu0 0
    %6462 = vmatpush1.bf16.msra.mxu0 0
    %6463 = vmatprep.subr.bf16.mxu0 0
    %6464 = vmatpush1.bf16.msra.mxu0 0
    %6465 = vmatprep.subr.bf16.mxu0 0
    %6466 = vmatpush1.bf16.msra.mxu0 0
    %6467 = vmatprep.subr.bf16.mxu0 0
    %6468 = vmatpush1.bf16.msra.mxu0 0
    %6469 = vmatprep.mubr.bf16.mxu0 0
    %6470 = vmatmul.mubr.bf16.gmra.mrb[0].mxu0 %v6368
    %v6471 = vpop.f32.mrb[0].mxu0
    %v6472 = vadd.f32 %v6430, %v6471
    %v6473 = vpop.f32.mrb[0].mxu0
    %v6474 = vadd.f32 %v6434, %v6473
    %v6475 = vpop.f32.mrb[0].mxu0
    %v6476 = vadd.f32 %v6430, %v6475
    %v6477 = vpop.f32.mrb[0].mxu0
    %v6478 = vadd.f32 %v6434, %v6477
    %6479 = vdwg.mxu0
    %v6482 = vcombine.high %v6472, %v6472
    %v6484 = vunpack.c.l.s4 1966171168
    %v6485 = vunpack.c.0.s8 %v6484
    %v6486 = vlaneseq
    %v6487 = vshrl.u32 %v6486, 7
    %v6488 = vsub.s32 %v6485, %v6487
    %v6489 = vrot.slane %v6472, %v6488
    %v6491 = vunpack.c.l.s4 1966171168
    %v6492 = vunpack.c.0.s8 %v6491
    %v6493 = vlaneseq
    %v6494 = vshrl.u32 %v6493, 7
    %v6495 = vsub.s32 %v6492, %v6494
    %v6496 = vrot.slane %v6482, %v6495
    %v6497 = vcombine.high %v6489, %v6489
    %v6498 = vcombine.high %v6496, %v6496
    %v6500 = vunpack.c.l.s4 1966171168
    %v6501 = vunpack.c.0.s8 %v6500
    %v6502 = vlaneseq
    %v6503 = vshrl.u32 %v6502, 7
    %v6504 = vsub.s32 %v6501, %v6503
    %v6505 = vrot.slane %v6489, %v6504
    %v6507 = vunpack.c.l.s4 1966171168
    %v6508 = vunpack.c.0.s8 %v6507
    %v6509 = vlaneseq
    %v6510 = vshrl.u32 %v6509, 7
    %v6511 = vsub.s32 %v6508, %v6510
    %v6512 = vrot.slane %v6496, %v6511
    %v6514 = vunpack.c.l.s4 1966171168
    %v6515 = vunpack.c.0.s8 %v6514
    %v6516 = vlaneseq
    %v6517 = vshrl.u32 %v6516, 7
    %v6518 = vsub.s32 %v6515, %v6517
    %v6519 = vrot.slane %v6497, %v6518
    %v6521 = vunpack.c.l.s4 1966171168
    %v6522 = vunpack.c.0.s8 %v6521
    %v6523 = vlaneseq
    %v6524 = vshrl.u32 %v6523, 7
    %v6525 = vsub.s32 %v6522, %v6524
    %v6526 = vrot.slane %v6498, %v6525
    %v6527 = vcombine.high %v6505, %v6505
    %v6528 = vcombine.high %v6512, %v6512
    %v6529 = vcombine.high %v6519, %v6519
    %v6530 = vcombine.high %v6526, %v6526
    %v6531 = vcombine.high %v6476, %v6476
    %v6533 = vunpack.c.l.s4 1966171168
    %v6534 = vunpack.c.0.s8 %v6533
    %v6535 = vlaneseq
    %v6536 = vshrl.u32 %v6535, 7
    %v6537 = vsub.s32 %v6534, %v6536
    %v6538 = vrot.slane %v6476, %v6537
    %v6540 = vunpack.c.l.s4 1966171168
    %v6541 = vunpack.c.0.s8 %v6540
    %v6542 = vlaneseq
    %v6543 = vshrl.u32 %v6542, 7
    %v6544 = vsub.s32 %v6541, %v6543
    %v6545 = vrot.slane %v6531, %v6544
    %v6546 = vcombine.high %v6538, %v6538
    %v6547 = vcombine.high %v6545, %v6545
    %v6549 = vunpack.c.l.s4 1966171168
    %v6550 = vunpack.c.0.s8 %v6549
    %v6551 = vlaneseq
    %v6552 = vshrl.u32 %v6551, 7
    %v6553 = vsub.s32 %v6550, %v6552
    %v6554 = vrot.slane %v6538, %v6553
    %v6556 = vunpack.c.l.s4 1966171168
    %v6557 = vunpack.c.0.s8 %v6556
    %v6558 = vlaneseq
    %v6559 = vshrl.u32 %v6558, 7
    %v6560 = vsub.s32 %v6557, %v6559
    %v6561 = vrot.slane %v6545, %v6560
    %v6563 = vunpack.c.l.s4 1966171168
    %v6564 = vunpack.c.0.s8 %v6563
    %v6565 = vlaneseq
    %v6566 = vshrl.u32 %v6565, 7
    %v6567 = vsub.s32 %v6564, %v6566
    %v6568 = vrot.slane %v6546, %v6567
    %v6570 = vunpack.c.l.s4 1966171168
    %v6571 = vunpack.c.0.s8 %v6570
    %v6572 = vlaneseq
    %v6573 = vshrl.u32 %v6572, 7
    %v6574 = vsub.s32 %v6571, %v6573
    %v6575 = vrot.slane %v6547, %v6574
    %v6576 = vcombine.high %v6554, %v6554
    %v6577 = vcombine.high %v6561, %v6561
    %v6578 = vcombine.high %v6568, %v6568
    %v6579 = vcombine.high %v6575, %v6575
    %v6580 = vlaneseq
    %v6581 = vshrl.u32 %v6580, 7
    %v6582 = vsub.s32 0, %v6581
    %v6583 = vrot.slane %v6505, %v6582
    %v6584 = vlaneseq
    %v6585 = vshrl.u32 %v6584, 7
    %v6586 = vsub.s32 0, %v6585
    %v6587 = vrot.slane %v6519, %v6586
    %v6588 = vlaneseq
    %v6589 = vshrl.u32 %v6588, 7
    %v6590 = vsub.s32 0, %v6589
    %v6591 = vrot.slane %v6527, %v6590
    %v6592 = vlaneseq
    %v6593 = vshrl.u32 %v6592, 7
    %v6594 = vsub.s32 0, %v6593
    %v6595 = vrot.slane %v6529, %v6594
    %v6596 = vlaneseq
    %v6597 = vshrl.u32 %v6596, 7
    %v6598 = vsub.s32 0, %v6597
    %v6599 = vrot.slane %v6512, %v6598
    %v6600 = vlaneseq
    %v6601 = vshrl.u32 %v6600, 7
    %v6602 = vsub.s32 0, %v6601
    %v6603 = vrot.slane %v6526, %v6602
    %v6604 = vlaneseq
    %v6605 = vshrl.u32 %v6604, 7
    %v6606 = vsub.s32 0, %v6605
    %v6607 = vrot.slane %v6528, %v6606
    %v6608 = vlaneseq
    %v6609 = vshrl.u32 %v6608, 7
    %v6610 = vsub.s32 0, %v6609
    %v6611 = vrot.slane %v6530, %v6610
    %v6612 = vlaneseq
    %v6613 = vshrl.u32 %v6612, 7
    %v6614 = vsub.s32 0, %v6613
    %v6615 = vrot.slane %v6554, %v6614
    %v6616 = vlaneseq
    %v6617 = vshrl.u32 %v6616, 7
    %v6618 = vsub.s32 0, %v6617
    %v6619 = vrot.slane %v6568, %v6618
    %v6620 = vlaneseq
    %v6621 = vshrl.u32 %v6620, 7
    %v6622 = vsub.s32 0, %v6621
    %v6623 = vrot.slane %v6576, %v6622
    %v6624 = vlaneseq
    %v6625 = vshrl.u32 %v6624, 7
    %v6626 = vsub.s32 0, %v6625
    %v6627 = vrot.slane %v6578, %v6626
    %v6628 = vlaneseq
    %v6629 = vshrl.u32 %v6628, 7
    %v6630 = vsub.s32 0, %v6629
    %v6631 = vrot.slane %v6561, %v6630
    %v6632 = vlaneseq
    %v6633 = vshrl.u32 %v6632, 7
    %v6634 = vsub.s32 0, %v6633
    %v6635 = vrot.slane %v6575, %v6634
    %v6636 = vlaneseq
    %v6637 = vshrl.u32 %v6636, 7
    %v6638 = vsub.s32 0, %v6637
    %v6639 = vrot.slane %v6577, %v6638
    %v6640 = vlaneseq
    %v6641 = vshrl.u32 %v6640, 7
    %v6642 = vsub.s32 0, %v6641
    %v6643 = vrot.slane %v6579, %v6642
    %v6660 = vadd.f32 %v6583, %v6405
    %v6661 = vadd.f32 %v6583, %v6409
    %v6662 = vadd.f32 %v6587, %v6405
    %v6663 = vadd.f32 %v6587, %v6409
    %v6664 = vadd.f32 %v6591, %v6405
    %v6665 = vadd.f32 %v6591, %v6409
    %v6666 = vadd.f32 %v6595, %v6405
    %v6667 = vadd.f32 %v6595, %v6409
    %v6668 = vadd.f32 %v6599, %v6405
    %v6669 = vadd.f32 %v6599, %v6409
    %v6670 = vadd.f32 %v6603, %v6405
    %v6671 = vadd.f32 %v6603, %v6409
    %v6672 = vadd.f32 %v6607, %v6405
    %v6673 = vadd.f32 %v6607, %v6409
    %v6674 = vadd.f32 %v6611, %v6405
    %v6675 = vadd.f32 %v6611, %v6409
    %v6676 = vadd.f32 %v6615, %v6405
    %v6677 = vadd.f32 %v6615, %v6409
    %v6678 = vadd.f32 %v6619, %v6405
    %v6679 = vadd.f32 %v6619, %v6409
    %v6680 = vadd.f32 %v6623, %v6405
    %v6681 = vadd.f32 %v6623, %v6409
    %v6682 = vadd.f32 %v6627, %v6405
    %v6683 = vadd.f32 %v6627, %v6409
    %v6684 = vadd.f32 %v6631, %v6405
    %v6685 = vadd.f32 %v6631, %v6409
    %v6686 = vadd.f32 %v6635, %v6405
    %v6687 = vadd.f32 %v6635, %v6409
    %v6688 = vadd.f32 %v6639, %v6405
    %v6689 = vadd.f32 %v6639, %v6409
    %v6690 = vadd.f32 %v6643, %v6405
    %v6691 = vadd.f32 %v6643, %v6409
    %vm6692 = vcmp.gt.f32.partialorder %v6660, 0.0
    %vm6693 = vcmp.gt.f32.partialorder %v6661, 0.0
    %vm6694 = vcmp.gt.f32.partialorder %v6662, 0.0
    %vm6695 = vcmp.gt.f32.partialorder %v6663, 0.0
    %vm6696 = vcmp.gt.f32.partialorder %v6664, 0.0
    %vm6697 = vcmp.gt.f32.partialorder %v6665, 0.0
    %vm6698 = vcmp.gt.f32.partialorder %v6666, 0.0
    %vm6699 = vcmp.gt.f32.partialorder %v6667, 0.0
    %vm6700 = vcmp.gt.f32.partialorder %v6668, 0.0
    %vm6701 = vcmp.gt.f32.partialorder %v6669, 0.0
    %vm6702 = vcmp.gt.f32.partialorder %v6670, 0.0
    %vm6703 = vcmp.gt.f32.partialorder %v6671, 0.0
    %vm6704 = vcmp.gt.f32.partialorder %v6672, 0.0
    %vm6705 = vcmp.gt.f32.partialorder %v6673, 0.0
    %vm6706 = vcmp.gt.f32.partialorder %v6674, 0.0
    %vm6707 = vcmp.gt.f32.partialorder %v6675, 0.0
    %vm6708 = vcmp.gt.f32.partialorder %v6676, 0.0
    %vm6709 = vcmp.gt.f32.partialorder %v6677, 0.0
    %vm6710 = vcmp.gt.f32.partialorder %v6678, 0.0
    %vm6711 = vcmp.gt.f32.partialorder %v6679, 0.0
    %vm6712 = vcmp.gt.f32.partialorder %v6680, 0.0
    %vm6713 = vcmp.gt.f32.partialorder %v6681, 0.0
    %vm6714 = vcmp.gt.f32.partialorder %v6682, 0.0
    %vm6715 = vcmp.gt.f32.partialorder %v6683, 0.0
    %vm6716 = vcmp.gt.f32.partialorder %v6684, 0.0
    %vm6717 = vcmp.gt.f32.partialorder %v6685, 0.0
    %vm6718 = vcmp.gt.f32.partialorder %v6686, 0.0
    %vm6719 = vcmp.gt.f32.partialorder %v6687, 0.0
    %vm6720 = vcmp.gt.f32.partialorder %v6688, 0.0
    %vm6721 = vcmp.gt.f32.partialorder %v6689, 0.0
    %vm6722 = vcmp.gt.f32.partialorder %v6690, 0.0
    %vm6723 = vcmp.gt.f32.partialorder %v6691, 0.0
    %v6724 = vmul.f32 %v6660, 0.2
    %v6725 = vmul.f32 %v6661, 0.2
    %v6726 = vmul.f32 %v6662, 0.2
    %v6727 = vmul.f32 %v6663, 0.2
    %v6728 = vmul.f32 %v6664, 0.2
    %v6729 = vmul.f32 %v6665, 0.2
    %v6730 = vmul.f32 %v6666, 0.2
    %v6731 = vmul.f32 %v6667, 0.2
    %v6732 = vmul.f32 %v6668, 0.2
    %v6733 = vmul.f32 %v6669, 0.2
    %v6734 = vmul.f32 %v6670, 0.2
    %v6735 = vmul.f32 %v6671, 0.2
    %v6736 = vmul.f32 %v6672, 0.2
    %v6737 = vmul.f32 %v6673, 0.2
    %v6738 = vmul.f32 %v6674, 0.2
    %v6739 = vmul.f32 %v6675, 0.2
    %v6740 = vmul.f32 %v6676, 0.2
    %v6741 = vmul.f32 %v6677, 0.2
    %v6742 = vmul.f32 %v6678, 0.2
    %v6743 = vmul.f32 %v6679, 0.2
    %v6744 = vmul.f32 %v6680, 0.2
    %v6745 = vmul.f32 %v6681, 0.2
    %v6746 = vmul.f32 %v6682, 0.2
    %v6747 = vmul.f32 %v6683, 0.2
    %v6748 = vmul.f32 %v6684, 0.2
    %v6749 = vmul.f32 %v6685, 0.2
    %v6750 = vmul.f32 %v6686, 0.2
    %v6751 = vmul.f32 %v6687, 0.2
    %v6752 = vmul.f32 %v6688, 0.2
    %v6753 = vmul.f32 %v6689, 0.2
    %v6754 = vmul.f32 %v6690, 0.2
    %v6755 = vmul.f32 %v6691, 0.2
    %v6756 = vsel %vm6692, %v6660, %v6724
    %v6757 = vsel %vm6693, %v6661, %v6725
    %v6758 = vsel %vm6694, %v6662, %v6726
    %v6759 = vsel %vm6695, %v6663, %v6727
    %v6760 = vsel %vm6696, %v6664, %v6728
    %v6761 = vsel %vm6697, %v6665, %v6729
    %v6762 = vsel %vm6698, %v6666, %v6730
    %v6763 = vsel %vm6699, %v6667, %v6731
    %v6764 = vsel %vm6700, %v6668, %v6732
    %v6765 = vsel %vm6701, %v6669, %v6733
    %v6766 = vsel %vm6702, %v6670, %v6734
    %v6767 = vsel %vm6703, %v6671, %v6735
    %v6768 = vsel %vm6704, %v6672, %v6736
    %v6769 = vsel %vm6705, %v6673, %v6737
    %v6770 = vsel %vm6706, %v6674, %v6738
    %v6771 = vsel %vm6707, %v6675, %v6739
    %v6772 = vsel %vm6708, %v6676, %v6740
    %v6773 = vsel %vm6709, %v6677, %v6741
    %v6774 = vsel %vm6710, %v6678, %v6742
    %v6775 = vsel %vm6711, %v6679, %v6743
    %v6776 = vsel %vm6712, %v6680, %v6744
    %v6777 = vsel %vm6713, %v6681, %v6745
    %v6778 = vsel %vm6714, %v6682, %v6746
    %v6779 = vsel %vm6715, %v6683, %v6747
    %v6780 = vsel %vm6716, %v6684, %v6748
    %v6781 = vsel %vm6717, %v6685, %v6749
    %v6782 = vsel %vm6718, %v6686, %v6750
    %v6783 = vsel %vm6719, %v6687, %v6751
    %v6784 = vsel %vm6720, %v6688, %v6752
    %v6785 = vsel %vm6721, %v6689, %v6753
    %v6786 = vsel %vm6722, %v6690, %v6754
    %v6787 = vsel %vm6723, %v6691, %v6755
    %v6788 = vld [vmem:[#allocation26] sm:$0x1]
    %v6789 = vlaneseq
    %v6790 = vshrl.u32 %v6789, 7
    %v6791 = vsub.s32 0, %v6790
    %v6792 = vrot.slane %v6788, %v6791
    %v6793 = vmul.f32 %v6756, %v6792
    %v6794 = vmul.f32 %v6757, %v6792
    %v6795 = vmul.f32 %v6758, %v6792
    %v6796 = vmul.f32 %v6759, %v6792
    %v6797 = vmul.f32 %v6760, %v6792
    %v6798 = vmul.f32 %v6761, %v6792
    %v6799 = vmul.f32 %v6762, %v6792
    %v6800 = vmul.f32 %v6763, %v6792
    %v6801 = vmul.f32 %v6764, %v6792
    %v6802 = vmul.f32 %v6765, %v6792
    %v6803 = vmul.f32 %v6766, %v6792
    %v6804 = vmul.f32 %v6767, %v6792
    %v6805 = vmul.f32 %v6768, %v6792
    %v6806 = vmul.f32 %v6769, %v6792
    %v6807 = vmul.f32 %v6770, %v6792
    %v6808 = vmul.f32 %v6771, %v6792
    %v6809 = vmul.f32 %v6772, %v6792
    %v6810 = vmul.f32 %v6773, %v6792
    %v6811 = vmul.f32 %v6774, %v6792
    %v6812 = vmul.f32 %v6775, %v6792
    %v6813 = vmul.f32 %v6776, %v6792
    %v6814 = vmul.f32 %v6777, %v6792
    %v6815 = vmul.f32 %v6778, %v6792
    %v6816 = vmul.f32 %v6779, %v6792
    %v6817 = vmul.f32 %v6780, %v6792
    %v6818 = vmul.f32 %v6781, %v6792
    %v6819 = vmul.f32 %v6782, %v6792
    %v6820 = vmul.f32 %v6783, %v6792
    %v6821 = vmul.f32 %v6784, %v6792
    %v6822 = vmul.f32 %v6785, %v6792
    %v6823 = vmul.f32 %v6786, %v6792
    %v6824 = vmul.f32 %v6787, %v6792
    %v6825 = vsel %vm773, %v6793, 0.0
    %6826 = vadd.xlane.f32.xlu0 %v6825
    %v6827 = vpop.xlane.xlu0 %6826
    %v6828 = vsel %vm773, %v6794, 0.0
    %6829 = vadd.xlane.f32.xlu0 %v6828
    %v6830 = vpop.xlane.xlu0 %6829
    %v6831 = vsel %vm773, %v6795, 0.0
    %6832 = vadd.xlane.f32.xlu0 %v6831
    %v6833 = vpop.xlane.xlu0 %6832
    %v6834 = vsel %vm773, %v6796, 0.0
    %6835 = vadd.xlane.f32.xlu0 %v6834
    %v6836 = vpop.xlane.xlu0 %6835
    %v6837 = vsel %vm773, %v6797, 0.0
    %6838 = vadd.xlane.f32.xlu0 %v6837
    %v6839 = vpop.xlane.xlu0 %6838
    %v6840 = vsel %vm773, %v6798, 0.0
    %6841 = vadd.xlane.f32.xlu0 %v6840
    %v6842 = vpop.xlane.xlu0 %6841
    %v6843 = vsel %vm773, %v6799, 0.0
    %6844 = vadd.xlane.f32.xlu0 %v6843
    %v6845 = vpop.xlane.xlu0 %6844
    %v6846 = vsel %vm773, %v6800, 0.0
    %6847 = vadd.xlane.f32.xlu0 %v6846
    %v6848 = vpop.xlane.xlu0 %6847
    %v6849 = vsel %vm773, %v6801, 0.0
    %6850 = vadd.xlane.f32.xlu0 %v6849
    %v6851 = vpop.xlane.xlu0 %6850
    %v6852 = vsel %vm773, %v6802, 0.0
    %6853 = vadd.xlane.f32.xlu0 %v6852
    %v6854 = vpop.xlane.xlu0 %6853
    %v6855 = vsel %vm773, %v6803, 0.0
    %6856 = vadd.xlane.f32.xlu0 %v6855
    %v6857 = vpop.xlane.xlu0 %6856
    %v6858 = vsel %vm773, %v6804, 0.0
    %6859 = vadd.xlane.f32.xlu0 %v6858
    %v6860 = vpop.xlane.xlu0 %6859
    %v6861 = vsel %vm773, %v6805, 0.0
    %6862 = vadd.xlane.f32.xlu0 %v6861
    %v6863 = vpop.xlane.xlu0 %6862
    %v6864 = vsel %vm773, %v6806, 0.0
    %6865 = vadd.xlane.f32.xlu0 %v6864
    %v6866 = vpop.xlane.xlu0 %6865
    %v6867 = vsel %vm773, %v6807, 0.0
    %6868 = vadd.xlane.f32.xlu0 %v6867
    %v6869 = vpop.xlane.xlu0 %6868
    %v6870 = vsel %vm773, %v6808, 0.0
    %6871 = vadd.xlane.f32.xlu0 %v6870
    %v6872 = vpop.xlane.xlu0 %6871
    %v6873 = vsel %vm773, %v6809, 0.0
    %6874 = vadd.xlane.f32.xlu0 %v6873
    %v6875 = vpop.xlane.xlu0 %6874
    %v6876 = vsel %vm773, %v6810, 0.0
    %6877 = vadd.xlane.f32.xlu0 %v6876
    %v6878 = vpop.xlane.xlu0 %6877
    %v6879 = vsel %vm773, %v6811, 0.0
    %6880 = vadd.xlane.f32.xlu0 %v6879
    %v6881 = vpop.xlane.xlu0 %6880
    %v6882 = vsel %vm773, %v6812, 0.0
    %6883 = vadd.xlane.f32.xlu0 %v6882
    %v6884 = vpop.xlane.xlu0 %6883
    %v6885 = vsel %vm773, %v6813, 0.0
    %6886 = vadd.xlane.f32.xlu0 %v6885
    %v6887 = vpop.xlane.xlu0 %6886
    %v6888 = vsel %vm773, %v6814, 0.0
    %6889 = vadd.xlane.f32.xlu0 %v6888
    %v6890 = vpop.xlane.xlu0 %6889
    %v6891 = vsel %vm773, %v6815, 0.0
    %6892 = vadd.xlane.f32.xlu0 %v6891
    %v6893 = vpop.xlane.xlu0 %6892
    %v6894 = vsel %vm773, %v6816, 0.0
    %6895 = vadd.xlane.f32.xlu0 %v6894
    %v6896 = vpop.xlane.xlu0 %6895
    %v6897 = vsel %vm773, %v6817, 0.0
    %6898 = vadd.xlane.f32.xlu0 %v6897
    %v6899 = vpop.xlane.xlu0 %6898
    %v6900 = vsel %vm773, %v6818, 0.0
    %6901 = vadd.xlane.f32.xlu0 %v6900
    %v6902 = vpop.xlane.xlu0 %6901
    %v6903 = vsel %vm773, %v6819, 0.0
    %6904 = vadd.xlane.f32.xlu0 %v6903
    %v6905 = vpop.xlane.xlu0 %6904
    %v6906 = vsel %vm773, %v6820, 0.0
    %6907 = vadd.xlane.f32.xlu0 %v6906
    %v6908 = vpop.xlane.xlu0 %6907
    %v6909 = vsel %vm773, %v6821, 0.0
    %6910 = vadd.xlane.f32.xlu0 %v6909
    %v6911 = vpop.xlane.xlu0 %6910
    %v6912 = vsel %vm773, %v6822, 0.0
    %6913 = vadd.xlane.f32.xlu0 %v6912
    %v6914 = vpop.xlane.xlu0 %6913
    %v6915 = vsel %vm773, %v6823, 0.0
    %6916 = vadd.xlane.f32.xlu0 %v6915
    %v6917 = vpop.xlane.xlu0 %6916
    %v6918 = vsel %vm773, %v6824, 0.0
    %6919 = vadd.xlane.f32.xlu0 %v6918
    %v6920 = vpop.xlane.xlu0 %6919
    %v6953 = vlaneseq
    %v6954 = vshrl.u32 %v6953, 7
    %v6955 = vsub.s32 %v903, %v6954
    %v6956 = vrot.slane %v6827, %v6955
    %v6957 = vlaneseq
    %v6958 = vshrl.u32 %v6957, 7
    %v6959 = vsub.s32 %v908, %v6958
    %v6960 = vrot.slane %v6830, %v6959
    %v6961 = vsel %vm913, %v6960, %v6956
    %v6962 = vlaneseq
    %v6963 = vshrl.u32 %v6962, 7
    %v6964 = vsub.s32 %v903, %v6963
    %v6965 = vrot.slane %v6833, %v6964
    %v6966 = vlaneseq
    %v6967 = vshrl.u32 %v6966, 7
    %v6968 = vsub.s32 %v908, %v6967
    %v6969 = vrot.slane %v6836, %v6968
    %v6970 = vsel %vm913, %v6969, %v6965
    %v6971 = vlaneseq
    %v6972 = vshrl.u32 %v6971, 7
    %v6973 = vsub.s32 %v903, %v6972
    %v6974 = vrot.slane %v6839, %v6973
    %v6975 = vlaneseq
    %v6976 = vshrl.u32 %v6975, 7
    %v6977 = vsub.s32 %v908, %v6976
    %v6978 = vrot.slane %v6842, %v6977
    %v6979 = vsel %vm913, %v6978, %v6974
    %v6980 = vlaneseq
    %v6981 = vshrl.u32 %v6980, 7
    %v6982 = vsub.s32 %v903, %v6981
    %v6983 = vrot.slane %v6845, %v6982
    %v6984 = vlaneseq
    %v6985 = vshrl.u32 %v6984, 7
    %v6986 = vsub.s32 %v908, %v6985
    %v6987 = vrot.slane %v6848, %v6986
    %v6988 = vsel %vm913, %v6987, %v6983
    %v6989 = vlaneseq
    %v6990 = vshrl.u32 %v6989, 7
    %v6991 = vsub.s32 %v903, %v6990
    %v6992 = vrot.slane %v6851, %v6991
    %v6993 = vlaneseq
    %v6994 = vshrl.u32 %v6993, 7
    %v6995 = vsub.s32 %v908, %v6994
    %v6996 = vrot.slane %v6854, %v6995
    %v6997 = vsel %vm913, %v6996, %v6992
    %v6998 = vlaneseq
    %v6999 = vshrl.u32 %v6998, 7
    %v7000 = vsub.s32 %v903, %v6999
    %v7001 = vrot.slane %v6857, %v7000
    %v7002 = vlaneseq
    %v7003 = vshrl.u32 %v7002, 7
    %v7004 = vsub.s32 %v908, %v7003
    %v7005 = vrot.slane %v6860, %v7004
    %v7006 = vsel %vm913, %v7005, %v7001
    %v7007 = vlaneseq
    %v7008 = vshrl.u32 %v7007, 7
    %v7009 = vsub.s32 %v903, %v7008
    %v7010 = vrot.slane %v6863, %v7009
    %v7011 = vlaneseq
    %v7012 = vshrl.u32 %v7011, 7
    %v7013 = vsub.s32 %v908, %v7012
    %v7014 = vrot.slane %v6866, %v7013
    %v7015 = vsel %vm913, %v7014, %v7010
    %v7016 = vlaneseq
    %v7017 = vshrl.u32 %v7016, 7
    %v7018 = vsub.s32 %v903, %v7017
    %v7019 = vrot.slane %v6869, %v7018
    %v7020 = vlaneseq
    %v7021 = vshrl.u32 %v7020, 7
    %v7022 = vsub.s32 %v908, %v7021
    %v7023 = vrot.slane %v6872, %v7022
    %v7024 = vsel %vm913, %v7023, %v7019
    %v7025 = vlaneseq
    %v7026 = vshrl.u32 %v7025, 7
    %v7027 = vsub.s32 %v903, %v7026
    %v7028 = vrot.slane %v6875, %v7027
    %v7029 = vlaneseq
    %v7030 = vshrl.u32 %v7029, 7
    %v7031 = vsub.s32 %v908, %v7030
    %v7032 = vrot.slane %v6878, %v7031
    %v7033 = vsel %vm913, %v7032, %v7028
    %v7034 = vlaneseq
    %v7035 = vshrl.u32 %v7034, 7
    %v7036 = vsub.s32 %v903, %v7035
    %v7037 = vrot.slane %v6881, %v7036
    %v7038 = vlaneseq
    %v7039 = vshrl.u32 %v7038, 7
    %v7040 = vsub.s32 %v908, %v7039
    %v7041 = vrot.slane %v6884, %v7040
    %v7042 = vsel %vm913, %v7041, %v7037
    %v7043 = vlaneseq
    %v7044 = vshrl.u32 %v7043, 7
    %v7045 = vsub.s32 %v903, %v7044
    %v7046 = vrot.slane %v6887, %v7045
    %v7047 = vlaneseq
    %v7048 = vshrl.u32 %v7047, 7
    %v7049 = vsub.s32 %v908, %v7048
    %v7050 = vrot.slane %v6890, %v7049
    %v7051 = vsel %vm913, %v7050, %v7046
    %v7052 = vlaneseq
    %v7053 = vshrl.u32 %v7052, 7
    %v7054 = vsub.s32 %v903, %v7053
    %v7055 = vrot.slane %v6893, %v7054
    %v7056 = vlaneseq
    %v7057 = vshrl.u32 %v7056, 7
    %v7058 = vsub.s32 %v908, %v7057
    %v7059 = vrot.slane %v6896, %v7058
    %v7060 = vsel %vm913, %v7059, %v7055
    %v7061 = vlaneseq
    %v7062 = vshrl.u32 %v7061, 7
    %v7063 = vsub.s32 %v903, %v7062
    %v7064 = vrot.slane %v6899, %v7063
    %v7065 = vlaneseq
    %v7066 = vshrl.u32 %v7065, 7
    %v7067 = vsub.s32 %v908, %v7066
    %v7068 = vrot.slane %v6902, %v7067
    %v7069 = vsel %vm913, %v7068, %v7064
    %v7070 = vlaneseq
    %v7071 = vshrl.u32 %v7070, 7
    %v7072 = vsub.s32 %v903, %v7071
    %v7073 = vrot.slane %v6905, %v7072
    %v7074 = vlaneseq
    %v7075 = vshrl.u32 %v7074, 7
    %v7076 = vsub.s32 %v908, %v7075
    %v7077 = vrot.slane %v6908, %v7076
    %v7078 = vsel %vm913, %v7077, %v7073
    %v7079 = vlaneseq
    %v7080 = vshrl.u32 %v7079, 7
    %v7081 = vsub.s32 %v903, %v7080
    %v7082 = vrot.slane %v6911, %v7081
    %v7083 = vlaneseq
    %v7084 = vshrl.u32 %v7083, 7
    %v7085 = vsub.s32 %v908, %v7084
    %v7086 = vrot.slane %v6914, %v7085
    %v7087 = vsel %vm913, %v7086, %v7082
    %v7088 = vlaneseq
    %v7089 = vshrl.u32 %v7088, 7
    %v7090 = vsub.s32 %v903, %v7089
    %v7091 = vrot.slane %v6917, %v7090
    %v7092 = vlaneseq
    %v7093 = vshrl.u32 %v7092, 7
    %v7094 = vsub.s32 %v908, %v7093
    %v7095 = vrot.slane %v6920, %v7094
    %v7096 = vsel %vm913, %v7095, %v7091
    %v7097 = vsel %vm1050, %v6970, %v6961
    %v7098 = vsel %vm1052, %v6979, %v7097
    %v7099 = vsel %vm1054, %v6988, %v7098
    %v7100 = vsel %vm1056, %v6997, %v7099
    %v7101 = vsel %vm1058, %v7006, %v7100
    %v7102 = vsel %vm1060, %v7015, %v7101
    %v7103 = vsel %vm1062, %v7024, %v7102
    %v7104 = vsel %vm1050, %v7042, %v7033
    %v7105 = vsel %vm1052, %v7051, %v7104
    %v7106 = vsel %vm1054, %v7060, %v7105
    %v7107 = vsel %vm1056, %v7069, %v7106
    %v7108 = vsel %vm1058, %v7078, %v7107
    %v7109 = vsel %vm1060, %v7087, %v7108
    %v7110 = vsel %vm1062, %v7096, %v7109
    %v7113 = vsel %vm288, %v7103, -1e+30
    %v7114 = vsel %vm289, %v7110, -1e+30
    %v7115 = vsel %vm1075, %v7113, -inf
    %7116 = vmax.xlane.f32.xlu0 %v7115
    %v7117 = vpop.xlane.xlu0 %7116
    %v7118 = vsel %vm1075, %v7114, -inf
    %7119 = vmax.xlane.f32.xlu0 %v7118
    %v7120 = vpop.xlane.xlu0 %7119
    %v7121 = vsub.f32 %v7113, %v7117
    %v7122 = vsub.f32 %v7114, %v7120
    %v7123 = vmul.f32 %v7121, 1.442695
    %v7124 = vpow.pop %v7123
    %v7125 = vmul.f32 %v7122, 1.442695
    %v7126 = vpow.pop %v7125
    %v7127 = vsel %vm1075, %v7124, 0.0
    %7128 = vadd.xlane.f32.xlu0 %v7127
    %v7129 = vpop.xlane.xlu0 %7128
    %v7130 = vsel %vm1075, %v7126, 0.0
    %7131 = vadd.xlane.f32.xlu0 %v7130
    %v7132 = vpop.xlane.xlu0 %7131
    %v7133 = vrcp.pop %v7129
    %v7134 = vrcp.pop %v7132
    %v7135 = vmul.f32 %v7124, %v7133
    %v7136 = vmul.f32 %v7126, %v7134
    %v7137 = vld [vmem:[#allocation26 + $0x1] sm:$0x1]
    %v7138 = vlaneseq
    %v7139 = vshrl.u32 %v7138, 7
    %v7140 = vsub.s32 0, %v7139
    %v7141 = vrot.slane %v7137, %v7140
    %7143 = vrot.lane.b32.xlu0 %v7141, 32
    %v7144 = vpop.permute.xlu0 %7143
    %v7146 = vmul.f32 %v6756, %v7144
    %v7147 = vmul.f32 %v6757, %v7144
    %v7148 = vmul.f32 %v6758, %v7144
    %v7149 = vmul.f32 %v6759, %v7144
    %v7150 = vmul.f32 %v6760, %v7144
    %v7151 = vmul.f32 %v6761, %v7144
    %v7152 = vmul.f32 %v6762, %v7144
    %v7153 = vmul.f32 %v6763, %v7144
    %v7154 = vmul.f32 %v6764, %v7144
    %v7155 = vmul.f32 %v6765, %v7144
    %v7156 = vmul.f32 %v6766, %v7144
    %v7157 = vmul.f32 %v6767, %v7144
    %v7158 = vmul.f32 %v6768, %v7144
    %v7159 = vmul.f32 %v6769, %v7144
    %v7160 = vmul.f32 %v6770, %v7144
    %v7161 = vmul.f32 %v6771, %v7144
    %v7162 = vmul.f32 %v6772, %v7144
    %v7163 = vmul.f32 %v6773, %v7144
    %v7164 = vmul.f32 %v6774, %v7144
    %v7165 = vmul.f32 %v6775, %v7144
    %v7166 = vmul.f32 %v6776, %v7144
    %v7167 = vmul.f32 %v6777, %v7144
    %v7168 = vmul.f32 %v6778, %v7144
    %v7169 = vmul.f32 %v6779, %v7144
    %v7170 = vmul.f32 %v6780, %v7144
    %v7171 = vmul.f32 %v6781, %v7144
    %v7172 = vmul.f32 %v6782, %v7144
    %v7173 = vmul.f32 %v6783, %v7144
    %v7174 = vmul.f32 %v6784, %v7144
    %v7175 = vmul.f32 %v6785, %v7144
    %v7176 = vmul.f32 %v6786, %v7144
    %v7177 = vmul.f32 %v6787, %v7144
    %7210 = vrot.lane.b32.xlu0 %v7146, 96
    %v7211 = vpop.permute.xlu0 %7210
    %7212 = vrot.lane.b32.xlu0 %v7147, 96
    %v7213 = vpop.permute.xlu0 %7212
    %7214 = vrot.lane.b32.xlu0 %v7148, 96
    %v7215 = vpop.permute.xlu0 %7214
    %7216 = vrot.lane.b32.xlu0 %v7149, 96
    %v7217 = vpop.permute.xlu0 %7216
    %7218 = vrot.lane.b32.xlu0 %v7150, 96
    %v7219 = vpop.permute.xlu0 %7218
    %7220 = vrot.lane.b32.xlu0 %v7151, 96
    %v7221 = vpop.permute.xlu0 %7220
    %7222 = vrot.lane.b32.xlu0 %v7152, 96
    %v7223 = vpop.permute.xlu0 %7222
    %7224 = vrot.lane.b32.xlu0 %v7153, 96
    %v7225 = vpop.permute.xlu0 %7224
    %7226 = vrot.lane.b32.xlu0 %v7154, 96
    %v7227 = vpop.permute.xlu0 %7226
    %7228 = vrot.lane.b32.xlu0 %v7155, 96
    %v7229 = vpop.permute.xlu0 %7228
    %7230 = vrot.lane.b32.xlu0 %v7156, 96
    %v7231 = vpop.permute.xlu0 %7230
    %7232 = vrot.lane.b32.xlu0 %v7157, 96
    %v7233 = vpop.permute.xlu0 %7232
    %7234 = vrot.lane.b32.xlu0 %v7158, 96
    %v7235 = vpop.permute.xlu0 %7234
    %7236 = vrot.lane.b32.xlu0 %v7159, 96
    %v7237 = vpop.permute.xlu0 %7236
    %7238 = vrot.lane.b32.xlu0 %v7160, 96
    %v7239 = vpop.permute.xlu0 %7238
    %7240 = vrot.lane.b32.xlu0 %v7161, 96
    %v7241 = vpop.permute.xlu0 %7240
    %7242 = vrot.lane.b32.xlu0 %v7162, 96
    %v7243 = vpop.permute.xlu0 %7242
    %7244 = vrot.lane.b32.xlu0 %v7163, 96
    %v7245 = vpop.permute.xlu0 %7244
    %7246 = vrot.lane.b32.xlu0 %v7164, 96
    %v7247 = vpop.permute.xlu0 %7246
    %7248 = vrot.lane.b32.xlu0 %v7165, 96
    %v7249 = vpop.permute.xlu0 %7248
    %7250 = vrot.lane.b32.xlu0 %v7166, 96
    %v7251 = vpop.permute.xlu0 %7250
    %7252 = vrot.lane.b32.xlu0 %v7167, 96
    %v7253 = vpop.permute.xlu0 %7252
    %7254 = vrot.lane.b32.xlu0 %v7168, 96
    %v7255 = vpop.permute.xlu0 %7254
    %7256 = vrot.lane.b32.xlu0 %v7169, 96
    %v7257 = vpop.permute.xlu0 %7256
    %7258 = vrot.lane.b32.xlu0 %v7170, 96
    %v7259 = vpop.permute.xlu0 %7258
    %7260 = vrot.lane.b32.xlu0 %v7171, 96
    %v7261 = vpop.permute.xlu0 %7260
    %7262 = vrot.lane.b32.xlu0 %v7172, 96
    %v7263 = vpop.permute.xlu0 %7262
    %7264 = vrot.lane.b32.xlu0 %v7173, 96
    %v7265 = vpop.permute.xlu0 %7264
    %7266 = vrot.lane.b32.xlu0 %v7174, 96
    %v7267 = vpop.permute.xlu0 %7266
    %7268 = vrot.lane.b32.xlu0 %v7175, 96
    %v7269 = vpop.permute.xlu0 %7268
    %7270 = vrot.lane.b32.xlu0 %v7176, 96
    %v7271 = vpop.permute.xlu0 %7270
    %7272 = vrot.lane.b32.xlu0 %v7177, 96
    %v7273 = vpop.permute.xlu0 %7272
    %v7306 = vsel %vm773, %v7211, 0.0
    %7307 = vadd.xlane.f32.xlu0 %v7306
    %v7308 = vpop.xlane.xlu0 %7307
    %v7309 = vsel %vm773, %v7213, 0.0
    %7310 = vadd.xlane.f32.xlu0 %v7309
    %v7311 = vpop.xlane.xlu0 %7310
    %v7312 = vsel %vm773, %v7215, 0.0
    %7313 = vadd.xlane.f32.xlu0 %v7312
    %v7314 = vpop.xlane.xlu0 %7313
    %v7315 = vsel %vm773, %v7217, 0.0
    %7316 = vadd.xlane.f32.xlu0 %v7315
    %v7317 = vpop.xlane.xlu0 %7316
    %v7318 = vsel %vm773, %v7219, 0.0
    %7319 = vadd.xlane.f32.xlu0 %v7318
    %v7320 = vpop.xlane.xlu0 %7319
    %v7321 = vsel %vm773, %v7221, 0.0
    %7322 = vadd.xlane.f32.xlu0 %v7321
    %v7323 = vpop.xlane.xlu0 %7322
    %v7324 = vsel %vm773, %v7223, 0.0
    %7325 = vadd.xlane.f32.xlu0 %v7324
    %v7326 = vpop.xlane.xlu0 %7325
    %v7327 = vsel %vm773, %v7225, 0.0
    %7328 = vadd.xlane.f32.xlu0 %v7327
    %v7329 = vpop.xlane.xlu0 %7328
    %v7330 = vsel %vm773, %v7227, 0.0
    %7331 = vadd.xlane.f32.xlu0 %v7330
    %v7332 = vpop.xlane.xlu0 %7331
    %v7333 = vsel %vm773, %v7229, 0.0
    %7334 = vadd.xlane.f32.xlu0 %v7333
    %v7335 = vpop.xlane.xlu0 %7334
    %v7336 = vsel %vm773, %v7231, 0.0
    %7337 = vadd.xlane.f32.xlu0 %v7336
    %v7338 = vpop.xlane.xlu0 %7337
    %v7339 = vsel %vm773, %v7233, 0.0
    %7340 = vadd.xlane.f32.xlu0 %v7339
    %v7341 = vpop.xlane.xlu0 %7340
    %v7342 = vsel %vm773, %v7235, 0.0
    %7343 = vadd.xlane.f32.xlu0 %v7342
    %v7344 = vpop.xlane.xlu0 %7343
    %v7345 = vsel %vm773, %v7237, 0.0
    %7346 = vadd.xlane.f32.xlu0 %v7345
    %v7347 = vpop.xlane.xlu0 %7346
    %v7348 = vsel %vm773, %v7239, 0.0
    %7349 = vadd.xlane.f32.xlu0 %v7348
    %v7350 = vpop.xlane.xlu0 %7349
    %v7351 = vsel %vm773, %v7241, 0.0
    %7352 = vadd.xlane.f32.xlu0 %v7351
    %v7353 = vpop.xlane.xlu0 %7352
    %v7354 = vsel %vm773, %v7243, 0.0
    %7355 = vadd.xlane.f32.xlu0 %v7354
    %v7356 = vpop.xlane.xlu0 %7355
    %v7357 = vsel %vm773, %v7245, 0.0
    %7358 = vadd.xlane.f32.xlu0 %v7357
    %v7359 = vpop.xlane.xlu0 %7358
    %v7360 = vsel %vm773, %v7247, 0.0
    %7361 = vadd.xlane.f32.xlu0 %v7360
    %v7362 = vpop.xlane.xlu0 %7361
    %v7363 = vsel %vm773, %v7249, 0.0
    %7364 = vadd.xlane.f32.xlu0 %v7363
    %v7365 = vpop.xlane.xlu0 %7364
    %v7366 = vsel %vm773, %v7251, 0.0
    %7367 = vadd.xlane.f32.xlu0 %v7366
    %v7368 = vpop.xlane.xlu0 %7367
    %v7369 = vsel %vm773, %v7253, 0.0
    %7370 = vadd.xlane.f32.xlu0 %v7369
    %v7371 = vpop.xlane.xlu0 %7370
    %v7372 = vsel %vm773, %v7255, 0.0
    %7373 = vadd.xlane.f32.xlu0 %v7372
    %v7374 = vpop.xlane.xlu0 %7373
    %v7375 = vsel %vm773, %v7257, 0.0
    %7376 = vadd.xlane.f32.xlu0 %v7375
    %v7377 = vpop.xlane.xlu0 %7376
    %v7378 = vsel %vm773, %v7259, 0.0
    %7379 = vadd.xlane.f32.xlu0 %v7378
    %v7380 = vpop.xlane.xlu0 %7379
    %v7381 = vsel %vm773, %v7261, 0.0
    %7382 = vadd.xlane.f32.xlu0 %v7381
    %v7383 = vpop.xlane.xlu0 %7382
    %v7384 = vsel %vm773, %v7263, 0.0
    %7385 = vadd.xlane.f32.xlu0 %v7384
    %v7386 = vpop.xlane.xlu0 %7385
    %v7387 = vsel %vm773, %v7265, 0.0
    %7388 = vadd.xlane.f32.xlu0 %v7387
    %v7389 = vpop.xlane.xlu0 %7388
    %v7390 = vsel %vm773, %v7267, 0.0
    %7391 = vadd.xlane.f32.xlu0 %v7390
    %v7392 = vpop.xlane.xlu0 %7391
    %v7393 = vsel %vm773, %v7269, 0.0
    %7394 = vadd.xlane.f32.xlu0 %v7393
    %v7395 = vpop.xlane.xlu0 %7394
    %v7396 = vsel %vm773, %v7271, 0.0
    %7397 = vadd.xlane.f32.xlu0 %v7396
    %v7398 = vpop.xlane.xlu0 %7397
    %v7399 = vsel %vm773, %v7273, 0.0
    %7400 = vadd.xlane.f32.xlu0 %v7399
    %v7401 = vpop.xlane.xlu0 %7400
    %v7434 = vlaneseq
    %v7435 = vshrl.u32 %v7434, 7
    %v7436 = vsub.s32 %v903, %v7435
    %v7437 = vrot.slane %v7308, %v7436
    %v7438 = vlaneseq
    %v7439 = vshrl.u32 %v7438, 7
    %v7440 = vsub.s32 %v908, %v7439
    %v7441 = vrot.slane %v7311, %v7440
    %v7442 = vsel %vm913, %v7441, %v7437
    %v7443 = vlaneseq
    %v7444 = vshrl.u32 %v7443, 7
    %v7445 = vsub.s32 %v903, %v7444
    %v7446 = vrot.slane %v7314, %v7445
    %v7447 = vlaneseq
    %v7448 = vshrl.u32 %v7447, 7
    %v7449 = vsub.s32 %v908, %v7448
    %v7450 = vrot.slane %v7317, %v7449
    %v7451 = vsel %vm913, %v7450, %v7446
    %v7452 = vlaneseq
    %v7453 = vshrl.u32 %v7452, 7
    %v7454 = vsub.s32 %v903, %v7453
    %v7455 = vrot.slane %v7320, %v7454
    %v7456 = vlaneseq
    %v7457 = vshrl.u32 %v7456, 7
    %v7458 = vsub.s32 %v908, %v7457
    %v7459 = vrot.slane %v7323, %v7458
    %v7460 = vsel %vm913, %v7459, %v7455
    %v7461 = vlaneseq
    %v7462 = vshrl.u32 %v7461, 7
    %v7463 = vsub.s32 %v903, %v7462
    %v7464 = vrot.slane %v7326, %v7463
    %v7465 = vlaneseq
    %v7466 = vshrl.u32 %v7465, 7
    %v7467 = vsub.s32 %v908, %v7466
    %v7468 = vrot.slane %v7329, %v7467
    %v7469 = vsel %vm913, %v7468, %v7464
    %v7470 = vlaneseq
    %v7471 = vshrl.u32 %v7470, 7
    %v7472 = vsub.s32 %v903, %v7471
    %v7473 = vrot.slane %v7332, %v7472
    %v7474 = vlaneseq
    %v7475 = vshrl.u32 %v7474, 7
    %v7476 = vsub.s32 %v908, %v7475
    %v7477 = vrot.slane %v7335, %v7476
    %v7478 = vsel %vm913, %v7477, %v7473
    %v7479 = vlaneseq
    %v7480 = vshrl.u32 %v7479, 7
    %v7481 = vsub.s32 %v903, %v7480
    %v7482 = vrot.slane %v7338, %v7481
    %v7483 = vlaneseq
    %v7484 = vshrl.u32 %v7483, 7
    %v7485 = vsub.s32 %v908, %v7484
    %v7486 = vrot.slane %v7341, %v7485
    %v7487 = vsel %vm913, %v7486, %v7482
    %v7488 = vlaneseq
    %v7489 = vshrl.u32 %v7488, 7
    %v7490 = vsub.s32 %v903, %v7489
    %v7491 = vrot.slane %v7344, %v7490
    %v7492 = vlaneseq
    %v7493 = vshrl.u32 %v7492, 7
    %v7494 = vsub.s32 %v908, %v7493
    %v7495 = vrot.slane %v7347, %v7494
    %v7496 = vsel %vm913, %v7495, %v7491
    %v7497 = vlaneseq
    %v7498 = vshrl.u32 %v7497, 7
    %v7499 = vsub.s32 %v903, %v7498
    %v7500 = vrot.slane %v7350, %v7499
    %v7501 = vlaneseq
    %v7502 = vshrl.u32 %v7501, 7
    %v7503 = vsub.s32 %v908, %v7502
    %v7504 = vrot.slane %v7353, %v7503
    %v7505 = vsel %vm913, %v7504, %v7500
    %v7506 = vlaneseq
    %v7507 = vshrl.u32 %v7506, 7
    %v7508 = vsub.s32 %v903, %v7507
    %v7509 = vrot.slane %v7356, %v7508
    %v7510 = vlaneseq
    %v7511 = vshrl.u32 %v7510, 7
    %v7512 = vsub.s32 %v908, %v7511
    %v7513 = vrot.slane %v7359, %v7512
    %v7514 = vsel %vm913, %v7513, %v7509
    %v7515 = vlaneseq
    %v7516 = vshrl.u32 %v7515, 7
    %v7517 = vsub.s32 %v903, %v7516
    %v7518 = vrot.slane %v7362, %v7517
    %v7519 = vlaneseq
    %v7520 = vshrl.u32 %v7519, 7
    %v7521 = vsub.s32 %v908, %v7520
    %v7522 = vrot.slane %v7365, %v7521
    %v7523 = vsel %vm913, %v7522, %v7518
    %v7524 = vlaneseq
    %v7525 = vshrl.u32 %v7524, 7
    %v7526 = vsub.s32 %v903, %v7525
    %v7527 = vrot.slane %v7368, %v7526
    %v7528 = vlaneseq
    %v7529 = vshrl.u32 %v7528, 7
    %v7530 = vsub.s32 %v908, %v7529
    %v7531 = vrot.slane %v7371, %v7530
    %v7532 = vsel %vm913, %v7531, %v7527
    %v7533 = vlaneseq
    %v7534 = vshrl.u32 %v7533, 7
    %v7535 = vsub.s32 %v903, %v7534
    %v7536 = vrot.slane %v7374, %v7535
    %v7537 = vlaneseq
    %v7538 = vshrl.u32 %v7537, 7
    %v7539 = vsub.s32 %v908, %v7538
    %v7540 = vrot.slane %v7377, %v7539
    %v7541 = vsel %vm913, %v7540, %v7536
    %v7542 = vlaneseq
    %v7543 = vshrl.u32 %v7542, 7
    %v7544 = vsub.s32 %v903, %v7543
    %v7545 = vrot.slane %v7380, %v7544
    %v7546 = vlaneseq
    %v7547 = vshrl.u32 %v7546, 7
    %v7548 = vsub.s32 %v908, %v7547
    %v7549 = vrot.slane %v7383, %v7548
    %v7550 = vsel %vm913, %v7549, %v7545
    %v7551 = vlaneseq
    %v7552 = vshrl.u32 %v7551, 7
    %v7553 = vsub.s32 %v903, %v7552
    %v7554 = vrot.slane %v7386, %v7553
    %v7555 = vlaneseq
    %v7556 = vshrl.u32 %v7555, 7
    %v7557 = vsub.s32 %v908, %v7556
    %v7558 = vrot.slane %v7389, %v7557
    %v7559 = vsel %vm913, %v7558, %v7554
    %v7560 = vlaneseq
    %v7561 = vshrl.u32 %v7560, 7
    %v7562 = vsub.s32 %v903, %v7561
    %v7563 = vrot.slane %v7392, %v7562
    %v7564 = vlaneseq
    %v7565 = vshrl.u32 %v7564, 7
    %v7566 = vsub.s32 %v908, %v7565
    %v7567 = vrot.slane %v7395, %v7566
    %v7568 = vsel %vm913, %v7567, %v7563
    %v7569 = vlaneseq
    %v7570 = vshrl.u32 %v7569, 7
    %v7571 = vsub.s32 %v903, %v7570
    %v7572 = vrot.slane %v7398, %v7571
    %v7573 = vlaneseq
    %v7574 = vshrl.u32 %v7573, 7
    %v7575 = vsub.s32 %v908, %v7574
    %v7576 = vrot.slane %v7401, %v7575
    %v7577 = vsel %vm913, %v7576, %v7572
    %v7578 = vsel %vm1050, %v7451, %v7442
    %v7579 = vsel %vm1052, %v7460, %v7578
    %v7580 = vsel %vm1054, %v7469, %v7579
    %v7581 = vsel %vm1056, %v7478, %v7580
    %v7582 = vsel %vm1058, %v7487, %v7581
    %v7583 = vsel %vm1060, %v7496, %v7582
    %v7584 = vsel %vm1062, %v7505, %v7583
    %v7585 = vsel %vm1050, %v7523, %v7514
    %v7586 = vsel %vm1052, %v7532, %v7585
    %v7587 = vsel %vm1054, %v7541, %v7586
    %v7588 = vsel %vm1056, %v7550, %v7587
    %v7589 = vsel %vm1058, %v7559, %v7588
    %v7590 = vsel %vm1060, %v7568, %v7589
    %v7591 = vsel %vm1062, %v7577, %v7590
    %v7594 = vsel %vm288, %v7584, -1e+30
    %v7595 = vsel %vm289, %v7591, -1e+30
    %v7596 = vsel %vm1075, %v7594, -inf
    %7597 = vmax.xlane.f32.xlu0 %v7596
    %v7598 = vpop.xlane.xlu0 %7597
    %v7599 = vsel %vm1075, %v7595, -inf
    %7600 = vmax.xlane.f32.xlu0 %v7599
    %v7601 = vpop.xlane.xlu0 %7600
    %v7602 = vsub.f32 %v7594, %v7598
    %v7603 = vsub.f32 %v7595, %v7601
    %v7604 = vmul.f32 %v7602, 1.442695
    %v7605 = vpow.pop %v7604
    %v7606 = vmul.f32 %v7603, 1.442695
    %v7607 = vpow.pop %v7606
    %v7608 = vsel %vm1075, %v7605, 0.0
    %7609 = vadd.xlane.f32.xlu0 %v7608
    %v7610 = vpop.xlane.xlu0 %7609
    %v7611 = vsel %vm1075, %v7607, 0.0
    %7612 = vadd.xlane.f32.xlu0 %v7611
    %v7613 = vpop.xlane.xlu0 %7612
    %v7614 = vrcp.pop %v7610
    %v7615 = vrcp.pop %v7613
    %v7616 = vmul.f32 %v7605, %v7614
    %v7617 = vmul.f32 %v7607, %v7615
    %v7618 = vld [vmem:[#allocation26 + $0x2] sm:$0x1]
    %v7619 = vlaneseq
    %v7620 = vshrl.u32 %v7619, 7
    %v7621 = vsub.s32 0, %v7620
    %v7622 = vrot.slane %v7618, %v7621
    %7624 = vrot.lane.b32.xlu0 %v7622, 64
    %v7625 = vpop.permute.xlu0 %7624
    %v7627 = vmul.f32 %v6756, %v7625
    %v7628 = vmul.f32 %v6757, %v7625
    %v7629 = vmul.f32 %v6758, %v7625
    %v7630 = vmul.f32 %v6759, %v7625
    %v7631 = vmul.f32 %v6760, %v7625
    %v7632 = vmul.f32 %v6761, %v7625
    %v7633 = vmul.f32 %v6762, %v7625
    %v7634 = vmul.f32 %v6763, %v7625
    %v7635 = vmul.f32 %v6764, %v7625
    %v7636 = vmul.f32 %v6765, %v7625
    %v7637 = vmul.f32 %v6766, %v7625
    %v7638 = vmul.f32 %v6767, %v7625
    %v7639 = vmul.f32 %v6768, %v7625
    %v7640 = vmul.f32 %v6769, %v7625
    %v7641 = vmul.f32 %v6770, %v7625
    %v7642 = vmul.f32 %v6771, %v7625
    %v7643 = vmul.f32 %v6772, %v7625
    %v7644 = vmul.f32 %v6773, %v7625
    %v7645 = vmul.f32 %v6774, %v7625
    %v7646 = vmul.f32 %v6775, %v7625
    %v7647 = vmul.f32 %v6776, %v7625
    %v7648 = vmul.f32 %v6777, %v7625
    %v7649 = vmul.f32 %v6778, %v7625
    %v7650 = vmul.f32 %v6779, %v7625
    %v7651 = vmul.f32 %v6780, %v7625
    %v7652 = vmul.f32 %v6781, %v7625
    %v7653 = vmul.f32 %v6782, %v7625
    %v7654 = vmul.f32 %v6783, %v7625
    %v7655 = vmul.f32 %v6784, %v7625
    %v7656 = vmul.f32 %v6785, %v7625
    %v7657 = vmul.f32 %v6786, %v7625
    %v7658 = vmul.f32 %v6787, %v7625
    %7691 = vrot.lane.b32.xlu0 %v7627, 64
    %v7692 = vpop.permute.xlu0 %7691
    %7693 = vrot.lane.b32.xlu0 %v7628, 64
    %v7694 = vpop.permute.xlu0 %7693
    %7695 = vrot.lane.b32.xlu0 %v7629, 64
    %v7696 = vpop.permute.xlu0 %7695
    %7697 = vrot.lane.b32.xlu0 %v7630, 64
    %v7698 = vpop.permute.xlu0 %7697
    %7699 = vrot.lane.b32.xlu0 %v7631, 64
    %v7700 = vpop.permute.xlu0 %7699
    %7701 = vrot.lane.b32.xlu0 %v7632, 64
    %v7702 = vpop.permute.xlu0 %7701
    %7703 = vrot.lane.b32.xlu0 %v7633, 64
    %v7704 = vpop.permute.xlu0 %7703
    %7705 = vrot.lane.b32.xlu0 %v7634, 64
    %v7706 = vpop.permute.xlu0 %7705
    %7707 = vrot.lane.b32.xlu0 %v7635, 64
    %v7708 = vpop.permute.xlu0 %7707
    %7709 = vrot.lane.b32.xlu0 %v7636, 64
    %v7710 = vpop.permute.xlu0 %7709
    %7711 = vrot.lane.b32.xlu0 %v7637, 64
    %v7712 = vpop.permute.xlu0 %7711
    %7713 = vrot.lane.b32.xlu0 %v7638, 64
    %v7714 = vpop.permute.xlu0 %7713
    %7715 = vrot.lane.b32.xlu0 %v7639, 64
    %v7716 = vpop.permute.xlu0 %7715
    %7717 = vrot.lane.b32.xlu0 %v7640, 64
    %v7718 = vpop.permute.xlu0 %7717
    %7719 = vrot.lane.b32.xlu0 %v7641, 64
    %v7720 = vpop.permute.xlu0 %7719
    %7721 = vrot.lane.b32.xlu0 %v7642, 64
    %v7722 = vpop.permute.xlu0 %7721
    %7723 = vrot.lane.b32.xlu0 %v7643, 64
    %v7724 = vpop.permute.xlu0 %7723
    %7725 = vrot.lane.b32.xlu0 %v7644, 64
    %v7726 = vpop.permute.xlu0 %7725
    %7727 = vrot.lane.b32.xlu0 %v7645, 64
    %v7728 = vpop.permute.xlu0 %7727
    %7729 = vrot.lane.b32.xlu0 %v7646, 64
    %v7730 = vpop.permute.xlu0 %7729
    %7731 = vrot.lane.b32.xlu0 %v7647, 64
    %v7732 = vpop.permute.xlu0 %7731
    %7733 = vrot.lane.b32.xlu0 %v7648, 64
    %v7734 = vpop.permute.xlu0 %7733
    %7735 = vrot.lane.b32.xlu0 %v7649, 64
    %v7736 = vpop.permute.xlu0 %7735
    %7737 = vrot.lane.b32.xlu0 %v7650, 64
    %v7738 = vpop.permute.xlu0 %7737
    %7739 = vrot.lane.b32.xlu0 %v7651, 64
    %v7740 = vpop.permute.xlu0 %7739
    %7741 = vrot.lane.b32.xlu0 %v7652, 64
    %v7742 = vpop.permute.xlu0 %7741
    %7743 = vrot.lane.b32.xlu0 %v7653, 64
    %v7744 = vpop.permute.xlu0 %7743
    %7745 = vrot.lane.b32.xlu0 %v7654, 64
    %v7746 = vpop.permute.xlu0 %7745
    %7747 = vrot.lane.b32.xlu0 %v7655, 64
    %v7748 = vpop.permute.xlu0 %7747
    %7749 = vrot.lane.b32.xlu0 %v7656, 64
    %v7750 = vpop.permute.xlu0 %7749
    %7751 = vrot.lane.b32.xlu0 %v7657, 64
    %v7752 = vpop.permute.xlu0 %7751
    %7753 = vrot.lane.b32.xlu0 %v7658, 64
    %v7754 = vpop.permute.xlu0 %7753
    %v7787 = vsel %vm773, %v7692, 0.0
    %7788 = vadd.xlane.f32.xlu0 %v7787
    %v7789 = vpop.xlane.xlu0 %7788
    %v7790 = vsel %vm773, %v7694, 0.0
    %7791 = vadd.xlane.f32.xlu0 %v7790
    %v7792 = vpop.xlane.xlu0 %7791
    %v7793 = vsel %vm773, %v7696, 0.0
    %7794 = vadd.xlane.f32.xlu0 %v7793
    %v7795 = vpop.xlane.xlu0 %7794
    %v7796 = vsel %vm773, %v7698, 0.0
    %7797 = vadd.xlane.f32.xlu0 %v7796
    %v7798 = vpop.xlane.xlu0 %7797
    %v7799 = vsel %vm773, %v7700, 0.0
    %7800 = vadd.xlane.f32.xlu0 %v7799
    %v7801 = vpop.xlane.xlu0 %7800
    %v7802 = vsel %vm773, %v7702, 0.0
    %7803 = vadd.xlane.f32.xlu0 %v7802
    %v7804 = vpop.xlane.xlu0 %7803
    %v7805 = vsel %vm773, %v7704, 0.0
    %7806 = vadd.xlane.f32.xlu0 %v7805
    %v7807 = vpop.xlane.xlu0 %7806
    %v7808 = vsel %vm773, %v7706, 0.0
    %7809 = vadd.xlane.f32.xlu0 %v7808
    %v7810 = vpop.xlane.xlu0 %7809
    %v7811 = vsel %vm773, %v7708, 0.0
    %7812 = vadd.xlane.f32.xlu0 %v7811
    %v7813 = vpop.xlane.xlu0 %7812
    %v7814 = vsel %vm773, %v7710, 0.0
    %7815 = vadd.xlane.f32.xlu0 %v7814
    %v7816 = vpop.xlane.xlu0 %7815
    %v7817 = vsel %vm773, %v7712, 0.0
    %7818 = vadd.xlane.f32.xlu0 %v7817
    %v7819 = vpop.xlane.xlu0 %7818
    %v7820 = vsel %vm773, %v7714, 0.0
    %7821 = vadd.xlane.f32.xlu0 %v7820
    %v7822 = vpop.xlane.xlu0 %7821
    %v7823 = vsel %vm773, %v7716, 0.0
    %7824 = vadd.xlane.f32.xlu0 %v7823
    %v7825 = vpop.xlane.xlu0 %7824
    %v7826 = vsel %vm773, %v7718, 0.0
    %7827 = vadd.xlane.f32.xlu0 %v7826
    %v7828 = vpop.xlane.xlu0 %7827
    %v7829 = vsel %vm773, %v7720, 0.0
    %7830 = vadd.xlane.f32.xlu0 %v7829
    %v7831 = vpop.xlane.xlu0 %7830
    %v7832 = vsel %vm773, %v7722, 0.0
    %7833 = vadd.xlane.f32.xlu0 %v7832
    %v7834 = vpop.xlane.xlu0 %7833
    %v7835 = vsel %vm773, %v7724, 0.0
    %7836 = vadd.xlane.f32.xlu0 %v7835
    %v7837 = vpop.xlane.xlu0 %7836
    %v7838 = vsel %vm773, %v7726, 0.0
    %7839 = vadd.xlane.f32.xlu0 %v7838
    %v7840 = vpop.xlane.xlu0 %7839
    %v7841 = vsel %vm773, %v7728, 0.0
    %7842 = vadd.xlane.f32.xlu0 %v7841
    %v7843 = vpop.xlane.xlu0 %7842
    %v7844 = vsel %vm773, %v7730, 0.0
    %7845 = vadd.xlane.f32.xlu0 %v7844
    %v7846 = vpop.xlane.xlu0 %7845
    %v7847 = vsel %vm773, %v7732, 0.0
    %7848 = vadd.xlane.f32.xlu0 %v7847
    %v7849 = vpop.xlane.xlu0 %7848
    %v7850 = vsel %vm773, %v7734, 0.0
    %7851 = vadd.xlane.f32.xlu0 %v7850
    %v7852 = vpop.xlane.xlu0 %7851
    %v7853 = vsel %vm773, %v7736, 0.0
    %7854 = vadd.xlane.f32.xlu0 %v7853
    %v7855 = vpop.xlane.xlu0 %7854
    %v7856 = vsel %vm773, %v7738, 0.0
    %7857 = vadd.xlane.f32.xlu0 %v7856
    %v7858 = vpop.xlane.xlu0 %7857
    %v7859 = vsel %vm773, %v7740, 0.0
    %7860 = vadd.xlane.f32.xlu0 %v7859
    %v7861 = vpop.xlane.xlu0 %7860
    %v7862 = vsel %vm773, %v7742, 0.0
    %7863 = vadd.xlane.f32.xlu0 %v7862
    %v7864 = vpop.xlane.xlu0 %7863
    %v7865 = vsel %vm773, %v7744, 0.0
    %7866 = vadd.xlane.f32.xlu0 %v7865
    %v7867 = vpop.xlane.xlu0 %7866
    %v7868 = vsel %vm773, %v7746, 0.0
    %7869 = vadd.xlane.f32.xlu0 %v7868
    %v7870 = vpop.xlane.xlu0 %7869
    %v7871 = vsel %vm773, %v7748, 0.0
    %7872 = vadd.xlane.f32.xlu0 %v7871
    %v7873 = vpop.xlane.xlu0 %7872
    %v7874 = vsel %vm773, %v7750, 0.0
    %7875 = vadd.xlane.f32.xlu0 %v7874
    %v7876 = vpop.xlane.xlu0 %7875
    %v7877 = vsel %vm773, %v7752, 0.0
    %7878 = vadd.xlane.f32.xlu0 %v7877
    %v7879 = vpop.xlane.xlu0 %7878
    %v7880 = vsel %vm773, %v7754, 0.0
    %7881 = vadd.xlane.f32.xlu0 %v7880
    %v7882 = vpop.xlane.xlu0 %7881
    %v7915 = vlaneseq
    %v7916 = vshrl.u32 %v7915, 7
    %v7917 = vsub.s32 %v903, %v7916
    %v7918 = vrot.slane %v7789, %v7917
    %v7919 = vlaneseq
    %v7920 = vshrl.u32 %v7919, 7
    %v7921 = vsub.s32 %v908, %v7920
    %v7922 = vrot.slane %v7792, %v7921
    %v7923 = vsel %vm913, %v7922, %v7918
    %v7924 = vlaneseq
    %v7925 = vshrl.u32 %v7924, 7
    %v7926 = vsub.s32 %v903, %v7925
    %v7927 = vrot.slane %v7795, %v7926
    %v7928 = vlaneseq
    %v7929 = vshrl.u32 %v7928, 7
    %v7930 = vsub.s32 %v908, %v7929
    %v7931 = vrot.slane %v7798, %v7930
    %v7932 = vsel %vm913, %v7931, %v7927
    %v7933 = vlaneseq
    %v7934 = vshrl.u32 %v7933, 7
    %v7935 = vsub.s32 %v903, %v7934
    %v7936 = vrot.slane %v7801, %v7935
    %v7937 = vlaneseq
    %v7938 = vshrl.u32 %v7937, 7
    %v7939 = vsub.s32 %v908, %v7938
    %v7940 = vrot.slane %v7804, %v7939
    %v7941 = vsel %vm913, %v7940, %v7936
    %v7942 = vlaneseq
    %v7943 = vshrl.u32 %v7942, 7
    %v7944 = vsub.s32 %v903, %v7943
    %v7945 = vrot.slane %v7807, %v7944
    %v7946 = vlaneseq
    %v7947 = vshrl.u32 %v7946, 7
    %v7948 = vsub.s32 %v908, %v7947
    %v7949 = vrot.slane %v7810, %v7948
    %v7950 = vsel %vm913, %v7949, %v7945
    %v7951 = vlaneseq
    %v7952 = vshrl.u32 %v7951, 7
    %v7953 = vsub.s32 %v903, %v7952
    %v7954 = vrot.slane %v7813, %v7953
    %v7955 = vlaneseq
    %v7956 = vshrl.u32 %v7955, 7
    %v7957 = vsub.s32 %v908, %v7956
    %v7958 = vrot.slane %v7816, %v7957
    %v7959 = vsel %vm913, %v7958, %v7954
    %v7960 = vlaneseq
    %v7961 = vshrl.u32 %v7960, 7
    %v7962 = vsub.s32 %v903, %v7961
    %v7963 = vrot.slane %v7819, %v7962
    %v7964 = vlaneseq
    %v7965 = vshrl.u32 %v7964, 7
    %v7966 = vsub.s32 %v908, %v7965
    %v7967 = vrot.slane %v7822, %v7966
    %v7968 = vsel %vm913, %v7967, %v7963
    %v7969 = vlaneseq
    %v7970 = vshrl.u32 %v7969, 7
    %v7971 = vsub.s32 %v903, %v7970
    %v7972 = vrot.slane %v7825, %v7971
    %v7973 = vlaneseq
    %v7974 = vshrl.u32 %v7973, 7
    %v7975 = vsub.s32 %v908, %v7974
    %v7976 = vrot.slane %v7828, %v7975
    %v7977 = vsel %vm913, %v7976, %v7972
    %v7978 = vlaneseq
    %v7979 = vshrl.u32 %v7978, 7
    %v7980 = vsub.s32 %v903, %v7979
    %v7981 = vrot.slane %v7831, %v7980
    %v7982 = vlaneseq
    %v7983 = vshrl.u32 %v7982, 7
    %v7984 = vsub.s32 %v908, %v7983
    %v7985 = vrot.slane %v7834, %v7984
    %v7986 = vsel %vm913, %v7985, %v7981
    %v7987 = vlaneseq
    %v7988 = vshrl.u32 %v7987, 7
    %v7989 = vsub.s32 %v903, %v7988
    %v7990 = vrot.slane %v7837, %v7989
    %v7991 = vlaneseq
    %v7992 = vshrl.u32 %v7991, 7
    %v7993 = vsub.s32 %v908, %v7992
    %v7994 = vrot.slane %v7840, %v7993
    %v7995 = vsel %vm913, %v7994, %v7990
    %v7996 = vlaneseq
    %v7997 = vshrl.u32 %v7996, 7
    %v7998 = vsub.s32 %v903, %v7997
    %v7999 = vrot.slane %v7843, %v7998
    %v8000 = vlaneseq
    %v8001 = vshrl.u32 %v8000, 7
    %v8002 = vsub.s32 %v908, %v8001
    %v8003 = vrot.slane %v7846, %v8002
    %v8004 = vsel %vm913, %v8003, %v7999
    %v8005 = vlaneseq
    %v8006 = vshrl.u32 %v8005, 7
    %v8007 = vsub.s32 %v903, %v8006
    %v8008 = vrot.slane %v7849, %v8007
    %v8009 = vlaneseq
    %v8010 = vshrl.u32 %v8009, 7
    %v8011 = vsub.s32 %v908, %v8010
    %v8012 = vrot.slane %v7852, %v8011
    %v8013 = vsel %vm913, %v8012, %v8008
    %v8014 = vlaneseq
    %v8015 = vshrl.u32 %v8014, 7
    %v8016 = vsub.s32 %v903, %v8015
    %v8017 = vrot.slane %v7855, %v8016
    %v8018 = vlaneseq
    %v8019 = vshrl.u32 %v8018, 7
    %v8020 = vsub.s32 %v908, %v8019
    %v8021 = vrot.slane %v7858, %v8020
    %v8022 = vsel %vm913, %v8021, %v8017
    %v8023 = vlaneseq
    %v8024 = vshrl.u32 %v8023, 7
    %v8025 = vsub.s32 %v903, %v8024
    %v8026 = vrot.slane %v7861, %v8025
    %v8027 = vlaneseq
    %v8028 = vshrl.u32 %v8027, 7
    %v8029 = vsub.s32 %v908, %v8028
    %v8030 = vrot.slane %v7864, %v8029
    %v8031 = vsel %vm913, %v8030, %v8026
    %v8032 = vlaneseq
    %v8033 = vshrl.u32 %v8032, 7
    %v8034 = vsub.s32 %v903, %v8033
    %v8035 = vrot.slane %v7867, %v8034
    %v8036 = vlaneseq
    %v8037 = vshrl.u32 %v8036, 7
    %v8038 = vsub.s32 %v908, %v8037
    %v8039 = vrot.slane %v7870, %v8038
    %v8040 = vsel %vm913, %v8039, %v8035
    %v8041 = vlaneseq
    %v8042 = vshrl.u32 %v8041, 7
    %v8043 = vsub.s32 %v903, %v8042
    %v8044 = vrot.slane %v7873, %v8043
    %v8045 = vlaneseq
    %v8046 = vshrl.u32 %v8045, 7
    %v8047 = vsub.s32 %v908, %v8046
    %v8048 = vrot.slane %v7876, %v8047
    %v8049 = vsel %vm913, %v8048, %v8044
    %v8050 = vlaneseq
    %v8051 = vshrl.u32 %v8050, 7
    %v8052 = vsub.s32 %v903, %v8051
    %v8053 = vrot.slane %v7879, %v8052
    %v8054 = vlaneseq
    %v8055 = vshrl.u32 %v8054, 7
    %v8056 = vsub.s32 %v908, %v8055
    %v8057 = vrot.slane %v7882, %v8056
    %v8058 = vsel %vm913, %v8057, %v8053
    %v8059 = vsel %vm1050, %v7932, %v7923
    %v8060 = vsel %vm1052, %v7941, %v8059
    %v8061 = vsel %vm1054, %v7950, %v8060
    %v8062 = vsel %vm1056, %v7959, %v8061
    %v8063 = vsel %vm1058, %v7968, %v8062
    %v8064 = vsel %vm1060, %v7977, %v8063
    %v8065 = vsel %vm1062, %v7986, %v8064
    %v8066 = vsel %vm1050, %v8004, %v7995
    %v8067 = vsel %vm1052, %v8013, %v8066
    %v8068 = vsel %vm1054, %v8022, %v8067
    %v8069 = vsel %vm1056, %v8031, %v8068
    %v8070 = vsel %vm1058, %v8040, %v8069
    %v8071 = vsel %vm1060, %v8049, %v8070
    %v8072 = vsel %vm1062, %v8058, %v8071
    %v8075 = vsel %vm288, %v8065, -1e+30
    %v8076 = vsel %vm289, %v8072, -1e+30
    %v8077 = vsel %vm1075, %v8075, -inf
    %8078 = vmax.xlane.f32.xlu0 %v8077
    %v8079 = vpop.xlane.xlu0 %8078
    %v8080 = vsel %vm1075, %v8076, -inf
    %8081 = vmax.xlane.f32.xlu0 %v8080
    %v8082 = vpop.xlane.xlu0 %8081
    %v8083 = vsub.f32 %v8075, %v8079
    %v8084 = vsub.f32 %v8076, %v8082
    %v8085 = vmul.f32 %v8083, 1.442695
    %v8086 = vpow.pop %v8085
    %v8087 = vmul.f32 %v8084, 1.442695
    %v8088 = vpow.pop %v8087
    %v8089 = vsel %vm1075, %v8086, 0.0
    %8090 = vadd.xlane.f32.xlu0 %v8089
    %v8091 = vpop.xlane.xlu0 %8090
    %v8092 = vsel %vm1075, %v8088, 0.0
    %8093 = vadd.xlane.f32.xlu0 %v8092
    %v8094 = vpop.xlane.xlu0 %8093
    %v8095 = vrcp.pop %v8091
    %v8096 = vrcp.pop %v8094
    %v8097 = vmul.f32 %v8086, %v8095
    %v8098 = vmul.f32 %v8088, %v8096
    %v8099 = vld [vmem:[#allocation26 + $0x3] sm:$0x1]
    %v8100 = vlaneseq
    %v8101 = vshrl.u32 %v8100, 7
    %v8102 = vsub.s32 0, %v8101
    %v8103 = vrot.slane %v8099, %v8102
    %8105 = vrot.lane.b32.xlu0 %v8103, 96
    %v8106 = vpop.permute.xlu0 %8105
    %v8108 = vmul.f32 %v6756, %v8106
    %v8109 = vmul.f32 %v6757, %v8106
    %v8110 = vmul.f32 %v6758, %v8106
    %v8111 = vmul.f32 %v6759, %v8106
    %v8112 = vmul.f32 %v6760, %v8106
    %v8113 = vmul.f32 %v6761, %v8106
    %v8114 = vmul.f32 %v6762, %v8106
    %v8115 = vmul.f32 %v6763, %v8106
    %v8116 = vmul.f32 %v6764, %v8106
    %v8117 = vmul.f32 %v6765, %v8106
    %v8118 = vmul.f32 %v6766, %v8106
    %v8119 = vmul.f32 %v6767, %v8106
    %v8120 = vmul.f32 %v6768, %v8106
    %v8121 = vmul.f32 %v6769, %v8106
    %v8122 = vmul.f32 %v6770, %v8106
    %v8123 = vmul.f32 %v6771, %v8106
    %v8124 = vmul.f32 %v6772, %v8106
    %v8125 = vmul.f32 %v6773, %v8106
    %v8126 = vmul.f32 %v6774, %v8106
    %v8127 = vmul.f32 %v6775, %v8106
    %v8128 = vmul.f32 %v6776, %v8106
    %v8129 = vmul.f32 %v6777, %v8106
    %v8130 = vmul.f32 %v6778, %v8106
    %v8131 = vmul.f32 %v6779, %v8106
    %v8132 = vmul.f32 %v6780, %v8106
    %v8133 = vmul.f32 %v6781, %v8106
    %v8134 = vmul.f32 %v6782, %v8106
    %v8135 = vmul.f32 %v6783, %v8106
    %v8136 = vmul.f32 %v6784, %v8106
    %v8137 = vmul.f32 %v6785, %v8106
    %v8138 = vmul.f32 %v6786, %v8106
    %v8139 = vmul.f32 %v6787, %v8106
    %8172 = vrot.lane.b32.xlu0 %v8108, 32
    %v8173 = vpop.permute.xlu0 %8172
    %8174 = vrot.lane.b32.xlu0 %v8109, 32
    %v8175 = vpop.permute.xlu0 %8174
    %8176 = vrot.lane.b32.xlu0 %v8110, 32
    %v8177 = vpop.permute.xlu0 %8176
    %8178 = vrot.lane.b32.xlu0 %v8111, 32
    %v8179 = vpop.permute.xlu0 %8178
    %8180 = vrot.lane.b32.xlu0 %v8112, 32
    %v8181 = vpop.permute.xlu0 %8180
    %8182 = vrot.lane.b32.xlu0 %v8113, 32
    %v8183 = vpop.permute.xlu0 %8182
    %8184 = vrot.lane.b32.xlu0 %v8114, 32
    %v8185 = vpop.permute.xlu0 %8184
    %8186 = vrot.lane.b32.xlu0 %v8115, 32
    %v8187 = vpop.permute.xlu0 %8186
    %8188 = vrot.lane.b32.xlu0 %v8116, 32
    %v8189 = vpop.permute.xlu0 %8188
    %8190 = vrot.lane.b32.xlu0 %v8117, 32
    %v8191 = vpop.permute.xlu0 %8190
    %8192 = vrot.lane.b32.xlu0 %v8118, 32
    %v8193 = vpop.permute.xlu0 %8192
    %8194 = vrot.lane.b32.xlu0 %v8119, 32
    %v8195 = vpop.permute.xlu0 %8194
    %8196 = vrot.lane.b32.xlu0 %v8120, 32
    %v8197 = vpop.permute.xlu0 %8196
    %8198 = vrot.lane.b32.xlu0 %v8121, 32
    %v8199 = vpop.permute.xlu0 %8198
    %8200 = vrot.lane.b32.xlu0 %v8122, 32
    %v8201 = vpop.permute.xlu0 %8200
    %8202 = vrot.lane.b32.xlu0 %v8123, 32
    %v8203 = vpop.permute.xlu0 %8202
    %8204 = vrot.lane.b32.xlu0 %v8124, 32
    %v8205 = vpop.permute.xlu0 %8204
    %8206 = vrot.lane.b32.xlu0 %v8125, 32
    %v8207 = vpop.permute.xlu0 %8206
    %8208 = vrot.lane.b32.xlu0 %v8126, 32
    %v8209 = vpop.permute.xlu0 %8208
    %8210 = vrot.lane.b32.xlu0 %v8127, 32
    %v8211 = vpop.permute.xlu0 %8210
    %8212 = vrot.lane.b32.xlu0 %v8128, 32
    %v8213 = vpop.permute.xlu0 %8212
    %8214 = vrot.lane.b32.xlu0 %v8129, 32
    %v8215 = vpop.permute.xlu0 %8214
    %8216 = vrot.lane.b32.xlu0 %v8130, 32
    %v8217 = vpop.permute.xlu0 %8216
    %8218 = vrot.lane.b32.xlu0 %v8131, 32
    %v8219 = vpop.permute.xlu0 %8218
    %8220 = vrot.lane.b32.xlu0 %v8132, 32
    %v8221 = vpop.permute.xlu0 %8220
    %8222 = vrot.lane.b32.xlu0 %v8133, 32
    %v8223 = vpop.permute.xlu0 %8222
    %8224 = vrot.lane.b32.xlu0 %v8134, 32
    %v8225 = vpop.permute.xlu0 %8224
    %8226 = vrot.lane.b32.xlu0 %v8135, 32
    %v8227 = vpop.permute.xlu0 %8226
    %8228 = vrot.lane.b32.xlu0 %v8136, 32
    %v8229 = vpop.permute.xlu0 %8228
    %8230 = vrot.lane.b32.xlu0 %v8137, 32
    %v8231 = vpop.permute.xlu0 %8230
    %8232 = vrot.lane.b32.xlu0 %v8138, 32
    %v8233 = vpop.permute.xlu0 %8232
    %8234 = vrot.lane.b32.xlu0 %v8139, 32
    %v8235 = vpop.permute.xlu0 %8234
    %v8268 = vsel %vm773, %v8173, 0.0
    %8269 = vadd.xlane.f32.xlu0 %v8268
    %v8270 = vpop.xlane.xlu0 %8269
    %v8271 = vsel %vm773, %v8175, 0.0
    %8272 = vadd.xlane.f32.xlu0 %v8271
    %v8273 = vpop.xlane.xlu0 %8272
    %v8274 = vsel %vm773, %v8177, 0.0
    %8275 = vadd.xlane.f32.xlu0 %v8274
    %v8276 = vpop.xlane.xlu0 %8275
    %v8277 = vsel %vm773, %v8179, 0.0
    %8278 = vadd.xlane.f32.xlu0 %v8277
    %v8279 = vpop.xlane.xlu0 %8278
    %v8280 = vsel %vm773, %v8181, 0.0
    %8281 = vadd.xlane.f32.xlu0 %v8280
    %v8282 = vpop.xlane.xlu0 %8281
    %v8283 = vsel %vm773, %v8183, 0.0
    %8284 = vadd.xlane.f32.xlu0 %v8283
    %v8285 = vpop.xlane.xlu0 %8284
    %v8286 = vsel %vm773, %v8185, 0.0
    %8287 = vadd.xlane.f32.xlu0 %v8286
    %v8288 = vpop.xlane.xlu0 %8287
    %v8289 = vsel %vm773, %v8187, 0.0
    %8290 = vadd.xlane.f32.xlu0 %v8289
    %v8291 = vpop.xlane.xlu0 %8290
    %v8292 = vsel %vm773, %v8189, 0.0
    %8293 = vadd.xlane.f32.xlu0 %v8292
    %v8294 = vpop.xlane.xlu0 %8293
    %v8295 = vsel %vm773, %v8191, 0.0
    %8296 = vadd.xlane.f32.xlu0 %v8295
    %v8297 = vpop.xlane.xlu0 %8296
    %v8298 = vsel %vm773, %v8193, 0.0
    %8299 = vadd.xlane.f32.xlu0 %v8298
    %v8300 = vpop.xlane.xlu0 %8299
    %v8301 = vsel %vm773, %v8195, 0.0
    %8302 = vadd.xlane.f32.xlu0 %v8301
    %v8303 = vpop.xlane.xlu0 %8302
    %v8304 = vsel %vm773, %v8197, 0.0
    %8305 = vadd.xlane.f32.xlu0 %v8304
    %v8306 = vpop.xlane.xlu0 %8305
    %v8307 = vsel %vm773, %v8199, 0.0
    %8308 = vadd.xlane.f32.xlu0 %v8307
    %v8309 = vpop.xlane.xlu0 %8308
    %v8310 = vsel %vm773, %v8201, 0.0
    %8311 = vadd.xlane.f32.xlu0 %v8310
    %v8312 = vpop.xlane.xlu0 %8311
    %v8313 = vsel %vm773, %v8203, 0.0
    %8314 = vadd.xlane.f32.xlu0 %v8313
    %v8315 = vpop.xlane.xlu0 %8314
    %v8316 = vsel %vm773, %v8205, 0.0
    %8317 = vadd.xlane.f32.xlu0 %v8316
    %v8318 = vpop.xlane.xlu0 %8317
    %v8319 = vsel %vm773, %v8207, 0.0
    %8320 = vadd.xlane.f32.xlu0 %v8319
    %v8321 = vpop.xlane.xlu0 %8320
    %v8322 = vsel %vm773, %v8209, 0.0
    %8323 = vadd.xlane.f32.xlu0 %v8322
    %v8324 = vpop.xlane.xlu0 %8323
    %v8325 = vsel %vm773, %v8211, 0.0
    %8326 = vadd.xlane.f32.xlu0 %v8325
    %v8327 = vpop.xlane.xlu0 %8326
    %v8328 = vsel %vm773, %v8213, 0.0
    %8329 = vadd.xlane.f32.xlu0 %v8328
    %v8330 = vpop.xlane.xlu0 %8329
    %v8331 = vsel %vm773, %v8215, 0.0
    %8332 = vadd.xlane.f32.xlu0 %v8331
    %v8333 = vpop.xlane.xlu0 %8332
    %v8334 = vsel %vm773, %v8217, 0.0
    %8335 = vadd.xlane.f32.xlu0 %v8334
    %v8336 = vpop.xlane.xlu0 %8335
    %v8337 = vsel %vm773, %v8219, 0.0
    %8338 = vadd.xlane.f32.xlu0 %v8337
    %v8339 = vpop.xlane.xlu0 %8338
    %v8340 = vsel %vm773, %v8221, 0.0
    %8341 = vadd.xlane.f32.xlu0 %v8340
    %v8342 = vpop.xlane.xlu0 %8341
    %v8343 = vsel %vm773, %v8223, 0.0
    %8344 = vadd.xlane.f32.xlu0 %v8343
    %v8345 = vpop.xlane.xlu0 %8344
    %v8346 = vsel %vm773, %v8225, 0.0
    %8347 = vadd.xlane.f32.xlu0 %v8346
    %v8348 = vpop.xlane.xlu0 %8347
    %v8349 = vsel %vm773, %v8227, 0.0
    %8350 = vadd.xlane.f32.xlu0 %v8349
    %v8351 = vpop.xlane.xlu0 %8350
    %v8352 = vsel %vm773, %v8229, 0.0
    %8353 = vadd.xlane.f32.xlu0 %v8352
    %v8354 = vpop.xlane.xlu0 %8353
    %v8355 = vsel %vm773, %v8231, 0.0
    %8356 = vadd.xlane.f32.xlu0 %v8355
    %v8357 = vpop.xlane.xlu0 %8356
    %v8358 = vsel %vm773, %v8233, 0.0
    %8359 = vadd.xlane.f32.xlu0 %v8358
    %v8360 = vpop.xlane.xlu0 %8359
    %v8361 = vsel %vm773, %v8235, 0.0
    %8362 = vadd.xlane.f32.xlu0 %v8361
    %v8363 = vpop.xlane.xlu0 %8362
    %v8396 = vlaneseq
    %v8397 = vshrl.u32 %v8396, 7
    %v8398 = vsub.s32 %v903, %v8397
    %v8399 = vrot.slane %v8270, %v8398
    %v8400 = vlaneseq
    %v8401 = vshrl.u32 %v8400, 7
    %v8402 = vsub.s32 %v908, %v8401
    %v8403 = vrot.slane %v8273, %v8402
    %v8404 = vsel %vm913, %v8403, %v8399
    %v8405 = vlaneseq
    %v8406 = vshrl.u32 %v8405, 7
    %v8407 = vsub.s32 %v903, %v8406
    %v8408 = vrot.slane %v8276, %v8407
    %v8409 = vlaneseq
    %v8410 = vshrl.u32 %v8409, 7
    %v8411 = vsub.s32 %v908, %v8410
    %v8412 = vrot.slane %v8279, %v8411
    %v8413 = vsel %vm913, %v8412, %v8408
    %v8414 = vlaneseq
    %v8415 = vshrl.u32 %v8414, 7
    %v8416 = vsub.s32 %v903, %v8415
    %v8417 = vrot.slane %v8282, %v8416
    %v8418 = vlaneseq
    %v8419 = vshrl.u32 %v8418, 7
    %v8420 = vsub.s32 %v908, %v8419
    %v8421 = vrot.slane %v8285, %v8420
    %v8422 = vsel %vm913, %v8421, %v8417
    %v8423 = vlaneseq
    %v8424 = vshrl.u32 %v8423, 7
    %v8425 = vsub.s32 %v903, %v8424
    %v8426 = vrot.slane %v8288, %v8425
    %v8427 = vlaneseq
    %v8428 = vshrl.u32 %v8427, 7
    %v8429 = vsub.s32 %v908, %v8428
    %v8430 = vrot.slane %v8291, %v8429
    %v8431 = vsel %vm913, %v8430, %v8426
    %v8432 = vlaneseq
    %v8433 = vshrl.u32 %v8432, 7
    %v8434 = vsub.s32 %v903, %v8433
    %v8435 = vrot.slane %v8294, %v8434
    %v8436 = vlaneseq
    %v8437 = vshrl.u32 %v8436, 7
    %v8438 = vsub.s32 %v908, %v8437
    %v8439 = vrot.slane %v8297, %v8438
    %v8440 = vsel %vm913, %v8439, %v8435
    %v8441 = vlaneseq
    %v8442 = vshrl.u32 %v8441, 7
    %v8443 = vsub.s32 %v903, %v8442
    %v8444 = vrot.slane %v8300, %v8443
    %v8445 = vlaneseq
    %v8446 = vshrl.u32 %v8445, 7
    %v8447 = vsub.s32 %v908, %v8446
    %v8448 = vrot.slane %v8303, %v8447
    %v8449 = vsel %vm913, %v8448, %v8444
    %v8450 = vlaneseq
    %v8451 = vshrl.u32 %v8450, 7
    %v8452 = vsub.s32 %v903, %v8451
    %v8453 = vrot.slane %v8306, %v8452
    %v8454 = vlaneseq
    %v8455 = vshrl.u32 %v8454, 7
    %v8456 = vsub.s32 %v908, %v8455
    %v8457 = vrot.slane %v8309, %v8456
    %v8458 = vsel %vm913, %v8457, %v8453
    %v8459 = vlaneseq
    %v8460 = vshrl.u32 %v8459, 7
    %v8461 = vsub.s32 %v903, %v8460
    %v8462 = vrot.slane %v8312, %v8461
    %v8463 = vlaneseq
    %v8464 = vshrl.u32 %v8463, 7
    %v8465 = vsub.s32 %v908, %v8464
    %v8466 = vrot.slane %v8315, %v8465
    %v8467 = vsel %vm913, %v8466, %v8462
    %v8468 = vlaneseq
    %v8469 = vshrl.u32 %v8468, 7
    %v8470 = vsub.s32 %v903, %v8469
    %v8471 = vrot.slane %v8318, %v8470
    %v8472 = vlaneseq
    %v8473 = vshrl.u32 %v8472, 7
    %v8474 = vsub.s32 %v908, %v8473
    %v8475 = vrot.slane %v8321, %v8474
    %v8476 = vsel %vm913, %v8475, %v8471
    %v8477 = vlaneseq
    %v8478 = vshrl.u32 %v8477, 7
    %v8479 = vsub.s32 %v903, %v8478
    %v8480 = vrot.slane %v8324, %v8479
    %v8481 = vlaneseq
    %v8482 = vshrl.u32 %v8481, 7
    %v8483 = vsub.s32 %v908, %v8482
    %v8484 = vrot.slane %v8327, %v8483
    %v8485 = vsel %vm913, %v8484, %v8480
    %v8486 = vlaneseq
    %v8487 = vshrl.u32 %v8486, 7
    %v8488 = vsub.s32 %v903, %v8487
    %v8489 = vrot.slane %v8330, %v8488
    %v8490 = vlaneseq
    %v8491 = vshrl.u32 %v8490, 7
    %v8492 = vsub.s32 %v908, %v8491
    %v8493 = vrot.slane %v8333, %v8492
    %v8494 = vsel %vm913, %v8493, %v8489
    %v8495 = vlaneseq
    %v8496 = vshrl.u32 %v8495, 7
    %v8497 = vsub.s32 %v903, %v8496
    %v8498 = vrot.slane %v8336, %v8497
    %v8499 = vlaneseq
    %v8500 = vshrl.u32 %v8499, 7
    %v8501 = vsub.s32 %v908, %v8500
    %v8502 = vrot.slane %v8339, %v8501
    %v8503 = vsel %vm913, %v8502, %v8498
    %v8504 = vlaneseq
    %v8505 = vshrl.u32 %v8504, 7
    %v8506 = vsub.s32 %v903, %v8505
    %v8507 = vrot.slane %v8342, %v8506
    %v8508 = vlaneseq
    %v8509 = vshrl.u32 %v8508, 7
    %v8510 = vsub.s32 %v908, %v8509
    %v8511 = vrot.slane %v8345, %v8510
    %v8512 = vsel %vm913, %v8511, %v8507
    %v8513 = vlaneseq
    %v8514 = vshrl.u32 %v8513, 7
    %v8515 = vsub.s32 %v903, %v8514
    %v8516 = vrot.slane %v8348, %v8515
    %v8517 = vlaneseq
    %v8518 = vshrl.u32 %v8517, 7
    %v8519 = vsub.s32 %v908, %v8518
    %v8520 = vrot.slane %v8351, %v8519
    %v8521 = vsel %vm913, %v8520, %v8516
    %v8522 = vlaneseq
    %v8523 = vshrl.u32 %v8522, 7
    %v8524 = vsub.s32 %v903, %v8523
    %v8525 = vrot.slane %v8354, %v8524
    %v8526 = vlaneseq
    %v8527 = vshrl.u32 %v8526, 7
    %v8528 = vsub.s32 %v908, %v8527
    %v8529 = vrot.slane %v8357, %v8528
    %v8530 = vsel %vm913, %v8529, %v8525
    %v8531 = vlaneseq
    %v8532 = vshrl.u32 %v8531, 7
    %v8533 = vsub.s32 %v903, %v8532
    %v8534 = vrot.slane %v8360, %v8533
    %v8535 = vlaneseq
    %v8536 = vshrl.u32 %v8535, 7
    %v8537 = vsub.s32 %v908, %v8536
    %v8538 = vrot.slane %v8363, %v8537
    %v8539 = vsel %vm913, %v8538, %v8534
    %v8540 = vsel %vm1050, %v8413, %v8404
    %v8541 = vsel %vm1052, %v8422, %v8540
    %v8542 = vsel %vm1054, %v8431, %v8541
    %v8543 = vsel %vm1056, %v8440, %v8542
    %v8544 = vsel %vm1058, %v8449, %v8543
    %v8545 = vsel %vm1060, %v8458, %v8544
    %v8546 = vsel %vm1062, %v8467, %v8545
    %v8547 = vsel %vm1050, %v8485, %v8476
    %v8548 = vsel %vm1052, %v8494, %v8547
    %v8549 = vsel %vm1054, %v8503, %v8548
    %v8550 = vsel %vm1056, %v8512, %v8549
    %v8551 = vsel %vm1058, %v8521, %v8550
    %v8552 = vsel %vm1060, %v8530, %v8551
    %v8553 = vsel %vm1062, %v8539, %v8552
    %v8556 = vsel %vm288, %v8546, -1e+30
    %v8557 = vsel %vm289, %v8553, -1e+30
    %v8558 = vsel %vm1075, %v8556, -inf
    %8559 = vmax.xlane.f32.xlu0 %v8558
    %v8560 = vpop.xlane.xlu0 %8559
    %v8561 = vsel %vm1075, %v8557, -inf
    %8562 = vmax.xlane.f32.xlu0 %v8561
    %v8563 = vpop.xlane.xlu0 %8562
    %v8564 = vsub.f32 %v8556, %v8560
    %v8565 = vsub.f32 %v8557, %v8563
    %v8566 = vmul.f32 %v8564, 1.442695
    %v8567 = vpow.pop %v8566
    %v8568 = vmul.f32 %v8565, 1.442695
    %v8569 = vpow.pop %v8568
    %v8570 = vsel %vm1075, %v8567, 0.0
    %8571 = vadd.xlane.f32.xlu0 %v8570
    %v8572 = vpop.xlane.xlu0 %8571
    %v8573 = vsel %vm1075, %v8569, 0.0
    %8574 = vadd.xlane.f32.xlu0 %v8573
    %v8575 = vpop.xlane.xlu0 %8574
    %v8576 = vrcp.pop %v8572
    %v8577 = vrcp.pop %v8575
    %v8578 = vmul.f32 %v8567, %v8576
    %v8579 = vmul.f32 %v8569, %v8577
    %v8582 = vcombine.high %v6474, %v6474
    %v8584 = vunpack.c.l.s4 1966171168
    %v8585 = vunpack.c.0.s8 %v8584
    %v8586 = vlaneseq
    %v8587 = vshrl.u32 %v8586, 7
    %v8588 = vsub.s32 %v8585, %v8587
    %v8589 = vrot.slane %v6474, %v8588
    %v8591 = vunpack.c.l.s4 1966171168
    %v8592 = vunpack.c.0.s8 %v8591
    %v8593 = vlaneseq
    %v8594 = vshrl.u32 %v8593, 7
    %v8595 = vsub.s32 %v8592, %v8594
    %v8596 = vrot.slane %v8582, %v8595
    %v8597 = vcombine.high %v8589, %v8589
    %v8598 = vcombine.high %v8596, %v8596
    %v8600 = vunpack.c.l.s4 1966171168
    %v8601 = vunpack.c.0.s8 %v8600
    %v8602 = vlaneseq
    %v8603 = vshrl.u32 %v8602, 7
    %v8604 = vsub.s32 %v8601, %v8603
    %v8605 = vrot.slane %v8589, %v8604
    %v8607 = vunpack.c.l.s4 1966171168
    %v8608 = vunpack.c.0.s8 %v8607
    %v8609 = vlaneseq
    %v8610 = vshrl.u32 %v8609, 7
    %v8611 = vsub.s32 %v8608, %v8610
    %v8612 = vrot.slane %v8596, %v8611
    %v8614 = vunpack.c.l.s4 1966171168
    %v8615 = vunpack.c.0.s8 %v8614
    %v8616 = vlaneseq
    %v8617 = vshrl.u32 %v8616, 7
    %v8618 = vsub.s32 %v8615, %v8617
    %v8619 = vrot.slane %v8597, %v8618
    %v8621 = vunpack.c.l.s4 1966171168
    %v8622 = vunpack.c.0.s8 %v8621
    %v8623 = vlaneseq
    %v8624 = vshrl.u32 %v8623, 7
    %v8625 = vsub.s32 %v8622, %v8624
    %v8626 = vrot.slane %v8598, %v8625
    %v8627 = vcombine.high %v8605, %v8605
    %v8628 = vcombine.high %v8612, %v8612
    %v8629 = vcombine.high %v8619, %v8619
    %v8630 = vcombine.high %v8626, %v8626
    %v8631 = vcombine.high %v6478, %v6478
    %v8633 = vunpack.c.l.s4 1966171168
    %v8634 = vunpack.c.0.s8 %v8633
    %v8635 = vlaneseq
    %v8636 = vshrl.u32 %v8635, 7
    %v8637 = vsub.s32 %v8634, %v8636
    %v8638 = vrot.slane %v6478, %v8637
    %v8640 = vunpack.c.l.s4 1966171168
    %v8641 = vunpack.c.0.s8 %v8640
    %v8642 = vlaneseq
    %v8643 = vshrl.u32 %v8642, 7
    %v8644 = vsub.s32 %v8641, %v8643
    %v8645 = vrot.slane %v8631, %v8644
    %v8646 = vcombine.high %v8638, %v8638
    %v8647 = vcombine.high %v8645, %v8645
    %v8649 = vunpack.c.l.s4 1966171168
    %v8650 = vunpack.c.0.s8 %v8649
    %v8651 = vlaneseq
    %v8652 = vshrl.u32 %v8651, 7
    %v8653 = vsub.s32 %v8650, %v8652
    %v8654 = vrot.slane %v8638, %v8653
    %v8656 = vunpack.c.l.s4 1966171168
    %v8657 = vunpack.c.0.s8 %v8656
    %v8658 = vlaneseq
    %v8659 = vshrl.u32 %v8658, 7
    %v8660 = vsub.s32 %v8657, %v8659
    %v8661 = vrot.slane %v8645, %v8660
    %v8663 = vunpack.c.l.s4 1966171168
    %v8664 = vunpack.c.0.s8 %v8663
    %v8665 = vlaneseq
    %v8666 = vshrl.u32 %v8665, 7
    %v8667 = vsub.s32 %v8664, %v8666
    %v8668 = vrot.slane %v8646, %v8667
    %v8670 = vunpack.c.l.s4 1966171168
    %v8671 = vunpack.c.0.s8 %v8670
    %v8672 = vlaneseq
    %v8673 = vshrl.u32 %v8672, 7
    %v8674 = vsub.s32 %v8671, %v8673
    %v8675 = vrot.slane %v8647, %v8674
    %v8676 = vcombine.high %v8654, %v8654
    %v8677 = vcombine.high %v8661, %v8661
    %v8678 = vcombine.high %v8668, %v8668
    %v8679 = vcombine.high %v8675, %v8675
    %v8680 = vlaneseq
    %v8681 = vshrl.u32 %v8680, 7
    %v8682 = vsub.s32 0, %v8681
    %v8683 = vrot.slane %v8605, %v8682
    %v8684 = vlaneseq
    %v8685 = vshrl.u32 %v8684, 7
    %v8686 = vsub.s32 0, %v8685
    %v8687 = vrot.slane %v8619, %v8686
    %v8688 = vlaneseq
    %v8689 = vshrl.u32 %v8688, 7
    %v8690 = vsub.s32 0, %v8689
    %v8691 = vrot.slane %v8627, %v8690
    %v8692 = vlaneseq
    %v8693 = vshrl.u32 %v8692, 7
    %v8694 = vsub.s32 0, %v8693
    %v8695 = vrot.slane %v8629, %v8694
    %v8696 = vlaneseq
    %v8697 = vshrl.u32 %v8696, 7
    %v8698 = vsub.s32 0, %v8697
    %v8699 = vrot.slane %v8612, %v8698
    %v8700 = vlaneseq
    %v8701 = vshrl.u32 %v8700, 7
    %v8702 = vsub.s32 0, %v8701
    %v8703 = vrot.slane %v8626, %v8702
    %v8704 = vlaneseq
    %v8705 = vshrl.u32 %v8704, 7
    %v8706 = vsub.s32 0, %v8705
    %v8707 = vrot.slane %v8628, %v8706
    %v8708 = vlaneseq
    %v8709 = vshrl.u32 %v8708, 7
    %v8710 = vsub.s32 0, %v8709
    %v8711 = vrot.slane %v8630, %v8710
    %v8712 = vlaneseq
    %v8713 = vshrl.u32 %v8712, 7
    %v8714 = vsub.s32 0, %v8713
    %v8715 = vrot.slane %v8654, %v8714
    %v8716 = vlaneseq
    %v8717 = vshrl.u32 %v8716, 7
    %v8718 = vsub.s32 0, %v8717
    %v8719 = vrot.slane %v8668, %v8718
    %v8720 = vlaneseq
    %v8721 = vshrl.u32 %v8720, 7
    %v8722 = vsub.s32 0, %v8721
    %v8723 = vrot.slane %v8676, %v8722
    %v8724 = vlaneseq
    %v8725 = vshrl.u32 %v8724, 7
    %v8726 = vsub.s32 0, %v8725
    %v8727 = vrot.slane %v8678, %v8726
    %v8728 = vlaneseq
    %v8729 = vshrl.u32 %v8728, 7
    %v8730 = vsub.s32 0, %v8729
    %v8731 = vrot.slane %v8661, %v8730
    %v8732 = vlaneseq
    %v8733 = vshrl.u32 %v8732, 7
    %v8734 = vsub.s32 0, %v8733
    %v8735 = vrot.slane %v8675, %v8734
    %v8736 = vlaneseq
    %v8737 = vshrl.u32 %v8736, 7
    %v8738 = vsub.s32 0, %v8737
    %v8739 = vrot.slane %v8677, %v8738
    %v8740 = vlaneseq
    %v8741 = vshrl.u32 %v8740, 7
    %v8742 = vsub.s32 0, %v8741
    %v8743 = vrot.slane %v8679, %v8742
    %v8760 = vadd.f32 %v8683, %v6407
    %v8761 = vadd.f32 %v8683, %v6411
    %v8762 = vadd.f32 %v8687, %v6407
    %v8763 = vadd.f32 %v8687, %v6411
    %v8764 = vadd.f32 %v8691, %v6407
    %v8765 = vadd.f32 %v8691, %v6411
    %v8766 = vadd.f32 %v8695, %v6407
    %v8767 = vadd.f32 %v8695, %v6411
    %v8768 = vadd.f32 %v8699, %v6407
    %v8769 = vadd.f32 %v8699, %v6411
    %v8770 = vadd.f32 %v8703, %v6407
    %v8771 = vadd.f32 %v8703, %v6411
    %v8772 = vadd.f32 %v8707, %v6407
    %v8773 = vadd.f32 %v8707, %v6411
    %v8774 = vadd.f32 %v8711, %v6407
    %v8775 = vadd.f32 %v8711, %v6411
    %v8776 = vadd.f32 %v8715, %v6407
    %v8777 = vadd.f32 %v8715, %v6411
    %v8778 = vadd.f32 %v8719, %v6407
    %v8779 = vadd.f32 %v8719, %v6411
    %v8780 = vadd.f32 %v8723, %v6407
    %v8781 = vadd.f32 %v8723, %v6411
    %v8782 = vadd.f32 %v8727, %v6407
    %v8783 = vadd.f32 %v8727, %v6411
    %v8784 = vadd.f32 %v8731, %v6407
    %v8785 = vadd.f32 %v8731, %v6411
    %v8786 = vadd.f32 %v8735, %v6407
    %v8787 = vadd.f32 %v8735, %v6411
    %v8788 = vadd.f32 %v8739, %v6407
    %v8789 = vadd.f32 %v8739, %v6411
    %v8790 = vadd.f32 %v8743, %v6407
    %v8791 = vadd.f32 %v8743, %v6411
    %vm8792 = vcmp.gt.f32.partialorder %v8760, 0.0
    %vm8793 = vcmp.gt.f32.partialorder %v8761, 0.0
    %vm8794 = vcmp.gt.f32.partialorder %v8762, 0.0
    %vm8795 = vcmp.gt.f32.partialorder %v8763, 0.0
    %vm8796 = vcmp.gt.f32.partialorder %v8764, 0.0
    %vm8797 = vcmp.gt.f32.partialorder %v8765, 0.0
    %vm8798 = vcmp.gt.f32.partialorder %v8766, 0.0
    %vm8799 = vcmp.gt.f32.partialorder %v8767, 0.0
    %vm8800 = vcmp.gt.f32.partialorder %v8768, 0.0
    %vm8801 = vcmp.gt.f32.partialorder %v8769, 0.0
    %vm8802 = vcmp.gt.f32.partialorder %v8770, 0.0
    %vm8803 = vcmp.gt.f32.partialorder %v8771, 0.0
    %vm8804 = vcmp.gt.f32.partialorder %v8772, 0.0
    %vm8805 = vcmp.gt.f32.partialorder %v8773, 0.0
    %vm8806 = vcmp.gt.f32.partialorder %v8774, 0.0
    %vm8807 = vcmp.gt.f32.partialorder %v8775, 0.0
    %vm8808 = vcmp.gt.f32.partialorder %v8776, 0.0
    %vm8809 = vcmp.gt.f32.partialorder %v8777, 0.0
    %vm8810 = vcmp.gt.f32.partialorder %v8778, 0.0
    %vm8811 = vcmp.gt.f32.partialorder %v8779, 0.0
    %vm8812 = vcmp.gt.f32.partialorder %v8780, 0.0
    %vm8813 = vcmp.gt.f32.partialorder %v8781, 0.0
    %vm8814 = vcmp.gt.f32.partialorder %v8782, 0.0
    %vm8815 = vcmp.gt.f32.partialorder %v8783, 0.0
    %vm8816 = vcmp.gt.f32.partialorder %v8784, 0.0
    %vm8817 = vcmp.gt.f32.partialorder %v8785, 0.0
    %vm8818 = vcmp.gt.f32.partialorder %v8786, 0.0
    %vm8819 = vcmp.gt.f32.partialorder %v8787, 0.0
    %vm8820 = vcmp.gt.f32.partialorder %v8788, 0.0
    %vm8821 = vcmp.gt.f32.partialorder %v8789, 0.0
    %vm8822 = vcmp.gt.f32.partialorder %v8790, 0.0
    %vm8823 = vcmp.gt.f32.partialorder %v8791, 0.0
    %v8824 = vmul.f32 %v8760, 0.2
    %v8825 = vmul.f32 %v8761, 0.2
    %v8826 = vmul.f32 %v8762, 0.2
    %v8827 = vmul.f32 %v8763, 0.2
    %v8828 = vmul.f32 %v8764, 0.2
    %v8829 = vmul.f32 %v8765, 0.2
    %v8830 = vmul.f32 %v8766, 0.2
    %v8831 = vmul.f32 %v8767, 0.2
    %v8832 = vmul.f32 %v8768, 0.2
    %v8833 = vmul.f32 %v8769, 0.2
    %v8834 = vmul.f32 %v8770, 0.2
    %v8835 = vmul.f32 %v8771, 0.2
    %v8836 = vmul.f32 %v8772, 0.2
    %v8837 = vmul.f32 %v8773, 0.2
    %v8838 = vmul.f32 %v8774, 0.2
    %v8839 = vmul.f32 %v8775, 0.2
    %v8840 = vmul.f32 %v8776, 0.2
    %v8841 = vmul.f32 %v8777, 0.2
    %v8842 = vmul.f32 %v8778, 0.2
    %v8843 = vmul.f32 %v8779, 0.2
    %v8844 = vmul.f32 %v8780, 0.2
    %v8845 = vmul.f32 %v8781, 0.2
    %v8846 = vmul.f32 %v8782, 0.2
    %v8847 = vmul.f32 %v8783, 0.2
    %v8848 = vmul.f32 %v8784, 0.2
    %v8849 = vmul.f32 %v8785, 0.2
    %v8850 = vmul.f32 %v8786, 0.2
    %v8851 = vmul.f32 %v8787, 0.2
    %v8852 = vmul.f32 %v8788, 0.2
    %v8853 = vmul.f32 %v8789, 0.2
    %v8854 = vmul.f32 %v8790, 0.2
    %v8855 = vmul.f32 %v8791, 0.2
    %v8856 = vsel %vm8792, %v8760, %v8824
    %v8857 = vsel %vm8793, %v8761, %v8825
    %v8858 = vsel %vm8794, %v8762, %v8826
    %v8859 = vsel %vm8795, %v8763, %v8827
    %v8860 = vsel %vm8796, %v8764, %v8828
    %v8861 = vsel %vm8797, %v8765, %v8829
    %v8862 = vsel %vm8798, %v8766, %v8830
    %v8863 = vsel %vm8799, %v8767, %v8831
    %v8864 = vsel %vm8800, %v8768, %v8832
    %v8865 = vsel %vm8801, %v8769, %v8833
    %v8866 = vsel %vm8802, %v8770, %v8834
    %v8867 = vsel %vm8803, %v8771, %v8835
    %v8868 = vsel %vm8804, %v8772, %v8836
    %v8869 = vsel %vm8805, %v8773, %v8837
    %v8870 = vsel %vm8806, %v8774, %v8838
    %v8871 = vsel %vm8807, %v8775, %v8839
    %v8872 = vsel %vm8808, %v8776, %v8840
    %v8873 = vsel %vm8809, %v8777, %v8841
    %v8874 = vsel %vm8810, %v8778, %v8842
    %v8875 = vsel %vm8811, %v8779, %v8843
    %v8876 = vsel %vm8812, %v8780, %v8844
    %v8877 = vsel %vm8813, %v8781, %v8845
    %v8878 = vsel %vm8814, %v8782, %v8846
    %v8879 = vsel %vm8815, %v8783, %v8847
    %v8880 = vsel %vm8816, %v8784, %v8848
    %v8881 = vsel %vm8817, %v8785, %v8849
    %v8882 = vsel %vm8818, %v8786, %v8850
    %v8883 = vsel %vm8819, %v8787, %v8851
    %v8884 = vsel %vm8820, %v8788, %v8852
    %v8885 = vsel %vm8821, %v8789, %v8853
    %v8886 = vsel %vm8822, %v8790, %v8854
    %v8887 = vsel %vm8823, %v8791, %v8855
    %v8888 = vld [vmem:[#allocation26 + $0x4] sm:$0x1]
    %v8889 = vlaneseq
    %v8890 = vshrl.u32 %v8889, 7
    %v8891 = vsub.s32 0, %v8890
    %v8892 = vrot.slane %v8888, %v8891
    %v8893 = vmul.f32 %v8856, %v8892
    %v8894 = vmul.f32 %v8857, %v8892
    %v8895 = vmul.f32 %v8858, %v8892
    %v8896 = vmul.f32 %v8859, %v8892
    %v8897 = vmul.f32 %v8860, %v8892
    %v8898 = vmul.f32 %v8861, %v8892
    %v8899 = vmul.f32 %v8862, %v8892
    %v8900 = vmul.f32 %v8863, %v8892
    %v8901 = vmul.f32 %v8864, %v8892
    %v8902 = vmul.f32 %v8865, %v8892
    %v8903 = vmul.f32 %v8866, %v8892
    %v8904 = vmul.f32 %v8867, %v8892
    %v8905 = vmul.f32 %v8868, %v8892
    %v8906 = vmul.f32 %v8869, %v8892
    %v8907 = vmul.f32 %v8870, %v8892
    %v8908 = vmul.f32 %v8871, %v8892
    %v8909 = vmul.f32 %v8872, %v8892
    %v8910 = vmul.f32 %v8873, %v8892
    %v8911 = vmul.f32 %v8874, %v8892
    %v8912 = vmul.f32 %v8875, %v8892
    %v8913 = vmul.f32 %v8876, %v8892
    %v8914 = vmul.f32 %v8877, %v8892
    %v8915 = vmul.f32 %v8878, %v8892
    %v8916 = vmul.f32 %v8879, %v8892
    %v8917 = vmul.f32 %v8880, %v8892
    %v8918 = vmul.f32 %v8881, %v8892
    %v8919 = vmul.f32 %v8882, %v8892
    %v8920 = vmul.f32 %v8883, %v8892
    %v8921 = vmul.f32 %v8884, %v8892
    %v8922 = vmul.f32 %v8885, %v8892
    %v8923 = vmul.f32 %v8886, %v8892
    %v8924 = vmul.f32 %v8887, %v8892
    %v8925 = vsel %vm773, %v8893, 0.0
    %8926 = vadd.xlane.f32.xlu0 %v8925
    %v8927 = vpop.xlane.xlu0 %8926
    %v8928 = vsel %vm773, %v8894, 0.0
    %8929 = vadd.xlane.f32.xlu0 %v8928
    %v8930 = vpop.xlane.xlu0 %8929
    %v8931 = vsel %vm773, %v8895, 0.0
    %8932 = vadd.xlane.f32.xlu0 %v8931
    %v8933 = vpop.xlane.xlu0 %8932
    %v8934 = vsel %vm773, %v8896, 0.0
    %8935 = vadd.xlane.f32.xlu0 %v8934
    %v8936 = vpop.xlane.xlu0 %8935
    %v8937 = vsel %vm773, %v8897, 0.0
    %8938 = vadd.xlane.f32.xlu0 %v8937
    %v8939 = vpop.xlane.xlu0 %8938
    %v8940 = vsel %vm773, %v8898, 0.0
    %8941 = vadd.xlane.f32.xlu0 %v8940
    %v8942 = vpop.xlane.xlu0 %8941
    %v8943 = vsel %vm773, %v8899, 0.0
    %8944 = vadd.xlane.f32.xlu0 %v8943
    %v8945 = vpop.xlane.xlu0 %8944
    %v8946 = vsel %vm773, %v8900, 0.0
    %8947 = vadd.xlane.f32.xlu0 %v8946
    %v8948 = vpop.xlane.xlu0 %8947
    %v8949 = vsel %vm773, %v8901, 0.0
    %8950 = vadd.xlane.f32.xlu0 %v8949
    %v8951 = vpop.xlane.xlu0 %8950
    %v8952 = vsel %vm773, %v8902, 0.0
    %8953 = vadd.xlane.f32.xlu0 %v8952
    %v8954 = vpop.xlane.xlu0 %8953
    %v8955 = vsel %vm773, %v8903, 0.0
    %8956 = vadd.xlane.f32.xlu0 %v8955
    %v8957 = vpop.xlane.xlu0 %8956
    %v8958 = vsel %vm773, %v8904, 0.0
    %8959 = vadd.xlane.f32.xlu0 %v8958
    %v8960 = vpop.xlane.xlu0 %8959
    %v8961 = vsel %vm773, %v8905, 0.0
    %8962 = vadd.xlane.f32.xlu0 %v8961
    %v8963 = vpop.xlane.xlu0 %8962
    %v8964 = vsel %vm773, %v8906, 0.0
    %8965 = vadd.xlane.f32.xlu0 %v8964
    %v8966 = vpop.xlane.xlu0 %8965
    %v8967 = vsel %vm773, %v8907, 0.0
    %8968 = vadd.xlane.f32.xlu0 %v8967
    %v8969 = vpop.xlane.xlu0 %8968
    %v8970 = vsel %vm773, %v8908, 0.0
    %8971 = vadd.xlane.f32.xlu0 %v8970
    %v8972 = vpop.xlane.xlu0 %8971
    %v8973 = vsel %vm773, %v8909, 0.0
    %8974 = vadd.xlane.f32.xlu0 %v8973
    %v8975 = vpop.xlane.xlu0 %8974
    %v8976 = vsel %vm773, %v8910, 0.0
    %8977 = vadd.xlane.f32.xlu0 %v8976
    %v8978 = vpop.xlane.xlu0 %8977
    %v8979 = vsel %vm773, %v8911, 0.0
    %8980 = vadd.xlane.f32.xlu0 %v8979
    %v8981 = vpop.xlane.xlu0 %8980
    %v8982 = vsel %vm773, %v8912, 0.0
    %8983 = vadd.xlane.f32.xlu0 %v8982
    %v8984 = vpop.xlane.xlu0 %8983
    %v8985 = vsel %vm773, %v8913, 0.0
    %8986 = vadd.xlane.f32.xlu0 %v8985
    %v8987 = vpop.xlane.xlu0 %8986
    %v8988 = vsel %vm773, %v8914, 0.0
    %8989 = vadd.xlane.f32.xlu0 %v8988
    %v8990 = vpop.xlane.xlu0 %8989
    %v8991 = vsel %vm773, %v8915, 0.0
    %8992 = vadd.xlane.f32.xlu0 %v8991
    %v8993 = vpop.xlane.xlu0 %8992
    %v8994 = vsel %vm773, %v8916, 0.0
    %8995 = vadd.xlane.f32.xlu0 %v8994
    %v8996 = vpop.xlane.xlu0 %8995
    %v8997 = vsel %vm773, %v8917, 0.0
    %8998 = vadd.xlane.f32.xlu0 %v8997
    %v8999 = vpop.xlane.xlu0 %8998
    %v9000 = vsel %vm773, %v8918, 0.0
    %9001 = vadd.xlane.f32.xlu0 %v9000
    %v9002 = vpop.xlane.xlu0 %9001
    %v9003 = vsel %vm773, %v8919, 0.0
    %9004 = vadd.xlane.f32.xlu0 %v9003
    %v9005 = vpop.xlane.xlu0 %9004
    %v9006 = vsel %vm773, %v8920, 0.0
    %9007 = vadd.xlane.f32.xlu0 %v9006
    %v9008 = vpop.xlane.xlu0 %9007
    %v9009 = vsel %vm773, %v8921, 0.0
    %9010 = vadd.xlane.f32.xlu0 %v9009
    %v9011 = vpop.xlane.xlu0 %9010
    %v9012 = vsel %vm773, %v8922, 0.0
    %9013 = vadd.xlane.f32.xlu0 %v9012
    %v9014 = vpop.xlane.xlu0 %9013
    %v9015 = vsel %vm773, %v8923, 0.0
    %9016 = vadd.xlane.f32.xlu0 %v9015
    %v9017 = vpop.xlane.xlu0 %9016
    %v9018 = vsel %vm773, %v8924, 0.0
    %9019 = vadd.xlane.f32.xlu0 %v9018
    %v9020 = vpop.xlane.xlu0 %9019
    %v9053 = vlaneseq
    %v9054 = vshrl.u32 %v9053, 7
    %v9055 = vsub.s32 %v903, %v9054
    %v9056 = vrot.slane %v8927, %v9055
    %v9057 = vlaneseq
    %v9058 = vshrl.u32 %v9057, 7
    %v9059 = vsub.s32 %v908, %v9058
    %v9060 = vrot.slane %v8930, %v9059
    %v9061 = vsel %vm913, %v9060, %v9056
    %v9062 = vlaneseq
    %v9063 = vshrl.u32 %v9062, 7
    %v9064 = vsub.s32 %v903, %v9063
    %v9065 = vrot.slane %v8933, %v9064
    %v9066 = vlaneseq
    %v9067 = vshrl.u32 %v9066, 7
    %v9068 = vsub.s32 %v908, %v9067
    %v9069 = vrot.slane %v8936, %v9068
    %v9070 = vsel %vm913, %v9069, %v9065
    %v9071 = vlaneseq
    %v9072 = vshrl.u32 %v9071, 7
    %v9073 = vsub.s32 %v903, %v9072
    %v9074 = vrot.slane %v8939, %v9073
    %v9075 = vlaneseq
    %v9076 = vshrl.u32 %v9075, 7
    %v9077 = vsub.s32 %v908, %v9076
    %v9078 = vrot.slane %v8942, %v9077
    %v9079 = vsel %vm913, %v9078, %v9074
    %v9080 = vlaneseq
    %v9081 = vshrl.u32 %v9080, 7
    %v9082 = vsub.s32 %v903, %v9081
    %v9083 = vrot.slane %v8945, %v9082
    %v9084 = vlaneseq
    %v9085 = vshrl.u32 %v9084, 7
    %v9086 = vsub.s32 %v908, %v9085
    %v9087 = vrot.slane %v8948, %v9086
    %v9088 = vsel %vm913, %v9087, %v9083
    %v9089 = vlaneseq
    %v9090 = vshrl.u32 %v9089, 7
    %v9091 = vsub.s32 %v903, %v9090
    %v9092 = vrot.slane %v8951, %v9091
    %v9093 = vlaneseq
    %v9094 = vshrl.u32 %v9093, 7
    %v9095 = vsub.s32 %v908, %v9094
    %v9096 = vrot.slane %v8954, %v9095
    %v9097 = vsel %vm913, %v9096, %v9092
    %v9098 = vlaneseq
    %v9099 = vshrl.u32 %v9098, 7
    %v9100 = vsub.s32 %v903, %v9099
    %v9101 = vrot.slane %v8957, %v9100
    %v9102 = vlaneseq
    %v9103 = vshrl.u32 %v9102, 7
    %v9104 = vsub.s32 %v908, %v9103
    %v9105 = vrot.slane %v8960, %v9104
    %v9106 = vsel %vm913, %v9105, %v9101
    %v9107 = vlaneseq
    %v9108 = vshrl.u32 %v9107, 7
    %v9109 = vsub.s32 %v903, %v9108
    %v9110 = vrot.slane %v8963, %v9109
    %v9111 = vlaneseq
    %v9112 = vshrl.u32 %v9111, 7
    %v9113 = vsub.s32 %v908, %v9112
    %v9114 = vrot.slane %v8966, %v9113
    %v9115 = vsel %vm913, %v9114, %v9110
    %v9116 = vlaneseq
    %v9117 = vshrl.u32 %v9116, 7
    %v9118 = vsub.s32 %v903, %v9117
    %v9119 = vrot.slane %v8969, %v9118
    %v9120 = vlaneseq
    %v9121 = vshrl.u32 %v9120, 7
    %v9122 = vsub.s32 %v908, %v9121
    %v9123 = vrot.slane %v8972, %v9122
    %v9124 = vsel %vm913, %v9123, %v9119
    %v9125 = vlaneseq
    %v9126 = vshrl.u32 %v9125, 7
    %v9127 = vsub.s32 %v903, %v9126
    %v9128 = vrot.slane %v8975, %v9127
    %v9129 = vlaneseq
    %v9130 = vshrl.u32 %v9129, 7
    %v9131 = vsub.s32 %v908, %v9130
    %v9132 = vrot.slane %v8978, %v9131
    %v9133 = vsel %vm913, %v9132, %v9128
    %v9134 = vlaneseq
    %v9135 = vshrl.u32 %v9134, 7
    %v9136 = vsub.s32 %v903, %v9135
    %v9137 = vrot.slane %v8981, %v9136
    %v9138 = vlaneseq
    %v9139 = vshrl.u32 %v9138, 7
    %v9140 = vsub.s32 %v908, %v9139
    %v9141 = vrot.slane %v8984, %v9140
    %v9142 = vsel %vm913, %v9141, %v9137
    %v9143 = vlaneseq
    %v9144 = vshrl.u32 %v9143, 7
    %v9145 = vsub.s32 %v903, %v9144
    %v9146 = vrot.slane %v8987, %v9145
    %v9147 = vlaneseq
    %v9148 = vshrl.u32 %v9147, 7
    %v9149 = vsub.s32 %v908, %v9148
    %v9150 = vrot.slane %v8990, %v9149
    %v9151 = vsel %vm913, %v9150, %v9146
    %v9152 = vlaneseq
    %v9153 = vshrl.u32 %v9152, 7
    %v9154 = vsub.s32 %v903, %v9153
    %v9155 = vrot.slane %v8993, %v9154
    %v9156 = vlaneseq
    %v9157 = vshrl.u32 %v9156, 7
    %v9158 = vsub.s32 %v908, %v9157
    %v9159 = vrot.slane %v8996, %v9158
    %v9160 = vsel %vm913, %v9159, %v9155
    %v9161 = vlaneseq
    %v9162 = vshrl.u32 %v9161, 7
    %v9163 = vsub.s32 %v903, %v9162
    %v9164 = vrot.slane %v8999, %v9163
    %v9165 = vlaneseq
    %v9166 = vshrl.u32 %v9165, 7
    %v9167 = vsub.s32 %v908, %v9166
    %v9168 = vrot.slane %v9002, %v9167
    %v9169 = vsel %vm913, %v9168, %v9164
    %v9170 = vlaneseq
    %v9171 = vshrl.u32 %v9170, 7
    %v9172 = vsub.s32 %v903, %v9171
    %v9173 = vrot.slane %v9005, %v9172
    %v9174 = vlaneseq
    %v9175 = vshrl.u32 %v9174, 7
    %v9176 = vsub.s32 %v908, %v9175
    %v9177 = vrot.slane %v9008, %v9176
    %v9178 = vsel %vm913, %v9177, %v9173
    %v9179 = vlaneseq
    %v9180 = vshrl.u32 %v9179, 7
    %v9181 = vsub.s32 %v903, %v9180
    %v9182 = vrot.slane %v9011, %v9181
    %v9183 = vlaneseq
    %v9184 = vshrl.u32 %v9183, 7
    %v9185 = vsub.s32 %v908, %v9184
    %v9186 = vrot.slane %v9014, %v9185
    %v9187 = vsel %vm913, %v9186, %v9182
    %v9188 = vlaneseq
    %v9189 = vshrl.u32 %v9188, 7
    %v9190 = vsub.s32 %v903, %v9189
    %v9191 = vrot.slane %v9017, %v9190
    %v9192 = vlaneseq
    %v9193 = vshrl.u32 %v9192, 7
    %v9194 = vsub.s32 %v908, %v9193
    %v9195 = vrot.slane %v9020, %v9194
    %v9196 = vsel %vm913, %v9195, %v9191
    %v9197 = vsel %vm1050, %v9070, %v9061
    %v9198 = vsel %vm1052, %v9079, %v9197
    %v9199 = vsel %vm1054, %v9088, %v9198
    %v9200 = vsel %vm1056, %v9097, %v9199
    %v9201 = vsel %vm1058, %v9106, %v9200
    %v9202 = vsel %vm1060, %v9115, %v9201
    %v9203 = vsel %vm1062, %v9124, %v9202
    %v9204 = vsel %vm1050, %v9142, %v9133
    %v9205 = vsel %vm1052, %v9151, %v9204
    %v9206 = vsel %vm1054, %v9160, %v9205
    %v9207 = vsel %vm1056, %v9169, %v9206
    %v9208 = vsel %vm1058, %v9178, %v9207
    %v9209 = vsel %vm1060, %v9187, %v9208
    %v9210 = vsel %vm1062, %v9196, %v9209
    %v9213 = vsel %vm288, %v9203, -1e+30
    %v9214 = vsel %vm289, %v9210, -1e+30
    %v9215 = vsel %vm1075, %v9213, -inf
    %9216 = vmax.xlane.f32.xlu0 %v9215
    %v9217 = vpop.xlane.xlu0 %9216
    %v9218 = vsel %vm1075, %v9214, -inf
    %9219 = vmax.xlane.f32.xlu0 %v9218
    %v9220 = vpop.xlane.xlu0 %9219
    %v9221 = vsub.f32 %v9213, %v9217
    %v9222 = vsub.f32 %v9214, %v9220
    %v9223 = vmul.f32 %v9221, 1.442695
    %v9224 = vpow.pop %v9223
    %v9225 = vmul.f32 %v9222, 1.442695
    %v9226 = vpow.pop %v9225
    %v9227 = vsel %vm1075, %v9224, 0.0
    %9228 = vadd.xlane.f32.xlu0 %v9227
    %v9229 = vpop.xlane.xlu0 %9228
    %v9230 = vsel %vm1075, %v9226, 0.0
    %9231 = vadd.xlane.f32.xlu0 %v9230
    %v9232 = vpop.xlane.xlu0 %9231
    %v9233 = vrcp.pop %v9229
    %v9234 = vrcp.pop %v9232
    %v9235 = vmul.f32 %v9224, %v9233
    %v9236 = vmul.f32 %v9226, %v9234
    %9239 = vrot.lane.b32.xlu0 %v7616, 16
    %v9240 = vpop.permute.xlu0 %9239
    %9241 = vrot.lane.b32.xlu0 %v7617, 16
    %v9242 = vpop.permute.xlu0 %9241
    %9247 = vrot.lane.b32.xlu0 %v8097, 32
    %v9248 = vpop.permute.xlu0 %9247
    %9249 = vrot.lane.b32.xlu0 %v8098, 32
    %v9250 = vpop.permute.xlu0 %9249
    %9255 = vrot.lane.b32.xlu0 %v8578, 48
    %v9256 = vpop.permute.xlu0 %9255
    %9257 = vrot.lane.b32.xlu0 %v8579, 48
    %v9258 = vpop.permute.xlu0 %9257
    %9263 = vrot.lane.b32.xlu0 %v9235, 64
    %v9264 = vpop.permute.xlu0 %9263
    %9265 = vrot.lane.b32.xlu0 %v9236, 64
    %v9266 = vpop.permute.xlu0 %9265
    %v9269 = vsel %vm1075, %v7135, %v9240
    %v9270 = vsel %vm1075, %v7136, %v9242
    %v9271 = vsel %vm773, %v9269, %v9248
    %v9272 = vsel %vm773, %v9270, %v9250
    %v9273 = vsel %vm3234, %v9271, %v9256
    %v9274 = vsel %vm3234, %v9272, %v9258
    %v9275 = vsel %vm3237, %v9273, %v9264
    %v9276 = vsel %vm3237, %v9274, %v9266
    %9279 = vrot.lane.b32.xlu0 %v6405, 96
    %v9280 = vpop.permute.xlu0 %9279
    %9281 = vrot.lane.b32.xlu0 %v6409, 96
    %v9282 = vpop.permute.xlu0 %9281
    %9285 = vrot.lane.b32.xlu0 %v6405, 64
    %v9286 = vpop.permute.xlu0 %9285
    %9287 = vrot.lane.b32.xlu0 %v6409, 64
    %v9288 = vpop.permute.xlu0 %9287
    %9291 = vrot.lane.b32.xlu0 %v6405, 32
    %v9292 = vpop.permute.xlu0 %9291
    %9293 = vrot.lane.b32.xlu0 %v6409, 32
    %v9294 = vpop.permute.xlu0 %9293
    %v9297 = vpack.c.bf16 %v9276, %v9275
    %v9298 = vpack.c.bf16 %v6409, %v6405
    %v9299 = vpack.c.bf16 %v9282, %v9280
    %v9300 = vpack.c.bf16 %v9288, %v9286
    %v9301 = vpack.c.bf16 %v9294, %v9292
    %v9302 = vpack.c.bf16 %v6411, %v6407
    %v9304 = vsel %vm3266, %v9297, 0
    %9306 = vmatprep.subr.bf16.mxu0 0
    %9307 = vmatpush1.bf16.msra.mxu0 %v9298
    %9308 = vmatprep.subr.bf16.mxu0 0
    %9309 = vmatpush1.bf16.msra.mxu0 %v9299
    %9310 = vmatprep.subr.bf16.mxu0 0
    %9311 = vmatpush1.bf16.msra.mxu0 %v9300
    %9312 = vmatprep.subr.bf16.mxu0 0
    %9313 = vmatpush1.bf16.msra.mxu0 %v9301
    %9314 = vmatprep.subr.bf16.mxu0 0
    %9315 = vmatpush1.bf16.msra.mxu0 %v9302
    %9316 = vmatprep.subr.bf16.mxu0 0
    %9317 = vmatpush1.bf16.msra.mxu0 0
    %9318 = vmatprep.subr.bf16.mxu0 0
    %9319 = vmatpush1.bf16.msra.mxu0 0
    %9320 = vmatprep.subr.bf16.mxu0 0
    %9321 = vmatpush1.bf16.msra.mxu0 0
    %9322 = vmatprep.subr.bf16.mxu0 0
    %9323 = vmatpush1.bf16.msra.mxu0 0
    %9324 = vmatprep.subr.bf16.mxu0 0
    %9325 = vmatpush1.bf16.msra.mxu0 0
    %9326 = vmatprep.subr.bf16.mxu0 0
    %9327 = vmatpush1.bf16.msra.mxu0 0
    %9328 = vmatprep.subr.bf16.mxu0 0
    %9329 = vmatpush1.bf16.msra.mxu0 0
    %9330 = vmatprep.subr.bf16.mxu0 0
    %9331 = vmatpush1.bf16.msra.mxu0 0
    %9332 = vmatprep.subr.bf16.mxu0 0
    %9333 = vmatpush1.bf16.msra.mxu0 0
    %9334 = vmatprep.subr.bf16.mxu0 0
    %9335 = vmatpush1.bf16.msra.mxu0 0
    %9336 = vmatprep.subr.bf16.mxu0 0
    %9337 = vmatpush1.bf16.msra.mxu0 0
    %9338 = vmatprep.mubr.bf16.mxu0 0
    %9339 = vmatmul.mubr.bf16.gmra.mrb[0].mxu0 %v9304
    %v9340 = vpop.f32.mrb[0].mxu0
    %v9341 = vadd.f32 0.0, %v9340
    %v9342 = vpop.f32.mrb[0].mxu0
    %v9343 = vpop.f32.mrb[0].mxu0
    %v9344 = vadd.f32 0.0, %v9343
    %v9345 = vpop.f32.mrb[0].mxu0
    %9346 = vdwg.mxu0
    %v9347 = vmul.f32 %v9341, 0.2
    %v9348 = vmul.f32 %v9344, 0.2
    %v9349 = vld [vmem:[%s20] sm:$0x1]
    %v9351 = vlaneseq
    %v9352 = vshrl.u32 %v9351, 7
    %v9353 = vsub.s32 0, %v9352
    %v9354 = vrot.slane %v9349, %v9353
    %v9356 = vadd.f32 %v9347, %v9354
    %v9357 = vadd.f32 %v9348, %v9354
    %v9358 = vld [vmem:[#allocation5] sm:$0x3]
    %v9359 = vpack.c.bf16 %v9358, %v9358
    %v9360 = vpack.c.bf16 %v9357, %v9356
    %v9362 = vsel %vm1075, %v9359, 0
    %9364 = vmatprep.subr.bf16.mxu0 0
    %9365 = vmatpush1.bf16.msra.mxu0 %v9360
    %9366 = vmatprep.subr.bf16.mxu0 0
    %9367 = vmatpush1.bf16.msra.mxu0 0
    %9368 = vmatprep.subr.bf16.mxu0 0
    %9369 = vmatpush1.bf16.msra.mxu0 0
    %9370 = vmatprep.subr.bf16.mxu0 0
    %9371 = vmatpush1.bf16.msra.mxu0 0
    %9372 = vmatprep.subr.bf16.mxu0 0
    %9373 = vmatpush1.bf16.msra.mxu0 0
    %9374 = vmatprep.subr.bf16.mxu0 0
    %9375 = vmatpush1.bf16.msra.mxu0 0
    %9376 = vmatprep.subr.bf16.mxu0 0
    %9377 = vmatpush1.bf16.msra.mxu0 0
    %9378 = vmatprep.subr.bf16.mxu0 0
    %9379 = vmatpush1.bf16.msra.mxu0 0
    %9380 = vmatprep.subr.bf16.mxu0 0
    %9381 = vmatpush1.bf16.msra.mxu0 0
    %9382 = vmatprep.subr.bf16.mxu0 0
    %9383 = vmatpush1.bf16.msra.mxu0 0
    %9384 = vmatprep.subr.bf16.mxu0 0
    %9385 = vmatpush1.bf16.msra.mxu0 0
    %9386 = vmatprep.subr.bf16.mxu0 0
    %9387 = vmatpush1.bf16.msra.mxu0 0
    %9388 = vmatprep.subr.bf16.mxu0 0
    %9389 = vmatpush1.bf16.msra.mxu0 0
    %9390 = vmatprep.subr.bf16.mxu0 0
    %9391 = vmatpush1.bf16.msra.mxu0 0
    %9392 = vmatprep.subr.bf16.mxu0 0
    %9393 = vmatpush1.bf16.msra.mxu0 0
    %9394 = vmatprep.subr.bf16.mxu0 0
    %9395 = vmatpush1.bf16.msra.mxu0 0
    %9396 = vmatprep.mubr.bf16.mxu0 0
    %9397 = vmatmul.mubr.bf16.gmra.mrb[0].mxu0 %v9362
    %v9398 = vpop.f32.mrb[0].mxu0
    %v9399 = vadd.f32 0.0, %v9398
    %v9400 = vpop.f32.mrb[0].mxu0
    %v9401 = vpop.f32.mrb[0].mxu0
    %v9402 = vpop.f32.mrb[0].mxu0
    %9403 = vdwg.mxu0
    %v9404 = vpack.c.bf16 %v9399, %v9399
    %v9405 = vld [vmem:[#allocation28] sm:$0xff]
    %v9406 = vld [vmem:[#allocation28 + $0x8] sm:$0xff]
    %v9407 = vld [vmem:[#allocation28 + $0x10] sm:$0xff]
    %v9408 = vld [vmem:[#allocation28 + $0x18] sm:$0xff]
    %v9409 = vpack.c.bf16 %v9406, %v9405
    %v9410 = vpack.c.bf16 %v9408, %v9407
    %v9411 = vld [vmem:[%s22] sm:$0x1]
    %v9413 = vlaneseq
    %v9414 = vshrl.u32 %v9413, 7
    %v9415 = vsub.s32 0, %v9414
    %v9416 = vrot.slane %v9411, %v9415
    %v9419 = vsel %vm773, %v9404, 0
    %9421 = vmatprep.subr.bf16.mxu0 0
    %9422 = vmatpush1.bf16.msra.mxu0 %v9409
    %9423 = vmatprep.subr.bf16.mxu0 0
    %9424 = vmatpush1.bf16.msra.mxu0 %v9410
    %9425 = vmatprep.subr.bf16.mxu0 0
    %9426 = vmatpush1.bf16.msra.mxu0 0
    %9427 = vmatprep.subr.bf16.mxu0 0
    %9428 = vmatpush1.bf16.msra.mxu0 0
    %9429 = vmatprep.subr.bf16.mxu0 0
    %9430 = vmatpush1.bf16.msra.mxu0 0
    %9431 = vmatprep.subr.bf16.mxu0 0
    %9432 = vmatpush1.bf16.msra.mxu0 0
    %9433 = vmatprep.subr.bf16.mxu0 0
    %9434 = vmatpush1.bf16.msra.mxu0 0
    %9435 = vmatprep.subr.bf16.mxu0 0
    %9436 = vmatpush1.bf16.msra.mxu0 0
    %9437 = vmatprep.subr.bf16.mxu0 0
    %9438 = vmatpush1.bf16.msra.mxu0 0
    %9439 = vmatprep.subr.bf16.mxu0 0
    %9440 = vmatpush1.bf16.msra.mxu0 0
    %9441 = vmatprep.subr.bf16.mxu0 0
    %9442 = vmatpush1.bf16.msra.mxu0 0
    %9443 = vmatprep.subr.bf16.mxu0 0
    %9444 = vmatpush1.bf16.msra.mxu0 0
    %9445 = vmatprep.subr.bf16.mxu0 0
    %9446 = vmatpush1.bf16.msra.mxu0 0
    %9447 = vmatprep.subr.bf16.mxu0 0
    %9448 = vmatpush1.bf16.msra.mxu0 0
    %9449 = vmatprep.subr.bf16.mxu0 0
    %9450 = vmatpush1.bf16.msra.mxu0 0
    %9451 = vmatprep.subr.bf16.mxu0 0
    %9452 = vmatpush1.bf16.msra.mxu0 0
    %9453 = vmatprep.mubr.bf16.mxu0 0
    %9454 = vmatmul.mubr.bf16.gmra.mrb[0].mxu0 %v9419
    %v9455 = vpop.f32.mrb[0].mxu0
    %v9456 = vadd.f32 %v9416, %v9455
    %v9457 = vpop.f32.mrb[0].mxu0
    %v9458 = vpop.f32.mrb[0].mxu0
    %v9459 = vpop.f32.mrb[0].mxu0
    %9460 = vdwg.mxu0
    %v9461 = vmax.f32 %v9456, 0.0
    %v9462 = vpack.c.bf16 %v9461, %v9461
    %v9463 = vld [vmem:[%s23] sm:$0xff]
    %v9464 = vld [vmem:[%s23 + $0x8] sm:$0xff]
    %v9465 = vld [vmem:[%s23 + $0x10] sm:$0xff]
    %v9466 = vld [vmem:[%s23 + $0x18] sm:$0xff]
    %v9467 = vpack.c.bf16 %v9464, %v9463
    %v9468 = vpack.c.bf16 %v9466, %v9465
    %v9469 = vld [vmem:[%s24] sm:$0x1]
    %v9471 = vlaneseq
    %v9472 = vshrl.u32 %v9471, 7
    %v9473 = vsub.s32 0, %v9472
    %v9474 = vrot.slane %v9469, %v9473
    %v9477 = vsel %vm773, %v9462, 0
    %9479 = vmatprep.subr.bf16.mxu0 0
    %9480 = vmatpush1.bf16.msra.mxu0 %v9467
    %9481 = vmatprep.subr.bf16.mxu0 0
    %9482 = vmatpush1.bf16.msra.mxu0 %v9468
    %9483 = vmatprep.subr.bf16.mxu0 0
    %9484 = vmatpush1.bf16.msra.mxu0 0
    %9485 = vmatprep.subr.bf16.mxu0 0
    %9486 = vmatpush1.bf16.msra.mxu0 0
    %9487 = vmatprep.subr.bf16.mxu0 0
    %9488 = vmatpush1.bf16.msra.mxu0 0
    %9489 = vmatprep.subr.bf16.mxu0 0
    %9490 = vmatpush1.bf16.msra.mxu0 0
    %9491 = vmatprep.subr.bf16.mxu0 0
    %9492 = vmatpush1.bf16.msra.mxu0 0
    %9493 = vmatprep.subr.bf16.mxu0 0
    %9494 = vmatpush1.bf16.msra.mxu0 0
    %9495 = vmatprep.subr.bf16.mxu0 0
    %9496 = vmatpush1.bf16.msra.mxu0 0
    %9497 = vmatprep.subr.bf16.mxu0 0
    %9498 = vmatpush1.bf16.msra.mxu0 0
    %9499 = vmatprep.subr.bf16.mxu0 0
    %9500 = vmatpush1.bf16.msra.mxu0 0
    %9501 = vmatprep.subr.bf16.mxu0 0
    %9502 = vmatpush1.bf16.msra.mxu0 0
    %9503 = vmatprep.subr.bf16.mxu0 0
    %9504 = vmatpush1.bf16.msra.mxu0 0
    %9505 = vmatprep.subr.bf16.mxu0 0
    %9506 = vmatpush1.bf16.msra.mxu0 0
    %9507 = vmatprep.subr.bf16.mxu0 0
    %9508 = vmatpush1.bf16.msra.mxu0 0
    %9509 = vmatprep.subr.bf16.mxu0 0
    %9510 = vmatpush1.bf16.msra.mxu0 0
    %9511 = vmatprep.mubr.bf16.mxu0 0
    %9512 = vmatmul.mubr.bf16.gmra.mrb[0].mxu0 %v9477
    %v9513 = vpop.f32.mrb[0].mxu0
    %v9514 = vadd.f32 %v9474, %v9513
    %v9515 = vpop.f32.mrb[0].mxu0
    %v9516 = vpop.f32.mrb[0].mxu0
    %v9517 = vpop.f32.mrb[0].mxu0
    %9518 = vdwg.mxu0
    %vm9519 = vcmask 123904
    %9520 = vst.msk [vmem:[#allocation29] sm:$0x3] %vm9519, %v9514
    // Predicated region
    $region170: #{tpu_custom_call.1} parent=1 // pred_check
      _
    $region171: #{tpu_custom_call.1} parent=1 // pred_check_branch
      %9522 = sbr.rel (0) target = $region173
    $region172: #{tpu_custom_call.1} parent=1 // pred_region
      %s9524 = ssub.s32 32, 32
      %9525 = vsyncadd [#allocation4], %s9524
      %s9527 = sshll.u32 [#allocation29], 4
      %s9528 = int_to_ptr.vmem [resolvable:$true] %s9527
      %9530 = dma.vmem_to_hbm [thread:$0]  %s9528, 32, %s25, [#allocation4]
    $region173: #{tpu_custom_call.1} parent=1 // pred_fallthru
      _
    // Predicated region
    $region174: #{tpu_custom_call.1} parent=1 // pred_check
      _
    $region175: #{tpu_custom_call.1} parent=1 // pred_check_branch
      %9532 = sbr.rel (0) target = $region177
    $region176: #{tpu_custom_call.1} parent=1 // pred_region
      %9533 = dma.done [#allocation4], 32
    $region177: #{tpu_custom_call.1} parent=1 // pred_fallthru
      _
    %9534 = vsyncpa [#allocation3], 1
    %9535 = vsyncpa [#allocation6], 1
    %9536 = vsyncpa [#allocation9], 1
    %9537 = vsyncpa [#allocation12], 1
    %9538 = vsyncpa [#allocation15], 1
    %9539 = vsyncpa [#allocation18], 1
    %9540 = vsyncpa [#allocation21], 1
    %9541 = vsyncpa [#allocation24], 1
    %9542 = vsyncpa [#allocation27], 1
    %9543 = vsyncpa [#allocation4], 1

</llo_original>
